<compile_context>
chip_gen: v6e
topology: v6e:2x2x1
jax: 0.10.0
libtpu: 0.0.40
codegen_flags: <defaults>
</compile_context>

<pallas_src>
import functools

import jax
import jax.numpy as jnp
from jax import lax
from jax.experimental import pallas as pl
from jax.experimental.pallas import tpu as pltpu


def _round_up(x, m):
    return ((x + m - 1) // m) * m


def _layer_norm_f32(v, g, b, eps):
    mu = jnp.mean(v, axis=-1, keepdims=True)
    vc = v - mu
    var = jnp.mean(vc * vc, axis=-1, keepdims=True)
    return vc * lax.rsqrt(var + eps) * g + b


# ----------------------- fused 2-layer transformer kernel -----------------------

def _encoder_kernel(x_ref, mask_ref,
                    w_qkv_ref, b_qkv_ref, w_o_ref, b_o_ref,
                    ln1_g_ref, ln1_b_ref,
                    w1_ref, b1_ref, w2_ref, b2_ref,
                    ln2_g_ref, ln2_b_ref,
                    o_ref, attn_scratch,
                    *, nhead, num_layers, eps):
    x = x_ref[0].astype(jnp.float32)          # [S, H] f32 running residual
    mask = mask_ref[0]                         # [1, S] additive key-padding bias
    S, H = x.shape
    HD = H // nhead
    scale = 1.0 / float(HD) ** 0.5

    for l in range(num_layers):
        # ---------------- self-attention (all heads, static unroll) ----------------
        x_bf = x.astype(jnp.bfloat16)
        qkv = jnp.dot(x_bf, w_qkv_ref[l],
                      preferred_element_type=jnp.float32) + b_qkv_ref[l]   # [S, 3H]
        for hh in range(nhead):
            q = (qkv[:, hh * HD:(hh + 1) * HD] * scale).astype(jnp.bfloat16)
            k = qkv[:, H + hh * HD:H + (hh + 1) * HD].astype(jnp.bfloat16)
            v = qkv[:, 2 * H + hh * HD:2 * H + (hh + 1) * HD].astype(jnp.bfloat16)
            s = lax.dot_general(q, k, (((1,), (1,)), ((), ())),
                                preferred_element_type=jnp.float32)        # [S, S]
            s = s + mask
            s = s - jnp.max(s, axis=-1, keepdims=True)
            p = jnp.exp(s)
            denom = jnp.sum(p, axis=-1, keepdims=True)
            p = p * pl.reciprocal(denom, approx=True)
            o_h = jnp.dot(p.astype(jnp.bfloat16), v,
                          preferred_element_type=jnp.float32)              # [S, HD]
            attn_scratch[:, hh * HD:(hh + 1) * HD] = o_h
        attn_bf = attn_scratch[...].astype(jnp.bfloat16)                   # [S, H]

        # ------------- out-proj + bias + residual + LayerNorm1 (fused) -------------
        y = (jnp.dot(attn_bf, w_o_ref[l], preferred_element_type=jnp.float32)
             + b_o_ref[l] + x)
        y = _layer_norm_f32(y, ln1_g_ref[l], ln1_b_ref[l], eps)

        # ----------- FFN (relu) + bias + residual + LayerNorm2 (fused) -------------
        y_bf = y.astype(jnp.bfloat16)
        h1 = jnp.maximum(
            jnp.dot(y_bf, w1_ref[l], preferred_element_type=jnp.float32)
            + b1_ref[l], 0.0)                                              # [S, 2H]
        z = (jnp.dot(h1.astype(jnp.bfloat16), w2_ref[l],
                     preferred_element_type=jnp.float32)
             + b2_ref[l] + y)
        x = _layer_norm_f32(z, ln2_g_ref[l], ln2_b_ref[l], eps)

    o_ref[0] = x[0:1, :]                       # CLS row only, lane-dense [1, H]


# --------------------------------- wrapper --------------------------------------

def text_encoder_forward(input_ids, attention_mask, params, *, nhead=8):
    """TextEncoder.forward: returns encoded[:, 0, :]  ->  [B, hidden] f32."""
    B, S = input_ids.shape
    H = params["tok_emb"].shape[1]
    L = params["w_qkv"].shape[0]
    assert H % nhead == 0
    S_pad = max(_round_up(S, 8), 8)

    # Embedding + positional encoding (gather stays in XLA).
    tok = jnp.take(params["tok_emb"], input_ids, axis=0)              # [B, S, H]
    pos = params["pos_emb"][:S]
    x = (tok + pos[None, :, :]).astype(jnp.float32)
    mask_bias = jnp.where(attention_mask == 0, -1e9, 0.0).astype(jnp.float32)
    if S_pad != S:                                                     # one top-level pad
        x = jnp.pad(x, ((0, 0), (0, S_pad - S), (0, 0)))
        mask_bias = jnp.pad(mask_bias, ((0, 0), (0, S_pad - S)),
                            constant_values=-1e9)
    mask_bias = mask_bias.reshape(B, 1, S_pad)

    def _row(a):          # [L, N] -> [L, 1, N]: 2-D blocks broadcast cleanly in-kernel
        return a[:, None, :].astype(jnp.float32)

    args = (x, mask_bias,
            params["w_qkv"], _row(params["b_qkv"]),
            params["w_o"], _row(params["b_o"]),
            _row(params["ln1_g"]), _row(params["ln1_b"]),
            params["w1"], _row(params["b1"]),
            params["w2"], _row(params["b2"]),
            _row(params["ln2_g"]), _row(params["ln2_b"]))

    def _full(a):         # whole (stacked-over-layers) array resident in VMEM
        return pl.BlockSpec(a.shape, lambda b: (0, 0, 0))

    in_specs = ([pl.BlockSpec((1, S_pad, H), lambda b: (b, 0, 0)),
                 pl.BlockSpec((1, 1, S_pad), lambda b: (b, 0, 0))]
                + [_full(a) for a in args[2:]])

    flops = B * L * (16 * S_pad * H * H + 4 * S_pad * S_pad * H)
    transcendentals = B * L * nhead * S_pad * S_pad
    bytes_accessed = (sum(int(a.size) * a.dtype.itemsize for a in args)
                      + B * H * 4)

    out = pl.pallas_call(
        functools.partial(_encoder_kernel, nhead=nhead, num_layers=L, eps=1e-5),
        out_shape=jax.ShapeDtypeStruct((B, 1, H), jnp.float32),
        grid=(B,),
        in_specs=in_specs,
        out_specs=pl.BlockSpec((1, 1, H), lambda b: (b, 0, 0)),
        scratch_shapes=[pltpu.VMEM((S_pad, H), jnp.float32)],
        compiler_params=pltpu.CompilerParams(
            dimension_semantics=("parallel",)),
        cost_estimate=pl.CostEstimate(flops=flops,
                                      transcendentals=transcendentals,
                                      bytes_accessed=bytes_accessed),
    )(*args)
    return out.reshape(B, H)


# ------------------------------- parameter init ---------------------------------

def init_text_encoder_params(key, vocab_size=5000, hidden_size=256,
                             num_layers=2, max_len=77):
    H, FF = hidden_size, 2 * hidden_size
    k_tok, k_pos, k_layers = jax.random.split(key, 3)
    tok = 0.02 * jax.random.normal(k_tok, (vocab_size, H), jnp.float32)
    tok = tok.at[0].set(0.0)                                    # padding_idx=0
    pos = 0.02 * jax.random.normal(k_pos, (max_len, H), jnp.float32)

    def _w(k, shape):
        return (0.02 * jax.random.normal(k, shape, jnp.float32)).astype(jnp.bfloat16)

    lkeys = jax.random.split(k_layers, num_layers)
    w_qkv, w_o, w1, w2 = [], [], [], []
    for lk in lkeys:
        k1, k2, k3, k4 = jax.random.split(lk, 4)
        w_qkv.append(_w(k1, (H, 3 * H)))
        w_o.append(_w(k2, (H, H)))
        w1.append(_w(k3, (H, FF)))
        w2.append(_w(k4, (FF, H)))

    zeros = lambda n: jnp.zeros((num_layers, n), jnp.float32)
    ones = lambda n: jnp.ones((num_layers, n), jnp.float32)
    return {
        "tok_emb": tok, "pos_emb": pos,
        "w_qkv": jnp.stack(w_qkv), "b_qkv": zeros(3 * H),
        "w_o": jnp.stack(w_o), "b_o": zeros(H),
        "ln1_g": ones(H), "ln1_b": zeros(H),
        "w1": jnp.stack(w1), "b1": zeros(FF),
        "w2": jnp.stack(w2), "b2": zeros(H),
        "ln2_g": ones(H), "ln2_b": zeros(H),
    }


# ------------------------------------ demo --------------------------------------

if __name__ == "__main__":
    key = jax.random.PRNGKey(0)
    k_params, k_ids = jax.random.split(key)

    B, S = 2, 16
    VOCAB, HIDDEN, LAYERS, NHEAD = 1000, 256, 2, 8
    params = init_text_encoder_params(k_params, vocab_size=VOCAB,
                                      hidden_size=HIDDEN, num_layers=LAYERS)

    positions = jnp.arange(S)
    lengths = jnp.array([S, 10])                               # second sample padded
    attention_mask = (positions[None, :] < lengths[:, None]).astype(jnp.int32)
    input_ids = jax.random.randint(k_ids, (B, S), 1, VOCAB) * attention_mask

    fwd = jax.jit(functools.partial(text_encoder_forward, nhead=NHEAD))
    feats = jax.block_until_ready(fwd(input_ids, attention_mask, params))

    assert feats.shape == (B, HIDDEN), feats.shape
    assert bool(jnp.all(jnp.isfinite(feats)))
    print("KERNEL_OK")
</pallas_src>

<mosaic_0001>
module attributes {stable_mosaic.version = 11 : i64} {
  func.func @_encoder_kernel(%arg0: i32, %arg1: memref<1x16x256xf32, #tpu.memory_space<vmem>>, %arg2: memref<1x1x16xf32, #tpu.memory_space<vmem>>, %arg3: memref<2x256x768xbf16, #tpu.memory_space<vmem>>, %arg4: memref<2x1x768xf32, #tpu.memory_space<vmem>>, %arg5: memref<2x256x256xbf16, #tpu.memory_space<vmem>>, %arg6: memref<2x1x256xf32, #tpu.memory_space<vmem>>, %arg7: memref<2x1x256xf32, #tpu.memory_space<vmem>>, %arg8: memref<2x1x256xf32, #tpu.memory_space<vmem>>, %arg9: memref<2x256x512xbf16, #tpu.memory_space<vmem>>, %arg10: memref<2x1x512xf32, #tpu.memory_space<vmem>>, %arg11: memref<2x512x256xbf16, #tpu.memory_space<vmem>>, %arg12: memref<2x1x256xf32, #tpu.memory_space<vmem>>, %arg13: memref<2x1x256xf32, #tpu.memory_space<vmem>>, %arg14: memref<2x1x256xf32, #tpu.memory_space<vmem>>, %arg15: memref<1x1x256xf32, #tpu.memory_space<vmem>>, %arg16: memref<16x256xf32, #tpu.memory_space<vmem>>) attributes {dimension_semantics = [#tpu.dimension_semantics<parallel>], iteration_bounds = array<i64: 2>, scalar_prefetch = 0 : i64, scratch_operands = 1 : i64, tpu.core_type = #tpu.core_type<tc>, window_params = [{transform_indices = @transform_0, window_bounds = array<i64: 1, 16, 256>}, {transform_indices = @transform_1, window_bounds = array<i64: 1, 1, 16>}, {pipeline_mode = #tpu.pipeline_mode<synchronous>, transform_indices = @transform_2, window_bounds = array<i64: 2, 256, 768>}, {pipeline_mode = #tpu.pipeline_mode<synchronous>, transform_indices = @transform_3, window_bounds = array<i64: 2, 1, 768>}, {pipeline_mode = #tpu.pipeline_mode<synchronous>, transform_indices = @transform_4, window_bounds = array<i64: 2, 256, 256>}, {pipeline_mode = #tpu.pipeline_mode<synchronous>, transform_indices = @transform_5, window_bounds = array<i64: 2, 1, 256>}, {pipeline_mode = #tpu.pipeline_mode<synchronous>, transform_indices = @transform_6, window_bounds = array<i64: 2, 1, 256>}, {pipeline_mode = #tpu.pipeline_mode<synchronous>, transform_indices = @transform_7, window_bounds = array<i64: 2, 1, 256>}, {pipeline_mode = #tpu.pipeline_mode<synchronous>, transform_indices = @transform_8, window_bounds = array<i64: 2, 256, 512>}, {pipeline_mode = #tpu.pipeline_mode<synchronous>, transform_indices = @transform_9, window_bounds = array<i64: 2, 1, 512>}, {pipeline_mode = #tpu.pipeline_mode<synchronous>, transform_indices = @transform_10, window_bounds = array<i64: 2, 512, 256>}, {pipeline_mode = #tpu.pipeline_mode<synchronous>, transform_indices = @transform_11, window_bounds = array<i64: 2, 1, 256>}, {pipeline_mode = #tpu.pipeline_mode<synchronous>, transform_indices = @transform_12, window_bounds = array<i64: 2, 1, 256>}, {pipeline_mode = #tpu.pipeline_mode<synchronous>, transform_indices = @transform_13, window_bounds = array<i64: 2, 1, 256>}, {transform_indices = @transform_14, window_bounds = array<i64: 1, 1, 256>}]} {
    %c0 = arith.constant 0 : index
    %c0_0 = arith.constant 0 : index
    %c0_1 = arith.constant 0 : index
    %0 = vector.load %arg1[%c0, %c0_0, %c0_1] : memref<1x16x256xf32, #tpu.memory_space<vmem>>, vector<1x16x256xf32>
    %1 = vector.shape_cast %0 : vector<1x16x256xf32> to vector<16x256xf32>
    %c0_2 = arith.constant 0 : index
    %c0_3 = arith.constant 0 : index
    %c0_4 = arith.constant 0 : index
    %2 = vector.load %arg2[%c0_2, %c0_3, %c0_4] : memref<1x1x16xf32, #tpu.memory_space<vmem>>, vector<1x1x16xf32>
    %3 = vector.shape_cast %2 : vector<1x1x16xf32> to vector<1x16xf32>
    %4 = arith.truncf %1 : vector<16x256xf32> to vector<16x256xbf16>
    %c0_5 = arith.constant 0 : index
    %c0_6 = arith.constant 0 : index
    %c0_7 = arith.constant 0 : index
    %5 = vector.load %arg3[%c0_5, %c0_6, %c0_7] : memref<2x256x768xbf16, #tpu.memory_space<vmem>>, vector<1x256x768xbf16>
    %6 = vector.shape_cast %5 : vector<1x256x768xbf16> to vector<256x768xbf16>
    %cst = arith.constant dense<0.000000e+00> : vector<16x768xf32>
    %7 = tpu.matmul %4, %6, %cst {dimension_numbers = #tpu.dot_dimension_numbers<[1], [0], [0], [1], [0, 0, 1, 1], [], []>} : vector<16x256xbf16>, vector<256x768xbf16>, vector<16x768xf32> -> vector<16x768xf32>
    %c0_8 = arith.constant 0 : index
    %c0_9 = arith.constant 0 : index
    %c0_10 = arith.constant 0 : index
    %8 = vector.load %arg4[%c0_8, %c0_9, %c0_10] : memref<2x1x768xf32, #tpu.memory_space<vmem>>, vector<1x1x768xf32>
    %9 = vector.shape_cast %8 : vector<1x1x768xf32> to vector<1x768xf32>
    %10 = vector.broadcast %9 : vector<1x768xf32> to vector<16x768xf32>
    %11 = arith.addf %7, %10 : vector<16x768xf32>
    %12 = vector.extract_strided_slice %11 {offsets = [0, 0], sizes = [16, 32], strides = [1, 1]} : vector<16x768xf32> to vector<16x32xf32>
    %cst_11 = arith.constant 0.176776692 : f32
    %13 = vector.broadcast %cst_11 : f32 to vector<16x32xf32>
    %14 = arith.mulf %12, %13 : vector<16x32xf32>
    %15 = arith.truncf %14 : vector<16x32xf32> to vector<16x32xbf16>
    %16 = vector.extract_strided_slice %11 {offsets = [0, 256], sizes = [16, 32], strides = [1, 1]} : vector<16x768xf32> to vector<16x32xf32>
    %17 = arith.truncf %16 : vector<16x32xf32> to vector<16x32xbf16>
    %18 = vector.extract_strided_slice %11 {offsets = [0, 512], sizes = [16, 32], strides = [1, 1]} : vector<16x768xf32> to vector<16x32xf32>
    %19 = arith.truncf %18 : vector<16x32xf32> to vector<16x32xbf16>
    %cst_12 = arith.constant dense<0.000000e+00> : vector<16x16xf32>
    %20 = tpu.matmul %15, %17, %cst_12 {dimension_numbers = #tpu.dot_dimension_numbers<[1], [1], [0], [0], [0, 0, 1, 0], [], []>} : vector<16x32xbf16>, vector<16x32xbf16>, vector<16x16xf32> -> vector<16x16xf32>
    %21 = vector.broadcast %3 : vector<1x16xf32> to vector<16x16xf32>
    %22 = arith.addf %20, %21 : vector<16x16xf32>
    %cst_13 = arith.constant dense<0xFF800000> : vector<16xf32>
    %23 = vector.multi_reduction <maximumf>, %22, %cst_13 [1] : vector<16x16xf32> to vector<16xf32>
    %24 = vector.shape_cast %23 : vector<16xf32> to vector<16x1xf32>
    %25 = vector.broadcast %24 : vector<16x1xf32> to vector<16x16xf32>
    %26 = arith.subf %22, %25 : vector<16x16xf32>
    %27 = math.exp %26 : vector<16x16xf32>
    %cst_14 = arith.constant dense<0.000000e+00> : vector<16xf32>
    %28 = vector.multi_reduction <add>, %27, %cst_14 [1] : vector<16x16xf32> to vector<16xf32>
    %29 = vector.shape_cast %28 : vector<16xf32> to vector<16x1xf32>
    %30 = tpu.reciprocal %29 {approx = true} : vector<16x1xf32> -> vector<16x1xf32>
    %31 = vector.broadcast %30 : vector<16x1xf32> to vector<16x16xf32>
    %32 = arith.mulf %27, %31 : vector<16x16xf32>
    %33 = arith.truncf %32 : vector<16x16xf32> to vector<16x16xbf16>
    %cst_15 = arith.constant dense<0.000000e+00> : vector<16x32xf32>
    %34 = tpu.matmul %33, %19, %cst_15 {dimension_numbers = #tpu.dot_dimension_numbers<[1], [0], [0], [1], [0, 0, 1, 1], [], []>} : vector<16x16xbf16>, vector<16x32xbf16>, vector<16x32xf32> -> vector<16x32xf32>
    %c0_16 = arith.constant 0 : index
    %c0_17 = arith.constant 0 : index
    %35 = vector.load %arg16[%c0_16, %c0_17] : memref<16x256xf32, #tpu.memory_space<vmem>>, vector<16x32xf32>
    tpu.vector_store %arg16[%c0_16, %c0_17], %34 {strides = array<i32>} : memref<16x256xf32, #tpu.memory_space<vmem>>, vector<16x32xf32>,
    %36 = vector.extract_strided_slice %11 {offsets = [0, 32], sizes = [16, 32], strides = [1, 1]} : vector<16x768xf32> to vector<16x32xf32>
    %cst_18 = arith.constant 0.176776692 : f32
    %37 = vector.broadcast %cst_18 : f32 to vector<16x32xf32>
    %38 = arith.mulf %36, %37 : vector<16x32xf32>
    %39 = arith.truncf %38 : vector<16x32xf32> to vector<16x32xbf16>
    %40 = vector.extract_strided_slice %11 {offsets = [0, 288], sizes = [16, 32], strides = [1, 1]} : vector<16x768xf32> to vector<16x32xf32>
    %41 = arith.truncf %40 : vector<16x32xf32> to vector<16x32xbf16>
    %42 = vector.extract_strided_slice %11 {offsets = [0, 544], sizes = [16, 32], strides = [1, 1]} : vector<16x768xf32> to vector<16x32xf32>
    %43 = arith.truncf %42 : vector<16x32xf32> to vector<16x32xbf16>
    %cst_19 = arith.constant dense<0.000000e+00> : vector<16x16xf32>
    %44 = tpu.matmul %39, %41, %cst_19 {dimension_numbers = #tpu.dot_dimension_numbers<[1], [1], [0], [0], [0, 0, 1, 0], [], []>} : vector<16x32xbf16>, vector<16x32xbf16>, vector<16x16xf32> -> vector<16x16xf32>
    %45 = vector.broadcast %3 : vector<1x16xf32> to vector<16x16xf32>
    %46 = arith.addf %44, %45 : vector<16x16xf32>
    %cst_20 = arith.constant dense<0xFF800000> : vector<16xf32>
    %47 = vector.multi_reduction <maximumf>, %46, %cst_20 [1] : vector<16x16xf32> to vector<16xf32>
    %48 = vector.shape_cast %47 : vector<16xf32> to vector<16x1xf32>
    %49 = vector.broadcast %48 : vector<16x1xf32> to vector<16x16xf32>
    %50 = arith.subf %46, %49 : vector<16x16xf32>
    %51 = math.exp %50 : vector<16x16xf32>
    %cst_21 = arith.constant dense<0.000000e+00> : vector<16xf32>
    %52 = vector.multi_reduction <add>, %51, %cst_21 [1] : vector<16x16xf32> to vector<16xf32>
    %53 = vector.shape_cast %52 : vector<16xf32> to vector<16x1xf32>
    %54 = tpu.reciprocal %53 {approx = true} : vector<16x1xf32> -> vector<16x1xf32>
    %55 = vector.broadcast %54 : vector<16x1xf32> to vector<16x16xf32>
    %56 = arith.mulf %51, %55 : vector<16x16xf32>
    %57 = arith.truncf %56 : vector<16x16xf32> to vector<16x16xbf16>
    %cst_22 = arith.constant dense<0.000000e+00> : vector<16x32xf32>
    %58 = tpu.matmul %57, %43, %cst_22 {dimension_numbers = #tpu.dot_dimension_numbers<[1], [0], [0], [1], [0, 0, 1, 1], [], []>} : vector<16x16xbf16>, vector<16x32xbf16>, vector<16x32xf32> -> vector<16x32xf32>
    %c0_23 = arith.constant 0 : index
    %c32 = arith.constant 32 : index
    %59 = vector.load %arg16[%c0_23, %c32] : memref<16x256xf32, #tpu.memory_space<vmem>>, vector<16x32xf32>
    tpu.vector_store %arg16[%c0_23, %c32], %58 {strides = array<i32>} : memref<16x256xf32, #tpu.memory_space<vmem>>, vector<16x32xf32>,
    %60 = vector.extract_strided_slice %11 {offsets = [0, 64], sizes = [16, 32], strides = [1, 1]} : vector<16x768xf32> to vector<16x32xf32>
    %cst_24 = arith.constant 0.176776692 : f32
    %61 = vector.broadcast %cst_24 : f32 to vector<16x32xf32>
    %62 = arith.mulf %60, %61 : vector<16x32xf32>
    %63 = arith.truncf %62 : vector<16x32xf32> to vector<16x32xbf16>
    %64 = vector.extract_strided_slice %11 {offsets = [0, 320], sizes = [16, 32], strides = [1, 1]} : vector<16x768xf32> to vector<16x32xf32>
    %65 = arith.truncf %64 : vector<16x32xf32> to vector<16x32xbf16>
    %66 = vector.extract_strided_slice %11 {offsets = [0, 576], sizes = [16, 32], strides = [1, 1]} : vector<16x768xf32> to vector<16x32xf32>
    %67 = arith.truncf %66 : vector<16x32xf32> to vector<16x32xbf16>
    %cst_25 = arith.constant dense<0.000000e+00> : vector<16x16xf32>
    %68 = tpu.matmul %63, %65, %cst_25 {dimension_numbers = #tpu.dot_dimension_numbers<[1], [1], [0], [0], [0, 0, 1, 0], [], []>} : vector<16x32xbf16>, vector<16x32xbf16>, vector<16x16xf32> -> vector<16x16xf32>
    %69 = vector.broadcast %3 : vector<1x16xf32> to vector<16x16xf32>
    %70 = arith.addf %68, %69 : vector<16x16xf32>
    %cst_26 = arith.constant dense<0xFF800000> : vector<16xf32>
    %71 = vector.multi_reduction <maximumf>, %70, %cst_26 [1] : vector<16x16xf32> to vector<16xf32>
    %72 = vector.shape_cast %71 : vector<16xf32> to vector<16x1xf32>
    %73 = vector.broadcast %72 : vector<16x1xf32> to vector<16x16xf32>
    %74 = arith.subf %70, %73 : vector<16x16xf32>
    %75 = math.exp %74 : vector<16x16xf32>
    %cst_27 = arith.constant dense<0.000000e+00> : vector<16xf32>
    %76 = vector.multi_reduction <add>, %75, %cst_27 [1] : vector<16x16xf32> to vector<16xf32>
    %77 = vector.shape_cast %76 : vector<16xf32> to vector<16x1xf32>
    %78 = tpu.reciprocal %77 {approx = true} : vector<16x1xf32> -> vector<16x1xf32>
    %79 = vector.broadcast %78 : vector<16x1xf32> to vector<16x16xf32>
    %80 = arith.mulf %75, %79 : vector<16x16xf32>
    %81 = arith.truncf %80 : vector<16x16xf32> to vector<16x16xbf16>
    %cst_28 = arith.constant dense<0.000000e+00> : vector<16x32xf32>
    %82 = tpu.matmul %81, %67, %cst_28 {dimension_numbers = #tpu.dot_dimension_numbers<[1], [0], [0], [1], [0, 0, 1, 1], [], []>} : vector<16x16xbf16>, vector<16x32xbf16>, vector<16x32xf32> -> vector<16x32xf32>
    %c0_29 = arith.constant 0 : index
    %c64 = arith.constant 64 : index
    %83 = vector.load %arg16[%c0_29, %c64] : memref<16x256xf32, #tpu.memory_space<vmem>>, vector<16x32xf32>
    tpu.vector_store %arg16[%c0_29, %c64], %82 {strides = array<i32>} : memref<16x256xf32, #tpu.memory_space<vmem>>, vector<16x32xf32>,
    %84 = vector.extract_strided_slice %11 {offsets = [0, 96], sizes = [16, 32], strides = [1, 1]} : vector<16x768xf32> to vector<16x32xf32>
    %cst_30 = arith.constant 0.176776692 : f32
    %85 = vector.broadcast %cst_30 : f32 to vector<16x32xf32>
    %86 = arith.mulf %84, %85 : vector<16x32xf32>
    %87 = arith.truncf %86 : vector<16x32xf32> to vector<16x32xbf16>
    %88 = vector.extract_strided_slice %11 {offsets = [0, 352], sizes = [16, 32], strides = [1, 1]} : vector<16x768xf32> to vector<16x32xf32>
    %89 = arith.truncf %88 : vector<16x32xf32> to vector<16x32xbf16>
    %90 = vector.extract_strided_slice %11 {offsets = [0, 608], sizes = [16, 32], strides = [1, 1]} : vector<16x768xf32> to vector<16x32xf32>
    %91 = arith.truncf %90 : vector<16x32xf32> to vector<16x32xbf16>
    %cst_31 = arith.constant dense<0.000000e+00> : vector<16x16xf32>
    %92 = tpu.matmul %87, %89, %cst_31 {dimension_numbers = #tpu.dot_dimension_numbers<[1], [1], [0], [0], [0, 0, 1, 0], [], []>} : vector<16x32xbf16>, vector<16x32xbf16>, vector<16x16xf32> -> vector<16x16xf32>
    %93 = vector.broadcast %3 : vector<1x16xf32> to vector<16x16xf32>
    %94 = arith.addf %92, %93 : vector<16x16xf32>
    %cst_32 = arith.constant dense<0xFF800000> : vector<16xf32>
    %95 = vector.multi_reduction <maximumf>, %94, %cst_32 [1] : vector<16x16xf32> to vector<16xf32>
    %96 = vector.shape_cast %95 : vector<16xf32> to vector<16x1xf32>
    %97 = vector.broadcast %96 : vector<16x1xf32> to vector<16x16xf32>
    %98 = arith.subf %94, %97 : vector<16x16xf32>
    %99 = math.exp %98 : vector<16x16xf32>
    %cst_33 = arith.constant dense<0.000000e+00> : vector<16xf32>
    %100 = vector.multi_reduction <add>, %99, %cst_33 [1] : vector<16x16xf32> to vector<16xf32>
    %101 = vector.shape_cast %100 : vector<16xf32> to vector<16x1xf32>
    %102 = tpu.reciprocal %101 {approx = true} : vector<16x1xf32> -> vector<16x1xf32>
    %103 = vector.broadcast %102 : vector<16x1xf32> to vector<16x16xf32>
    %104 = arith.mulf %99, %103 : vector<16x16xf32>
    %105 = arith.truncf %104 : vector<16x16xf32> to vector<16x16xbf16>
    %cst_34 = arith.constant dense<0.000000e+00> : vector<16x32xf32>
    %106 = tpu.matmul %105, %91, %cst_34 {dimension_numbers = #tpu.dot_dimension_numbers<[1], [0], [0], [1], [0, 0, 1, 1], [], []>} : vector<16x16xbf16>, vector<16x32xbf16>, vector<16x32xf32> -> vector<16x32xf32>
    %c0_35 = arith.constant 0 : index
    %c96 = arith.constant 96 : index
    %107 = vector.load %arg16[%c0_35, %c96] : memref<16x256xf32, #tpu.memory_space<vmem>>, vector<16x32xf32>
    tpu.vector_store %arg16[%c0_35, %c96], %106 {strides = array<i32>} : memref<16x256xf32, #tpu.memory_space<vmem>>, vector<16x32xf32>,
    %108 = vector.extract_strided_slice %11 {offsets = [0, 128], sizes = [16, 32], strides = [1, 1]} : vector<16x768xf32> to vector<16x32xf32>
    %cst_36 = arith.constant 0.176776692 : f32
    %109 = vector.broadcast %cst_36 : f32 to vector<16x32xf32>
    %110 = arith.mulf %108, %109 : vector<16x32xf32>
    %111 = arith.truncf %110 : vector<16x32xf32> to vector<16x32xbf16>
    %112 = vector.extract_strided_slice %11 {offsets = [0, 384], sizes = [16, 32], strides = [1, 1]} : vector<16x768xf32> to vector<16x32xf32>
    %113 = arith.truncf %112 : vector<16x32xf32> to vector<16x32xbf16>
    %114 = vector.extract_strided_slice %11 {offsets = [0, 640], sizes = [16, 32], strides = [1, 1]} : vector<16x768xf32> to vector<16x32xf32>
    %115 = arith.truncf %114 : vector<16x32xf32> to vector<16x32xbf16>
    %cst_37 = arith.constant dense<0.000000e+00> : vector<16x16xf32>
    %116 = tpu.matmul %111, %113, %cst_37 {dimension_numbers = #tpu.dot_dimension_numbers<[1], [1], [0], [0], [0, 0, 1, 0], [], []>} : vector<16x32xbf16>, vector<16x32xbf16>, vector<16x16xf32> -> vector<16x16xf32>
    %117 = vector.broadcast %3 : vector<1x16xf32> to vector<16x16xf32>
    %118 = arith.addf %116, %117 : vector<16x16xf32>
    %cst_38 = arith.constant dense<0xFF800000> : vector<16xf32>
    %119 = vector.multi_reduction <maximumf>, %118, %cst_38 [1] : vector<16x16xf32> to vector<16xf32>
    %120 = vector.shape_cast %119 : vector<16xf32> to vector<16x1xf32>
    %121 = vector.broadcast %120 : vector<16x1xf32> to vector<16x16xf32>
    %122 = arith.subf %118, %121 : vector<16x16xf32>
    %123 = math.exp %122 : vector<16x16xf32>
    %cst_39 = arith.constant dense<0.000000e+00> : vector<16xf32>
    %124 = vector.multi_reduction <add>, %123, %cst_39 [1] : vector<16x16xf32> to vector<16xf32>
    %125 = vector.shape_cast %124 : vector<16xf32> to vector<16x1xf32>
    %126 = tpu.reciprocal %125 {approx = true} : vector<16x1xf32> -> vector<16x1xf32>
    %127 = vector.broadcast %126 : vector<16x1xf32> to vector<16x16xf32>
    %128 = arith.mulf %123, %127 : vector<16x16xf32>
    %129 = arith.truncf %128 : vector<16x16xf32> to vector<16x16xbf16>
    %cst_40 = arith.constant dense<0.000000e+00> : vector<16x32xf32>
    %130 = tpu.matmul %129, %115, %cst_40 {dimension_numbers = #tpu.dot_dimension_numbers<[1], [0], [0], [1], [0, 0, 1, 1], [], []>} : vector<16x16xbf16>, vector<16x32xbf16>, vector<16x32xf32> -> vector<16x32xf32>
    %c0_41 = arith.constant 0 : index
    %c128 = arith.constant 128 : index
    %131 = vector.load %arg16[%c0_41, %c128] : memref<16x256xf32, #tpu.memory_space<vmem>>, vector<16x32xf32>
    tpu.vector_store %arg16[%c0_41, %c128], %130 {strides = array<i32>} : memref<16x256xf32, #tpu.memory_space<vmem>>, vector<16x32xf32>,
    %132 = vector.extract_strided_slice %11 {offsets = [0, 160], sizes = [16, 32], strides = [1, 1]} : vector<16x768xf32> to vector<16x32xf32>
    %cst_42 = arith.constant 0.176776692 : f32
    %133 = vector.broadcast %cst_42 : f32 to vector<16x32xf32>
    %134 = arith.mulf %132, %133 : vector<16x32xf32>
    %135 = arith.truncf %134 : vector<16x32xf32> to vector<16x32xbf16>
    %136 = vector.extract_strided_slice %11 {offsets = [0, 416], sizes = [16, 32], strides = [1, 1]} : vector<16x768xf32> to vector<16x32xf32>
    %137 = arith.truncf %136 : vector<16x32xf32> to vector<16x32xbf16>
    %138 = vector.extract_strided_slice %11 {offsets = [0, 672], sizes = [16, 32], strides = [1, 1]} : vector<16x768xf32> to vector<16x32xf32>
    %139 = arith.truncf %138 : vector<16x32xf32> to vector<16x32xbf16>
    %cst_43 = arith.constant dense<0.000000e+00> : vector<16x16xf32>
    %140 = tpu.matmul %135, %137, %cst_43 {dimension_numbers = #tpu.dot_dimension_numbers<[1], [1], [0], [0], [0, 0, 1, 0], [], []>} : vector<16x32xbf16>, vector<16x32xbf16>, vector<16x16xf32> -> vector<16x16xf32>
    %141 = vector.broadcast %3 : vector<1x16xf32> to vector<16x16xf32>
    %142 = arith.addf %140, %141 : vector<16x16xf32>
    %cst_44 = arith.constant dense<0xFF800000> : vector<16xf32>
    %143 = vector.multi_reduction <maximumf>, %142, %cst_44 [1] : vector<16x16xf32> to vector<16xf32>
    %144 = vector.shape_cast %143 : vector<16xf32> to vector<16x1xf32>
    %145 = vector.broadcast %144 : vector<16x1xf32> to vector<16x16xf32>
    %146 = arith.subf %142, %145 : vector<16x16xf32>
    %147 = math.exp %146 : vector<16x16xf32>
    %cst_45 = arith.constant dense<0.000000e+00> : vector<16xf32>
    %148 = vector.multi_reduction <add>, %147, %cst_45 [1] : vector<16x16xf32> to vector<16xf32>
    %149 = vector.shape_cast %148 : vector<16xf32> to vector<16x1xf32>
    %150 = tpu.reciprocal %149 {approx = true} : vector<16x1xf32> -> vector<16x1xf32>
    %151 = vector.broadcast %150 : vector<16x1xf32> to vector<16x16xf32>
    %152 = arith.mulf %147, %151 : vector<16x16xf32>
    %153 = arith.truncf %152 : vector<16x16xf32> to vector<16x16xbf16>
    %cst_46 = arith.constant dense<0.000000e+00> : vector<16x32xf32>
    %154 = tpu.matmul %153, %139, %cst_46 {dimension_numbers = #tpu.dot_dimension_numbers<[1], [0], [0], [1], [0, 0, 1, 1], [], []>} : vector<16x16xbf16>, vector<16x32xbf16>, vector<16x32xf32> -> vector<16x32xf32>
    %c0_47 = arith.constant 0 : index
    %c160 = arith.constant 160 : index
    %155 = vector.load %arg16[%c0_47, %c160] : memref<16x256xf32, #tpu.memory_space<vmem>>, vector<16x32xf32>
    tpu.vector_store %arg16[%c0_47, %c160], %154 {strides = array<i32>} : memref<16x256xf32, #tpu.memory_space<vmem>>, vector<16x32xf32>,
    %156 = vector.extract_strided_slice %11 {offsets = [0, 192], sizes = [16, 32], strides = [1, 1]} : vector<16x768xf32> to vector<16x32xf32>
    %cst_48 = arith.constant 0.176776692 : f32
    %157 = vector.broadcast %cst_48 : f32 to vector<16x32xf32>
    %158 = arith.mulf %156, %157 : vector<16x32xf32>
    %159 = arith.truncf %158 : vector<16x32xf32> to vector<16x32xbf16>
    %160 = vector.extract_strided_slice %11 {offsets = [0, 448], sizes = [16, 32], strides = [1, 1]} : vector<16x768xf32> to vector<16x32xf32>
    %161 = arith.truncf %160 : vector<16x32xf32> to vector<16x32xbf16>
    %162 = vector.extract_strided_slice %11 {offsets = [0, 704], sizes = [16, 32], strides = [1, 1]} : vector<16x768xf32> to vector<16x32xf32>
    %163 = arith.truncf %162 : vector<16x32xf32> to vector<16x32xbf16>
    %cst_49 = arith.constant dense<0.000000e+00> : vector<16x16xf32>
    %164 = tpu.matmul %159, %161, %cst_49 {dimension_numbers = #tpu.dot_dimension_numbers<[1], [1], [0], [0], [0, 0, 1, 0], [], []>} : vector<16x32xbf16>, vector<16x32xbf16>, vector<16x16xf32> -> vector<16x16xf32>
    %165 = vector.broadcast %3 : vector<1x16xf32> to vector<16x16xf32>
    %166 = arith.addf %164, %165 : vector<16x16xf32>
    %cst_50 = arith.constant dense<0xFF800000> : vector<16xf32>
    %167 = vector.multi_reduction <maximumf>, %166, %cst_50 [1] : vector<16x16xf32> to vector<16xf32>
    %168 = vector.shape_cast %167 : vector<16xf32> to vector<16x1xf32>
    %169 = vector.broadcast %168 : vector<16x1xf32> to vector<16x16xf32>
    %170 = arith.subf %166, %169 : vector<16x16xf32>
    %171 = math.exp %170 : vector<16x16xf32>
    %cst_51 = arith.constant dense<0.000000e+00> : vector<16xf32>
    %172 = vector.multi_reduction <add>, %171, %cst_51 [1] : vector<16x16xf32> to vector<16xf32>
    %173 = vector.shape_cast %172 : vector<16xf32> to vector<16x1xf32>
    %174 = tpu.reciprocal %173 {approx = true} : vector<16x1xf32> -> vector<16x1xf32>
    %175 = vector.broadcast %174 : vector<16x1xf32> to vector<16x16xf32>
    %176 = arith.mulf %171, %175 : vector<16x16xf32>
    %177 = arith.truncf %176 : vector<16x16xf32> to vector<16x16xbf16>
    %cst_52 = arith.constant dense<0.000000e+00> : vector<16x32xf32>
    %178 = tpu.matmul %177, %163, %cst_52 {dimension_numbers = #tpu.dot_dimension_numbers<[1], [0], [0], [1], [0, 0, 1, 1], [], []>} : vector<16x16xbf16>, vector<16x32xbf16>, vector<16x32xf32> -> vector<16x32xf32>
    %c0_53 = arith.constant 0 : index
    %c192 = arith.constant 192 : index
    %179 = vector.load %arg16[%c0_53, %c192] : memref<16x256xf32, #tpu.memory_space<vmem>>, vector<16x32xf32>
    tpu.vector_store %arg16[%c0_53, %c192], %178 {strides = array<i32>} : memref<16x256xf32, #tpu.memory_space<vmem>>, vector<16x32xf32>,
    %180 = vector.extract_strided_slice %11 {offsets = [0, 224], sizes = [16, 32], strides = [1, 1]} : vector<16x768xf32> to vector<16x32xf32>
    %cst_54 = arith.constant 0.176776692 : f32
    %181 = vector.broadcast %cst_54 : f32 to vector<16x32xf32>
    %182 = arith.mulf %180, %181 : vector<16x32xf32>
    %183 = arith.truncf %182 : vector<16x32xf32> to vector<16x32xbf16>
    %184 = vector.extract_strided_slice %11 {offsets = [0, 480], sizes = [16, 32], strides = [1, 1]} : vector<16x768xf32> to vector<16x32xf32>
    %185 = arith.truncf %184 : vector<16x32xf32> to vector<16x32xbf16>
    %186 = vector.extract_strided_slice %11 {offsets = [0, 736], sizes = [16, 32], strides = [1, 1]} : vector<16x768xf32> to vector<16x32xf32>
    %187 = arith.truncf %186 : vector<16x32xf32> to vector<16x32xbf16>
    %cst_55 = arith.constant dense<0.000000e+00> : vector<16x16xf32>
    %188 = tpu.matmul %183, %185, %cst_55 {dimension_numbers = #tpu.dot_dimension_numbers<[1], [1], [0], [0], [0, 0, 1, 0], [], []>} : vector<16x32xbf16>, vector<16x32xbf16>, vector<16x16xf32> -> vector<16x16xf32>
    %189 = vector.broadcast %3 : vector<1x16xf32> to vector<16x16xf32>
    %190 = arith.addf %188, %189 : vector<16x16xf32>
    %cst_56 = arith.constant dense<0xFF800000> : vector<16xf32>
    %191 = vector.multi_reduction <maximumf>, %190, %cst_56 [1] : vector<16x16xf32> to vector<16xf32>
    %192 = vector.shape_cast %191 : vector<16xf32> to vector<16x1xf32>
    %193 = vector.broadcast %192 : vector<16x1xf32> to vector<16x16xf32>
    %194 = arith.subf %190, %193 : vector<16x16xf32>
    %195 = math.exp %194 : vector<16x16xf32>
    %cst_57 = arith.constant dense<0.000000e+00> : vector<16xf32>
    %196 = vector.multi_reduction <add>, %195, %cst_57 [1] : vector<16x16xf32> to vector<16xf32>
    %197 = vector.shape_cast %196 : vector<16xf32> to vector<16x1xf32>
    %198 = tpu.reciprocal %197 {approx = true} : vector<16x1xf32> -> vector<16x1xf32>
    %199 = vector.broadcast %198 : vector<16x1xf32> to vector<16x16xf32>
    %200 = arith.mulf %195, %199 : vector<16x16xf32>
    %201 = arith.truncf %200 : vector<16x16xf32> to vector<16x16xbf16>
    %cst_58 = arith.constant dense<0.000000e+00> : vector<16x32xf32>
    %202 = tpu.matmul %201, %187, %cst_58 {dimension_numbers = #tpu.dot_dimension_numbers<[1], [0], [0], [1], [0, 0, 1, 1], [], []>} : vector<16x16xbf16>, vector<16x32xbf16>, vector<16x32xf32> -> vector<16x32xf32>
    %c0_59 = arith.constant 0 : index
    %c224 = arith.constant 224 : index
    %203 = vector.load %arg16[%c0_59, %c224] : memref<16x256xf32, #tpu.memory_space<vmem>>, vector<16x32xf32>
    tpu.vector_store %arg16[%c0_59, %c224], %202 {strides = array<i32>} : memref<16x256xf32, #tpu.memory_space<vmem>>, vector<16x32xf32>,
    %c0_60 = arith.constant 0 : index
    %c0_61 = arith.constant 0 : index
    %204 = vector.load %arg16[%c0_60, %c0_61] : memref<16x256xf32, #tpu.memory_space<vmem>>, vector<16x256xf32>
    %205 = arith.truncf %204 : vector<16x256xf32> to vector<16x256xbf16>
    %c0_62 = arith.constant 0 : index
    %c0_63 = arith.constant 0 : index
    %c0_64 = arith.constant 0 : index
    %206 = vector.load %arg5[%c0_62, %c0_63, %c0_64] : memref<2x256x256xbf16, #tpu.memory_space<vmem>>, vector<1x256x256xbf16>
    %207 = vector.shape_cast %206 : vector<1x256x256xbf16> to vector<256x256xbf16>
    %cst_65 = arith.constant dense<0.000000e+00> : vector<16x256xf32>
    %208 = tpu.matmul %205, %207, %cst_65 {dimension_numbers = #tpu.dot_dimension_numbers<[1], [0], [0], [1], [0, 0, 1, 1], [], []>} : vector<16x256xbf16>, vector<256x256xbf16>, vector<16x256xf32> -> vector<16x256xf32>
    %c0_66 = arith.constant 0 : index
    %c0_67 = arith.constant 0 : index
    %c0_68 = arith.constant 0 : index
    %209 = vector.load %arg6[%c0_66, %c0_67, %c0_68] : memref<2x1x256xf32, #tpu.memory_space<vmem>>, vector<1x1x256xf32>
    %210 = vector.shape_cast %209 : vector<1x1x256xf32> to vector<1x256xf32>
    %211 = vector.broadcast %210 : vector<1x256xf32> to vector<16x256xf32>
    %212 = arith.addf %208, %211 : vector<16x256xf32>
    %213 = arith.addf %212, %1 : vector<16x256xf32>
    %c0_69 = arith.constant 0 : index
    %c0_70 = arith.constant 0 : index
    %c0_71 = arith.constant 0 : index
    %214 = vector.load %arg7[%c0_69, %c0_70, %c0_71] : memref<2x1x256xf32, #tpu.memory_space<vmem>>, vector<1x1x256xf32>
    %215 = vector.shape_cast %214 : vector<1x1x256xf32> to vector<1x256xf32>
    %c0_72 = arith.constant 0 : index
    %c0_73 = arith.constant 0 : index
    %c0_74 = arith.constant 0 : index
    %216 = vector.load %arg8[%c0_72, %c0_73, %c0_74] : memref<2x1x256xf32, #tpu.memory_space<vmem>>, vector<1x1x256xf32>
    %217 = vector.shape_cast %216 : vector<1x1x256xf32> to vector<1x256xf32>
    %cst_75 = arith.constant dense<0.000000e+00> : vector<16xf32>
    %218 = vector.multi_reduction <add>, %213, %cst_75 [1] : vector<16x256xf32> to vector<16xf32>
    %219 = vector.shape_cast %218 : vector<16xf32> to vector<16x1xf32>
    %cst_76 = arith.constant 2.560000e+02 : f32
    %220 = vector.broadcast %cst_76 : f32 to vector<16x1xf32>
    %221 = arith.divf %219, %220 : vector<16x1xf32>
    %222 = vector.broadcast %221 : vector<16x1xf32> to vector<16x256xf32>
    %223 = arith.subf %213, %222 : vector<16x256xf32>
    %224 = arith.mulf %223, %223 : vector<16x256xf32>
    %cst_77 = arith.constant dense<0.000000e+00> : vector<16xf32>
    %225 = vector.multi_reduction <add>, %224, %cst_77 [1] : vector<16x256xf32> to vector<16xf32>
    %226 = vector.shape_cast %225 : vector<16xf32> to vector<16x1xf32>
    %cst_78 = arith.constant 2.560000e+02 : f32
    %227 = vector.broadcast %cst_78 : f32 to vector<16x1xf32>
    %228 = arith.divf %226, %227 : vector<16x1xf32>
    %cst_79 = arith.constant 9.99999974E-6 : f32
    %229 = vector.broadcast %cst_79 : f32 to vector<16x1xf32>
    %230 = arith.addf %228, %229 : vector<16x1xf32>
    %231 = math.rsqrt %230 : vector<16x1xf32>
    %232 = vector.broadcast %231 : vector<16x1xf32> to vector<16x256xf32>
    %233 = arith.mulf %223, %232 : vector<16x256xf32>
    %234 = vector.broadcast %215 : vector<1x256xf32> to vector<16x256xf32>
    %235 = arith.mulf %233, %234 : vector<16x256xf32>
    %236 = vector.broadcast %217 : vector<1x256xf32> to vector<16x256xf32>
    %237 = arith.addf %235, %236 : vector<16x256xf32>
    %238 = arith.truncf %237 : vector<16x256xf32> to vector<16x256xbf16>
    %c0_80 = arith.constant 0 : index
    %c0_81 = arith.constant 0 : index
    %c0_82 = arith.constant 0 : index
    %239 = vector.load %arg9[%c0_80, %c0_81, %c0_82] : memref<2x256x512xbf16, #tpu.memory_space<vmem>>, vector<1x256x512xbf16>
    %240 = vector.shape_cast %239 : vector<1x256x512xbf16> to vector<256x512xbf16>
    %cst_83 = arith.constant dense<0.000000e+00> : vector<16x512xf32>
    %241 = tpu.matmul %238, %240, %cst_83 {dimension_numbers = #tpu.dot_dimension_numbers<[1], [0], [0], [1], [0, 0, 1, 1], [], []>} : vector<16x256xbf16>, vector<256x512xbf16>, vector<16x512xf32> -> vector<16x512xf32>
    %c0_84 = arith.constant 0 : index
    %c0_85 = arith.constant 0 : index
    %c0_86 = arith.constant 0 : index
    %242 = vector.load %arg10[%c0_84, %c0_85, %c0_86] : memref<2x1x512xf32, #tpu.memory_space<vmem>>, vector<1x1x512xf32>
    %243 = vector.shape_cast %242 : vector<1x1x512xf32> to vector<1x512xf32>
    %244 = vector.broadcast %243 : vector<1x512xf32> to vector<16x512xf32>
    %245 = arith.addf %241, %244 : vector<16x512xf32>
    %cst_87 = arith.constant 0.000000e+00 : f32
    %246 = vector.broadcast %cst_87 : f32 to vector<16x512xf32>
    %247 = arith.maximumf %245, %246 : vector<16x512xf32>
    %248 = arith.truncf %247 : vector<16x512xf32> to vector<16x512xbf16>
    %c0_88 = arith.constant 0 : index
    %c0_89 = arith.constant 0 : index
    %c0_90 = arith.constant 0 : index
    %249 = vector.load %arg11[%c0_88, %c0_89, %c0_90] : memref<2x512x256xbf16, #tpu.memory_space<vmem>>, vector<1x512x256xbf16>
    %250 = vector.shape_cast %249 : vector<1x512x256xbf16> to vector<512x256xbf16>
    %cst_91 = arith.constant dense<0.000000e+00> : vector<16x256xf32>
    %251 = tpu.matmul %248, %250, %cst_91 {dimension_numbers = #tpu.dot_dimension_numbers<[1], [0], [0], [1], [0, 0, 1, 1], [], []>} : vector<16x512xbf16>, vector<512x256xbf16>, vector<16x256xf32> -> vector<16x256xf32>
    %c0_92 = arith.constant 0 : index
    %c0_93 = arith.constant 0 : index
    %c0_94 = arith.constant 0 : index
    %252 = vector.load %arg12[%c0_92, %c0_93, %c0_94] : memref<2x1x256xf32, #tpu.memory_space<vmem>>, vector<1x1x256xf32>
    %253 = vector.shape_cast %252 : vector<1x1x256xf32> to vector<1x256xf32>
    %254 = vector.broadcast %253 : vector<1x256xf32> to vector<16x256xf32>
    %255 = arith.addf %251, %254 : vector<16x256xf32>
    %256 = arith.addf %255, %237 : vector<16x256xf32>
    %c0_95 = arith.constant 0 : index
    %c0_96 = arith.constant 0 : index
    %c0_97 = arith.constant 0 : index
    %257 = vector.load %arg13[%c0_95, %c0_96, %c0_97] : memref<2x1x256xf32, #tpu.memory_space<vmem>>, vector<1x1x256xf32>
    %258 = vector.shape_cast %257 : vector<1x1x256xf32> to vector<1x256xf32>
    %c0_98 = arith.constant 0 : index
    %c0_99 = arith.constant 0 : index
    %c0_100 = arith.constant 0 : index
    %259 = vector.load %arg14[%c0_98, %c0_99, %c0_100] : memref<2x1x256xf32, #tpu.memory_space<vmem>>, vector<1x1x256xf32>
    %260 = vector.shape_cast %259 : vector<1x1x256xf32> to vector<1x256xf32>
    %cst_101 = arith.constant dense<0.000000e+00> : vector<16xf32>
    %261 = vector.multi_reduction <add>, %256, %cst_101 [1] : vector<16x256xf32> to vector<16xf32>
    %262 = vector.shape_cast %261 : vector<16xf32> to vector<16x1xf32>
    %cst_102 = arith.constant 2.560000e+02 : f32
    %263 = vector.broadcast %cst_102 : f32 to vector<16x1xf32>
    %264 = arith.divf %262, %263 : vector<16x1xf32>
    %265 = vector.broadcast %264 : vector<16x1xf32> to vector<16x256xf32>
    %266 = arith.subf %256, %265 : vector<16x256xf32>
    %267 = arith.mulf %266, %266 : vector<16x256xf32>
    %cst_103 = arith.constant dense<0.000000e+00> : vector<16xf32>
    %268 = vector.multi_reduction <add>, %267, %cst_103 [1] : vector<16x256xf32> to vector<16xf32>
    %269 = vector.shape_cast %268 : vector<16xf32> to vector<16x1xf32>
    %cst_104 = arith.constant 2.560000e+02 : f32
    %270 = vector.broadcast %cst_104 : f32 to vector<16x1xf32>
    %271 = arith.divf %269, %270 : vector<16x1xf32>
    %cst_105 = arith.constant 9.99999974E-6 : f32
    %272 = vector.broadcast %cst_105 : f32 to vector<16x1xf32>
    %273 = arith.addf %271, %272 : vector<16x1xf32>
    %274 = math.rsqrt %273 : vector<16x1xf32>
    %275 = vector.broadcast %274 : vector<16x1xf32> to vector<16x256xf32>
    %276 = arith.mulf %266, %275 : vector<16x256xf32>
    %277 = vector.broadcast %258 : vector<1x256xf32> to vector<16x256xf32>
    %278 = arith.mulf %276, %277 : vector<16x256xf32>
    %279 = vector.broadcast %260 : vector<1x256xf32> to vector<16x256xf32>
    %280 = arith.addf %278, %279 : vector<16x256xf32>
    %281 = arith.truncf %280 : vector<16x256xf32> to vector<16x256xbf16>
    %c1 = arith.constant 1 : index
    %c0_106 = arith.constant 0 : index
    %c0_107 = arith.constant 0 : index
    %282 = vector.load %arg3[%c1, %c0_106, %c0_107] : memref<2x256x768xbf16, #tpu.memory_space<vmem>>, vector<1x256x768xbf16>
    %283 = vector.shape_cast %282 : vector<1x256x768xbf16> to vector<256x768xbf16>
    %cst_108 = arith.constant dense<0.000000e+00> : vector<16x768xf32>
    %284 = tpu.matmul %281, %283, %cst_108 {dimension_numbers = #tpu.dot_dimension_numbers<[1], [0], [0], [1], [0, 0, 1, 1], [], []>} : vector<16x256xbf16>, vector<256x768xbf16>, vector<16x768xf32> -> vector<16x768xf32>
    %c1_109 = arith.constant 1 : index
    %c0_110 = arith.constant 0 : index
    %c0_111 = arith.constant 0 : index
    %285 = vector.load %arg4[%c1_109, %c0_110, %c0_111] : memref<2x1x768xf32, #tpu.memory_space<vmem>>, vector<1x1x768xf32>
    %286 = vector.shape_cast %285 : vector<1x1x768xf32> to vector<1x768xf32>
    %287 = vector.broadcast %286 : vector<1x768xf32> to vector<16x768xf32>
    %288 = arith.addf %284, %287 : vector<16x768xf32>
    %289 = vector.extract_strided_slice %288 {offsets = [0, 0], sizes = [16, 32], strides = [1, 1]} : vector<16x768xf32> to vector<16x32xf32>
    %cst_112 = arith.constant 0.176776692 : f32
    %290 = vector.broadcast %cst_112 : f32 to vector<16x32xf32>
    %291 = arith.mulf %289, %290 : vector<16x32xf32>
    %292 = arith.truncf %291 : vector<16x32xf32> to vector<16x32xbf16>
    %293 = vector.extract_strided_slice %288 {offsets = [0, 256], sizes = [16, 32], strides = [1, 1]} : vector<16x768xf32> to vector<16x32xf32>
    %294 = arith.truncf %293 : vector<16x32xf32> to vector<16x32xbf16>
    %295 = vector.extract_strided_slice %288 {offsets = [0, 512], sizes = [16, 32], strides = [1, 1]} : vector<16x768xf32> to vector<16x32xf32>
    %296 = arith.truncf %295 : vector<16x32xf32> to vector<16x32xbf16>
    %cst_113 = arith.constant dense<0.000000e+00> : vector<16x16xf32>
    %297 = tpu.matmul %292, %294, %cst_113 {dimension_numbers = #tpu.dot_dimension_numbers<[1], [1], [0], [0], [0, 0, 1, 0], [], []>} : vector<16x32xbf16>, vector<16x32xbf16>, vector<16x16xf32> -> vector<16x16xf32>
    %298 = vector.broadcast %3 : vector<1x16xf32> to vector<16x16xf32>
    %299 = arith.addf %297, %298 : vector<16x16xf32>
    %cst_114 = arith.constant dense<0xFF800000> : vector<16xf32>
    %300 = vector.multi_reduction <maximumf>, %299, %cst_114 [1] : vector<16x16xf32> to vector<16xf32>
    %301 = vector.shape_cast %300 : vector<16xf32> to vector<16x1xf32>
    %302 = vector.broadcast %301 : vector<16x1xf32> to vector<16x16xf32>
    %303 = arith.subf %299, %302 : vector<16x16xf32>
    %304 = math.exp %303 : vector<16x16xf32>
    %cst_115 = arith.constant dense<0.000000e+00> : vector<16xf32>
    %305 = vector.multi_reduction <add>, %304, %cst_115 [1] : vector<16x16xf32> to vector<16xf32>
    %306 = vector.shape_cast %305 : vector<16xf32> to vector<16x1xf32>
    %307 = tpu.reciprocal %306 {approx = true} : vector<16x1xf32> -> vector<16x1xf32>
    %308 = vector.broadcast %307 : vector<16x1xf32> to vector<16x16xf32>
    %309 = arith.mulf %304, %308 : vector<16x16xf32>
    %310 = arith.truncf %309 : vector<16x16xf32> to vector<16x16xbf16>
    %cst_116 = arith.constant dense<0.000000e+00> : vector<16x32xf32>
    %311 = tpu.matmul %310, %296, %cst_116 {dimension_numbers = #tpu.dot_dimension_numbers<[1], [0], [0], [1], [0, 0, 1, 1], [], []>} : vector<16x16xbf16>, vector<16x32xbf16>, vector<16x32xf32> -> vector<16x32xf32>
    %c0_117 = arith.constant 0 : index
    %c0_118 = arith.constant 0 : index
    %312 = vector.load %arg16[%c0_117, %c0_118] : memref<16x256xf32, #tpu.memory_space<vmem>>, vector<16x32xf32>
    tpu.vector_store %arg16[%c0_117, %c0_118], %311 {strides = array<i32>} : memref<16x256xf32, #tpu.memory_space<vmem>>, vector<16x32xf32>,
    %313 = vector.extract_strided_slice %288 {offsets = [0, 32], sizes = [16, 32], strides = [1, 1]} : vector<16x768xf32> to vector<16x32xf32>
    %cst_119 = arith.constant 0.176776692 : f32
    %314 = vector.broadcast %cst_119 : f32 to vector<16x32xf32>
    %315 = arith.mulf %313, %314 : vector<16x32xf32>
    %316 = arith.truncf %315 : vector<16x32xf32> to vector<16x32xbf16>
    %317 = vector.extract_strided_slice %288 {offsets = [0, 288], sizes = [16, 32], strides = [1, 1]} : vector<16x768xf32> to vector<16x32xf32>
    %318 = arith.truncf %317 : vector<16x32xf32> to vector<16x32xbf16>
    %319 = vector.extract_strided_slice %288 {offsets = [0, 544], sizes = [16, 32], strides = [1, 1]} : vector<16x768xf32> to vector<16x32xf32>
    %320 = arith.truncf %319 : vector<16x32xf32> to vector<16x32xbf16>
    %cst_120 = arith.constant dense<0.000000e+00> : vector<16x16xf32>
    %321 = tpu.matmul %316, %318, %cst_120 {dimension_numbers = #tpu.dot_dimension_numbers<[1], [1], [0], [0], [0, 0, 1, 0], [], []>} : vector<16x32xbf16>, vector<16x32xbf16>, vector<16x16xf32> -> vector<16x16xf32>
    %322 = vector.broadcast %3 : vector<1x16xf32> to vector<16x16xf32>
    %323 = arith.addf %321, %322 : vector<16x16xf32>
    %cst_121 = arith.constant dense<0xFF800000> : vector<16xf32>
    %324 = vector.multi_reduction <maximumf>, %323, %cst_121 [1] : vector<16x16xf32> to vector<16xf32>
    %325 = vector.shape_cast %324 : vector<16xf32> to vector<16x1xf32>
    %326 = vector.broadcast %325 : vector<16x1xf32> to vector<16x16xf32>
    %327 = arith.subf %323, %326 : vector<16x16xf32>
    %328 = math.exp %327 : vector<16x16xf32>
    %cst_122 = arith.constant dense<0.000000e+00> : vector<16xf32>
    %329 = vector.multi_reduction <add>, %328, %cst_122 [1] : vector<16x16xf32> to vector<16xf32>
    %330 = vector.shape_cast %329 : vector<16xf32> to vector<16x1xf32>
    %331 = tpu.reciprocal %330 {approx = true} : vector<16x1xf32> -> vector<16x1xf32>
    %332 = vector.broadcast %331 : vector<16x1xf32> to vector<16x16xf32>
    %333 = arith.mulf %328, %332 : vector<16x16xf32>
    %334 = arith.truncf %333 : vector<16x16xf32> to vector<16x16xbf16>
    %cst_123 = arith.constant dense<0.000000e+00> : vector<16x32xf32>
    %335 = tpu.matmul %334, %320, %cst_123 {dimension_numbers = #tpu.dot_dimension_numbers<[1], [0], [0], [1], [0, 0, 1, 1], [], []>} : vector<16x16xbf16>, vector<16x32xbf16>, vector<16x32xf32> -> vector<16x32xf32>
    %c0_124 = arith.constant 0 : index
    %c32_125 = arith.constant 32 : index
    %336 = vector.load %arg16[%c0_124, %c32_125] : memref<16x256xf32, #tpu.memory_space<vmem>>, vector<16x32xf32>
    tpu.vector_store %arg16[%c0_124, %c32_125], %335 {strides = array<i32>} : memref<16x256xf32, #tpu.memory_space<vmem>>, vector<16x32xf32>,
    %337 = vector.extract_strided_slice %288 {offsets = [0, 64], sizes = [16, 32], strides = [1, 1]} : vector<16x768xf32> to vector<16x32xf32>
    %cst_126 = arith.constant 0.176776692 : f32
    %338 = vector.broadcast %cst_126 : f32 to vector<16x32xf32>
    %339 = arith.mulf %337, %338 : vector<16x32xf32>
    %340 = arith.truncf %339 : vector<16x32xf32> to vector<16x32xbf16>
    %341 = vector.extract_strided_slice %288 {offsets = [0, 320], sizes = [16, 32], strides = [1, 1]} : vector<16x768xf32> to vector<16x32xf32>
    %342 = arith.truncf %341 : vector<16x32xf32> to vector<16x32xbf16>
    %343 = vector.extract_strided_slice %288 {offsets = [0, 576], sizes = [16, 32], strides = [1, 1]} : vector<16x768xf32> to vector<16x32xf32>
    %344 = arith.truncf %343 : vector<16x32xf32> to vector<16x32xbf16>
    %cst_127 = arith.constant dense<0.000000e+00> : vector<16x16xf32>
    %345 = tpu.matmul %340, %342, %cst_127 {dimension_numbers = #tpu.dot_dimension_numbers<[1], [1], [0], [0], [0, 0, 1, 0], [], []>} : vector<16x32xbf16>, vector<16x32xbf16>, vector<16x16xf32> -> vector<16x16xf32>
    %346 = vector.broadcast %3 : vector<1x16xf32> to vector<16x16xf32>
    %347 = arith.addf %345, %346 : vector<16x16xf32>
    %cst_128 = arith.constant dense<0xFF800000> : vector<16xf32>
    %348 = vector.multi_reduction <maximumf>, %347, %cst_128 [1] : vector<16x16xf32> to vector<16xf32>
    %349 = vector.shape_cast %348 : vector<16xf32> to vector<16x1xf32>
    %350 = vector.broadcast %349 : vector<16x1xf32> to vector<16x16xf32>
    %351 = arith.subf %347, %350 : vector<16x16xf32>
    %352 = math.exp %351 : vector<16x16xf32>
    %cst_129 = arith.constant dense<0.000000e+00> : vector<16xf32>
    %353 = vector.multi_reduction <add>, %352, %cst_129 [1] : vector<16x16xf32> to vector<16xf32>
    %354 = vector.shape_cast %353 : vector<16xf32> to vector<16x1xf32>
    %355 = tpu.reciprocal %354 {approx = true} : vector<16x1xf32> -> vector<16x1xf32>
    %356 = vector.broadcast %355 : vector<16x1xf32> to vector<16x16xf32>
    %357 = arith.mulf %352, %356 : vector<16x16xf32>
    %358 = arith.truncf %357 : vector<16x16xf32> to vector<16x16xbf16>
    %cst_130 = arith.constant dense<0.000000e+00> : vector<16x32xf32>
    %359 = tpu.matmul %358, %344, %cst_130 {dimension_numbers = #tpu.dot_dimension_numbers<[1], [0], [0], [1], [0, 0, 1, 1], [], []>} : vector<16x16xbf16>, vector<16x32xbf16>, vector<16x32xf32> -> vector<16x32xf32>
    %c0_131 = arith.constant 0 : index
    %c64_132 = arith.constant 64 : index
    %360 = vector.load %arg16[%c0_131, %c64_132] : memref<16x256xf32, #tpu.memory_space<vmem>>, vector<16x32xf32>
    tpu.vector_store %arg16[%c0_131, %c64_132], %359 {strides = array<i32>} : memref<16x256xf32, #tpu.memory_space<vmem>>, vector<16x32xf32>,
    %361 = vector.extract_strided_slice %288 {offsets = [0, 96], sizes = [16, 32], strides = [1, 1]} : vector<16x768xf32> to vector<16x32xf32>
    %cst_133 = arith.constant 0.176776692 : f32
    %362 = vector.broadcast %cst_133 : f32 to vector<16x32xf32>
    %363 = arith.mulf %361, %362 : vector<16x32xf32>
    %364 = arith.truncf %363 : vector<16x32xf32> to vector<16x32xbf16>
    %365 = vector.extract_strided_slice %288 {offsets = [0, 352], sizes = [16, 32], strides = [1, 1]} : vector<16x768xf32> to vector<16x32xf32>
    %366 = arith.truncf %365 : vector<16x32xf32> to vector<16x32xbf16>
    %367 = vector.extract_strided_slice %288 {offsets = [0, 608], sizes = [16, 32], strides = [1, 1]} : vector<16x768xf32> to vector<16x32xf32>
    %368 = arith.truncf %367 : vector<16x32xf32> to vector<16x32xbf16>
    %cst_134 = arith.constant dense<0.000000e+00> : vector<16x16xf32>
    %369 = tpu.matmul %364, %366, %cst_134 {dimension_numbers = #tpu.dot_dimension_numbers<[1], [1], [0], [0], [0, 0, 1, 0], [], []>} : vector<16x32xbf16>, vector<16x32xbf16>, vector<16x16xf32> -> vector<16x16xf32>
    %370 = vector.broadcast %3 : vector<1x16xf32> to vector<16x16xf32>
    %371 = arith.addf %369, %370 : vector<16x16xf32>
    %cst_135 = arith.constant dense<0xFF800000> : vector<16xf32>
    %372 = vector.multi_reduction <maximumf>, %371, %cst_135 [1] : vector<16x16xf32> to vector<16xf32>
    %373 = vector.shape_cast %372 : vector<16xf32> to vector<16x1xf32>
    %374 = vector.broadcast %373 : vector<16x1xf32> to vector<16x16xf32>
    %375 = arith.subf %371, %374 : vector<16x16xf32>
    %376 = math.exp %375 : vector<16x16xf32>
    %cst_136 = arith.constant dense<0.000000e+00> : vector<16xf32>
    %377 = vector.multi_reduction <add>, %376, %cst_136 [1] : vector<16x16xf32> to vector<16xf32>
    %378 = vector.shape_cast %377 : vector<16xf32> to vector<16x1xf32>
    %379 = tpu.reciprocal %378 {approx = true} : vector<16x1xf32> -> vector<16x1xf32>
    %380 = vector.broadcast %379 : vector<16x1xf32> to vector<16x16xf32>
    %381 = arith.mulf %376, %380 : vector<16x16xf32>
    %382 = arith.truncf %381 : vector<16x16xf32> to vector<16x16xbf16>
    %cst_137 = arith.constant dense<0.000000e+00> : vector<16x32xf32>
    %383 = tpu.matmul %382, %368, %cst_137 {dimension_numbers = #tpu.dot_dimension_numbers<[1], [0], [0], [1], [0, 0, 1, 1], [], []>} : vector<16x16xbf16>, vector<16x32xbf16>, vector<16x32xf32> -> vector<16x32xf32>
    %c0_138 = arith.constant 0 : index
    %c96_139 = arith.constant 96 : index
    %384 = vector.load %arg16[%c0_138, %c96_139] : memref<16x256xf32, #tpu.memory_space<vmem>>, vector<16x32xf32>
    tpu.vector_store %arg16[%c0_138, %c96_139], %383 {strides = array<i32>} : memref<16x256xf32, #tpu.memory_space<vmem>>, vector<16x32xf32>,
    %385 = vector.extract_strided_slice %288 {offsets = [0, 128], sizes = [16, 32], strides = [1, 1]} : vector<16x768xf32> to vector<16x32xf32>
    %cst_140 = arith.constant 0.176776692 : f32
    %386 = vector.broadcast %cst_140 : f32 to vector<16x32xf32>
    %387 = arith.mulf %385, %386 : vector<16x32xf32>
    %388 = arith.truncf %387 : vector<16x32xf32> to vector<16x32xbf16>
    %389 = vector.extract_strided_slice %288 {offsets = [0, 384], sizes = [16, 32], strides = [1, 1]} : vector<16x768xf32> to vector<16x32xf32>
    %390 = arith.truncf %389 : vector<16x32xf32> to vector<16x32xbf16>
    %391 = vector.extract_strided_slice %288 {offsets = [0, 640], sizes = [16, 32], strides = [1, 1]} : vector<16x768xf32> to vector<16x32xf32>
    %392 = arith.truncf %391 : vector<16x32xf32> to vector<16x32xbf16>
    %cst_141 = arith.constant dense<0.000000e+00> : vector<16x16xf32>
    %393 = tpu.matmul %388, %390, %cst_141 {dimension_numbers = #tpu.dot_dimension_numbers<[1], [1], [0], [0], [0, 0, 1, 0], [], []>} : vector<16x32xbf16>, vector<16x32xbf16>, vector<16x16xf32> -> vector<16x16xf32>
    %394 = vector.broadcast %3 : vector<1x16xf32> to vector<16x16xf32>
    %395 = arith.addf %393, %394 : vector<16x16xf32>
    %cst_142 = arith.constant dense<0xFF800000> : vector<16xf32>
    %396 = vector.multi_reduction <maximumf>, %395, %cst_142 [1] : vector<16x16xf32> to vector<16xf32>
    %397 = vector.shape_cast %396 : vector<16xf32> to vector<16x1xf32>
    %398 = vector.broadcast %397 : vector<16x1xf32> to vector<16x16xf32>
    %399 = arith.subf %395, %398 : vector<16x16xf32>
    %400 = math.exp %399 : vector<16x16xf32>
    %cst_143 = arith.constant dense<0.000000e+00> : vector<16xf32>
    %401 = vector.multi_reduction <add>, %400, %cst_143 [1] : vector<16x16xf32> to vector<16xf32>
    %402 = vector.shape_cast %401 : vector<16xf32> to vector<16x1xf32>
    %403 = tpu.reciprocal %402 {approx = true} : vector<16x1xf32> -> vector<16x1xf32>
    %404 = vector.broadcast %403 : vector<16x1xf32> to vector<16x16xf32>
    %405 = arith.mulf %400, %404 : vector<16x16xf32>
    %406 = arith.truncf %405 : vector<16x16xf32> to vector<16x16xbf16>
    %cst_144 = arith.constant dense<0.000000e+00> : vector<16x32xf32>
    %407 = tpu.matmul %406, %392, %cst_144 {dimension_numbers = #tpu.dot_dimension_numbers<[1], [0], [0], [1], [0, 0, 1, 1], [], []>} : vector<16x16xbf16>, vector<16x32xbf16>, vector<16x32xf32> -> vector<16x32xf32>
    %c0_145 = arith.constant 0 : index
    %c128_146 = arith.constant 128 : index
    %408 = vector.load %arg16[%c0_145, %c128_146] : memref<16x256xf32, #tpu.memory_space<vmem>>, vector<16x32xf32>
    tpu.vector_store %arg16[%c0_145, %c128_146], %407 {strides = array<i32>} : memref<16x256xf32, #tpu.memory_space<vmem>>, vector<16x32xf32>,
    %409 = vector.extract_strided_slice %288 {offsets = [0, 160], sizes = [16, 32], strides = [1, 1]} : vector<16x768xf32> to vector<16x32xf32>
    %cst_147 = arith.constant 0.176776692 : f32
    %410 = vector.broadcast %cst_147 : f32 to vector<16x32xf32>
    %411 = arith.mulf %409, %410 : vector<16x32xf32>
    %412 = arith.truncf %411 : vector<16x32xf32> to vector<16x32xbf16>
    %413 = vector.extract_strided_slice %288 {offsets = [0, 416], sizes = [16, 32], strides = [1, 1]} : vector<16x768xf32> to vector<16x32xf32>
    %414 = arith.truncf %413 : vector<16x32xf32> to vector<16x32xbf16>
    %415 = vector.extract_strided_slice %288 {offsets = [0, 672], sizes = [16, 32], strides = [1, 1]} : vector<16x768xf32> to vector<16x32xf32>
    %416 = arith.truncf %415 : vector<16x32xf32> to vector<16x32xbf16>
    %cst_148 = arith.constant dense<0.000000e+00> : vector<16x16xf32>
    %417 = tpu.matmul %412, %414, %cst_148 {dimension_numbers = #tpu.dot_dimension_numbers<[1], [1], [0], [0], [0, 0, 1, 0], [], []>} : vector<16x32xbf16>, vector<16x32xbf16>, vector<16x16xf32> -> vector<16x16xf32>
    %418 = vector.broadcast %3 : vector<1x16xf32> to vector<16x16xf32>
    %419 = arith.addf %417, %418 : vector<16x16xf32>
    %cst_149 = arith.constant dense<0xFF800000> : vector<16xf32>
    %420 = vector.multi_reduction <maximumf>, %419, %cst_149 [1] : vector<16x16xf32> to vector<16xf32>
    %421 = vector.shape_cast %420 : vector<16xf32> to vector<16x1xf32>
    %422 = vector.broadcast %421 : vector<16x1xf32> to vector<16x16xf32>
    %423 = arith.subf %419, %422 : vector<16x16xf32>
    %424 = math.exp %423 : vector<16x16xf32>
    %cst_150 = arith.constant dense<0.000000e+00> : vector<16xf32>
    %425 = vector.multi_reduction <add>, %424, %cst_150 [1] : vector<16x16xf32> to vector<16xf32>
    %426 = vector.shape_cast %425 : vector<16xf32> to vector<16x1xf32>
    %427 = tpu.reciprocal %426 {approx = true} : vector<16x1xf32> -> vector<16x1xf32>
    %428 = vector.broadcast %427 : vector<16x1xf32> to vector<16x16xf32>
    %429 = arith.mulf %424, %428 : vector<16x16xf32>
    %430 = arith.truncf %429 : vector<16x16xf32> to vector<16x16xbf16>
    %cst_151 = arith.constant dense<0.000000e+00> : vector<16x32xf32>
    %431 = tpu.matmul %430, %416, %cst_151 {dimension_numbers = #tpu.dot_dimension_numbers<[1], [0], [0], [1], [0, 0, 1, 1], [], []>} : vector<16x16xbf16>, vector<16x32xbf16>, vector<16x32xf32> -> vector<16x32xf32>
    %c0_152 = arith.constant 0 : index
    %c160_153 = arith.constant 160 : index
    %432 = vector.load %arg16[%c0_152, %c160_153] : memref<16x256xf32, #tpu.memory_space<vmem>>, vector<16x32xf32>
    tpu.vector_store %arg16[%c0_152, %c160_153], %431 {strides = array<i32>} : memref<16x256xf32, #tpu.memory_space<vmem>>, vector<16x32xf32>,
    %433 = vector.extract_strided_slice %288 {offsets = [0, 192], sizes = [16, 32], strides = [1, 1]} : vector<16x768xf32> to vector<16x32xf32>
    %cst_154 = arith.constant 0.176776692 : f32
    %434 = vector.broadcast %cst_154 : f32 to vector<16x32xf32>
    %435 = arith.mulf %433, %434 : vector<16x32xf32>
    %436 = arith.truncf %435 : vector<16x32xf32> to vector<16x32xbf16>
    %437 = vector.extract_strided_slice %288 {offsets = [0, 448], sizes = [16, 32], strides = [1, 1]} : vector<16x768xf32> to vector<16x32xf32>
    %438 = arith.truncf %437 : vector<16x32xf32> to vector<16x32xbf16>
    %439 = vector.extract_strided_slice %288 {offsets = [0, 704], sizes = [16, 32], strides = [1, 1]} : vector<16x768xf32> to vector<16x32xf32>
    %440 = arith.truncf %439 : vector<16x32xf32> to vector<16x32xbf16>
    %cst_155 = arith.constant dense<0.000000e+00> : vector<16x16xf32>
    %441 = tpu.matmul %436, %438, %cst_155 {dimension_numbers = #tpu.dot_dimension_numbers<[1], [1], [0], [0], [0, 0, 1, 0], [], []>} : vector<16x32xbf16>, vector<16x32xbf16>, vector<16x16xf32> -> vector<16x16xf32>
    %442 = vector.broadcast %3 : vector<1x16xf32> to vector<16x16xf32>
    %443 = arith.addf %441, %442 : vector<16x16xf32>
    %cst_156 = arith.constant dense<0xFF800000> : vector<16xf32>
    %444 = vector.multi_reduction <maximumf>, %443, %cst_156 [1] : vector<16x16xf32> to vector<16xf32>
    %445 = vector.shape_cast %444 : vector<16xf32> to vector<16x1xf32>
    %446 = vector.broadcast %445 : vector<16x1xf32> to vector<16x16xf32>
    %447 = arith.subf %443, %446 : vector<16x16xf32>
    %448 = math.exp %447 : vector<16x16xf32>
    %cst_157 = arith.constant dense<0.000000e+00> : vector<16xf32>
    %449 = vector.multi_reduction <add>, %448, %cst_157 [1] : vector<16x16xf32> to vector<16xf32>
    %450 = vector.shape_cast %449 : vector<16xf32> to vector<16x1xf32>
    %451 = tpu.reciprocal %450 {approx = true} : vector<16x1xf32> -> vector<16x1xf32>
    %452 = vector.broadcast %451 : vector<16x1xf32> to vector<16x16xf32>
    %453 = arith.mulf %448, %452 : vector<16x16xf32>
    %454 = arith.truncf %453 : vector<16x16xf32> to vector<16x16xbf16>
    %cst_158 = arith.constant dense<0.000000e+00> : vector<16x32xf32>
    %455 = tpu.matmul %454, %440, %cst_158 {dimension_numbers = #tpu.dot_dimension_numbers<[1], [0], [0], [1], [0, 0, 1, 1], [], []>} : vector<16x16xbf16>, vector<16x32xbf16>, vector<16x32xf32> -> vector<16x32xf32>
    %c0_159 = arith.constant 0 : index
    %c192_160 = arith.constant 192 : index
    %456 = vector.load %arg16[%c0_159, %c192_160] : memref<16x256xf32, #tpu.memory_space<vmem>>, vector<16x32xf32>
    tpu.vector_store %arg16[%c0_159, %c192_160], %455 {strides = array<i32>} : memref<16x256xf32, #tpu.memory_space<vmem>>, vector<16x32xf32>,
    %457 = vector.extract_strided_slice %288 {offsets = [0, 224], sizes = [16, 32], strides = [1, 1]} : vector<16x768xf32> to vector<16x32xf32>
    %cst_161 = arith.constant 0.176776692 : f32
    %458 = vector.broadcast %cst_161 : f32 to vector<16x32xf32>
    %459 = arith.mulf %457, %458 : vector<16x32xf32>
    %460 = arith.truncf %459 : vector<16x32xf32> to vector<16x32xbf16>
    %461 = vector.extract_strided_slice %288 {offsets = [0, 480], sizes = [16, 32], strides = [1, 1]} : vector<16x768xf32> to vector<16x32xf32>
    %462 = arith.truncf %461 : vector<16x32xf32> to vector<16x32xbf16>
    %463 = vector.extract_strided_slice %288 {offsets = [0, 736], sizes = [16, 32], strides = [1, 1]} : vector<16x768xf32> to vector<16x32xf32>
    %464 = arith.truncf %463 : vector<16x32xf32> to vector<16x32xbf16>
    %cst_162 = arith.constant dense<0.000000e+00> : vector<16x16xf32>
    %465 = tpu.matmul %460, %462, %cst_162 {dimension_numbers = #tpu.dot_dimension_numbers<[1], [1], [0], [0], [0, 0, 1, 0], [], []>} : vector<16x32xbf16>, vector<16x32xbf16>, vector<16x16xf32> -> vector<16x16xf32>
    %466 = vector.broadcast %3 : vector<1x16xf32> to vector<16x16xf32>
    %467 = arith.addf %465, %466 : vector<16x16xf32>
    %cst_163 = arith.constant dense<0xFF800000> : vector<16xf32>
    %468 = vector.multi_reduction <maximumf>, %467, %cst_163 [1] : vector<16x16xf32> to vector<16xf32>
    %469 = vector.shape_cast %468 : vector<16xf32> to vector<16x1xf32>
    %470 = vector.broadcast %469 : vector<16x1xf32> to vector<16x16xf32>
    %471 = arith.subf %467, %470 : vector<16x16xf32>
    %472 = math.exp %471 : vector<16x16xf32>
    %cst_164 = arith.constant dense<0.000000e+00> : vector<16xf32>
    %473 = vector.multi_reduction <add>, %472, %cst_164 [1] : vector<16x16xf32> to vector<16xf32>
    %474 = vector.shape_cast %473 : vector<16xf32> to vector<16x1xf32>
    %475 = tpu.reciprocal %474 {approx = true} : vector<16x1xf32> -> vector<16x1xf32>
    %476 = vector.broadcast %475 : vector<16x1xf32> to vector<16x16xf32>
    %477 = arith.mulf %472, %476 : vector<16x16xf32>
    %478 = arith.truncf %477 : vector<16x16xf32> to vector<16x16xbf16>
    %cst_165 = arith.constant dense<0.000000e+00> : vector<16x32xf32>
    %479 = tpu.matmul %478, %464, %cst_165 {dimension_numbers = #tpu.dot_dimension_numbers<[1], [0], [0], [1], [0, 0, 1, 1], [], []>} : vector<16x16xbf16>, vector<16x32xbf16>, vector<16x32xf32> -> vector<16x32xf32>
    %c0_166 = arith.constant 0 : index
    %c224_167 = arith.constant 224 : index
    %480 = vector.load %arg16[%c0_166, %c224_167] : memref<16x256xf32, #tpu.memory_space<vmem>>, vector<16x32xf32>
    tpu.vector_store %arg16[%c0_166, %c224_167], %479 {strides = array<i32>} : memref<16x256xf32, #tpu.memory_space<vmem>>, vector<16x32xf32>,
    %c0_168 = arith.constant 0 : index
    %c0_169 = arith.constant 0 : index
    %481 = vector.load %arg16[%c0_168, %c0_169] : memref<16x256xf32, #tpu.memory_space<vmem>>, vector<16x256xf32>
    %482 = arith.truncf %481 : vector<16x256xf32> to vector<16x256xbf16>
    %c1_170 = arith.constant 1 : index
    %c0_171 = arith.constant 0 : index
    %c0_172 = arith.constant 0 : index
    %483 = vector.load %arg5[%c1_170, %c0_171, %c0_172] : memref<2x256x256xbf16, #tpu.memory_space<vmem>>, vector<1x256x256xbf16>
    %484 = vector.shape_cast %483 : vector<1x256x256xbf16> to vector<256x256xbf16>
    %cst_173 = arith.constant dense<0.000000e+00> : vector<16x256xf32>
    %485 = tpu.matmul %482, %484, %cst_173 {dimension_numbers = #tpu.dot_dimension_numbers<[1], [0], [0], [1], [0, 0, 1, 1], [], []>} : vector<16x256xbf16>, vector<256x256xbf16>, vector<16x256xf32> -> vector<16x256xf32>
    %c1_174 = arith.constant 1 : index
    %c0_175 = arith.constant 0 : index
    %c0_176 = arith.constant 0 : index
    %486 = vector.load %arg6[%c1_174, %c0_175, %c0_176] : memref<2x1x256xf32, #tpu.memory_space<vmem>>, vector<1x1x256xf32>
    %487 = vector.shape_cast %486 : vector<1x1x256xf32> to vector<1x256xf32>
    %488 = vector.broadcast %487 : vector<1x256xf32> to vector<16x256xf32>
    %489 = arith.addf %485, %488 : vector<16x256xf32>
    %490 = arith.addf %489, %280 : vector<16x256xf32>
    %c1_177 = arith.constant 1 : index
    %c0_178 = arith.constant 0 : index
    %c0_179 = arith.constant 0 : index
    %491 = vector.load %arg7[%c1_177, %c0_178, %c0_179] : memref<2x1x256xf32, #tpu.memory_space<vmem>>, vector<1x1x256xf32>
    %492 = vector.shape_cast %491 : vector<1x1x256xf32> to vector<1x256xf32>
    %c1_180 = arith.constant 1 : index
    %c0_181 = arith.constant 0 : index
    %c0_182 = arith.constant 0 : index
    %493 = vector.load %arg8[%c1_180, %c0_181, %c0_182] : memref<2x1x256xf32, #tpu.memory_space<vmem>>, vector<1x1x256xf32>
    %494 = vector.shape_cast %493 : vector<1x1x256xf32> to vector<1x256xf32>
    %cst_183 = arith.constant dense<0.000000e+00> : vector<16xf32>
    %495 = vector.multi_reduction <add>, %490, %cst_183 [1] : vector<16x256xf32> to vector<16xf32>
    %496 = vector.shape_cast %495 : vector<16xf32> to vector<16x1xf32>
    %cst_184 = arith.constant 2.560000e+02 : f32
    %497 = vector.broadcast %cst_184 : f32 to vector<16x1xf32>
    %498 = arith.divf %496, %497 : vector<16x1xf32>
    %499 = vector.broadcast %498 : vector<16x1xf32> to vector<16x256xf32>
    %500 = arith.subf %490, %499 : vector<16x256xf32>
    %501 = arith.mulf %500, %500 : vector<16x256xf32>
    %cst_185 = arith.constant dense<0.000000e+00> : vector<16xf32>
    %502 = vector.multi_reduction <add>, %501, %cst_185 [1] : vector<16x256xf32> to vector<16xf32>
    %503 = vector.shape_cast %502 : vector<16xf32> to vector<16x1xf32>
    %cst_186 = arith.constant 2.560000e+02 : f32
    %504 = vector.broadcast %cst_186 : f32 to vector<16x1xf32>
    %505 = arith.divf %503, %504 : vector<16x1xf32>
    %cst_187 = arith.constant 9.99999974E-6 : f32
    %506 = vector.broadcast %cst_187 : f32 to vector<16x1xf32>
    %507 = arith.addf %505, %506 : vector<16x1xf32>
    %508 = math.rsqrt %507 : vector<16x1xf32>
    %509 = vector.broadcast %508 : vector<16x1xf32> to vector<16x256xf32>
    %510 = arith.mulf %500, %509 : vector<16x256xf32>
    %511 = vector.broadcast %492 : vector<1x256xf32> to vector<16x256xf32>
    %512 = arith.mulf %510, %511 : vector<16x256xf32>
    %513 = vector.broadcast %494 : vector<1x256xf32> to vector<16x256xf32>
    %514 = arith.addf %512, %513 : vector<16x256xf32>
    %515 = arith.truncf %514 : vector<16x256xf32> to vector<16x256xbf16>
    %c1_188 = arith.constant 1 : index
    %c0_189 = arith.constant 0 : index
    %c0_190 = arith.constant 0 : index
    %516 = vector.load %arg9[%c1_188, %c0_189, %c0_190] : memref<2x256x512xbf16, #tpu.memory_space<vmem>>, vector<1x256x512xbf16>
    %517 = vector.shape_cast %516 : vector<1x256x512xbf16> to vector<256x512xbf16>
    %cst_191 = arith.constant dense<0.000000e+00> : vector<16x512xf32>
    %518 = tpu.matmul %515, %517, %cst_191 {dimension_numbers = #tpu.dot_dimension_numbers<[1], [0], [0], [1], [0, 0, 1, 1], [], []>} : vector<16x256xbf16>, vector<256x512xbf16>, vector<16x512xf32> -> vector<16x512xf32>
    %c1_192 = arith.constant 1 : index
    %c0_193 = arith.constant 0 : index
    %c0_194 = arith.constant 0 : index
    %519 = vector.load %arg10[%c1_192, %c0_193, %c0_194] : memref<2x1x512xf32, #tpu.memory_space<vmem>>, vector<1x1x512xf32>
    %520 = vector.shape_cast %519 : vector<1x1x512xf32> to vector<1x512xf32>
    %521 = vector.broadcast %520 : vector<1x512xf32> to vector<16x512xf32>
    %522 = arith.addf %518, %521 : vector<16x512xf32>
    %cst_195 = arith.constant 0.000000e+00 : f32
    %523 = vector.broadcast %cst_195 : f32 to vector<16x512xf32>
    %524 = arith.maximumf %522, %523 : vector<16x512xf32>
    %525 = arith.truncf %524 : vector<16x512xf32> to vector<16x512xbf16>
    %c1_196 = arith.constant 1 : index
    %c0_197 = arith.constant 0 : index
    %c0_198 = arith.constant 0 : index
    %526 = vector.load %arg11[%c1_196, %c0_197, %c0_198] : memref<2x512x256xbf16, #tpu.memory_space<vmem>>, vector<1x512x256xbf16>
    %527 = vector.shape_cast %526 : vector<1x512x256xbf16> to vector<512x256xbf16>
    %cst_199 = arith.constant dense<0.000000e+00> : vector<16x256xf32>
    %528 = tpu.matmul %525, %527, %cst_199 {dimension_numbers = #tpu.dot_dimension_numbers<[1], [0], [0], [1], [0, 0, 1, 1], [], []>} : vector<16x512xbf16>, vector<512x256xbf16>, vector<16x256xf32> -> vector<16x256xf32>
    %c1_200 = arith.constant 1 : index
    %c0_201 = arith.constant 0 : index
    %c0_202 = arith.constant 0 : index
    %529 = vector.load %arg12[%c1_200, %c0_201, %c0_202] : memref<2x1x256xf32, #tpu.memory_space<vmem>>, vector<1x1x256xf32>
    %530 = vector.shape_cast %529 : vector<1x1x256xf32> to vector<1x256xf32>
    %531 = vector.broadcast %530 : vector<1x256xf32> to vector<16x256xf32>
    %532 = arith.addf %528, %531 : vector<16x256xf32>
    %533 = arith.addf %532, %514 : vector<16x256xf32>
    %c1_203 = arith.constant 1 : index
    %c0_204 = arith.constant 0 : index
    %c0_205 = arith.constant 0 : index
    %534 = vector.load %arg13[%c1_203, %c0_204, %c0_205] : memref<2x1x256xf32, #tpu.memory_space<vmem>>, vector<1x1x256xf32>
    %535 = vector.shape_cast %534 : vector<1x1x256xf32> to vector<1x256xf32>
    %c1_206 = arith.constant 1 : index
    %c0_207 = arith.constant 0 : index
    %c0_208 = arith.constant 0 : index
    %536 = vector.load %arg14[%c1_206, %c0_207, %c0_208] : memref<2x1x256xf32, #tpu.memory_space<vmem>>, vector<1x1x256xf32>
    %537 = vector.shape_cast %536 : vector<1x1x256xf32> to vector<1x256xf32>
    %cst_209 = arith.constant dense<0.000000e+00> : vector<16xf32>
    %538 = vector.multi_reduction <add>, %533, %cst_209 [1] : vector<16x256xf32> to vector<16xf32>
    %539 = vector.shape_cast %538 : vector<16xf32> to vector<16x1xf32>
    %cst_210 = arith.constant 2.560000e+02 : f32
    %540 = vector.broadcast %cst_210 : f32 to vector<16x1xf32>
    %541 = arith.divf %539, %540 : vector<16x1xf32>
    %542 = vector.broadcast %541 : vector<16x1xf32> to vector<16x256xf32>
    %543 = arith.subf %533, %542 : vector<16x256xf32>
    %544 = arith.mulf %543, %543 : vector<16x256xf32>
    %cst_211 = arith.constant dense<0.000000e+00> : vector<16xf32>
    %545 = vector.multi_reduction <add>, %544, %cst_211 [1] : vector<16x256xf32> to vector<16xf32>
    %546 = vector.shape_cast %545 : vector<16xf32> to vector<16x1xf32>
    %cst_212 = arith.constant 2.560000e+02 : f32
    %547 = vector.broadcast %cst_212 : f32 to vector<16x1xf32>
    %548 = arith.divf %546, %547 : vector<16x1xf32>
    %cst_213 = arith.constant 9.99999974E-6 : f32
    %549 = vector.broadcast %cst_213 : f32 to vector<16x1xf32>
    %550 = arith.addf %548, %549 : vector<16x1xf32>
    %551 = math.rsqrt %550 : vector<16x1xf32>
    %552 = vector.broadcast %551 : vector<16x1xf32> to vector<16x256xf32>
    %553 = arith.mulf %543, %552 : vector<16x256xf32>
    %554 = vector.broadcast %535 : vector<1x256xf32> to vector<16x256xf32>
    %555 = arith.mulf %553, %554 : vector<16x256xf32>
    %556 = vector.broadcast %537 : vector<1x256xf32> to vector<16x256xf32>
    %557 = arith.addf %555, %556 : vector<16x256xf32>
    %558 = vector.extract_strided_slice %557 {offsets = [0, 0], sizes = [1, 256], strides = [1, 1]} : vector<16x256xf32> to vector<1x256xf32>
    %c0_214 = arith.constant 0 : index
    %c0_215 = arith.constant 0 : index
    %c0_216 = arith.constant 0 : index
    %559 = vector.load %arg15[%c0_214, %c0_215, %c0_216] : memref<1x1x256xf32, #tpu.memory_space<vmem>>, vector<1x1x256xf32>
    %560 = vector.shape_cast %559 : vector<1x1x256xf32> to vector<1x256xf32>
    %561 = vector.shape_cast %558 : vector<1x256xf32> to vector<1x1x256xf32>
    tpu.vector_store %arg15[%c0_214, %c0_215, %c0_216], %561 {strides = array<i32>} : memref<1x1x256xf32, #tpu.memory_space<vmem>>, vector<1x1x256xf32>,
    return
  }
  func.func @transform_0(%arg0: i32) -> (i32, i32, i32) {
    %c0_i32 = arith.constant 0 : i32
    %c0_i32_0 = arith.constant 0 : i32
    %c0_i32_1 = arith.constant 0 : i32
    return %arg0, %c0_i32, %c0_i32_0 : i32, i32, i32
  }
  func.func @transform_1(%arg0: i32) -> (i32, i32, i32) {
    %c0_i32 = arith.constant 0 : i32
    %c0_i32_0 = arith.constant 0 : i32
    %c0_i32_1 = arith.constant 0 : i32
    return %arg0, %c0_i32, %c0_i32_0 : i32, i32, i32
  }
  func.func @transform_2(%arg0: i32) -> (i32, i32, i32) {
    %c0_i32 = arith.constant 0 : i32
    %c0_i32_0 = arith.constant 0 : i32
    %c0_i32_1 = arith.constant 0 : i32
    %c0_i32_2 = arith.constant 0 : i32
    return %c0_i32, %c0_i32_0, %c0_i32_1 : i32, i32, i32
  }
  func.func @transform_3(%arg0: i32) -> (i32, i32, i32) {
    %c0_i32 = arith.constant 0 : i32
    %c0_i32_0 = arith.constant 0 : i32
    %c0_i32_1 = arith.constant 0 : i32
    %c0_i32_2 = arith.constant 0 : i32
    return %c0_i32, %c0_i32_0, %c0_i32_1 : i32, i32, i32
  }
  func.func @transform_4(%arg0: i32) -> (i32, i32, i32) {
    %c0_i32 = arith.constant 0 : i32
    %c0_i32_0 = arith.constant 0 : i32
    %c0_i32_1 = arith.constant 0 : i32
    %c0_i32_2 = arith.constant 0 : i32
    return %c0_i32, %c0_i32_0, %c0_i32_1 : i32, i32, i32
  }
  func.func @transform_5(%arg0: i32) -> (i32, i32, i32) {
    %c0_i32 = arith.constant 0 : i32
    %c0_i32_0 = arith.constant 0 : i32
    %c0_i32_1 = arith.constant 0 : i32
    %c0_i32_2 = arith.constant 0 : i32
    return %c0_i32, %c0_i32_0, %c0_i32_1 : i32, i32, i32
  }
  func.func @transform_6(%arg0: i32) -> (i32, i32, i32) {
    %c0_i32 = arith.constant 0 : i32
    %c0_i32_0 = arith.constant 0 : i32
    %c0_i32_1 = arith.constant 0 : i32
    %c0_i32_2 = arith.constant 0 : i32
    return %c0_i32, %c0_i32_0, %c0_i32_1 : i32, i32, i32
  }
  func.func @transform_7(%arg0: i32) -> (i32, i32, i32) {
    %c0_i32 = arith.constant 0 : i32
    %c0_i32_0 = arith.constant 0 : i32
    %c0_i32_1 = arith.constant 0 : i32
    %c0_i32_2 = arith.constant 0 : i32
    return %c0_i32, %c0_i32_0, %c0_i32_1 : i32, i32, i32
  }
  func.func @transform_8(%arg0: i32) -> (i32, i32, i32) {
    %c0_i32 = arith.constant 0 : i32
    %c0_i32_0 = arith.constant 0 : i32
    %c0_i32_1 = arith.constant 0 : i32
    %c0_i32_2 = arith.constant 0 : i32
    return %c0_i32, %c0_i32_0, %c0_i32_1 : i32, i32, i32
  }
  func.func @transform_9(%arg0: i32) -> (i32, i32, i32) {
    %c0_i32 = arith.constant 0 : i32
    %c0_i32_0 = arith.constant 0 : i32
    %c0_i32_1 = arith.constant 0 : i32
    %c0_i32_2 = arith.constant 0 : i32
    return %c0_i32, %c0_i32_0, %c0_i32_1 : i32, i32, i32
  }
  func.func @transform_10(%arg0: i32) -> (i32, i32, i32) {
    %c0_i32 = arith.constant 0 : i32
    %c0_i32_0 = arith.constant 0 : i32
    %c0_i32_1 = arith.constant 0 : i32
    %c0_i32_2 = arith.constant 0 : i32
    return %c0_i32, %c0_i32_0, %c0_i32_1 : i32, i32, i32
  }
  func.func @transform_11(%arg0: i32) -> (i32, i32, i32) {
    %c0_i32 = arith.constant 0 : i32
    %c0_i32_0 = arith.constant 0 : i32
    %c0_i32_1 = arith.constant 0 : i32
    %c0_i32_2 = arith.constant 0 : i32
    return %c0_i32, %c0_i32_0, %c0_i32_1 : i32, i32, i32
  }
  func.func @transform_12(%arg0: i32) -> (i32, i32, i32) {
    %c0_i32 = arith.constant 0 : i32
    %c0_i32_0 = arith.constant 0 : i32
    %c0_i32_1 = arith.constant 0 : i32
    %c0_i32_2 = arith.constant 0 : i32
    return %c0_i32, %c0_i32_0, %c0_i32_1 : i32, i32, i32
  }
  func.func @transform_13(%arg0: i32) -> (i32, i32, i32) {
    %c0_i32 = arith.constant 0 : i32
    %c0_i32_0 = arith.constant 0 : i32
    %c0_i32_1 = arith.constant 0 : i32
    %c0_i32_2 = arith.constant 0 : i32
    return %c0_i32, %c0_i32_0, %c0_i32_1 : i32, i32, i32
  }
  func.func @transform_14(%arg0: i32) -> (i32, i32, i32) {
    %c0_i32 = arith.constant 0 : i32
    %c0_i32_0 = arith.constant 0 : i32
    %c0_i32_1 = arith.constant 0 : i32
    return %arg0, %c0_i32, %c0_i32_0 : i32, i32, i32
  }
}

</mosaic_0001>

<llo_original>
// kernel: text_encoder_forward.1
$region0: #{text_encoder_forward.1}
  #allocation0 [shape = 'u32[]', space=smem, size = 0x4, offset = 0x4, fixed_abs, tag = 'smem constant byte address 0x4 - core index']
  #allocation1 [shape = 'u32[144,128]{1,0:T(1,128)}', space=vmem, size = 0x12000, scoped, tag = 'internal scratch']
  #allocation2 [shape = 'f32[16,256]{1,0:T(8,128)}', space=vmem, size = 0x4000, scoped, tag = 'scratch operand']
  %s0 = inlined_call_operand.vmem [shape: f32[2,16,256], index: 0, kind: input, shape index: {}]
  %s1 = inlined_call_operand.vmem [shape: f32[2,1,16], index: 1, kind: input, shape index: {}]
  %s2 = inlined_call_operand.hbm [shape: bf16[2,256,768], index: 2, kind: input, shape index: {}]
  %s3 = inlined_call_operand.vmem [shape: f32[2,1,768], index: 3, kind: input, shape index: {}]
  %s4 = inlined_call_operand.vmem [shape: bf16[2,256,256], index: 4, kind: input, shape index: {}]
  %s5 = inlined_call_operand.vmem [shape: f32[2,1,256], index: 5, kind: input, shape index: {}]
  %s6 = inlined_call_operand.vmem [shape: f32[2,1,256], index: 6, kind: input, shape index: {}]
  %s7 = inlined_call_operand.vmem [shape: f32[2,1,256], index: 7, kind: input, shape index: {}]
  %s8 = inlined_call_operand.hbm [shape: bf16[2,256,512], index: 8, kind: input, shape index: {}]
  %s9 = inlined_call_operand.vmem [shape: f32[2,1,512], index: 9, kind: input, shape index: {}]
  %s10 = inlined_call_operand.hbm [shape: bf16[2,512,256], index: 10, kind: input, shape index: {}]
  %s11 = inlined_call_operand.vmem [shape: f32[2,1,256], index: 11, kind: input, shape index: {}]
  %s12 = inlined_call_operand.vmem [shape: f32[2,1,256], index: 12, kind: input, shape index: {}]
  %s13 = inlined_call_operand.vmem [shape: f32[2,1,256], index: 13, kind: input, shape index: {}]
  %s14 = inlined_call_operand.vmem [shape: f32[2,1,256], index: 14, kind: output, shape index: {}]
  %s15 = sld [smem:[#allocation0]]
  $region101: #{text_encoder_forward.1} parent=0
    _
  %s17 = ssub.s32 1, %s15
  %s18 = scalar_select 0, %s17, %s15
  $region1: #{text_encoder_forward.1} parent=0
    #allocation3 [shape = 'u8[786432]{0}', space=vmem, size = 0xc0000, scoped, tag = 'input window, operand 2, single buffered']
    #allocation4 [shape = 's32[2]{0}', space=sflag, size = 0x8, scoped, tag = 'scoped memory for text_encoder_forward.1']
    #allocation5 [shape = 'u8[524288]{0}', space=vmem, size = 0x80000, scoped, tag = 'input window, operand 8, single buffered']
    #allocation6 [shape = 's32[1]{0}', space=sflag, size = 0x4, scoped, tag = 'scoped memory for text_encoder_forward.1']
    #allocation7 [shape = 'u8[524288]{0}', space=vmem, size = 0x80000, scoped, tag = 'input window, operand 10, single buffered']
    %19 = vsyncpa [#allocation4], 0
    %20 = vsyncpa [#allocation6], 0
    loop: start=0, step=1, limit=4
    $region2: #{text_encoder_forward.1} parent=1 // loop_pre_header
      _
    $region3: #{text_encoder_forward.1} parent=1 // loop_header
      %s22 = sphi 0, %s26
      %p23 = scmp.ge.s32.totalorder %s22, 4
      %s32 = sphi 0, %s34
      %s35 = sphi 0, %s32
      %s36 = sphi 0, %s35
      %s52 = sphi 0, %s36
      %s58 = sphi 0, %s60
      %s61 = sphi 0, %s58
      %s62 = sphi 0, %s61
      %s78 = sphi 0, %s62
      %s82 = sphi 0, %s82
      %s84 = sphi 0, %s82
      %s85 = sphi 0, %s84
      %s99 = sphi 0, %s85
      %s103 = sphi 0, %s103
      %s105 = sphi 0, %s103
      %s106 = sphi 0, %s105
      %s120 = sphi 0, %s106
      %s124 = sphi 0, %s124
      %s126 = sphi 0, %s124
      %s127 = sphi 0, %s126
      %s141 = sphi 0, %s127
      %s145 = sphi 0, %s145
      %s147 = sphi 0, %s145
      %s148 = sphi 0, %s147
      %s162 = sphi 0, %s148
      %s166 = sphi 0, %s166
      %s168 = sphi 0, %s166
      %s169 = sphi 0, %s168
      %s183 = sphi 0, %s169
      %s187 = sphi 0, %s187
      %s189 = sphi 0, %s187
      %s190 = sphi 0, %s189
      %s204 = sphi 0, %s190
      %s208 = sphi 0, %s208
      %s210 = sphi 0, %s208
      %s211 = sphi 0, %s210
      %s225 = sphi 0, %s211
      %s229 = sphi 0, %s229
      %s231 = sphi 0, %s229
      %s232 = sphi 0, %s231
      %s246 = sphi 0, %s232
      %s250 = sphi 0, %s250
      %s252 = sphi 0, %s250
      %s253 = sphi 0, %s252
      %s267 = sphi 0, %s253
      %s271 = sphi 0, %s271
      %s273 = sphi 0, %s271
      %s274 = sphi 0, %s273
      %s288 = sphi 0, %s274
      %s292 = sphi 0, %s292
      %s294 = sphi 0, %s292
      %s295 = sphi 0, %s294
      %s309 = sphi 0, %s295
      %s313 = sphi 0, %s313
      %s315 = sphi 0, %s313
      %s316 = sphi 0, %s315
      %s330 = sphi 0, %s316
      %s336 = sphi 0, %s338
      %s339 = sphi 0, %s336
      %s340 = sphi 0, %s339
      %s356 = sphi 0, %s340
    $region4: #{text_encoder_forward.1} parent=1 // loop_header_branch
      %25 = sbr.rel (%p23) target = $region8
    $region5: #{text_encoder_forward.1} parent=1 // loop_body
      %s27 = ssub.s32 %s22, 1
      %s28 = ssub.s32 %s22, 2
      %s29 = sadd.s32 %s22, 1
      %s30 = ssub.s32 %s22, %s29
      %p31 = scmp.eq.s32.totalorder %s30, 0
      %s33 = sadd.s32 %s32, 1
      %s34 = scalar_select %p31, %s32, %s33
      %p37 = pneg %p31
      %p38 = scmp.eq.s32.totalorder %s22, 1
      %p39 = por %p37, %p38
      %p40 = scmp.ne.s32.totalorder %s32, %s35
      %p41 = scmp.eq.s32.totalorder %s22, 0
      %p42 = por %p40, %p41
      %p43 = scmp.ne.s32.totalorder %s32, %s35
      %p44 = scmp.eq.s32.totalorder %s27, 1
      %p45 = por %p43, %p44
      %p46 = scmp.ne.s32.totalorder %s35, %s36
      %p47 = scmp.eq.s32.totalorder %s27, 0
      %p48 = por %p46, %p47
      %p49 = scmp.ne.s32.totalorder %s35, %s36
      %p50 = scmp.eq.s32.totalorder %s28, 1
      %p51 = por %p49, %p50
      %p53 = scmp.ne.s32.totalorder %s36, %s52
      %p54 = scmp.eq.s32.totalorder %s28, 0
      %p55 = por %p53, %p54
      %s56 = ssub.s32 %s22, %s29
      %p57 = scmp.eq.s32.totalorder %s56, 0
      %s59 = sadd.s32 %s58, 1
      %s60 = scalar_select %p57, %s58, %s59
      %p63 = pneg %p57
      %p64 = scmp.eq.s32.totalorder %s22, 1
      %p65 = por %p63, %p64
      %p66 = scmp.ne.s32.totalorder %s58, %s61
      %p67 = scmp.eq.s32.totalorder %s22, 0
      %p68 = por %p66, %p67
      %p69 = scmp.ne.s32.totalorder %s58, %s61
      %p70 = scmp.eq.s32.totalorder %s27, 1
      %p71 = por %p69, %p70
      %p72 = scmp.ne.s32.totalorder %s61, %s62
      %p73 = scmp.eq.s32.totalorder %s27, 0
      %p74 = por %p72, %p73
      %p75 = scmp.ne.s32.totalorder %s61, %s62
      %p76 = scmp.eq.s32.totalorder %s28, 1
      %p77 = por %p75, %p76
      %p79 = scmp.ne.s32.totalorder %s62, %s78
      %p80 = scmp.eq.s32.totalorder %s28, 0
      %p81 = por %p79, %p80
      %s83 = sadd.s32 %s82, 1
      %p86 = scmp.eq.s32.totalorder %s22, 1
      %p87 = scmp.ne.s32.totalorder %s82, %s84
      %p88 = scmp.eq.s32.totalorder %s22, 0
      %p89 = por %p87, %p88
      %p90 = scmp.ne.s32.totalorder %s82, %s84
      %p91 = scmp.eq.s32.totalorder %s27, 1
      %p92 = por %p90, %p91
      %p93 = scmp.ne.s32.totalorder %s84, %s85
      %p94 = scmp.eq.s32.totalorder %s27, 0
      %p95 = por %p93, %p94
      %p96 = scmp.ne.s32.totalorder %s84, %s85
      %p97 = scmp.eq.s32.totalorder %s28, 1
      %p98 = por %p96, %p97
      %p100 = scmp.ne.s32.totalorder %s85, %s99
      %p101 = scmp.eq.s32.totalorder %s28, 0
      %p102 = por %p100, %p101
      %s104 = sadd.s32 %s103, 1
      %p107 = scmp.eq.s32.totalorder %s22, 1
      %p108 = scmp.ne.s32.totalorder %s103, %s105
      %p109 = scmp.eq.s32.totalorder %s22, 0
      %p110 = por %p108, %p109
      %p111 = scmp.ne.s32.totalorder %s103, %s105
      %p112 = scmp.eq.s32.totalorder %s27, 1
      %p113 = por %p111, %p112
      %p114 = scmp.ne.s32.totalorder %s105, %s106
      %p115 = scmp.eq.s32.totalorder %s27, 0
      %p116 = por %p114, %p115
      %p117 = scmp.ne.s32.totalorder %s105, %s106
      %p118 = scmp.eq.s32.totalorder %s28, 1
      %p119 = por %p117, %p118
      %p121 = scmp.ne.s32.totalorder %s106, %s120
      %p122 = scmp.eq.s32.totalorder %s28, 0
      %p123 = por %p121, %p122
      %s125 = sadd.s32 %s124, 1
      %p128 = scmp.eq.s32.totalorder %s22, 1
      %p129 = scmp.ne.s32.totalorder %s124, %s126
      %p130 = scmp.eq.s32.totalorder %s22, 0
      %p131 = por %p129, %p130
      %p132 = scmp.ne.s32.totalorder %s124, %s126
      %p133 = scmp.eq.s32.totalorder %s27, 1
      %p134 = por %p132, %p133
      %p135 = scmp.ne.s32.totalorder %s126, %s127
      %p136 = scmp.eq.s32.totalorder %s27, 0
      %p137 = por %p135, %p136
      %p138 = scmp.ne.s32.totalorder %s126, %s127
      %p139 = scmp.eq.s32.totalorder %s28, 1
      %p140 = por %p138, %p139
      %p142 = scmp.ne.s32.totalorder %s127, %s141
      %p143 = scmp.eq.s32.totalorder %s28, 0
      %p144 = por %p142, %p143
      %s146 = sadd.s32 %s145, 1
      %p149 = scmp.eq.s32.totalorder %s22, 1
      %p150 = scmp.ne.s32.totalorder %s145, %s147
      %p151 = scmp.eq.s32.totalorder %s22, 0
      %p152 = por %p150, %p151
      %p153 = scmp.ne.s32.totalorder %s145, %s147
      %p154 = scmp.eq.s32.totalorder %s27, 1
      %p155 = por %p153, %p154
      %p156 = scmp.ne.s32.totalorder %s147, %s148
      %p157 = scmp.eq.s32.totalorder %s27, 0
      %p158 = por %p156, %p157
      %p159 = scmp.ne.s32.totalorder %s147, %s148
      %p160 = scmp.eq.s32.totalorder %s28, 1
      %p161 = por %p159, %p160
      %p163 = scmp.ne.s32.totalorder %s148, %s162
      %p164 = scmp.eq.s32.totalorder %s28, 0
      %p165 = por %p163, %p164
      %s167 = sadd.s32 %s166, 1
      %p170 = scmp.eq.s32.totalorder %s22, 1
      %p171 = scmp.ne.s32.totalorder %s166, %s168
      %p172 = scmp.eq.s32.totalorder %s22, 0
      %p173 = por %p171, %p172
      %p174 = scmp.ne.s32.totalorder %s166, %s168
      %p175 = scmp.eq.s32.totalorder %s27, 1
      %p176 = por %p174, %p175
      %p177 = scmp.ne.s32.totalorder %s168, %s169
      %p178 = scmp.eq.s32.totalorder %s27, 0
      %p179 = por %p177, %p178
      %p180 = scmp.ne.s32.totalorder %s168, %s169
      %p181 = scmp.eq.s32.totalorder %s28, 1
      %p182 = por %p180, %p181
      %p184 = scmp.ne.s32.totalorder %s169, %s183
      %p185 = scmp.eq.s32.totalorder %s28, 0
      %p186 = por %p184, %p185
      %s188 = sadd.s32 %s187, 1
      %p191 = scmp.eq.s32.totalorder %s22, 1
      %p192 = scmp.ne.s32.totalorder %s187, %s189
      %p193 = scmp.eq.s32.totalorder %s22, 0
      %p194 = por %p192, %p193
      %p195 = scmp.ne.s32.totalorder %s187, %s189
      %p196 = scmp.eq.s32.totalorder %s27, 1
      %p197 = por %p195, %p196
      %p198 = scmp.ne.s32.totalorder %s189, %s190
      %p199 = scmp.eq.s32.totalorder %s27, 0
      %p200 = por %p198, %p199
      %p201 = scmp.ne.s32.totalorder %s189, %s190
      %p202 = scmp.eq.s32.totalorder %s28, 1
      %p203 = por %p201, %p202
      %p205 = scmp.ne.s32.totalorder %s190, %s204
      %p206 = scmp.eq.s32.totalorder %s28, 0
      %p207 = por %p205, %p206
      %s209 = sadd.s32 %s208, 1
      %p212 = scmp.eq.s32.totalorder %s22, 1
      %p213 = scmp.ne.s32.totalorder %s208, %s210
      %p214 = scmp.eq.s32.totalorder %s22, 0
      %p215 = por %p213, %p214
      %p216 = scmp.ne.s32.totalorder %s208, %s210
      %p217 = scmp.eq.s32.totalorder %s27, 1
      %p218 = por %p216, %p217
      %p219 = scmp.ne.s32.totalorder %s210, %s211
      %p220 = scmp.eq.s32.totalorder %s27, 0
      %p221 = por %p219, %p220
      %p222 = scmp.ne.s32.totalorder %s210, %s211
      %p223 = scmp.eq.s32.totalorder %s28, 1
      %p224 = por %p222, %p223
      %p226 = scmp.ne.s32.totalorder %s211, %s225
      %p227 = scmp.eq.s32.totalorder %s28, 0
      %p228 = por %p226, %p227
      %s230 = sadd.s32 %s229, 1
      %p233 = scmp.eq.s32.totalorder %s22, 1
      %p234 = scmp.ne.s32.totalorder %s229, %s231
      %p235 = scmp.eq.s32.totalorder %s22, 0
      %p236 = por %p234, %p235
      %p237 = scmp.ne.s32.totalorder %s229, %s231
      %p238 = scmp.eq.s32.totalorder %s27, 1
      %p239 = por %p237, %p238
      %p240 = scmp.ne.s32.totalorder %s231, %s232
      %p241 = scmp.eq.s32.totalorder %s27, 0
      %p242 = por %p240, %p241
      %p243 = scmp.ne.s32.totalorder %s231, %s232
      %p244 = scmp.eq.s32.totalorder %s28, 1
      %p245 = por %p243, %p244
      %p247 = scmp.ne.s32.totalorder %s232, %s246
      %p248 = scmp.eq.s32.totalorder %s28, 0
      %p249 = por %p247, %p248
      %s251 = sadd.s32 %s250, 1
      %p254 = scmp.eq.s32.totalorder %s22, 1
      %p255 = scmp.ne.s32.totalorder %s250, %s252
      %p256 = scmp.eq.s32.totalorder %s22, 0
      %p257 = por %p255, %p256
      %p258 = scmp.ne.s32.totalorder %s250, %s252
      %p259 = scmp.eq.s32.totalorder %s27, 1
      %p260 = por %p258, %p259
      %p261 = scmp.ne.s32.totalorder %s252, %s253
      %p262 = scmp.eq.s32.totalorder %s27, 0
      %p263 = por %p261, %p262
      %p264 = scmp.ne.s32.totalorder %s252, %s253
      %p265 = scmp.eq.s32.totalorder %s28, 1
      %p266 = por %p264, %p265
      %p268 = scmp.ne.s32.totalorder %s253, %s267
      %p269 = scmp.eq.s32.totalorder %s28, 0
      %p270 = por %p268, %p269
      %s272 = sadd.s32 %s271, 1
      %p275 = scmp.eq.s32.totalorder %s22, 1
      %p276 = scmp.ne.s32.totalorder %s271, %s273
      %p277 = scmp.eq.s32.totalorder %s22, 0
      %p278 = por %p276, %p277
      %p279 = scmp.ne.s32.totalorder %s271, %s273
      %p280 = scmp.eq.s32.totalorder %s27, 1
      %p281 = por %p279, %p280
      %p282 = scmp.ne.s32.totalorder %s273, %s274
      %p283 = scmp.eq.s32.totalorder %s27, 0
      %p284 = por %p282, %p283
      %p285 = scmp.ne.s32.totalorder %s273, %s274
      %p286 = scmp.eq.s32.totalorder %s28, 1
      %p287 = por %p285, %p286
      %p289 = scmp.ne.s32.totalorder %s274, %s288
      %p290 = scmp.eq.s32.totalorder %s28, 0
      %p291 = por %p289, %p290
      %s293 = sadd.s32 %s292, 1
      %p296 = scmp.eq.s32.totalorder %s22, 1
      %p297 = scmp.ne.s32.totalorder %s292, %s294
      %p298 = scmp.eq.s32.totalorder %s22, 0
      %p299 = por %p297, %p298
      %p300 = scmp.ne.s32.totalorder %s292, %s294
      %p301 = scmp.eq.s32.totalorder %s27, 1
      %p302 = por %p300, %p301
      %p303 = scmp.ne.s32.totalorder %s294, %s295
      %p304 = scmp.eq.s32.totalorder %s27, 0
      %p305 = por %p303, %p304
      %p306 = scmp.ne.s32.totalorder %s294, %s295
      %p307 = scmp.eq.s32.totalorder %s28, 1
      %p308 = por %p306, %p307
      %p310 = scmp.ne.s32.totalorder %s295, %s309
      %p311 = scmp.eq.s32.totalorder %s28, 0
      %p312 = por %p310, %p311
      %s314 = sadd.s32 %s313, 1
      %p317 = scmp.eq.s32.totalorder %s22, 1
      %p318 = scmp.ne.s32.totalorder %s313, %s315
      %p319 = scmp.eq.s32.totalorder %s22, 0
      %p320 = por %p318, %p319
      %p321 = scmp.ne.s32.totalorder %s313, %s315
      %p322 = scmp.eq.s32.totalorder %s27, 1
      %p323 = por %p321, %p322
      %p324 = scmp.ne.s32.totalorder %s315, %s316
      %p325 = scmp.eq.s32.totalorder %s27, 0
      %p326 = por %p324, %p325
      %p327 = scmp.ne.s32.totalorder %s315, %s316
      %p328 = scmp.eq.s32.totalorder %s28, 1
      %p329 = por %p327, %p328
      %p331 = scmp.ne.s32.totalorder %s316, %s330
      %p332 = scmp.eq.s32.totalorder %s28, 0
      %p333 = por %p331, %p332
      %s334 = ssub.s32 %s22, %s29
      %p335 = scmp.eq.s32.totalorder %s334, 0
      %s337 = sadd.s32 %s336, 1
      %s338 = scalar_select %p335, %s336, %s337
      %p341 = pneg %p335
      %p342 = scmp.eq.s32.totalorder %s22, 1
      %p343 = por %p341, %p342
      %p344 = scmp.ne.s32.totalorder %s336, %s339
      %p345 = scmp.eq.s32.totalorder %s22, 0
      %p346 = por %p344, %p345
      %p347 = scmp.ne.s32.totalorder %s336, %s339
      %p348 = scmp.eq.s32.totalorder %s27, 1
      %p349 = por %p347, %p348
      %p350 = scmp.ne.s32.totalorder %s339, %s340
      %p351 = scmp.eq.s32.totalorder %s27, 0
      %p352 = por %p350, %p351
      %p353 = scmp.ne.s32.totalorder %s339, %s340
      %p354 = scmp.eq.s32.totalorder %s28, 1
      %p355 = por %p353, %p354
      %p357 = scmp.ne.s32.totalorder %s340, %s356
      %p358 = scmp.eq.s32.totalorder %s28, 0
      %p359 = por %p357, %p358
      %p360 = scmp.le.s32.totalorder 1, %s22
      %p361 = scmp.lt.s32.totalorder %s22, 3
      %p362 = pnand %p360, %p361
      %p363 = pneg %p362
      // Predicated region
      $region9: #{text_encoder_forward.1} parent=5 // pred_check
        _
      $region10: #{text_encoder_forward.1} parent=5 // pred_check_branch
        %365 = sbr.rel (%p362) target = $region12
      $region11: #{text_encoder_forward.1} parent=5 // pred_region
        %s366 = ssub.s32 %s22, 1
        // Predicated region
        $region13: #{text_encoder_forward.1} parent=11 // pred_check
          %p367 = pneg %p95
        $region14: #{text_encoder_forward.1} parent=11 // pred_check_branch
          %369 = sbr.rel (%p367) target = $region16
        $region15: #{text_encoder_forward.1} parent=11 // pred_region
          %s371 = ssub.s32 24576, 24576
          %372 = vsyncadd [#allocation4], %s371
          %s373 = sshll.u32 [#allocation3], 4
          %s374 = int_to_ptr.vmem [resolvable:$true] %s373
          %379 = dma.hbm_to_vmem [thread:$0]  %s2, 24576, %s374, [#allocation4], 384, 384, 24
        $region16: #{text_encoder_forward.1} parent=11 // pred_fallthru
          _
        // Predicated region
        $region17: #{text_encoder_forward.1} parent=11 // pred_check
          %p380 = pneg %p116
        $region18: #{text_encoder_forward.1} parent=11 // pred_check_branch
          %382 = sbr.rel (%p380) target = $region20
        $region19: #{text_encoder_forward.1} parent=11 // pred_region
          _
        $region20: #{text_encoder_forward.1} parent=11 // pred_fallthru
          _
        // Predicated region
        $region21: #{text_encoder_forward.1} parent=11 // pred_check
          %p383 = pneg %p137
        $region22: #{text_encoder_forward.1} parent=11 // pred_check_branch
          %385 = sbr.rel (%p383) target = $region24
        $region23: #{text_encoder_forward.1} parent=11 // pred_region
          _
        $region24: #{text_encoder_forward.1} parent=11 // pred_fallthru
          _
        // Predicated region
        $region25: #{text_encoder_forward.1} parent=11 // pred_check
          %p386 = pneg %p158
        $region26: #{text_encoder_forward.1} parent=11 // pred_check_branch
          %388 = sbr.rel (%p386) target = $region28
        $region27: #{text_encoder_forward.1} parent=11 // pred_region
          _
        $region28: #{text_encoder_forward.1} parent=11 // pred_fallthru
          _
        // Predicated region
        $region29: #{text_encoder_forward.1} parent=11 // pred_check
          %p389 = pneg %p179
        $region30: #{text_encoder_forward.1} parent=11 // pred_check_branch
          %391 = sbr.rel (%p389) target = $region32
        $region31: #{text_encoder_forward.1} parent=11 // pred_region
          _
        $region32: #{text_encoder_forward.1} parent=11 // pred_fallthru
          _
        // Predicated region
        $region33: #{text_encoder_forward.1} parent=11 // pred_check
          %p392 = pneg %p200
        $region34: #{text_encoder_forward.1} parent=11 // pred_check_branch
          %394 = sbr.rel (%p392) target = $region36
        $region35: #{text_encoder_forward.1} parent=11 // pred_region
          _
        $region36: #{text_encoder_forward.1} parent=11 // pred_fallthru
          _
        // Predicated region
        $region37: #{text_encoder_forward.1} parent=11 // pred_check
          %p395 = pneg %p221
        $region38: #{text_encoder_forward.1} parent=11 // pred_check_branch
          %397 = sbr.rel (%p395) target = $region40
        $region39: #{text_encoder_forward.1} parent=11 // pred_region
          %s399 = ssub.s32 16384, 16384
          %400 = vsyncadd [#allocation6], %s399
          %s401 = sshll.u32 [#allocation5], 4
          %s402 = int_to_ptr.vmem [resolvable:$true] %s401
          %407 = dma.hbm_to_vmem [thread:$0]  %s8, 16384, %s402, [#allocation6], 256, 256, 16
        $region40: #{text_encoder_forward.1} parent=11 // pred_fallthru
          _
        // Predicated region
        $region41: #{text_encoder_forward.1} parent=11 // pred_check
          %p408 = pneg %p242
        $region42: #{text_encoder_forward.1} parent=11 // pred_check_branch
          %410 = sbr.rel (%p408) target = $region44
        $region43: #{text_encoder_forward.1} parent=11 // pred_region
          _
        $region44: #{text_encoder_forward.1} parent=11 // pred_fallthru
          _
        // Predicated region
        $region45: #{text_encoder_forward.1} parent=11 // pred_check
          %p411 = pneg %p263
        $region46: #{text_encoder_forward.1} parent=11 // pred_check_branch
          %413 = sbr.rel (%p411) target = $region48
        $region47: #{text_encoder_forward.1} parent=11 // pred_region
          %s415 = ssub.s32 16384, 16384
          %416 = vsyncadd [#allocation6], %s415
          %s417 = sshll.u32 [#allocation7], 4
          %s418 = int_to_ptr.vmem [resolvable:$true] %s417
          %423 = dma.hbm_to_vmem [thread:$0]  %s10, 16384, %s418, [#allocation6], 128, 128, 8
        $region48: #{text_encoder_forward.1} parent=11 // pred_fallthru
          _
        // Predicated region
        $region49: #{text_encoder_forward.1} parent=11 // pred_check
          %p424 = pneg %p284
        $region50: #{text_encoder_forward.1} parent=11 // pred_check_branch
          %426 = sbr.rel (%p424) target = $region52
        $region51: #{text_encoder_forward.1} parent=11 // pred_region
          _
        $region52: #{text_encoder_forward.1} parent=11 // pred_fallthru
          _
        // Predicated region
        $region53: #{text_encoder_forward.1} parent=11 // pred_check
          %p427 = pneg %p305
        $region54: #{text_encoder_forward.1} parent=11 // pred_check_branch
          %429 = sbr.rel (%p427) target = $region56
        $region55: #{text_encoder_forward.1} parent=11 // pred_region
          _
        $region56: #{text_encoder_forward.1} parent=11 // pred_fallthru
          _
        // Predicated region
        $region57: #{text_encoder_forward.1} parent=11 // pred_check
          %p430 = pneg %p326
        $region58: #{text_encoder_forward.1} parent=11 // pred_check_branch
          %432 = sbr.rel (%p430) target = $region60
        $region59: #{text_encoder_forward.1} parent=11 // pred_region
          _
        $region60: #{text_encoder_forward.1} parent=11 // pred_fallthru
          _
      $region12: #{text_encoder_forward.1} parent=5 // pred_fallthru
        _
      %p433 = scmp.lt.s32.totalorder %s22, 2
      // Predicated region
      $region61: #{text_encoder_forward.1} parent=5 // pred_check
        %p434 = pneg %p433
      $region62: #{text_encoder_forward.1} parent=5 // pred_check_branch
        %436 = sbr.rel (%p434) target = $region64
      $region63: #{text_encoder_forward.1} parent=5 // pred_region
        // Predicated region
        $region65: #{text_encoder_forward.1} parent=63 // pred_check
          %p437 = pneg %p42
        $region66: #{text_encoder_forward.1} parent=63 // pred_check_branch
          %439 = sbr.rel (%p437) target = $region68
        $region67: #{text_encoder_forward.1} parent=63 // pred_region
          %p440 = scmp.lt.s32.totalorder %s22, 1
          %s441 = scalar_select %p440, %s22, 1
          %s442 = smul.addr %s441, 4
          %s443 = smul.addr %s442, 8
          %s444 = scalar_lea.vmem %s0, %s443
        $region68: #{text_encoder_forward.1} parent=63 // pred_fallthru
          _
        // Predicated region
        $region69: #{text_encoder_forward.1} parent=63 // pred_check
          %p445 = pneg %p68
        $region70: #{text_encoder_forward.1} parent=63 // pred_check_branch
          %447 = sbr.rel (%p445) target = $region72
        $region71: #{text_encoder_forward.1} parent=63 // pred_region
          %p448 = scmp.lt.s32.totalorder %s22, 1
          %s449 = scalar_select %p448, %s22, 1
          %s450 = scalar_lea.vmem %s1, %s449
        $region72: #{text_encoder_forward.1} parent=63 // pred_fallthru
          _
      $region64: #{text_encoder_forward.1} parent=5 // pred_fallthru
        _
      %p451 = scmp.le.s32.totalorder 1, %s22
      %p452 = scmp.lt.s32.totalorder %s22, 3
      %p453 = pnand %p451, %p452
      %p454 = pneg %p453
      // Predicated region
      $region73: #{text_encoder_forward.1} parent=5 // pred_check
        _
      $region74: #{text_encoder_forward.1} parent=5 // pred_check_branch
        %456 = sbr.rel (%p453) target = $region76
      $region75: #{text_encoder_forward.1} parent=5 // pred_region
        %s457 = ssub.s32 %s22, 1
        // Predicated region
        $region77: #{text_encoder_forward.1} parent=75 // pred_check
          %p458 = pneg %p95
        $region78: #{text_encoder_forward.1} parent=75 // pred_check_branch
          %460 = sbr.rel (%p458) target = $region80
        $region79: #{text_encoder_forward.1} parent=75 // pred_region
          %461 = dma.done [#allocation4], 24576
        $region80: #{text_encoder_forward.1} parent=75 // pred_fallthru
          _
        // Predicated region
        $region81: #{text_encoder_forward.1} parent=75 // pred_check
          %p462 = pneg %p221
        $region82: #{text_encoder_forward.1} parent=75 // pred_check_branch
          %464 = sbr.rel (%p462) target = $region84
        $region83: #{text_encoder_forward.1} parent=75 // pred_region
          %465 = dma.done [#allocation6], 16384
        $region84: #{text_encoder_forward.1} parent=75 // pred_fallthru
          _
        // Predicated region
        $region85: #{text_encoder_forward.1} parent=75 // pred_check
          %p466 = pneg %p263
        $region86: #{text_encoder_forward.1} parent=75 // pred_check_branch
          %468 = sbr.rel (%p466) target = $region88
        $region87: #{text_encoder_forward.1} parent=75 // pred_region
          %469 = dma.done [#allocation6], 16384
        $region88: #{text_encoder_forward.1} parent=75 // pred_fallthru
          _
        %p470 = scmp.lt.s32.totalorder %s27, 1
        %s471 = scalar_select %p470, %s27, 1
        %s472 = smul.addr %s471, 4
        %s473 = smul.addr %s472, 8
        %s474 = scalar_lea.vmem %s0, %s473
        %p475 = pneg %p48
        %p476 = pneg %p45
        %p477 = scmp.lt.s32.totalorder %s27, 1
        %s478 = scalar_select %p477, %s27, 1
        %s479 = scalar_lea.vmem %s1, %s478
        %p480 = pneg %p74
        %p481 = pneg %p71
        %p482 = pneg %p95
        %p483 = pneg %p92
        %p484 = pneg %p116
        %p485 = pneg %p113
        %p486 = pneg %p137
        %p487 = pneg %p134
        %p488 = pneg %p158
        %p489 = pneg %p155
        %p490 = pneg %p179
        %p491 = pneg %p176
        %p492 = pneg %p200
        %p493 = pneg %p197
        %p494 = pneg %p221
        %p495 = pneg %p218
        %p496 = pneg %p242
        %p497 = pneg %p239
        %p498 = pneg %p263
        %p499 = pneg %p260
        %p500 = pneg %p284
        %p501 = pneg %p281
        %p502 = pneg %p305
        %p503 = pneg %p302
        %p504 = pneg %p326
        %p505 = pneg %p323
        %p506 = pneg %p352
        %p507 = pneg %p349
        %p508 = scmp.lt.s32.totalorder %s27, 1
        %s509 = scalar_select %p508, %s27, 1
        %s510 = smul.addr %s509, 2
        %s511 = scalar_lea.vmem %s14, %s510
        %p512 = scmp.lt.s32.totalorder %s27, 1
        %s513 = scalar_select %p512, %s27, 1
        %s514 = smul.addr %s513, 4
        %s515 = smul.addr %s514, 8
        %s516 = scalar_lea.vmem %s0, %s515
        %p517 = scmp.lt.s32.totalorder %s27, 1
        %s518 = scalar_select %p517, %s27, 1
        %s519 = scalar_lea.vmem %s1, %s518
        %p520 = scmp.lt.s32.totalorder %s27, 1
        %s521 = scalar_select %p520, %s27, 1
        %s522 = smul.addr %s521, 2
        %s523 = scalar_lea.vmem %s14, %s522
        %v525 = vld [vmem:[%s516] sm:$0xff]
        %v526 = vld [vmem:[%s516 + $0x8] sm:$0xff]
        %v527 = vld [vmem:[%s516 + $0x10] sm:$0xff]
        %v528 = vld [vmem:[%s516 + $0x18] sm:$0xff]
        %v529 = vld [vmem:[%s519] sm:$0x1]
        %v530 = vpack.c.bf16 %v527, %v525
        %v531 = vpack.c.bf16 %v528, %v526
        %v532 = vld [vmem:[#allocation3] sm:$0xff]
        %v533 = vld [vmem:[#allocation3 + $0x8] sm:$0xff]
        %v534 = vld [vmem:[#allocation3 + $0x10] sm:$0xff]
        %v535 = vld [vmem:[#allocation3 + $0x18] sm:$0xff]
        %v536 = vld [vmem:[#allocation3 + $0x20] sm:$0xff]
        %v537 = vld [vmem:[#allocation3 + $0x28] sm:$0xff]
        %v538 = vld [vmem:[#allocation3 + $0x30] sm:$0xff]
        %v539 = vld [vmem:[#allocation3 + $0x38] sm:$0xff]
        %v540 = vld [vmem:[#allocation3 + $0x40] sm:$0xff]
        %v541 = vld [vmem:[#allocation3 + $0x48] sm:$0xff]
        %v542 = vld [vmem:[#allocation3 + $0x50] sm:$0xff]
        %v543 = vld [vmem:[#allocation3 + $0x58] sm:$0xff]
        %v544 = vld [vmem:[#allocation3 + $0x60] sm:$0xff]
        %v545 = vld [vmem:[#allocation3 + $0x68] sm:$0xff]
        %v546 = vld [vmem:[#allocation3 + $0x70] sm:$0xff]
        %v547 = vld [vmem:[#allocation3 + $0x78] sm:$0xff]
        %v548 = vld [vmem:[#allocation3 + $0x80] sm:$0xff]
        %v549 = vld [vmem:[#allocation3 + $0x88] sm:$0xff]
        %v550 = vld [vmem:[#allocation3 + $0x90] sm:$0xff]
        %v551 = vld [vmem:[#allocation3 + $0x98] sm:$0xff]
        %v552 = vld [vmem:[#allocation3 + $0xa0] sm:$0xff]
        %v553 = vld [vmem:[#allocation3 + $0xa8] sm:$0xff]
        %v554 = vld [vmem:[#allocation3 + $0xb0] sm:$0xff]
        %v555 = vld [vmem:[#allocation3 + $0xb8] sm:$0xff]
        %v556 = vld [vmem:[#allocation3 + $0xc0] sm:$0xff]
        %v557 = vld [vmem:[#allocation3 + $0xc8] sm:$0xff]
        %v558 = vld [vmem:[#allocation3 + $0xd0] sm:$0xff]
        %v559 = vld [vmem:[#allocation3 + $0xd8] sm:$0xff]
        %v560 = vld [vmem:[#allocation3 + $0xe0] sm:$0xff]
        %v561 = vld [vmem:[#allocation3 + $0xe8] sm:$0xff]
        %v562 = vld [vmem:[#allocation3 + $0xf0] sm:$0xff]
        %v563 = vld [vmem:[#allocation3 + $0xf8] sm:$0xff]
        %v564 = vld [vmem:[#allocation3 + $0x100] sm:$0xff]
        %v565 = vld [vmem:[#allocation3 + $0x108] sm:$0xff]
        %v566 = vld [vmem:[#allocation3 + $0x110] sm:$0xff]
        %v567 = vld [vmem:[#allocation3 + $0x118] sm:$0xff]
        %v568 = vld [vmem:[#allocation3 + $0x120] sm:$0xff]
        %v569 = vld [vmem:[#allocation3 + $0x128] sm:$0xff]
        %v570 = vld [vmem:[#allocation3 + $0x130] sm:$0xff]
        %v571 = vld [vmem:[#allocation3 + $0x138] sm:$0xff]
        %v572 = vld [vmem:[#allocation3 + $0x140] sm:$0xff]
        %v573 = vld [vmem:[#allocation3 + $0x148] sm:$0xff]
        %v574 = vld [vmem:[#allocation3 + $0x150] sm:$0xff]
        %v575 = vld [vmem:[#allocation3 + $0x158] sm:$0xff]
        %v576 = vld [vmem:[#allocation3 + $0x160] sm:$0xff]
        %v577 = vld [vmem:[#allocation3 + $0x168] sm:$0xff]
        %v578 = vld [vmem:[#allocation3 + $0x170] sm:$0xff]
        %v579 = vld [vmem:[#allocation3 + $0x178] sm:$0xff]
        %v580 = vld [vmem:[#allocation3 + $0x180] sm:$0xff]
        %v581 = vld [vmem:[#allocation3 + $0x188] sm:$0xff]
        %v582 = vld [vmem:[#allocation3 + $0x190] sm:$0xff]
        %v583 = vld [vmem:[#allocation3 + $0x198] sm:$0xff]
        %v584 = vld [vmem:[#allocation3 + $0x1a0] sm:$0xff]
        %v585 = vld [vmem:[#allocation3 + $0x1a8] sm:$0xff]
        %v586 = vld [vmem:[#allocation3 + $0x1b0] sm:$0xff]
        %v587 = vld [vmem:[#allocation3 + $0x1b8] sm:$0xff]
        %v588 = vld [vmem:[#allocation3 + $0x1c0] sm:$0xff]
        %v589 = vld [vmem:[#allocation3 + $0x1c8] sm:$0xff]
        %v590 = vld [vmem:[#allocation3 + $0x1d0] sm:$0xff]
        %v591 = vld [vmem:[#allocation3 + $0x1d8] sm:$0xff]
        %v592 = vld [vmem:[#allocation3 + $0x1e0] sm:$0xff]
        %v593 = vld [vmem:[#allocation3 + $0x1e8] sm:$0xff]
        %v594 = vld [vmem:[#allocation3 + $0x1f0] sm:$0xff]
        %v595 = vld [vmem:[#allocation3 + $0x1f8] sm:$0xff]
        %v596 = vld [vmem:[#allocation3 + $0x200] sm:$0xff]
        %v597 = vld [vmem:[#allocation3 + $0x208] sm:$0xff]
        %v598 = vld [vmem:[#allocation3 + $0x210] sm:$0xff]
        %v599 = vld [vmem:[#allocation3 + $0x218] sm:$0xff]
        %v600 = vld [vmem:[#allocation3 + $0x220] sm:$0xff]
        %v601 = vld [vmem:[#allocation3 + $0x228] sm:$0xff]
        %v602 = vld [vmem:[#allocation3 + $0x230] sm:$0xff]
        %v603 = vld [vmem:[#allocation3 + $0x238] sm:$0xff]
        %v604 = vld [vmem:[#allocation3 + $0x240] sm:$0xff]
        %v605 = vld [vmem:[#allocation3 + $0x248] sm:$0xff]
        %v606 = vld [vmem:[#allocation3 + $0x250] sm:$0xff]
        %v607 = vld [vmem:[#allocation3 + $0x258] sm:$0xff]
        %v608 = vld [vmem:[#allocation3 + $0x260] sm:$0xff]
        %v609 = vld [vmem:[#allocation3 + $0x268] sm:$0xff]
        %v610 = vld [vmem:[#allocation3 + $0x270] sm:$0xff]
        %v611 = vld [vmem:[#allocation3 + $0x278] sm:$0xff]
        %v612 = vld [vmem:[#allocation3 + $0x280] sm:$0xff]
        %v613 = vld [vmem:[#allocation3 + $0x288] sm:$0xff]
        %v614 = vld [vmem:[#allocation3 + $0x290] sm:$0xff]
        %v615 = vld [vmem:[#allocation3 + $0x298] sm:$0xff]
        %v616 = vld [vmem:[#allocation3 + $0x2a0] sm:$0xff]
        %v617 = vld [vmem:[#allocation3 + $0x2a8] sm:$0xff]
        %v618 = vld [vmem:[#allocation3 + $0x2b0] sm:$0xff]
        %v619 = vld [vmem:[#allocation3 + $0x2b8] sm:$0xff]
        %v620 = vld [vmem:[#allocation3 + $0x2c0] sm:$0xff]
        %v621 = vld [vmem:[#allocation3 + $0x2c8] sm:$0xff]
        %v622 = vld [vmem:[#allocation3 + $0x2d0] sm:$0xff]
        %v623 = vld [vmem:[#allocation3 + $0x2d8] sm:$0xff]
        %v624 = vld [vmem:[#allocation3 + $0x2e0] sm:$0xff]
        %v625 = vld [vmem:[#allocation3 + $0x2e8] sm:$0xff]
        %v626 = vld [vmem:[#allocation3 + $0x2f0] sm:$0xff]
        %v627 = vld [vmem:[#allocation3 + $0x2f8] sm:$0xff]
        %v628 = vld [vmem:[%s3] sm:$0x3f]
        %v630 = vlaneseq
        %v631 = vshrl.u32 %v630, 7
        %v632 = vsub.s32 0, %v631
        %v633 = vrot.slane %v628, %v632
        %v634 = vlaneseq
        %v635 = vshrl.u32 %v634, 7
        %v636 = vsub.s32 1, %v635
        %v637 = vrot.slane %v628, %v636
        %v638 = vlaneseq
        %v639 = vshrl.u32 %v638, 7
        %v640 = vsub.s32 2, %v639
        %v641 = vrot.slane %v628, %v640
        %v642 = vlaneseq
        %v643 = vshrl.u32 %v642, 7
        %v644 = vsub.s32 3, %v643
        %v645 = vrot.slane %v628, %v644
        %v646 = vlaneseq
        %v647 = vshrl.u32 %v646, 7
        %v648 = vsub.s32 4, %v647
        %v649 = vrot.slane %v628, %v648
        %v650 = vlaneseq
        %v651 = vshrl.u32 %v650, 7
        %v652 = vsub.s32 5, %v651
        %v653 = vrot.slane %v628, %v652
        %v756 = vunpack.c.l.b16 %v532
        %v757 = vunpack.c.h.b16 %v532
        %v758 = vunpack.c.l.b16 %v533
        %v759 = vunpack.c.h.b16 %v533
        %v760 = vunpack.c.l.b16 %v534
        %v761 = vunpack.c.h.b16 %v534
        %v762 = vunpack.c.l.b16 %v535
        %v763 = vunpack.c.h.b16 %v535
        %v764 = vunpack.c.l.b16 %v536
        %v765 = vunpack.c.h.b16 %v536
        %v766 = vunpack.c.l.b16 %v537
        %v767 = vunpack.c.h.b16 %v537
        %v768 = vunpack.c.l.b16 %v538
        %v769 = vunpack.c.h.b16 %v538
        %v770 = vunpack.c.l.b16 %v539
        %v771 = vunpack.c.h.b16 %v539
        %v772 = vunpack.c.l.b16 %v540
        %v773 = vunpack.c.h.b16 %v540
        %v774 = vunpack.c.l.b16 %v541
        %v775 = vunpack.c.h.b16 %v541
        %v776 = vunpack.c.l.b16 %v542
        %v777 = vunpack.c.h.b16 %v542
        %v778 = vunpack.c.l.b16 %v543
        %v779 = vunpack.c.h.b16 %v543
        %v780 = vunpack.c.l.b16 %v544
        %v781 = vunpack.c.h.b16 %v544
        %v782 = vunpack.c.l.b16 %v545
        %v783 = vunpack.c.h.b16 %v545
        %v784 = vunpack.c.l.b16 %v546
        %v785 = vunpack.c.h.b16 %v546
        %v786 = vunpack.c.l.b16 %v547
        %v787 = vunpack.c.h.b16 %v547
        %v788 = vunpack.c.l.b16 %v548
        %v789 = vunpack.c.h.b16 %v548
        %v790 = vunpack.c.l.b16 %v549
        %v791 = vunpack.c.h.b16 %v549
        %v792 = vunpack.c.l.b16 %v550
        %v793 = vunpack.c.h.b16 %v550
        %v794 = vunpack.c.l.b16 %v551
        %v795 = vunpack.c.h.b16 %v551
        %v796 = vunpack.c.l.b16 %v552
        %v797 = vunpack.c.h.b16 %v552
        %v798 = vunpack.c.l.b16 %v553
        %v799 = vunpack.c.h.b16 %v553
        %v800 = vunpack.c.l.b16 %v554
        %v801 = vunpack.c.h.b16 %v554
        %v802 = vunpack.c.l.b16 %v555
        %v803 = vunpack.c.h.b16 %v555
        %v804 = vunpack.c.l.b16 %v556
        %v805 = vunpack.c.h.b16 %v556
        %v806 = vunpack.c.l.b16 %v557
        %v807 = vunpack.c.h.b16 %v557
        %v808 = vunpack.c.l.b16 %v558
        %v809 = vunpack.c.h.b16 %v558
        %v810 = vunpack.c.l.b16 %v559
        %v811 = vunpack.c.h.b16 %v559
        %v812 = vunpack.c.l.b16 %v560
        %v813 = vunpack.c.h.b16 %v560
        %v814 = vunpack.c.l.b16 %v561
        %v815 = vunpack.c.h.b16 %v561
        %v816 = vunpack.c.l.b16 %v562
        %v817 = vunpack.c.h.b16 %v562
        %v818 = vunpack.c.l.b16 %v563
        %v819 = vunpack.c.h.b16 %v563
        %v820 = vunpack.c.l.b16 %v564
        %v821 = vunpack.c.h.b16 %v564
        %v822 = vunpack.c.l.b16 %v565
        %v823 = vunpack.c.h.b16 %v565
        %v824 = vunpack.c.l.b16 %v566
        %v825 = vunpack.c.h.b16 %v566
        %v826 = vunpack.c.l.b16 %v567
        %v827 = vunpack.c.h.b16 %v567
        %v828 = vunpack.c.l.b16 %v568
        %v829 = vunpack.c.h.b16 %v568
        %v830 = vunpack.c.l.b16 %v569
        %v831 = vunpack.c.h.b16 %v569
        %v832 = vunpack.c.l.b16 %v570
        %v833 = vunpack.c.h.b16 %v570
        %v834 = vunpack.c.l.b16 %v571
        %v835 = vunpack.c.h.b16 %v571
        %v836 = vunpack.c.l.b16 %v572
        %v837 = vunpack.c.h.b16 %v572
        %v838 = vunpack.c.l.b16 %v573
        %v839 = vunpack.c.h.b16 %v573
        %v840 = vunpack.c.l.b16 %v574
        %v841 = vunpack.c.h.b16 %v574
        %v842 = vunpack.c.l.b16 %v575
        %v843 = vunpack.c.h.b16 %v575
        %v844 = vunpack.c.l.b16 %v576
        %v845 = vunpack.c.h.b16 %v576
        %v846 = vunpack.c.l.b16 %v577
        %v847 = vunpack.c.h.b16 %v577
        %v848 = vunpack.c.l.b16 %v578
        %v849 = vunpack.c.h.b16 %v578
        %v850 = vunpack.c.l.b16 %v579
        %v851 = vunpack.c.h.b16 %v579
        %v852 = vunpack.c.l.b16 %v580
        %v853 = vunpack.c.h.b16 %v580
        %v854 = vunpack.c.l.b16 %v581
        %v855 = vunpack.c.h.b16 %v581
        %v856 = vunpack.c.l.b16 %v582
        %v857 = vunpack.c.h.b16 %v582
        %v858 = vunpack.c.l.b16 %v583
        %v859 = vunpack.c.h.b16 %v583
        %v860 = vunpack.c.l.b16 %v584
        %v861 = vunpack.c.h.b16 %v584
        %v862 = vunpack.c.l.b16 %v585
        %v863 = vunpack.c.h.b16 %v585
        %v864 = vunpack.c.l.b16 %v586
        %v865 = vunpack.c.h.b16 %v586
        %v866 = vunpack.c.l.b16 %v587
        %v867 = vunpack.c.h.b16 %v587
        %v868 = vunpack.c.l.b16 %v588
        %v869 = vunpack.c.h.b16 %v588
        %v870 = vunpack.c.l.b16 %v589
        %v871 = vunpack.c.h.b16 %v589
        %v872 = vunpack.c.l.b16 %v590
        %v873 = vunpack.c.h.b16 %v590
        %v874 = vunpack.c.l.b16 %v591
        %v875 = vunpack.c.h.b16 %v591
        %v876 = vunpack.c.l.b16 %v592
        %v877 = vunpack.c.h.b16 %v592
        %v878 = vunpack.c.l.b16 %v593
        %v879 = vunpack.c.h.b16 %v593
        %v880 = vunpack.c.l.b16 %v594
        %v881 = vunpack.c.h.b16 %v594
        %v882 = vunpack.c.l.b16 %v595
        %v883 = vunpack.c.h.b16 %v595
        %v884 = vunpack.c.l.b16 %v596
        %v885 = vunpack.c.h.b16 %v596
        %v886 = vunpack.c.l.b16 %v597
        %v887 = vunpack.c.h.b16 %v597
        %v888 = vunpack.c.l.b16 %v598
        %v889 = vunpack.c.h.b16 %v598
        %v890 = vunpack.c.l.b16 %v599
        %v891 = vunpack.c.h.b16 %v599
        %v892 = vunpack.c.l.b16 %v600
        %v893 = vunpack.c.h.b16 %v600
        %v894 = vunpack.c.l.b16 %v601
        %v895 = vunpack.c.h.b16 %v601
        %v896 = vunpack.c.l.b16 %v602
        %v897 = vunpack.c.h.b16 %v602
        %v898 = vunpack.c.l.b16 %v603
        %v899 = vunpack.c.h.b16 %v603
        %v900 = vunpack.c.l.b16 %v604
        %v901 = vunpack.c.h.b16 %v604
        %v902 = vunpack.c.l.b16 %v605
        %v903 = vunpack.c.h.b16 %v605
        %v904 = vunpack.c.l.b16 %v606
        %v905 = vunpack.c.h.b16 %v606
        %v906 = vunpack.c.l.b16 %v607
        %v907 = vunpack.c.h.b16 %v607
        %v908 = vunpack.c.l.b16 %v608
        %v909 = vunpack.c.h.b16 %v608
        %v910 = vunpack.c.l.b16 %v609
        %v911 = vunpack.c.h.b16 %v609
        %v912 = vunpack.c.l.b16 %v610
        %v913 = vunpack.c.h.b16 %v610
        %v914 = vunpack.c.l.b16 %v611
        %v915 = vunpack.c.h.b16 %v611
        %v916 = vunpack.c.l.b16 %v612
        %v917 = vunpack.c.h.b16 %v612
        %v918 = vunpack.c.l.b16 %v613
        %v919 = vunpack.c.h.b16 %v613
        %v920 = vunpack.c.l.b16 %v614
        %v921 = vunpack.c.h.b16 %v614
        %v922 = vunpack.c.l.b16 %v615
        %v923 = vunpack.c.h.b16 %v615
        %v924 = vunpack.c.l.b16 %v616
        %v925 = vunpack.c.h.b16 %v616
        %v926 = vunpack.c.l.b16 %v617
        %v927 = vunpack.c.h.b16 %v617
        %v928 = vunpack.c.l.b16 %v618
        %v929 = vunpack.c.h.b16 %v618
        %v930 = vunpack.c.l.b16 %v619
        %v931 = vunpack.c.h.b16 %v619
        %v932 = vunpack.c.l.b16 %v620
        %v933 = vunpack.c.h.b16 %v620
        %v934 = vunpack.c.l.b16 %v621
        %v935 = vunpack.c.h.b16 %v621
        %v936 = vunpack.c.l.b16 %v622
        %v937 = vunpack.c.h.b16 %v622
        %v938 = vunpack.c.l.b16 %v623
        %v939 = vunpack.c.h.b16 %v623
        %v940 = vunpack.c.l.b16 %v624
        %v941 = vunpack.c.h.b16 %v624
        %v942 = vunpack.c.l.b16 %v625
        %v943 = vunpack.c.h.b16 %v625
        %v944 = vunpack.c.l.b16 %v626
        %v945 = vunpack.c.h.b16 %v626
        %v946 = vunpack.c.l.b16 %v627
        %v947 = vunpack.c.h.b16 %v627
        %v948 = vpack.c.b16 %v762, %v756
        %v949 = vpack.c.b16 %v763, %v757
        %v950 = vpack.c.b16 %v764, %v758
        %v951 = vpack.c.b16 %v765, %v759
        %v952 = vpack.c.b16 %v766, %v760
        %v953 = vpack.c.b16 %v767, %v761
        %v954 = vpack.c.b16 %v774, %v768
        %v955 = vpack.c.b16 %v775, %v769
        %v956 = vpack.c.b16 %v776, %v770
        %v957 = vpack.c.b16 %v777, %v771
        %v958 = vpack.c.b16 %v778, %v772
        %v959 = vpack.c.b16 %v779, %v773
        %v960 = vpack.c.b16 %v786, %v780
        %v961 = vpack.c.b16 %v787, %v781
        %v962 = vpack.c.b16 %v788, %v782
        %v963 = vpack.c.b16 %v789, %v783
        %v964 = vpack.c.b16 %v790, %v784
        %v965 = vpack.c.b16 %v791, %v785
        %v966 = vpack.c.b16 %v798, %v792
        %v967 = vpack.c.b16 %v799, %v793
        %v968 = vpack.c.b16 %v800, %v794
        %v969 = vpack.c.b16 %v801, %v795
        %v970 = vpack.c.b16 %v802, %v796
        %v971 = vpack.c.b16 %v803, %v797
        %v972 = vpack.c.b16 %v810, %v804
        %v973 = vpack.c.b16 %v811, %v805
        %v974 = vpack.c.b16 %v812, %v806
        %v975 = vpack.c.b16 %v813, %v807
        %v976 = vpack.c.b16 %v814, %v808
        %v977 = vpack.c.b16 %v815, %v809
        %v978 = vpack.c.b16 %v822, %v816
        %v979 = vpack.c.b16 %v823, %v817
        %v980 = vpack.c.b16 %v824, %v818
        %v981 = vpack.c.b16 %v825, %v819
        %v982 = vpack.c.b16 %v826, %v820
        %v983 = vpack.c.b16 %v827, %v821
        %v984 = vpack.c.b16 %v834, %v828
        %v985 = vpack.c.b16 %v835, %v829
        %v986 = vpack.c.b16 %v836, %v830
        %v987 = vpack.c.b16 %v837, %v831
        %v988 = vpack.c.b16 %v838, %v832
        %v989 = vpack.c.b16 %v839, %v833
        %v990 = vpack.c.b16 %v846, %v840
        %v991 = vpack.c.b16 %v847, %v841
        %v992 = vpack.c.b16 %v848, %v842
        %v993 = vpack.c.b16 %v849, %v843
        %v994 = vpack.c.b16 %v850, %v844
        %v995 = vpack.c.b16 %v851, %v845
        %v996 = vpack.c.b16 %v858, %v852
        %v997 = vpack.c.b16 %v859, %v853
        %v998 = vpack.c.b16 %v860, %v854
        %v999 = vpack.c.b16 %v861, %v855
        %v1000 = vpack.c.b16 %v862, %v856
        %v1001 = vpack.c.b16 %v863, %v857
        %v1002 = vpack.c.b16 %v870, %v864
        %v1003 = vpack.c.b16 %v871, %v865
        %v1004 = vpack.c.b16 %v872, %v866
        %v1005 = vpack.c.b16 %v873, %v867
        %v1006 = vpack.c.b16 %v874, %v868
        %v1007 = vpack.c.b16 %v875, %v869
        %v1008 = vpack.c.b16 %v882, %v876
        %v1009 = vpack.c.b16 %v883, %v877
        %v1010 = vpack.c.b16 %v884, %v878
        %v1011 = vpack.c.b16 %v885, %v879
        %v1012 = vpack.c.b16 %v886, %v880
        %v1013 = vpack.c.b16 %v887, %v881
        %v1014 = vpack.c.b16 %v894, %v888
        %v1015 = vpack.c.b16 %v895, %v889
        %v1016 = vpack.c.b16 %v896, %v890
        %v1017 = vpack.c.b16 %v897, %v891
        %v1018 = vpack.c.b16 %v898, %v892
        %v1019 = vpack.c.b16 %v899, %v893
        %v1020 = vpack.c.b16 %v906, %v900
        %v1021 = vpack.c.b16 %v907, %v901
        %v1022 = vpack.c.b16 %v908, %v902
        %v1023 = vpack.c.b16 %v909, %v903
        %v1024 = vpack.c.b16 %v910, %v904
        %v1025 = vpack.c.b16 %v911, %v905
        %v1026 = vpack.c.b16 %v918, %v912
        %v1027 = vpack.c.b16 %v919, %v913
        %v1028 = vpack.c.b16 %v920, %v914
        %v1029 = vpack.c.b16 %v921, %v915
        %v1030 = vpack.c.b16 %v922, %v916
        %v1031 = vpack.c.b16 %v923, %v917
        %v1032 = vpack.c.b16 %v930, %v924
        %v1033 = vpack.c.b16 %v931, %v925
        %v1034 = vpack.c.b16 %v932, %v926
        %v1035 = vpack.c.b16 %v933, %v927
        %v1036 = vpack.c.b16 %v934, %v928
        %v1037 = vpack.c.b16 %v935, %v929
        %v1038 = vpack.c.b16 %v942, %v936
        %v1039 = vpack.c.b16 %v943, %v937
        %v1040 = vpack.c.b16 %v944, %v938
        %v1041 = vpack.c.b16 %v945, %v939
        %v1042 = vpack.c.b16 %v946, %v940
        %v1043 = vpack.c.b16 %v947, %v941
        %1140 = vmatprep.subr.bf16.mxu0 %v991
        %1141 = vmatpush1.bf16.msra.mxu0 %v990
        %1142 = vmatprep.subr.bf16.mxu0 %v985
        %1143 = vmatpush1.bf16.msra.mxu0 %v984
        %1144 = vmatprep.subr.bf16.mxu0 %v979
        %1145 = vmatpush1.bf16.msra.mxu0 %v978
        %1146 = vmatprep.subr.bf16.mxu0 %v973
        %1147 = vmatpush1.bf16.msra.mxu0 %v972
        %1148 = vmatprep.subr.bf16.mxu0 %v967
        %1149 = vmatpush1.bf16.msra.mxu0 %v966
        %1150 = vmatprep.subr.bf16.mxu0 %v961
        %1151 = vmatpush1.bf16.msra.mxu0 %v960
        %1152 = vmatprep.subr.bf16.mxu0 %v955
        %1153 = vmatpush1.bf16.msra.mxu0 %v954
        %1154 = vmatprep.subr.bf16.mxu0 %v949
        %1155 = vmatpush1.bf16.msra.mxu0 %v948
        %1156 = vmatprep.subr.bf16.mxu0 %v1039
        %1157 = vmatpush2.bf16.msra.mxu0 %v1038
        %1158 = vmatprep.subr.bf16.mxu0 %v1033
        %1159 = vmatpush2.bf16.msra.mxu0 %v1032
        %1160 = vmatprep.subr.bf16.mxu0 %v1027
        %1161 = vmatpush2.bf16.msra.mxu0 %v1026
        %1162 = vmatprep.subr.bf16.mxu0 %v1021
        %1163 = vmatpush2.bf16.msra.mxu0 %v1020
        %1164 = vmatprep.subr.bf16.mxu0 %v1015
        %1165 = vmatpush2.bf16.msra.mxu0 %v1014
        %1166 = vmatprep.subr.bf16.mxu0 %v1009
        %1167 = vmatpush2.bf16.msra.mxu0 %v1008
        %1168 = vmatprep.subr.bf16.mxu0 %v1003
        %1169 = vmatpush2.bf16.msra.mxu0 %v1002
        %1170 = vmatprep.subr.bf16.mxu0 %v997
        %1171 = vmatpush2.bf16.msra.mxu0 %v996
        %1172 = vmatprep.mubr.bf16.mxu0 %v531
        %1173 = vmatmul.mubr.bf16.gmra.mxu0 %v530
        %v1174 = vpop.f32.mrf.mxu0
        %v1175 = vadd.f32 %v633, %v1174
        %v1176 = vpop.f32.mrf.mxu0
        %v1177 = vadd.f32 %v637, %v1176
        %v1178 = vpop.f32.mrf.mxu0
        %v1179 = vadd.f32 %v633, %v1178
        %v1180 = vpop.f32.mrf.mxu0
        %v1181 = vadd.f32 %v637, %v1180
        %1182 = vdwg.mxu0
        %1183 = vmatprep.subr.bf16.mxu0 %v993
        %1184 = vmatpush1.bf16.msra.mxu0 %v992
        %1185 = vmatprep.subr.bf16.mxu0 %v987
        %1186 = vmatpush1.bf16.msra.mxu0 %v986
        %1187 = vmatprep.subr.bf16.mxu0 %v981
        %1188 = vmatpush1.bf16.msra.mxu0 %v980
        %1189 = vmatprep.subr.bf16.mxu0 %v975
        %1190 = vmatpush1.bf16.msra.mxu0 %v974
        %1191 = vmatprep.subr.bf16.mxu0 %v969
        %1192 = vmatpush1.bf16.msra.mxu0 %v968
        %1193 = vmatprep.subr.bf16.mxu0 %v963
        %1194 = vmatpush1.bf16.msra.mxu0 %v962
        %1195 = vmatprep.subr.bf16.mxu0 %v957
        %1196 = vmatpush1.bf16.msra.mxu0 %v956
        %1197 = vmatprep.subr.bf16.mxu0 %v951
        %1198 = vmatpush1.bf16.msra.mxu0 %v950
        %1199 = vmatprep.subr.bf16.mxu0 %v1041
        %1200 = vmatpush2.bf16.msra.mxu0 %v1040
        %1201 = vmatprep.subr.bf16.mxu0 %v1035
        %1202 = vmatpush2.bf16.msra.mxu0 %v1034
        %1203 = vmatprep.subr.bf16.mxu0 %v1029
        %1204 = vmatpush2.bf16.msra.mxu0 %v1028
        %1205 = vmatprep.subr.bf16.mxu0 %v1023
        %1206 = vmatpush2.bf16.msra.mxu0 %v1022
        %1207 = vmatprep.subr.bf16.mxu0 %v1017
        %1208 = vmatpush2.bf16.msra.mxu0 %v1016
        %1209 = vmatprep.subr.bf16.mxu0 %v1011
        %1210 = vmatpush2.bf16.msra.mxu0 %v1010
        %1211 = vmatprep.subr.bf16.mxu0 %v1005
        %1212 = vmatpush2.bf16.msra.mxu0 %v1004
        %1213 = vmatprep.subr.bf16.mxu0 %v999
        %1214 = vmatpush2.bf16.msra.mxu0 %v998
        %1215 = vmatprep.mubr.bf16.mxu0 %v531
        %1216 = vmatmul.mubr.bf16.gmra.mxu0 %v530
        %v1217 = vpop.f32.mrf.mxu0
        %v1218 = vadd.f32 %v641, %v1217
        %v1219 = vpop.f32.mrf.mxu0
        %v1220 = vadd.f32 %v645, %v1219
        %v1221 = vpop.f32.mrf.mxu0
        %v1222 = vadd.f32 %v641, %v1221
        %v1223 = vpop.f32.mrf.mxu0
        %v1224 = vadd.f32 %v645, %v1223
        %1225 = vdwg.mxu0
        %1226 = vmatprep.subr.bf16.mxu0 %v995
        %1227 = vmatpush1.bf16.msra.mxu0 %v994
        %1228 = vmatprep.subr.bf16.mxu0 %v989
        %1229 = vmatpush1.bf16.msra.mxu0 %v988
        %1230 = vmatprep.subr.bf16.mxu0 %v983
        %1231 = vmatpush1.bf16.msra.mxu0 %v982
        %1232 = vmatprep.subr.bf16.mxu0 %v977
        %1233 = vmatpush1.bf16.msra.mxu0 %v976
        %1234 = vmatprep.subr.bf16.mxu0 %v971
        %1235 = vmatpush1.bf16.msra.mxu0 %v970
        %1236 = vmatprep.subr.bf16.mxu0 %v965
        %1237 = vmatpush1.bf16.msra.mxu0 %v964
        %1238 = vmatprep.subr.bf16.mxu0 %v959
        %1239 = vmatpush1.bf16.msra.mxu0 %v958
        %1240 = vmatprep.subr.bf16.mxu0 %v953
        %1241 = vmatpush1.bf16.msra.mxu0 %v952
        %1242 = vmatprep.subr.bf16.mxu0 %v1043
        %1243 = vmatpush2.bf16.msra.mxu0 %v1042
        %1244 = vmatprep.subr.bf16.mxu0 %v1037
        %1245 = vmatpush2.bf16.msra.mxu0 %v1036
        %1246 = vmatprep.subr.bf16.mxu0 %v1031
        %1247 = vmatpush2.bf16.msra.mxu0 %v1030
        %1248 = vmatprep.subr.bf16.mxu0 %v1025
        %1249 = vmatpush2.bf16.msra.mxu0 %v1024
        %1250 = vmatprep.subr.bf16.mxu0 %v1019
        %1251 = vmatpush2.bf16.msra.mxu0 %v1018
        %1252 = vmatprep.subr.bf16.mxu0 %v1013
        %1253 = vmatpush2.bf16.msra.mxu0 %v1012
        %1254 = vmatprep.subr.bf16.mxu0 %v1007
        %1255 = vmatpush2.bf16.msra.mxu0 %v1006
        %1256 = vmatprep.subr.bf16.mxu0 %v1001
        %1257 = vmatpush2.bf16.msra.mxu0 %v1000
        %1258 = vmatprep.mubr.bf16.mxu0 %v531
        %1259 = vmatmul.mubr.bf16.gmra.mxu0 %v530
        %v1260 = vpop.f32.mrf.mxu0
        %v1261 = vadd.f32 %v649, %v1260
        %v1262 = vpop.f32.mrf.mxu0
        %v1263 = vadd.f32 %v653, %v1262
        %v1264 = vpop.f32.mrf.mxu0
        %v1265 = vadd.f32 %v649, %v1264
        %v1266 = vpop.f32.mrf.mxu0
        %v1267 = vadd.f32 %v653, %v1266
        %1268 = vdwg.mxu0
        %v1269 = vmul.f32 %v1175, 0.17677669
        %v1270 = vmul.f32 %v1179, 0.17677669
        %v1271 = vpack.c.bf16 %v1270, %v1269
        %v1272 = vpack.c.bf16 %v1222, %v1218
        %v1273 = vpack.c.bf16 %v1265, %v1261
        %v1275 = vlaneseq
        %v1276 = vshrl.u32 %v1275, 7
        %v1277 = vsub.s32 0, %v1276
        %v1278 = vrot.slane %v529, %v1277
        %vm1280 = vcmask 261120
        %v1282 = vsel %vm1280, %v1271, 0
        %v1285 = vsel %vm1280, %v1272, 0
        %1287 = vmatprep.subr.bf16.mxu0 0
        %1288 = vmatpush1.bf16.xpose.msra.mxu0 0
        %1289 = vmatprep.subr.bf16.mxu0 0
        %1290 = vmatpush1.bf16.xpose.msra.mxu0 0
        %1291 = vmatprep.subr.bf16.mxu0 0
        %1292 = vmatpush1.bf16.xpose.msra.mxu0 0
        %1293 = vmatprep.subr.bf16.mxu0 0
        %1294 = vmatpush1.bf16.xpose.msra.mxu0 0
        %1295 = vmatprep.subr.bf16.mxu0 0
        %1296 = vmatpush1.bf16.xpose.msra.mxu0 0
        %1297 = vmatprep.subr.bf16.mxu0 0
        %1298 = vmatpush1.bf16.xpose.msra.mxu0 0
        %1299 = vmatprep.subr.bf16.mxu0 0
        %1300 = vmatpush1.bf16.xpose.msra.mxu0 0
        %1301 = vmatprep.subr.bf16.mxu0 0
        %1302 = vmatpush1.bf16.xpose.msra.mxu0 %v1285
        %1303 = vmatprep.subr.bf16.mxu0 0
        %1304 = vmatpush2.bf16.xpose.msra.mxu0 0
        %1305 = vmatprep.subr.bf16.mxu0 0
        %1306 = vmatpush2.bf16.xpose.msra.mxu0 0
        %1307 = vmatprep.subr.bf16.mxu0 0
        %1308 = vmatpush2.bf16.xpose.msra.mxu0 0
        %1309 = vmatprep.subr.bf16.mxu0 0
        %1310 = vmatpush2.bf16.xpose.msra.mxu0 0
        %1311 = vmatprep.subr.bf16.mxu0 0
        %1312 = vmatpush2.bf16.xpose.msra.mxu0 0
        %1313 = vmatprep.subr.bf16.mxu0 0
        %1314 = vmatpush2.bf16.xpose.msra.mxu0 0
        %1315 = vmatprep.subr.bf16.mxu0 0
        %1316 = vmatpush2.bf16.xpose.msra.mxu0 0
        %1317 = vmatprep.subr.bf16.mxu0 0
        %1318 = vmatpush2.bf16.xpose.msra.mxu0 0
        %1319 = vmatprep.mubr.bf16.mxu0 0
        %1320 = vmatmul.mubr.bf16.gmra.mxu0 %v1282
        %v1321 = vpop.f32.mrf.mxu0
        %v1322 = vadd.f32 %v1278, %v1321
        %v1323 = vpop.f32.mrf.mxu0
        %v1324 = vpop.f32.mrf.mxu0
        %v1325 = vadd.f32 %v1278, %v1324
        %v1326 = vpop.f32.mrf.mxu0
        %1327 = vdwg.mxu0
        %vm1328 = vcmask 130048
        %v1329 = vsel %vm1328, %v1322, -inf
        %1330 = vmax.xlane.f32.xlu0 %v1329
        %v1331 = vpop.xlane.xlu0 %1330
        %v1332 = vsel %vm1328, %v1325, -inf
        %1333 = vmax.xlane.f32.xlu0 %v1332
        %v1334 = vpop.xlane.xlu0 %1333
        %v1335 = vsub.f32 %v1322, %v1331
        %v1336 = vsub.f32 %v1325, %v1334
        %v1337 = vmul.f32 %v1335, 1.442695
        %v1338 = vpow.pop %v1337
        %v1339 = vmul.f32 %v1336, 1.442695
        %v1340 = vpow.pop %v1339
        %v1341 = vsel %vm1328, %v1338, 0.0
        %1342 = vadd.xlane.f32.xlu0 %v1341
        %v1343 = vpop.xlane.xlu0 %1342
        %v1344 = vsel %vm1328, %v1340, 0.0
        %1345 = vadd.xlane.f32.xlu0 %v1344
        %v1346 = vpop.xlane.xlu0 %1345
        %v1347 = vrcp.pop %v1343
        %v1348 = vrcp.pop %v1346
        %v1349 = vmul.f32 %v1338, %v1347
        %v1350 = vmul.f32 %v1340, %v1348
        %v1351 = vpack.c.bf16 %v1350, %v1349
        %v1353 = vsel %vm1328, %v1351, 0
        %1355 = vmatprep.subr.bf16.mxu0 0
        %1356 = vmatpush1.bf16.msra.mxu0 0
        %1357 = vmatprep.subr.bf16.mxu0 0
        %1358 = vmatpush1.bf16.msra.mxu0 0
        %1359 = vmatprep.subr.bf16.mxu0 0
        %1360 = vmatpush1.bf16.msra.mxu0 0
        %1361 = vmatprep.subr.bf16.mxu0 0
        %1362 = vmatpush1.bf16.msra.mxu0 0
        %1363 = vmatprep.subr.bf16.mxu0 0
        %1364 = vmatpush1.bf16.msra.mxu0 0
        %1365 = vmatprep.subr.bf16.mxu0 0
        %1366 = vmatpush1.bf16.msra.mxu0 0
        %1367 = vmatprep.subr.bf16.mxu0 0
        %1368 = vmatpush1.bf16.msra.mxu0 0
        %1369 = vmatprep.subr.bf16.mxu0 0
        %1370 = vmatpush1.bf16.msra.mxu0 %v1273
        %1371 = vmatprep.subr.bf16.mxu0 0
        %1372 = vmatpush2.bf16.msra.mxu0 0
        %1373 = vmatprep.subr.bf16.mxu0 0
        %1374 = vmatpush2.bf16.msra.mxu0 0
        %1375 = vmatprep.subr.bf16.mxu0 0
        %1376 = vmatpush2.bf16.msra.mxu0 0
        %1377 = vmatprep.subr.bf16.mxu0 0
        %1378 = vmatpush2.bf16.msra.mxu0 0
        %1379 = vmatprep.subr.bf16.mxu0 0
        %1380 = vmatpush2.bf16.msra.mxu0 0
        %1381 = vmatprep.subr.bf16.mxu0 0
        %1382 = vmatpush2.bf16.msra.mxu0 0
        %1383 = vmatprep.subr.bf16.mxu0 0
        %1384 = vmatpush2.bf16.msra.mxu0 0
        %1385 = vmatprep.subr.bf16.mxu0 0
        %1386 = vmatpush2.bf16.msra.mxu0 0
        %1387 = vmatprep.mubr.bf16.mxu0 0
        %1388 = vmatmul.mubr.bf16.gmra.mxu0 %v1353
        %v1389 = vpop.f32.mrf.mxu0
        %v1390 = vadd.f32 0.0, %v1389
        %v1391 = vpop.f32.mrf.mxu0
        %v1392 = vpop.f32.mrf.mxu0
        %v1393 = vadd.f32 0.0, %v1392
        %v1394 = vpop.f32.mrf.mxu0
        %1395 = vdwg.mxu0
        %1396 = vst.msk [vmem:[#allocation2] sm:$0xff] %vm1280, %v1390
        %1397 = vst.msk [vmem:[#allocation2 + $0x10] sm:$0xff] %vm1280, %v1393
        %1399 = vrot.lane.b32.xlu0 %v1271, 96
        %v1400 = vpop.permute.xlu0 %1399
        %1402 = vrot.lane.b32.xlu0 %v1272, 96
        %v1403 = vpop.permute.xlu0 %1402
        %v1405 = vsel %vm1280, %v1400, 0
        %v1408 = vsel %vm1280, %v1403, 0
        %1410 = vmatprep.subr.bf16.mxu0 0
        %1411 = vmatpush1.bf16.xpose.msra.mxu0 0
        %1412 = vmatprep.subr.bf16.mxu0 0
        %1413 = vmatpush1.bf16.xpose.msra.mxu0 0
        %1414 = vmatprep.subr.bf16.mxu0 0
        %1415 = vmatpush1.bf16.xpose.msra.mxu0 0
        %1416 = vmatprep.subr.bf16.mxu0 0
        %1417 = vmatpush1.bf16.xpose.msra.mxu0 0
        %1418 = vmatprep.subr.bf16.mxu0 0
        %1419 = vmatpush1.bf16.xpose.msra.mxu0 0
        %1420 = vmatprep.subr.bf16.mxu0 0
        %1421 = vmatpush1.bf16.xpose.msra.mxu0 0
        %1422 = vmatprep.subr.bf16.mxu0 0
        %1423 = vmatpush1.bf16.xpose.msra.mxu0 0
        %1424 = vmatprep.subr.bf16.mxu0 0
        %1425 = vmatpush1.bf16.xpose.msra.mxu0 %v1408
        %1426 = vmatprep.subr.bf16.mxu0 0
        %1427 = vmatpush2.bf16.xpose.msra.mxu0 0
        %1428 = vmatprep.subr.bf16.mxu0 0
        %1429 = vmatpush2.bf16.xpose.msra.mxu0 0
        %1430 = vmatprep.subr.bf16.mxu0 0
        %1431 = vmatpush2.bf16.xpose.msra.mxu0 0
        %1432 = vmatprep.subr.bf16.mxu0 0
        %1433 = vmatpush2.bf16.xpose.msra.mxu0 0
        %1434 = vmatprep.subr.bf16.mxu0 0
        %1435 = vmatpush2.bf16.xpose.msra.mxu0 0
        %1436 = vmatprep.subr.bf16.mxu0 0
        %1437 = vmatpush2.bf16.xpose.msra.mxu0 0
        %1438 = vmatprep.subr.bf16.mxu0 0
        %1439 = vmatpush2.bf16.xpose.msra.mxu0 0
        %1440 = vmatprep.subr.bf16.mxu0 0
        %1441 = vmatpush2.bf16.xpose.msra.mxu0 0
        %1442 = vmatprep.mubr.bf16.mxu0 0
        %1443 = vmatmul.mubr.bf16.gmra.mxu0 %v1405
        %v1444 = vpop.f32.mrf.mxu0
        %v1445 = vadd.f32 %v1278, %v1444
        %v1446 = vpop.f32.mrf.mxu0
        %v1447 = vpop.f32.mrf.mxu0
        %v1448 = vadd.f32 %v1278, %v1447
        %v1449 = vpop.f32.mrf.mxu0
        %1450 = vdwg.mxu0
        %v1451 = vsel %vm1328, %v1445, -inf
        %1452 = vmax.xlane.f32.xlu0 %v1451
        %v1453 = vpop.xlane.xlu0 %1452
        %v1454 = vsel %vm1328, %v1448, -inf
        %1455 = vmax.xlane.f32.xlu0 %v1454
        %v1456 = vpop.xlane.xlu0 %1455
        %v1457 = vsub.f32 %v1445, %v1453
        %v1458 = vsub.f32 %v1448, %v1456
        %v1459 = vmul.f32 %v1457, 1.442695
        %v1460 = vpow.pop %v1459
        %v1461 = vmul.f32 %v1458, 1.442695
        %v1462 = vpow.pop %v1461
        %v1463 = vsel %vm1328, %v1460, 0.0
        %1464 = vadd.xlane.f32.xlu0 %v1463
        %v1465 = vpop.xlane.xlu0 %1464
        %v1466 = vsel %vm1328, %v1462, 0.0
        %1467 = vadd.xlane.f32.xlu0 %v1466
        %v1468 = vpop.xlane.xlu0 %1467
        %v1469 = vrcp.pop %v1465
        %v1470 = vrcp.pop %v1468
        %v1471 = vmul.f32 %v1460, %v1469
        %v1472 = vmul.f32 %v1462, %v1470
        %v1473 = vpack.c.bf16 %v1472, %v1471
        %1475 = vrot.lane.b32.xlu0 %v1273, 96
        %v1476 = vpop.permute.xlu0 %1475
        %v1479 = vsel %vm1328, %v1473, 0
        %1481 = vmatprep.subr.bf16.mxu0 0
        %1482 = vmatpush1.bf16.msra.mxu0 0
        %1483 = vmatprep.subr.bf16.mxu0 0
        %1484 = vmatpush1.bf16.msra.mxu0 0
        %1485 = vmatprep.subr.bf16.mxu0 0
        %1486 = vmatpush1.bf16.msra.mxu0 0
        %1487 = vmatprep.subr.bf16.mxu0 0
        %1488 = vmatpush1.bf16.msra.mxu0 0
        %1489 = vmatprep.subr.bf16.mxu0 0
        %1490 = vmatpush1.bf16.msra.mxu0 0
        %1491 = vmatprep.subr.bf16.mxu0 0
        %1492 = vmatpush1.bf16.msra.mxu0 0
        %1493 = vmatprep.subr.bf16.mxu0 0
        %1494 = vmatpush1.bf16.msra.mxu0 0
        %1495 = vmatprep.subr.bf16.mxu0 0
        %1496 = vmatpush1.bf16.msra.mxu0 %v1476
        %1497 = vmatprep.subr.bf16.mxu0 0
        %1498 = vmatpush2.bf16.msra.mxu0 0
        %1499 = vmatprep.subr.bf16.mxu0 0
        %1500 = vmatpush2.bf16.msra.mxu0 0
        %1501 = vmatprep.subr.bf16.mxu0 0
        %1502 = vmatpush2.bf16.msra.mxu0 0
        %1503 = vmatprep.subr.bf16.mxu0 0
        %1504 = vmatpush2.bf16.msra.mxu0 0
        %1505 = vmatprep.subr.bf16.mxu0 0
        %1506 = vmatpush2.bf16.msra.mxu0 0
        %1507 = vmatprep.subr.bf16.mxu0 0
        %1508 = vmatpush2.bf16.msra.mxu0 0
        %1509 = vmatprep.subr.bf16.mxu0 0
        %1510 = vmatpush2.bf16.msra.mxu0 0
        %1511 = vmatprep.subr.bf16.mxu0 0
        %1512 = vmatpush2.bf16.msra.mxu0 0
        %1513 = vmatprep.mubr.bf16.mxu0 0
        %1514 = vmatmul.mubr.bf16.gmra.mxu0 %v1479
        %v1515 = vpop.f32.mrf.mxu0
        %v1516 = vadd.f32 0.0, %v1515
        %v1517 = vpop.f32.mrf.mxu0
        %v1518 = vpop.f32.mrf.mxu0
        %v1519 = vadd.f32 0.0, %v1518
        %v1520 = vpop.f32.mrf.mxu0
        %1521 = vdwg.mxu0
        %1524 = vrot.lane.b32.xlu0 %v1516, 32
        %v1525 = vpop.permute.xlu0 %1524
        %1526 = vrot.lane.b32.xlu0 %v1519, 32
        %v1527 = vpop.permute.xlu0 %1526
        %vm1530 = vcmask 523520
        %1531 = vst.msk [vmem:[#allocation2] sm:$0xff] %vm1530, %v1525
        %1532 = vst.msk [vmem:[#allocation2 + $0x10] sm:$0xff] %vm1530, %v1527
        %1533 = vrot.lane.b32.xlu0 %v1271, 64
        %v1534 = vpop.permute.xlu0 %1533
        %1535 = vrot.lane.b32.xlu0 %v1272, 64
        %v1536 = vpop.permute.xlu0 %1535
        %v1538 = vsel %vm1280, %v1534, 0
        %v1541 = vsel %vm1280, %v1536, 0
        %1543 = vmatprep.subr.bf16.mxu0 0
        %1544 = vmatpush1.bf16.xpose.msra.mxu0 0
        %1545 = vmatprep.subr.bf16.mxu0 0
        %1546 = vmatpush1.bf16.xpose.msra.mxu0 0
        %1547 = vmatprep.subr.bf16.mxu0 0
        %1548 = vmatpush1.bf16.xpose.msra.mxu0 0
        %1549 = vmatprep.subr.bf16.mxu0 0
        %1550 = vmatpush1.bf16.xpose.msra.mxu0 0
        %1551 = vmatprep.subr.bf16.mxu0 0
        %1552 = vmatpush1.bf16.xpose.msra.mxu0 0
        %1553 = vmatprep.subr.bf16.mxu0 0
        %1554 = vmatpush1.bf16.xpose.msra.mxu0 0
        %1555 = vmatprep.subr.bf16.mxu0 0
        %1556 = vmatpush1.bf16.xpose.msra.mxu0 0
        %1557 = vmatprep.subr.bf16.mxu0 0
        %1558 = vmatpush1.bf16.xpose.msra.mxu0 %v1541
        %1559 = vmatprep.subr.bf16.mxu0 0
        %1560 = vmatpush2.bf16.xpose.msra.mxu0 0
        %1561 = vmatprep.subr.bf16.mxu0 0
        %1562 = vmatpush2.bf16.xpose.msra.mxu0 0
        %1563 = vmatprep.subr.bf16.mxu0 0
        %1564 = vmatpush2.bf16.xpose.msra.mxu0 0
        %1565 = vmatprep.subr.bf16.mxu0 0
        %1566 = vmatpush2.bf16.xpose.msra.mxu0 0
        %1567 = vmatprep.subr.bf16.mxu0 0
        %1568 = vmatpush2.bf16.xpose.msra.mxu0 0
        %1569 = vmatprep.subr.bf16.mxu0 0
        %1570 = vmatpush2.bf16.xpose.msra.mxu0 0
        %1571 = vmatprep.subr.bf16.mxu0 0
        %1572 = vmatpush2.bf16.xpose.msra.mxu0 0
        %1573 = vmatprep.subr.bf16.mxu0 0
        %1574 = vmatpush2.bf16.xpose.msra.mxu0 0
        %1575 = vmatprep.mubr.bf16.mxu0 0
        %1576 = vmatmul.mubr.bf16.gmra.mxu0 %v1538
        %v1577 = vpop.f32.mrf.mxu0
        %v1578 = vadd.f32 %v1278, %v1577
        %v1579 = vpop.f32.mrf.mxu0
        %v1580 = vpop.f32.mrf.mxu0
        %v1581 = vadd.f32 %v1278, %v1580
        %v1582 = vpop.f32.mrf.mxu0
        %1583 = vdwg.mxu0
        %v1584 = vsel %vm1328, %v1578, -inf
        %1585 = vmax.xlane.f32.xlu0 %v1584
        %v1586 = vpop.xlane.xlu0 %1585
        %v1587 = vsel %vm1328, %v1581, -inf
        %1588 = vmax.xlane.f32.xlu0 %v1587
        %v1589 = vpop.xlane.xlu0 %1588
        %v1590 = vsub.f32 %v1578, %v1586
        %v1591 = vsub.f32 %v1581, %v1589
        %v1592 = vmul.f32 %v1590, 1.442695
        %v1593 = vpow.pop %v1592
        %v1594 = vmul.f32 %v1591, 1.442695
        %v1595 = vpow.pop %v1594
        %v1596 = vsel %vm1328, %v1593, 0.0
        %1597 = vadd.xlane.f32.xlu0 %v1596
        %v1598 = vpop.xlane.xlu0 %1597
        %v1599 = vsel %vm1328, %v1595, 0.0
        %1600 = vadd.xlane.f32.xlu0 %v1599
        %v1601 = vpop.xlane.xlu0 %1600
        %v1602 = vrcp.pop %v1598
        %v1603 = vrcp.pop %v1601
        %v1604 = vmul.f32 %v1593, %v1602
        %v1605 = vmul.f32 %v1595, %v1603
        %v1606 = vpack.c.bf16 %v1605, %v1604
        %1607 = vrot.lane.b32.xlu0 %v1273, 64
        %v1608 = vpop.permute.xlu0 %1607
        %v1611 = vsel %vm1328, %v1606, 0
        %1613 = vmatprep.subr.bf16.mxu0 0
        %1614 = vmatpush1.bf16.msra.mxu0 0
        %1615 = vmatprep.subr.bf16.mxu0 0
        %1616 = vmatpush1.bf16.msra.mxu0 0
        %1617 = vmatprep.subr.bf16.mxu0 0
        %1618 = vmatpush1.bf16.msra.mxu0 0
        %1619 = vmatprep.subr.bf16.mxu0 0
        %1620 = vmatpush1.bf16.msra.mxu0 0
        %1621 = vmatprep.subr.bf16.mxu0 0
        %1622 = vmatpush1.bf16.msra.mxu0 0
        %1623 = vmatprep.subr.bf16.mxu0 0
        %1624 = vmatpush1.bf16.msra.mxu0 0
        %1625 = vmatprep.subr.bf16.mxu0 0
        %1626 = vmatpush1.bf16.msra.mxu0 0
        %1627 = vmatprep.subr.bf16.mxu0 0
        %1628 = vmatpush1.bf16.msra.mxu0 %v1608
        %1629 = vmatprep.subr.bf16.mxu0 0
        %1630 = vmatpush2.bf16.msra.mxu0 0
        %1631 = vmatprep.subr.bf16.mxu0 0
        %1632 = vmatpush2.bf16.msra.mxu0 0
        %1633 = vmatprep.subr.bf16.mxu0 0
        %1634 = vmatpush2.bf16.msra.mxu0 0
        %1635 = vmatprep.subr.bf16.mxu0 0
        %1636 = vmatpush2.bf16.msra.mxu0 0
        %1637 = vmatprep.subr.bf16.mxu0 0
        %1638 = vmatpush2.bf16.msra.mxu0 0
        %1639 = vmatprep.subr.bf16.mxu0 0
        %1640 = vmatpush2.bf16.msra.mxu0 0
        %1641 = vmatprep.subr.bf16.mxu0 0
        %1642 = vmatpush2.bf16.msra.mxu0 0
        %1643 = vmatprep.subr.bf16.mxu0 0
        %1644 = vmatpush2.bf16.msra.mxu0 0
        %1645 = vmatprep.mubr.bf16.mxu0 0
        %1646 = vmatmul.mubr.bf16.gmra.mxu0 %v1611
        %v1647 = vpop.f32.mrf.mxu0
        %v1648 = vadd.f32 0.0, %v1647
        %v1649 = vpop.f32.mrf.mxu0
        %v1650 = vpop.f32.mrf.mxu0
        %v1651 = vadd.f32 0.0, %v1650
        %v1652 = vpop.f32.mrf.mxu0
        %1653 = vdwg.mxu0
        %1656 = vrot.lane.b32.xlu0 %v1648, 64
        %v1657 = vpop.permute.xlu0 %1656
        %1658 = vrot.lane.b32.xlu0 %v1651, 64
        %v1659 = vpop.permute.xlu0 %1658
        %vm1662 = vcmask 785920
        %1663 = vst.msk [vmem:[#allocation2] sm:$0xff] %vm1662, %v1657
        %1664 = vst.msk [vmem:[#allocation2 + $0x10] sm:$0xff] %vm1662, %v1659
        %1665 = vrot.lane.b32.xlu0 %v1271, 32
        %v1666 = vpop.permute.xlu0 %1665
        %1667 = vrot.lane.b32.xlu0 %v1272, 32
        %v1668 = vpop.permute.xlu0 %1667
        %v1670 = vsel %vm1280, %v1666, 0
        %v1673 = vsel %vm1280, %v1668, 0
        %1675 = vmatprep.subr.bf16.mxu0 0
        %1676 = vmatpush1.bf16.xpose.msra.mxu0 0
        %1677 = vmatprep.subr.bf16.mxu0 0
        %1678 = vmatpush1.bf16.xpose.msra.mxu0 0
        %1679 = vmatprep.subr.bf16.mxu0 0
        %1680 = vmatpush1.bf16.xpose.msra.mxu0 0
        %1681 = vmatprep.subr.bf16.mxu0 0
        %1682 = vmatpush1.bf16.xpose.msra.mxu0 0
        %1683 = vmatprep.subr.bf16.mxu0 0
        %1684 = vmatpush1.bf16.xpose.msra.mxu0 0
        %1685 = vmatprep.subr.bf16.mxu0 0
        %1686 = vmatpush1.bf16.xpose.msra.mxu0 0
        %1687 = vmatprep.subr.bf16.mxu0 0
        %1688 = vmatpush1.bf16.xpose.msra.mxu0 0
        %1689 = vmatprep.subr.bf16.mxu0 0
        %1690 = vmatpush1.bf16.xpose.msra.mxu0 %v1673
        %1691 = vmatprep.subr.bf16.mxu0 0
        %1692 = vmatpush2.bf16.xpose.msra.mxu0 0
        %1693 = vmatprep.subr.bf16.mxu0 0
        %1694 = vmatpush2.bf16.xpose.msra.mxu0 0
        %1695 = vmatprep.subr.bf16.mxu0 0
        %1696 = vmatpush2.bf16.xpose.msra.mxu0 0
        %1697 = vmatprep.subr.bf16.mxu0 0
        %1698 = vmatpush2.bf16.xpose.msra.mxu0 0
        %1699 = vmatprep.subr.bf16.mxu0 0
        %1700 = vmatpush2.bf16.xpose.msra.mxu0 0
        %1701 = vmatprep.subr.bf16.mxu0 0
        %1702 = vmatpush2.bf16.xpose.msra.mxu0 0
        %1703 = vmatprep.subr.bf16.mxu0 0
        %1704 = vmatpush2.bf16.xpose.msra.mxu0 0
        %1705 = vmatprep.subr.bf16.mxu0 0
        %1706 = vmatpush2.bf16.xpose.msra.mxu0 0
        %1707 = vmatprep.mubr.bf16.mxu0 0
        %1708 = vmatmul.mubr.bf16.gmra.mxu0 %v1670
        %v1709 = vpop.f32.mrf.mxu0
        %v1710 = vadd.f32 %v1278, %v1709
        %v1711 = vpop.f32.mrf.mxu0
        %v1712 = vpop.f32.mrf.mxu0
        %v1713 = vadd.f32 %v1278, %v1712
        %v1714 = vpop.f32.mrf.mxu0
        %1715 = vdwg.mxu0
        %v1716 = vsel %vm1328, %v1710, -inf
        %1717 = vmax.xlane.f32.xlu0 %v1716
        %v1718 = vpop.xlane.xlu0 %1717
        %v1719 = vsel %vm1328, %v1713, -inf
        %1720 = vmax.xlane.f32.xlu0 %v1719
        %v1721 = vpop.xlane.xlu0 %1720
        %v1722 = vsub.f32 %v1710, %v1718
        %v1723 = vsub.f32 %v1713, %v1721
        %v1724 = vmul.f32 %v1722, 1.442695
        %v1725 = vpow.pop %v1724
        %v1726 = vmul.f32 %v1723, 1.442695
        %v1727 = vpow.pop %v1726
        %v1728 = vsel %vm1328, %v1725, 0.0
        %1729 = vadd.xlane.f32.xlu0 %v1728
        %v1730 = vpop.xlane.xlu0 %1729
        %v1731 = vsel %vm1328, %v1727, 0.0
        %1732 = vadd.xlane.f32.xlu0 %v1731
        %v1733 = vpop.xlane.xlu0 %1732
        %v1734 = vrcp.pop %v1730
        %v1735 = vrcp.pop %v1733
        %v1736 = vmul.f32 %v1725, %v1734
        %v1737 = vmul.f32 %v1727, %v1735
        %v1738 = vpack.c.bf16 %v1737, %v1736
        %1739 = vrot.lane.b32.xlu0 %v1273, 32
        %v1740 = vpop.permute.xlu0 %1739
        %v1743 = vsel %vm1328, %v1738, 0
        %1745 = vmatprep.subr.bf16.mxu0 0
        %1746 = vmatpush1.bf16.msra.mxu0 0
        %1747 = vmatprep.subr.bf16.mxu0 0
        %1748 = vmatpush1.bf16.msra.mxu0 0
        %1749 = vmatprep.subr.bf16.mxu0 0
        %1750 = vmatpush1.bf16.msra.mxu0 0
        %1751 = vmatprep.subr.bf16.mxu0 0
        %1752 = vmatpush1.bf16.msra.mxu0 0
        %1753 = vmatprep.subr.bf16.mxu0 0
        %1754 = vmatpush1.bf16.msra.mxu0 0
        %1755 = vmatprep.subr.bf16.mxu0 0
        %1756 = vmatpush1.bf16.msra.mxu0 0
        %1757 = vmatprep.subr.bf16.mxu0 0
        %1758 = vmatpush1.bf16.msra.mxu0 0
        %1759 = vmatprep.subr.bf16.mxu0 0
        %1760 = vmatpush1.bf16.msra.mxu0 %v1740
        %1761 = vmatprep.subr.bf16.mxu0 0
        %1762 = vmatpush2.bf16.msra.mxu0 0
        %1763 = vmatprep.subr.bf16.mxu0 0
        %1764 = vmatpush2.bf16.msra.mxu0 0
        %1765 = vmatprep.subr.bf16.mxu0 0
        %1766 = vmatpush2.bf16.msra.mxu0 0
        %1767 = vmatprep.subr.bf16.mxu0 0
        %1768 = vmatpush2.bf16.msra.mxu0 0
        %1769 = vmatprep.subr.bf16.mxu0 0
        %1770 = vmatpush2.bf16.msra.mxu0 0
        %1771 = vmatprep.subr.bf16.mxu0 0
        %1772 = vmatpush2.bf16.msra.mxu0 0
        %1773 = vmatprep.subr.bf16.mxu0 0
        %1774 = vmatpush2.bf16.msra.mxu0 0
        %1775 = vmatprep.subr.bf16.mxu0 0
        %1776 = vmatpush2.bf16.msra.mxu0 0
        %1777 = vmatprep.mubr.bf16.mxu0 0
        %1778 = vmatmul.mubr.bf16.gmra.mxu0 %v1743
        %v1779 = vpop.f32.mrf.mxu0
        %v1780 = vadd.f32 0.0, %v1779
        %v1781 = vpop.f32.mrf.mxu0
        %v1782 = vpop.f32.mrf.mxu0
        %v1783 = vadd.f32 0.0, %v1782
        %v1784 = vpop.f32.mrf.mxu0
        %1785 = vdwg.mxu0
        %1788 = vrot.lane.b32.xlu0 %v1780, 96
        %v1789 = vpop.permute.xlu0 %1788
        %1790 = vrot.lane.b32.xlu0 %v1783, 96
        %v1791 = vpop.permute.xlu0 %1790
        %vm1794 = vcmask 1048320
        %1795 = vst.msk [vmem:[#allocation2] sm:$0xff] %vm1794, %v1789
        %1796 = vst.msk [vmem:[#allocation2 + $0x10] sm:$0xff] %vm1794, %v1791
        %v1797 = vmul.f32 %v1177, 0.17677669
        %v1798 = vmul.f32 %v1181, 0.17677669
        %v1799 = vpack.c.bf16 %v1798, %v1797
        %v1800 = vpack.c.bf16 %v1224, %v1220
        %v1801 = vpack.c.bf16 %v1267, %v1263
        %v1803 = vsel %vm1280, %v1799, 0
        %v1806 = vsel %vm1280, %v1800, 0
        %1808 = vmatprep.subr.bf16.mxu0 0
        %1809 = vmatpush1.bf16.xpose.msra.mxu0 0
        %1810 = vmatprep.subr.bf16.mxu0 0
        %1811 = vmatpush1.bf16.xpose.msra.mxu0 0
        %1812 = vmatprep.subr.bf16.mxu0 0
        %1813 = vmatpush1.bf16.xpose.msra.mxu0 0
        %1814 = vmatprep.subr.bf16.mxu0 0
        %1815 = vmatpush1.bf16.xpose.msra.mxu0 0
        %1816 = vmatprep.subr.bf16.mxu0 0
        %1817 = vmatpush1.bf16.xpose.msra.mxu0 0
        %1818 = vmatprep.subr.bf16.mxu0 0
        %1819 = vmatpush1.bf16.xpose.msra.mxu0 0
        %1820 = vmatprep.subr.bf16.mxu0 0
        %1821 = vmatpush1.bf16.xpose.msra.mxu0 0
        %1822 = vmatprep.subr.bf16.mxu0 0
        %1823 = vmatpush1.bf16.xpose.msra.mxu0 %v1806
        %1824 = vmatprep.subr.bf16.mxu0 0
        %1825 = vmatpush2.bf16.xpose.msra.mxu0 0
        %1826 = vmatprep.subr.bf16.mxu0 0
        %1827 = vmatpush2.bf16.xpose.msra.mxu0 0
        %1828 = vmatprep.subr.bf16.mxu0 0
        %1829 = vmatpush2.bf16.xpose.msra.mxu0 0
        %1830 = vmatprep.subr.bf16.mxu0 0
        %1831 = vmatpush2.bf16.xpose.msra.mxu0 0
        %1832 = vmatprep.subr.bf16.mxu0 0
        %1833 = vmatpush2.bf16.xpose.msra.mxu0 0
        %1834 = vmatprep.subr.bf16.mxu0 0
        %1835 = vmatpush2.bf16.xpose.msra.mxu0 0
        %1836 = vmatprep.subr.bf16.mxu0 0
        %1837 = vmatpush2.bf16.xpose.msra.mxu0 0
        %1838 = vmatprep.subr.bf16.mxu0 0
        %1839 = vmatpush2.bf16.xpose.msra.mxu0 0
        %1840 = vmatprep.mubr.bf16.mxu0 0
        %1841 = vmatmul.mubr.bf16.gmra.mxu0 %v1803
        %v1842 = vpop.f32.mrf.mxu0
        %v1843 = vadd.f32 %v1278, %v1842
        %v1844 = vpop.f32.mrf.mxu0
        %v1845 = vpop.f32.mrf.mxu0
        %v1846 = vadd.f32 %v1278, %v1845
        %v1847 = vpop.f32.mrf.mxu0
        %1848 = vdwg.mxu0
        %v1849 = vsel %vm1328, %v1843, -inf
        %1850 = vmax.xlane.f32.xlu0 %v1849
        %v1851 = vpop.xlane.xlu0 %1850
        %v1852 = vsel %vm1328, %v1846, -inf
        %1853 = vmax.xlane.f32.xlu0 %v1852
        %v1854 = vpop.xlane.xlu0 %1853
        %v1855 = vsub.f32 %v1843, %v1851
        %v1856 = vsub.f32 %v1846, %v1854
        %v1857 = vmul.f32 %v1855, 1.442695
        %v1858 = vpow.pop %v1857
        %v1859 = vmul.f32 %v1856, 1.442695
        %v1860 = vpow.pop %v1859
        %v1861 = vsel %vm1328, %v1858, 0.0
        %1862 = vadd.xlane.f32.xlu0 %v1861
        %v1863 = vpop.xlane.xlu0 %1862
        %v1864 = vsel %vm1328, %v1860, 0.0
        %1865 = vadd.xlane.f32.xlu0 %v1864
        %v1866 = vpop.xlane.xlu0 %1865
        %v1867 = vrcp.pop %v1863
        %v1868 = vrcp.pop %v1866
        %v1869 = vmul.f32 %v1858, %v1867
        %v1870 = vmul.f32 %v1860, %v1868
        %v1871 = vpack.c.bf16 %v1870, %v1869
        %v1873 = vsel %vm1328, %v1871, 0
        %1875 = vmatprep.subr.bf16.mxu0 0
        %1876 = vmatpush1.bf16.msra.mxu0 0
        %1877 = vmatprep.subr.bf16.mxu0 0
        %1878 = vmatpush1.bf16.msra.mxu0 0
        %1879 = vmatprep.subr.bf16.mxu0 0
        %1880 = vmatpush1.bf16.msra.mxu0 0
        %1881 = vmatprep.subr.bf16.mxu0 0
        %1882 = vmatpush1.bf16.msra.mxu0 0
        %1883 = vmatprep.subr.bf16.mxu0 0
        %1884 = vmatpush1.bf16.msra.mxu0 0
        %1885 = vmatprep.subr.bf16.mxu0 0
        %1886 = vmatpush1.bf16.msra.mxu0 0
        %1887 = vmatprep.subr.bf16.mxu0 0
        %1888 = vmatpush1.bf16.msra.mxu0 0
        %1889 = vmatprep.subr.bf16.mxu0 0
        %1890 = vmatpush1.bf16.msra.mxu0 %v1801
        %1891 = vmatprep.subr.bf16.mxu0 0
        %1892 = vmatpush2.bf16.msra.mxu0 0
        %1893 = vmatprep.subr.bf16.mxu0 0
        %1894 = vmatpush2.bf16.msra.mxu0 0
        %1895 = vmatprep.subr.bf16.mxu0 0
        %1896 = vmatpush2.bf16.msra.mxu0 0
        %1897 = vmatprep.subr.bf16.mxu0 0
        %1898 = vmatpush2.bf16.msra.mxu0 0
        %1899 = vmatprep.subr.bf16.mxu0 0
        %1900 = vmatpush2.bf16.msra.mxu0 0
        %1901 = vmatprep.subr.bf16.mxu0 0
        %1902 = vmatpush2.bf16.msra.mxu0 0
        %1903 = vmatprep.subr.bf16.mxu0 0
        %1904 = vmatpush2.bf16.msra.mxu0 0
        %1905 = vmatprep.subr.bf16.mxu0 0
        %1906 = vmatpush2.bf16.msra.mxu0 0
        %1907 = vmatprep.mubr.bf16.mxu0 0
        %1908 = vmatmul.mubr.bf16.gmra.mxu0 %v1873
        %v1909 = vpop.f32.mrf.mxu0
        %v1910 = vadd.f32 0.0, %v1909
        %v1911 = vpop.f32.mrf.mxu0
        %v1912 = vpop.f32.mrf.mxu0
        %v1913 = vadd.f32 0.0, %v1912
        %v1914 = vpop.f32.mrf.mxu0
        %1915 = vdwg.mxu0
        %1916 = vst.msk [vmem:[#allocation2 + $0x8] sm:$0xff] %vm1280, %v1910
        %1917 = vst.msk [vmem:[#allocation2 + $0x18] sm:$0xff] %vm1280, %v1913
        %1919 = vrot.lane.b32.xlu0 %v1799, 96
        %v1920 = vpop.permute.xlu0 %1919
        %1922 = vrot.lane.b32.xlu0 %v1800, 96
        %v1923 = vpop.permute.xlu0 %1922
        %v1925 = vsel %vm1280, %v1920, 0
        %v1928 = vsel %vm1280, %v1923, 0
        %1930 = vmatprep.subr.bf16.mxu0 0
        %1931 = vmatpush1.bf16.xpose.msra.mxu0 0
        %1932 = vmatprep.subr.bf16.mxu0 0
        %1933 = vmatpush1.bf16.xpose.msra.mxu0 0
        %1934 = vmatprep.subr.bf16.mxu0 0
        %1935 = vmatpush1.bf16.xpose.msra.mxu0 0
        %1936 = vmatprep.subr.bf16.mxu0 0
        %1937 = vmatpush1.bf16.xpose.msra.mxu0 0
        %1938 = vmatprep.subr.bf16.mxu0 0
        %1939 = vmatpush1.bf16.xpose.msra.mxu0 0
        %1940 = vmatprep.subr.bf16.mxu0 0
        %1941 = vmatpush1.bf16.xpose.msra.mxu0 0
        %1942 = vmatprep.subr.bf16.mxu0 0
        %1943 = vmatpush1.bf16.xpose.msra.mxu0 0
        %1944 = vmatprep.subr.bf16.mxu0 0
        %1945 = vmatpush1.bf16.xpose.msra.mxu0 %v1928
        %1946 = vmatprep.subr.bf16.mxu0 0
        %1947 = vmatpush2.bf16.xpose.msra.mxu0 0
        %1948 = vmatprep.subr.bf16.mxu0 0
        %1949 = vmatpush2.bf16.xpose.msra.mxu0 0
        %1950 = vmatprep.subr.bf16.mxu0 0
        %1951 = vmatpush2.bf16.xpose.msra.mxu0 0
        %1952 = vmatprep.subr.bf16.mxu0 0
        %1953 = vmatpush2.bf16.xpose.msra.mxu0 0
        %1954 = vmatprep.subr.bf16.mxu0 0
        %1955 = vmatpush2.bf16.xpose.msra.mxu0 0
        %1956 = vmatprep.subr.bf16.mxu0 0
        %1957 = vmatpush2.bf16.xpose.msra.mxu0 0
        %1958 = vmatprep.subr.bf16.mxu0 0
        %1959 = vmatpush2.bf16.xpose.msra.mxu0 0
        %1960 = vmatprep.subr.bf16.mxu0 0
        %1961 = vmatpush2.bf16.xpose.msra.mxu0 0
        %1962 = vmatprep.mubr.bf16.mxu0 0
        %1963 = vmatmul.mubr.bf16.gmra.mxu0 %v1925
        %v1964 = vpop.f32.mrf.mxu0
        %v1965 = vadd.f32 %v1278, %v1964
        %v1966 = vpop.f32.mrf.mxu0
        %v1967 = vpop.f32.mrf.mxu0
        %v1968 = vadd.f32 %v1278, %v1967
        %v1969 = vpop.f32.mrf.mxu0
        %1970 = vdwg.mxu0
        %v1971 = vsel %vm1328, %v1965, -inf
        %1972 = vmax.xlane.f32.xlu0 %v1971
        %v1973 = vpop.xlane.xlu0 %1972
        %v1974 = vsel %vm1328, %v1968, -inf
        %1975 = vmax.xlane.f32.xlu0 %v1974
        %v1976 = vpop.xlane.xlu0 %1975
        %v1977 = vsub.f32 %v1965, %v1973
        %v1978 = vsub.f32 %v1968, %v1976
        %v1979 = vmul.f32 %v1977, 1.442695
        %v1980 = vpow.pop %v1979
        %v1981 = vmul.f32 %v1978, 1.442695
        %v1982 = vpow.pop %v1981
        %v1983 = vsel %vm1328, %v1980, 0.0
        %1984 = vadd.xlane.f32.xlu0 %v1983
        %v1985 = vpop.xlane.xlu0 %1984
        %v1986 = vsel %vm1328, %v1982, 0.0
        %1987 = vadd.xlane.f32.xlu0 %v1986
        %v1988 = vpop.xlane.xlu0 %1987
        %v1989 = vrcp.pop %v1985
        %v1990 = vrcp.pop %v1988
        %v1991 = vmul.f32 %v1980, %v1989
        %v1992 = vmul.f32 %v1982, %v1990
        %v1993 = vpack.c.bf16 %v1992, %v1991
        %1995 = vrot.lane.b32.xlu0 %v1801, 96
        %v1996 = vpop.permute.xlu0 %1995
        %v1999 = vsel %vm1328, %v1993, 0
        %2001 = vmatprep.subr.bf16.mxu0 0
        %2002 = vmatpush1.bf16.msra.mxu0 0
        %2003 = vmatprep.subr.bf16.mxu0 0
        %2004 = vmatpush1.bf16.msra.mxu0 0
        %2005 = vmatprep.subr.bf16.mxu0 0
        %2006 = vmatpush1.bf16.msra.mxu0 0
        %2007 = vmatprep.subr.bf16.mxu0 0
        %2008 = vmatpush1.bf16.msra.mxu0 0
        %2009 = vmatprep.subr.bf16.mxu0 0
        %2010 = vmatpush1.bf16.msra.mxu0 0
        %2011 = vmatprep.subr.bf16.mxu0 0
        %2012 = vmatpush1.bf16.msra.mxu0 0
        %2013 = vmatprep.subr.bf16.mxu0 0
        %2014 = vmatpush1.bf16.msra.mxu0 0
        %2015 = vmatprep.subr.bf16.mxu0 0
        %2016 = vmatpush1.bf16.msra.mxu0 %v1996
        %2017 = vmatprep.subr.bf16.mxu0 0
        %2018 = vmatpush2.bf16.msra.mxu0 0
        %2019 = vmatprep.subr.bf16.mxu0 0
        %2020 = vmatpush2.bf16.msra.mxu0 0
        %2021 = vmatprep.subr.bf16.mxu0 0
        %2022 = vmatpush2.bf16.msra.mxu0 0
        %2023 = vmatprep.subr.bf16.mxu0 0
        %2024 = vmatpush2.bf16.msra.mxu0 0
        %2025 = vmatprep.subr.bf16.mxu0 0
        %2026 = vmatpush2.bf16.msra.mxu0 0
        %2027 = vmatprep.subr.bf16.mxu0 0
        %2028 = vmatpush2.bf16.msra.mxu0 0
        %2029 = vmatprep.subr.bf16.mxu0 0
        %2030 = vmatpush2.bf16.msra.mxu0 0
        %2031 = vmatprep.subr.bf16.mxu0 0
        %2032 = vmatpush2.bf16.msra.mxu0 0
        %2033 = vmatprep.mubr.bf16.mxu0 0
        %2034 = vmatmul.mubr.bf16.gmra.mxu0 %v1999
        %v2035 = vpop.f32.mrf.mxu0
        %v2036 = vadd.f32 0.0, %v2035
        %v2037 = vpop.f32.mrf.mxu0
        %v2038 = vpop.f32.mrf.mxu0
        %v2039 = vadd.f32 0.0, %v2038
        %v2040 = vpop.f32.mrf.mxu0
        %2041 = vdwg.mxu0
        %2044 = vrot.lane.b32.xlu0 %v2036, 32
        %v2045 = vpop.permute.xlu0 %2044
        %2046 = vrot.lane.b32.xlu0 %v2039, 32
        %v2047 = vpop.permute.xlu0 %2046
        %2050 = vst.msk [vmem:[#allocation2 + $0x8] sm:$0xff] %vm1530, %v2045
        %2051 = vst.msk [vmem:[#allocation2 + $0x18] sm:$0xff] %vm1530, %v2047
        %2052 = vrot.lane.b32.xlu0 %v1799, 64
        %v2053 = vpop.permute.xlu0 %2052
        %2054 = vrot.lane.b32.xlu0 %v1800, 64
        %v2055 = vpop.permute.xlu0 %2054
        %v2057 = vsel %vm1280, %v2053, 0
        %v2060 = vsel %vm1280, %v2055, 0
        %2062 = vmatprep.subr.bf16.mxu0 0
        %2063 = vmatpush1.bf16.xpose.msra.mxu0 0
        %2064 = vmatprep.subr.bf16.mxu0 0
        %2065 = vmatpush1.bf16.xpose.msra.mxu0 0
        %2066 = vmatprep.subr.bf16.mxu0 0
        %2067 = vmatpush1.bf16.xpose.msra.mxu0 0
        %2068 = vmatprep.subr.bf16.mxu0 0
        %2069 = vmatpush1.bf16.xpose.msra.mxu0 0
        %2070 = vmatprep.subr.bf16.mxu0 0
        %2071 = vmatpush1.bf16.xpose.msra.mxu0 0
        %2072 = vmatprep.subr.bf16.mxu0 0
        %2073 = vmatpush1.bf16.xpose.msra.mxu0 0
        %2074 = vmatprep.subr.bf16.mxu0 0
        %2075 = vmatpush1.bf16.xpose.msra.mxu0 0
        %2076 = vmatprep.subr.bf16.mxu0 0
        %2077 = vmatpush1.bf16.xpose.msra.mxu0 %v2060
        %2078 = vmatprep.subr.bf16.mxu0 0
        %2079 = vmatpush2.bf16.xpose.msra.mxu0 0
        %2080 = vmatprep.subr.bf16.mxu0 0
        %2081 = vmatpush2.bf16.xpose.msra.mxu0 0
        %2082 = vmatprep.subr.bf16.mxu0 0
        %2083 = vmatpush2.bf16.xpose.msra.mxu0 0
        %2084 = vmatprep.subr.bf16.mxu0 0
        %2085 = vmatpush2.bf16.xpose.msra.mxu0 0
        %2086 = vmatprep.subr.bf16.mxu0 0
        %2087 = vmatpush2.bf16.xpose.msra.mxu0 0
        %2088 = vmatprep.subr.bf16.mxu0 0
        %2089 = vmatpush2.bf16.xpose.msra.mxu0 0
        %2090 = vmatprep.subr.bf16.mxu0 0
        %2091 = vmatpush2.bf16.xpose.msra.mxu0 0
        %2092 = vmatprep.subr.bf16.mxu0 0
        %2093 = vmatpush2.bf16.xpose.msra.mxu0 0
        %2094 = vmatprep.mubr.bf16.mxu0 0
        %2095 = vmatmul.mubr.bf16.gmra.mxu0 %v2057
        %v2096 = vpop.f32.mrf.mxu0
        %v2097 = vadd.f32 %v1278, %v2096
        %v2098 = vpop.f32.mrf.mxu0
        %v2099 = vpop.f32.mrf.mxu0
        %v2100 = vadd.f32 %v1278, %v2099
        %v2101 = vpop.f32.mrf.mxu0
        %2102 = vdwg.mxu0
        %v2103 = vsel %vm1328, %v2097, -inf
        %2104 = vmax.xlane.f32.xlu0 %v2103
        %v2105 = vpop.xlane.xlu0 %2104
        %v2106 = vsel %vm1328, %v2100, -inf
        %2107 = vmax.xlane.f32.xlu0 %v2106
        %v2108 = vpop.xlane.xlu0 %2107
        %v2109 = vsub.f32 %v2097, %v2105
        %v2110 = vsub.f32 %v2100, %v2108
        %v2111 = vmul.f32 %v2109, 1.442695
        %v2112 = vpow.pop %v2111
        %v2113 = vmul.f32 %v2110, 1.442695
        %v2114 = vpow.pop %v2113
        %v2115 = vsel %vm1328, %v2112, 0.0
        %2116 = vadd.xlane.f32.xlu0 %v2115
        %v2117 = vpop.xlane.xlu0 %2116
        %v2118 = vsel %vm1328, %v2114, 0.0
        %2119 = vadd.xlane.f32.xlu0 %v2118
        %v2120 = vpop.xlane.xlu0 %2119
        %v2121 = vrcp.pop %v2117
        %v2122 = vrcp.pop %v2120
        %v2123 = vmul.f32 %v2112, %v2121
        %v2124 = vmul.f32 %v2114, %v2122
        %v2125 = vpack.c.bf16 %v2124, %v2123
        %2126 = vrot.lane.b32.xlu0 %v1801, 64
        %v2127 = vpop.permute.xlu0 %2126
        %v2130 = vsel %vm1328, %v2125, 0
        %2132 = vmatprep.subr.bf16.mxu0 0
        %2133 = vmatpush1.bf16.msra.mxu0 0
        %2134 = vmatprep.subr.bf16.mxu0 0
        %2135 = vmatpush1.bf16.msra.mxu0 0
        %2136 = vmatprep.subr.bf16.mxu0 0
        %2137 = vmatpush1.bf16.msra.mxu0 0
        %2138 = vmatprep.subr.bf16.mxu0 0
        %2139 = vmatpush1.bf16.msra.mxu0 0
        %2140 = vmatprep.subr.bf16.mxu0 0
        %2141 = vmatpush1.bf16.msra.mxu0 0
        %2142 = vmatprep.subr.bf16.mxu0 0
        %2143 = vmatpush1.bf16.msra.mxu0 0
        %2144 = vmatprep.subr.bf16.mxu0 0
        %2145 = vmatpush1.bf16.msra.mxu0 0
        %2146 = vmatprep.subr.bf16.mxu0 0
        %2147 = vmatpush1.bf16.msra.mxu0 %v2127
        %2148 = vmatprep.subr.bf16.mxu0 0
        %2149 = vmatpush2.bf16.msra.mxu0 0
        %2150 = vmatprep.subr.bf16.mxu0 0
        %2151 = vmatpush2.bf16.msra.mxu0 0
        %2152 = vmatprep.subr.bf16.mxu0 0
        %2153 = vmatpush2.bf16.msra.mxu0 0
        %2154 = vmatprep.subr.bf16.mxu0 0
        %2155 = vmatpush2.bf16.msra.mxu0 0
        %2156 = vmatprep.subr.bf16.mxu0 0
        %2157 = vmatpush2.bf16.msra.mxu0 0
        %2158 = vmatprep.subr.bf16.mxu0 0
        %2159 = vmatpush2.bf16.msra.mxu0 0
        %2160 = vmatprep.subr.bf16.mxu0 0
        %2161 = vmatpush2.bf16.msra.mxu0 0
        %2162 = vmatprep.subr.bf16.mxu0 0
        %2163 = vmatpush2.bf16.msra.mxu0 0
        %2164 = vmatprep.mubr.bf16.mxu0 0
        %2165 = vmatmul.mubr.bf16.gmra.mxu0 %v2130
        %v2166 = vpop.f32.mrf.mxu0
        %v2167 = vadd.f32 0.0, %v2166
        %v2168 = vpop.f32.mrf.mxu0
        %v2169 = vpop.f32.mrf.mxu0
        %v2170 = vadd.f32 0.0, %v2169
        %v2171 = vpop.f32.mrf.mxu0
        %2172 = vdwg.mxu0
        %2175 = vrot.lane.b32.xlu0 %v2167, 64
        %v2176 = vpop.permute.xlu0 %2175
        %2177 = vrot.lane.b32.xlu0 %v2170, 64
        %v2178 = vpop.permute.xlu0 %2177
        %2181 = vst.msk [vmem:[#allocation2 + $0x8] sm:$0xff] %vm1662, %v2176
        %2182 = vst.msk [vmem:[#allocation2 + $0x18] sm:$0xff] %vm1662, %v2178
        %2183 = vrot.lane.b32.xlu0 %v1799, 32
        %v2184 = vpop.permute.xlu0 %2183
        %2185 = vrot.lane.b32.xlu0 %v1800, 32
        %v2186 = vpop.permute.xlu0 %2185
        %v2188 = vsel %vm1280, %v2184, 0
        %v2191 = vsel %vm1280, %v2186, 0
        %2193 = vmatprep.subr.bf16.mxu0 0
        %2194 = vmatpush1.bf16.xpose.msra.mxu0 0
        %2195 = vmatprep.subr.bf16.mxu0 0
        %2196 = vmatpush1.bf16.xpose.msra.mxu0 0
        %2197 = vmatprep.subr.bf16.mxu0 0
        %2198 = vmatpush1.bf16.xpose.msra.mxu0 0
        %2199 = vmatprep.subr.bf16.mxu0 0
        %2200 = vmatpush1.bf16.xpose.msra.mxu0 0
        %2201 = vmatprep.subr.bf16.mxu0 0
        %2202 = vmatpush1.bf16.xpose.msra.mxu0 0
        %2203 = vmatprep.subr.bf16.mxu0 0
        %2204 = vmatpush1.bf16.xpose.msra.mxu0 0
        %2205 = vmatprep.subr.bf16.mxu0 0
        %2206 = vmatpush1.bf16.xpose.msra.mxu0 0
        %2207 = vmatprep.subr.bf16.mxu0 0
        %2208 = vmatpush1.bf16.xpose.msra.mxu0 %v2191
        %2209 = vmatprep.subr.bf16.mxu0 0
        %2210 = vmatpush2.bf16.xpose.msra.mxu0 0
        %2211 = vmatprep.subr.bf16.mxu0 0
        %2212 = vmatpush2.bf16.xpose.msra.mxu0 0
        %2213 = vmatprep.subr.bf16.mxu0 0
        %2214 = vmatpush2.bf16.xpose.msra.mxu0 0
        %2215 = vmatprep.subr.bf16.mxu0 0
        %2216 = vmatpush2.bf16.xpose.msra.mxu0 0
        %2217 = vmatprep.subr.bf16.mxu0 0
        %2218 = vmatpush2.bf16.xpose.msra.mxu0 0
        %2219 = vmatprep.subr.bf16.mxu0 0
        %2220 = vmatpush2.bf16.xpose.msra.mxu0 0
        %2221 = vmatprep.subr.bf16.mxu0 0
        %2222 = vmatpush2.bf16.xpose.msra.mxu0 0
        %2223 = vmatprep.subr.bf16.mxu0 0
        %2224 = vmatpush2.bf16.xpose.msra.mxu0 0
        %2225 = vmatprep.mubr.bf16.mxu0 0
        %2226 = vmatmul.mubr.bf16.gmra.mxu0 %v2188
        %v2227 = vpop.f32.mrf.mxu0
        %v2228 = vadd.f32 %v1278, %v2227
        %v2229 = vpop.f32.mrf.mxu0
        %v2230 = vpop.f32.mrf.mxu0
        %v2231 = vadd.f32 %v1278, %v2230
        %v2232 = vpop.f32.mrf.mxu0
        %2233 = vdwg.mxu0
        %v2234 = vsel %vm1328, %v2228, -inf
        %2235 = vmax.xlane.f32.xlu0 %v2234
        %v2236 = vpop.xlane.xlu0 %2235
        %v2237 = vsel %vm1328, %v2231, -inf
        %2238 = vmax.xlane.f32.xlu0 %v2237
        %v2239 = vpop.xlane.xlu0 %2238
        %v2240 = vsub.f32 %v2228, %v2236
        %v2241 = vsub.f32 %v2231, %v2239
        %v2242 = vmul.f32 %v2240, 1.442695
        %v2243 = vpow.pop %v2242
        %v2244 = vmul.f32 %v2241, 1.442695
        %v2245 = vpow.pop %v2244
        %v2246 = vsel %vm1328, %v2243, 0.0
        %2247 = vadd.xlane.f32.xlu0 %v2246
        %v2248 = vpop.xlane.xlu0 %2247
        %v2249 = vsel %vm1328, %v2245, 0.0
        %2250 = vadd.xlane.f32.xlu0 %v2249
        %v2251 = vpop.xlane.xlu0 %2250
        %v2252 = vrcp.pop %v2248
        %v2253 = vrcp.pop %v2251
        %v2254 = vmul.f32 %v2243, %v2252
        %v2255 = vmul.f32 %v2245, %v2253
        %v2256 = vpack.c.bf16 %v2255, %v2254
        %2257 = vrot.lane.b32.xlu0 %v1801, 32
        %v2258 = vpop.permute.xlu0 %2257
        %v2261 = vsel %vm1328, %v2256, 0
        %2263 = vmatprep.subr.bf16.mxu0 0
        %2264 = vmatpush1.bf16.msra.mxu0 0
        %2265 = vmatprep.subr.bf16.mxu0 0
        %2266 = vmatpush1.bf16.msra.mxu0 0
        %2267 = vmatprep.subr.bf16.mxu0 0
        %2268 = vmatpush1.bf16.msra.mxu0 0
        %2269 = vmatprep.subr.bf16.mxu0 0
        %2270 = vmatpush1.bf16.msra.mxu0 0
        %2271 = vmatprep.subr.bf16.mxu0 0
        %2272 = vmatpush1.bf16.msra.mxu0 0
        %2273 = vmatprep.subr.bf16.mxu0 0
        %2274 = vmatpush1.bf16.msra.mxu0 0
        %2275 = vmatprep.subr.bf16.mxu0 0
        %2276 = vmatpush1.bf16.msra.mxu0 0
        %2277 = vmatprep.subr.bf16.mxu0 0
        %2278 = vmatpush1.bf16.msra.mxu0 %v2258
        %2279 = vmatprep.subr.bf16.mxu0 0
        %2280 = vmatpush2.bf16.msra.mxu0 0
        %2281 = vmatprep.subr.bf16.mxu0 0
        %2282 = vmatpush2.bf16.msra.mxu0 0
        %2283 = vmatprep.subr.bf16.mxu0 0
        %2284 = vmatpush2.bf16.msra.mxu0 0
        %2285 = vmatprep.subr.bf16.mxu0 0
        %2286 = vmatpush2.bf16.msra.mxu0 0
        %2287 = vmatprep.subr.bf16.mxu0 0
        %2288 = vmatpush2.bf16.msra.mxu0 0
        %2289 = vmatprep.subr.bf16.mxu0 0
        %2290 = vmatpush2.bf16.msra.mxu0 0
        %2291 = vmatprep.subr.bf16.mxu0 0
        %2292 = vmatpush2.bf16.msra.mxu0 0
        %2293 = vmatprep.subr.bf16.mxu0 0
        %2294 = vmatpush2.bf16.msra.mxu0 0
        %2295 = vmatprep.mubr.bf16.mxu0 0
        %2296 = vmatmul.mubr.bf16.gmra.mxu0 %v2261
        %v2297 = vpop.f32.mrf.mxu0
        %v2298 = vadd.f32 0.0, %v2297
        %v2299 = vpop.f32.mrf.mxu0
        %v2300 = vpop.f32.mrf.mxu0
        %v2301 = vadd.f32 0.0, %v2300
        %v2302 = vpop.f32.mrf.mxu0
        %2303 = vdwg.mxu0
        %2306 = vrot.lane.b32.xlu0 %v2298, 96
        %v2307 = vpop.permute.xlu0 %2306
        %2308 = vrot.lane.b32.xlu0 %v2301, 96
        %v2309 = vpop.permute.xlu0 %2308
        %2312 = vst.msk [vmem:[#allocation2 + $0x8] sm:$0xff] %vm1794, %v2307
        %2313 = vst.msk [vmem:[#allocation2 + $0x18] sm:$0xff] %vm1794, %v2309
        %v2314 = vld [vmem:[#allocation2] sm:$0xff]
        %v2315 = vld [vmem:[#allocation2 + $0x8] sm:$0xff]
        %v2316 = vld [vmem:[#allocation2 + $0x10] sm:$0xff]
        %v2317 = vld [vmem:[#allocation2 + $0x18] sm:$0xff]
        %v2318 = vpack.c.bf16 %v2316, %v2314
        %v2319 = vpack.c.bf16 %v2317, %v2315
        %v2320 = vld [vmem:[%s4] sm:$0xff]
        %v2321 = vld [vmem:[%s4 + $0x8] sm:$0xff]
        %v2322 = vld [vmem:[%s4 + $0x10] sm:$0xff]
        %v2323 = vld [vmem:[%s4 + $0x18] sm:$0xff]
        %v2324 = vld [vmem:[%s4 + $0x20] sm:$0xff]
        %v2325 = vld [vmem:[%s4 + $0x28] sm:$0xff]
        %v2326 = vld [vmem:[%s4 + $0x30] sm:$0xff]
        %v2327 = vld [vmem:[%s4 + $0x38] sm:$0xff]
        %v2328 = vld [vmem:[%s4 + $0x40] sm:$0xff]
        %v2329 = vld [vmem:[%s4 + $0x48] sm:$0xff]
        %v2330 = vld [vmem:[%s4 + $0x50] sm:$0xff]
        %v2331 = vld [vmem:[%s4 + $0x58] sm:$0xff]
        %v2332 = vld [vmem:[%s4 + $0x60] sm:$0xff]
        %v2333 = vld [vmem:[%s4 + $0x68] sm:$0xff]
        %v2334 = vld [vmem:[%s4 + $0x70] sm:$0xff]
        %v2335 = vld [vmem:[%s4 + $0x78] sm:$0xff]
        %v2336 = vld [vmem:[%s4 + $0x80] sm:$0xff]
        %v2337 = vld [vmem:[%s4 + $0x88] sm:$0xff]
        %v2338 = vld [vmem:[%s4 + $0x90] sm:$0xff]
        %v2339 = vld [vmem:[%s4 + $0x98] sm:$0xff]
        %v2340 = vld [vmem:[%s4 + $0xa0] sm:$0xff]
        %v2341 = vld [vmem:[%s4 + $0xa8] sm:$0xff]
        %v2342 = vld [vmem:[%s4 + $0xb0] sm:$0xff]
        %v2343 = vld [vmem:[%s4 + $0xb8] sm:$0xff]
        %v2344 = vld [vmem:[%s4 + $0xc0] sm:$0xff]
        %v2345 = vld [vmem:[%s4 + $0xc8] sm:$0xff]
        %v2346 = vld [vmem:[%s4 + $0xd0] sm:$0xff]
        %v2347 = vld [vmem:[%s4 + $0xd8] sm:$0xff]
        %v2348 = vld [vmem:[%s4 + $0xe0] sm:$0xff]
        %v2349 = vld [vmem:[%s4 + $0xe8] sm:$0xff]
        %v2350 = vld [vmem:[%s4 + $0xf0] sm:$0xff]
        %v2351 = vld [vmem:[%s4 + $0xf8] sm:$0xff]
        %v2352 = vld [vmem:[%s5] sm:$0x3]
        %v2354 = vlaneseq
        %v2355 = vshrl.u32 %v2354, 7
        %v2356 = vsub.s32 0, %v2355
        %v2357 = vrot.slane %v2352, %v2356
        %v2358 = vlaneseq
        %v2359 = vshrl.u32 %v2358, 7
        %v2360 = vsub.s32 1, %v2359
        %v2361 = vrot.slane %v2352, %v2360
        %v2396 = vunpack.c.l.b16 %v2320
        %v2397 = vunpack.c.h.b16 %v2320
        %v2398 = vunpack.c.l.b16 %v2321
        %v2399 = vunpack.c.h.b16 %v2321
        %v2400 = vunpack.c.l.b16 %v2322
        %v2401 = vunpack.c.h.b16 %v2322
        %v2402 = vunpack.c.l.b16 %v2323
        %v2403 = vunpack.c.h.b16 %v2323
        %v2404 = vunpack.c.l.b16 %v2324
        %v2405 = vunpack.c.h.b16 %v2324
        %v2406 = vunpack.c.l.b16 %v2325
        %v2407 = vunpack.c.h.b16 %v2325
        %v2408 = vunpack.c.l.b16 %v2326
        %v2409 = vunpack.c.h.b16 %v2326
        %v2410 = vunpack.c.l.b16 %v2327
        %v2411 = vunpack.c.h.b16 %v2327
        %v2412 = vunpack.c.l.b16 %v2328
        %v2413 = vunpack.c.h.b16 %v2328
        %v2414 = vunpack.c.l.b16 %v2329
        %v2415 = vunpack.c.h.b16 %v2329
        %v2416 = vunpack.c.l.b16 %v2330
        %v2417 = vunpack.c.h.b16 %v2330
        %v2418 = vunpack.c.l.b16 %v2331
        %v2419 = vunpack.c.h.b16 %v2331
        %v2420 = vunpack.c.l.b16 %v2332
        %v2421 = vunpack.c.h.b16 %v2332
        %v2422 = vunpack.c.l.b16 %v2333
        %v2423 = vunpack.c.h.b16 %v2333
        %v2424 = vunpack.c.l.b16 %v2334
        %v2425 = vunpack.c.h.b16 %v2334
        %v2426 = vunpack.c.l.b16 %v2335
        %v2427 = vunpack.c.h.b16 %v2335
        %v2428 = vunpack.c.l.b16 %v2336
        %v2429 = vunpack.c.h.b16 %v2336
        %v2430 = vunpack.c.l.b16 %v2337
        %v2431 = vunpack.c.h.b16 %v2337
        %v2432 = vunpack.c.l.b16 %v2338
        %v2433 = vunpack.c.h.b16 %v2338
        %v2434 = vunpack.c.l.b16 %v2339
        %v2435 = vunpack.c.h.b16 %v2339
        %v2436 = vunpack.c.l.b16 %v2340
        %v2437 = vunpack.c.h.b16 %v2340
        %v2438 = vunpack.c.l.b16 %v2341
        %v2439 = vunpack.c.h.b16 %v2341
        %v2440 = vunpack.c.l.b16 %v2342
        %v2441 = vunpack.c.h.b16 %v2342
        %v2442 = vunpack.c.l.b16 %v2343
        %v2443 = vunpack.c.h.b16 %v2343
        %v2444 = vunpack.c.l.b16 %v2344
        %v2445 = vunpack.c.h.b16 %v2344
        %v2446 = vunpack.c.l.b16 %v2345
        %v2447 = vunpack.c.h.b16 %v2345
        %v2448 = vunpack.c.l.b16 %v2346
        %v2449 = vunpack.c.h.b16 %v2346
        %v2450 = vunpack.c.l.b16 %v2347
        %v2451 = vunpack.c.h.b16 %v2347
        %v2452 = vunpack.c.l.b16 %v2348
        %v2453 = vunpack.c.h.b16 %v2348
        %v2454 = vunpack.c.l.b16 %v2349
        %v2455 = vunpack.c.h.b16 %v2349
        %v2456 = vunpack.c.l.b16 %v2350
        %v2457 = vunpack.c.h.b16 %v2350
        %v2458 = vunpack.c.l.b16 %v2351
        %v2459 = vunpack.c.h.b16 %v2351
        %v2460 = vpack.c.b16 %v2398, %v2396
        %v2461 = vpack.c.b16 %v2399, %v2397
        %v2462 = vpack.c.b16 %v2402, %v2400
        %v2463 = vpack.c.b16 %v2403, %v2401
        %v2464 = vpack.c.b16 %v2406, %v2404
        %v2465 = vpack.c.b16 %v2407, %v2405
        %v2466 = vpack.c.b16 %v2410, %v2408
        %v2467 = vpack.c.b16 %v2411, %v2409
        %v2468 = vpack.c.b16 %v2414, %v2412
        %v2469 = vpack.c.b16 %v2415, %v2413
        %v2470 = vpack.c.b16 %v2418, %v2416
        %v2471 = vpack.c.b16 %v2419, %v2417
        %v2472 = vpack.c.b16 %v2422, %v2420
        %v2473 = vpack.c.b16 %v2423, %v2421
        %v2474 = vpack.c.b16 %v2426, %v2424
        %v2475 = vpack.c.b16 %v2427, %v2425
        %v2476 = vpack.c.b16 %v2430, %v2428
        %v2477 = vpack.c.b16 %v2431, %v2429
        %v2478 = vpack.c.b16 %v2434, %v2432
        %v2479 = vpack.c.b16 %v2435, %v2433
        %v2480 = vpack.c.b16 %v2438, %v2436
        %v2481 = vpack.c.b16 %v2439, %v2437
        %v2482 = vpack.c.b16 %v2442, %v2440
        %v2483 = vpack.c.b16 %v2443, %v2441
        %v2484 = vpack.c.b16 %v2446, %v2444
        %v2485 = vpack.c.b16 %v2447, %v2445
        %v2486 = vpack.c.b16 %v2450, %v2448
        %v2487 = vpack.c.b16 %v2451, %v2449
        %v2488 = vpack.c.b16 %v2454, %v2452
        %v2489 = vpack.c.b16 %v2455, %v2453
        %v2490 = vpack.c.b16 %v2458, %v2456
        %v2491 = vpack.c.b16 %v2459, %v2457
        %2524 = vmatprep.subr.bf16.mxu0 %v2475
        %2525 = vmatpush1.bf16.msra.mxu0 %v2474
        %2526 = vmatprep.subr.bf16.mxu0 %v2473
        %2527 = vmatpush1.bf16.msra.mxu0 %v2472
        %2528 = vmatprep.subr.bf16.mxu0 %v2471
        %2529 = vmatpush1.bf16.msra.mxu0 %v2470
        %2530 = vmatprep.subr.bf16.mxu0 %v2469
        %2531 = vmatpush1.bf16.msra.mxu0 %v2468
        %2532 = vmatprep.subr.bf16.mxu0 %v2467
        %2533 = vmatpush1.bf16.msra.mxu0 %v2466
        %2534 = vmatprep.subr.bf16.mxu0 %v2465
        %2535 = vmatpush1.bf16.msra.mxu0 %v2464
        %2536 = vmatprep.subr.bf16.mxu0 %v2463
        %2537 = vmatpush1.bf16.msra.mxu0 %v2462
        %2538 = vmatprep.subr.bf16.mxu0 %v2461
        %2539 = vmatpush1.bf16.msra.mxu0 %v2460
        %2540 = vmatprep.subr.bf16.mxu0 %v2491
        %2541 = vmatpush2.bf16.msra.mxu0 %v2490
        %2542 = vmatprep.subr.bf16.mxu0 %v2489
        %2543 = vmatpush2.bf16.msra.mxu0 %v2488
        %2544 = vmatprep.subr.bf16.mxu0 %v2487
        %2545 = vmatpush2.bf16.msra.mxu0 %v2486
        %2546 = vmatprep.subr.bf16.mxu0 %v2485
        %2547 = vmatpush2.bf16.msra.mxu0 %v2484
        %2548 = vmatprep.subr.bf16.mxu0 %v2483
        %2549 = vmatpush2.bf16.msra.mxu0 %v2482
        %2550 = vmatprep.subr.bf16.mxu0 %v2481
        %2551 = vmatpush2.bf16.msra.mxu0 %v2480
        %2552 = vmatprep.subr.bf16.mxu0 %v2479
        %2553 = vmatpush2.bf16.msra.mxu0 %v2478
        %2554 = vmatprep.subr.bf16.mxu0 %v2477
        %2555 = vmatpush2.bf16.msra.mxu0 %v2476
        %2556 = vmatprep.mubr.bf16.mxu0 %v2319
        %2557 = vmatmul.mubr.bf16.gmra.mxu0 %v2318
        %v2558 = vpop.f32.mrf.mxu0
        %v2559 = vadd.f32 %v2357, %v2558
        %v2560 = vpop.f32.mrf.mxu0
        %v2561 = vadd.f32 %v2361, %v2560
        %v2562 = vpop.f32.mrf.mxu0
        %v2563 = vadd.f32 %v2357, %v2562
        %v2564 = vpop.f32.mrf.mxu0
        %v2565 = vadd.f32 %v2361, %v2564
        %2566 = vdwg.mxu0
        %v2567 = vadd.f32 %v2559, %v525
        %v2568 = vadd.f32 %v2561, %v526
        %v2569 = vadd.f32 %v2563, %v527
        %v2570 = vadd.f32 %v2565, %v528
        %v2571 = vld [vmem:[%s6] sm:$0x3]
        %v2572 = vld [vmem:[%s7] sm:$0x3]
        %v2573 = vadd.f32 %v2567, %v2568
        %2574 = vadd.xlane.f32.xlu0 %v2573
        %v2575 = vpop.xlane.xlu0 %2574
        %v2576 = vadd.f32 %v2569, %v2570
        %2577 = vadd.xlane.f32.xlu0 %v2576
        %v2578 = vpop.xlane.xlu0 %2577
        %v2579 = vrcp.pop 256.0
        %v2580 = vmul.f32 %v2575, %v2579
        %v2581 = vmul.f32 %v2578, %v2579
        %v2582 = vsub.f32 %v2567, %v2580
        %v2583 = vsub.f32 %v2568, %v2580
        %v2584 = vsub.f32 %v2569, %v2581
        %v2585 = vsub.f32 %v2570, %v2581
        %v2586 = vmul.f32 %v2582, %v2582
        %v2587 = vmul.f32 %v2583, %v2583
        %v2588 = vmul.f32 %v2584, %v2584
        %v2589 = vmul.f32 %v2585, %v2585
        %v2590 = vadd.f32 %v2586, %v2587
        %2591 = vadd.xlane.f32.xlu0 %v2590
        %v2592 = vpop.xlane.xlu0 %2591
        %v2593 = vadd.f32 %v2588, %v2589
        %2594 = vadd.xlane.f32.xlu0 %v2593
        %v2595 = vpop.xlane.xlu0 %2594
        %v2596 = vmul.f32 %v2592, %v2579
        %v2597 = vmul.f32 %v2595, %v2579
        %v2598 = vadd.f32 %v2596, 1e-05
        %v2599 = vadd.f32 %v2597, 1e-05
        %v2600 = vrsqrt.pop %v2598
        %v2601 = vrsqrt.pop %v2599
        %v2602 = vmul.f32 %v2582, %v2600
        %v2603 = vmul.f32 %v2583, %v2600
        %v2604 = vmul.f32 %v2584, %v2601
        %v2605 = vmul.f32 %v2585, %v2601
        %v2607 = vlaneseq
        %v2608 = vshrl.u32 %v2607, 7
        %v2609 = vsub.s32 0, %v2608
        %v2610 = vrot.slane %v2571, %v2609
        %v2611 = vlaneseq
        %v2612 = vshrl.u32 %v2611, 7
        %v2613 = vsub.s32 1, %v2612
        %v2614 = vrot.slane %v2571, %v2613
        %v2617 = vmul.f32 %v2602, %v2610
        %v2618 = vmul.f32 %v2603, %v2614
        %v2619 = vmul.f32 %v2604, %v2610
        %v2620 = vmul.f32 %v2605, %v2614
        %v2622 = vlaneseq
        %v2623 = vshrl.u32 %v2622, 7
        %v2624 = vsub.s32 0, %v2623
        %v2625 = vrot.slane %v2572, %v2624
        %v2626 = vlaneseq
        %v2627 = vshrl.u32 %v2626, 7
        %v2628 = vsub.s32 1, %v2627
        %v2629 = vrot.slane %v2572, %v2628
        %v2632 = vadd.f32 %v2617, %v2625
        %v2633 = vadd.f32 %v2618, %v2629
        %v2634 = vadd.f32 %v2619, %v2625
        %v2635 = vadd.f32 %v2620, %v2629
        %v2636 = vpack.c.bf16 %v2634, %v2632
        %v2637 = vpack.c.bf16 %v2635, %v2633
        %v2638 = vld [vmem:[#allocation5] sm:$0xff]
        %v2639 = vld [vmem:[#allocation5 + $0x8] sm:$0xff]
        %v2640 = vld [vmem:[#allocation5 + $0x10] sm:$0xff]
        %v2641 = vld [vmem:[#allocation5 + $0x18] sm:$0xff]
        %v2642 = vld [vmem:[#allocation5 + $0x20] sm:$0xff]
        %v2643 = vld [vmem:[#allocation5 + $0x28] sm:$0xff]
        %v2644 = vld [vmem:[#allocation5 + $0x30] sm:$0xff]
        %v2645 = vld [vmem:[#allocation5 + $0x38] sm:$0xff]
        %v2646 = vld [vmem:[#allocation5 + $0x40] sm:$0xff]
        %v2647 = vld [vmem:[#allocation5 + $0x48] sm:$0xff]
        %v2648 = vld [vmem:[#allocation5 + $0x50] sm:$0xff]
        %v2649 = vld [vmem:[#allocation5 + $0x58] sm:$0xff]
        %v2650 = vld [vmem:[#allocation5 + $0x60] sm:$0xff]
        %v2651 = vld [vmem:[#allocation5 + $0x68] sm:$0xff]
        %v2652 = vld [vmem:[#allocation5 + $0x70] sm:$0xff]
        %v2653 = vld [vmem:[#allocation5 + $0x78] sm:$0xff]
        %v2654 = vld [vmem:[#allocation5 + $0x80] sm:$0xff]
        %v2655 = vld [vmem:[#allocation5 + $0x88] sm:$0xff]
        %v2656 = vld [vmem:[#allocation5 + $0x90] sm:$0xff]
        %v2657 = vld [vmem:[#allocation5 + $0x98] sm:$0xff]
        %v2658 = vld [vmem:[#allocation5 + $0xa0] sm:$0xff]
        %v2659 = vld [vmem:[#allocation5 + $0xa8] sm:$0xff]
        %v2660 = vld [vmem:[#allocation5 + $0xb0] sm:$0xff]
        %v2661 = vld [vmem:[#allocation5 + $0xb8] sm:$0xff]
        %v2662 = vld [vmem:[#allocation5 + $0xc0] sm:$0xff]
        %v2663 = vld [vmem:[#allocation5 + $0xc8] sm:$0xff]
        %v2664 = vld [vmem:[#allocation5 + $0xd0] sm:$0xff]
        %v2665 = vld [vmem:[#allocation5 + $0xd8] sm:$0xff]
        %v2666 = vld [vmem:[#allocation5 + $0xe0] sm:$0xff]
        %v2667 = vld [vmem:[#allocation5 + $0xe8] sm:$0xff]
        %v2668 = vld [vmem:[#allocation5 + $0xf0] sm:$0xff]
        %v2669 = vld [vmem:[#allocation5 + $0xf8] sm:$0xff]
        %v2670 = vld [vmem:[#allocation5 + $0x100] sm:$0xff]
        %v2671 = vld [vmem:[#allocation5 + $0x108] sm:$0xff]
        %v2672 = vld [vmem:[#allocation5 + $0x110] sm:$0xff]
        %v2673 = vld [vmem:[#allocation5 + $0x118] sm:$0xff]
        %v2674 = vld [vmem:[#allocation5 + $0x120] sm:$0xff]
        %v2675 = vld [vmem:[#allocation5 + $0x128] sm:$0xff]
        %v2676 = vld [vmem:[#allocation5 + $0x130] sm:$0xff]
        %v2677 = vld [vmem:[#allocation5 + $0x138] sm:$0xff]
        %v2678 = vld [vmem:[#allocation5 + $0x140] sm:$0xff]
        %v2679 = vld [vmem:[#allocation5 + $0x148] sm:$0xff]
        %v2680 = vld [vmem:[#allocation5 + $0x150] sm:$0xff]
        %v2681 = vld [vmem:[#allocation5 + $0x158] sm:$0xff]
        %v2682 = vld [vmem:[#allocation5 + $0x160] sm:$0xff]
        %v2683 = vld [vmem:[#allocation5 + $0x168] sm:$0xff]
        %v2684 = vld [vmem:[#allocation5 + $0x170] sm:$0xff]
        %v2685 = vld [vmem:[#allocation5 + $0x178] sm:$0xff]
        %v2686 = vld [vmem:[#allocation5 + $0x180] sm:$0xff]
        %v2687 = vld [vmem:[#allocation5 + $0x188] sm:$0xff]
        %v2688 = vld [vmem:[#allocation5 + $0x190] sm:$0xff]
        %v2689 = vld [vmem:[#allocation5 + $0x198] sm:$0xff]
        %v2690 = vld [vmem:[#allocation5 + $0x1a0] sm:$0xff]
        %v2691 = vld [vmem:[#allocation5 + $0x1a8] sm:$0xff]
        %v2692 = vld [vmem:[#allocation5 + $0x1b0] sm:$0xff]
        %v2693 = vld [vmem:[#allocation5 + $0x1b8] sm:$0xff]
        %v2694 = vld [vmem:[#allocation5 + $0x1c0] sm:$0xff]
        %v2695 = vld [vmem:[#allocation5 + $0x1c8] sm:$0xff]
        %v2696 = vld [vmem:[#allocation5 + $0x1d0] sm:$0xff]
        %v2697 = vld [vmem:[#allocation5 + $0x1d8] sm:$0xff]
        %v2698 = vld [vmem:[#allocation5 + $0x1e0] sm:$0xff]
        %v2699 = vld [vmem:[#allocation5 + $0x1e8] sm:$0xff]
        %v2700 = vld [vmem:[#allocation5 + $0x1f0] sm:$0xff]
        %v2701 = vld [vmem:[#allocation5 + $0x1f8] sm:$0xff]
        %v2702 = vld [vmem:[%s9] sm:$0xf]
        %v2704 = vlaneseq
        %v2705 = vshrl.u32 %v2704, 7
        %v2706 = vsub.s32 0, %v2705
        %v2707 = vrot.slane %v2702, %v2706
        %v2708 = vlaneseq
        %v2709 = vshrl.u32 %v2708, 7
        %v2710 = vsub.s32 1, %v2709
        %v2711 = vrot.slane %v2702, %v2710
        %v2712 = vlaneseq
        %v2713 = vshrl.u32 %v2712, 7
        %v2714 = vsub.s32 2, %v2713
        %v2715 = vrot.slane %v2702, %v2714
        %v2716 = vlaneseq
        %v2717 = vshrl.u32 %v2716, 7
        %v2718 = vsub.s32 3, %v2717
        %v2719 = vrot.slane %v2702, %v2718
        %v2788 = vunpack.c.l.b16 %v2638
        %v2789 = vunpack.c.h.b16 %v2638
        %v2790 = vunpack.c.l.b16 %v2639
        %v2791 = vunpack.c.h.b16 %v2639
        %v2792 = vunpack.c.l.b16 %v2640
        %v2793 = vunpack.c.h.b16 %v2640
        %v2794 = vunpack.c.l.b16 %v2641
        %v2795 = vunpack.c.h.b16 %v2641
        %v2796 = vunpack.c.l.b16 %v2642
        %v2797 = vunpack.c.h.b16 %v2642
        %v2798 = vunpack.c.l.b16 %v2643
        %v2799 = vunpack.c.h.b16 %v2643
        %v2800 = vunpack.c.l.b16 %v2644
        %v2801 = vunpack.c.h.b16 %v2644
        %v2802 = vunpack.c.l.b16 %v2645
        %v2803 = vunpack.c.h.b16 %v2645
        %v2804 = vunpack.c.l.b16 %v2646
        %v2805 = vunpack.c.h.b16 %v2646
        %v2806 = vunpack.c.l.b16 %v2647
        %v2807 = vunpack.c.h.b16 %v2647
        %v2808 = vunpack.c.l.b16 %v2648
        %v2809 = vunpack.c.h.b16 %v2648
        %v2810 = vunpack.c.l.b16 %v2649
        %v2811 = vunpack.c.h.b16 %v2649
        %v2812 = vunpack.c.l.b16 %v2650
        %v2813 = vunpack.c.h.b16 %v2650
        %v2814 = vunpack.c.l.b16 %v2651
        %v2815 = vunpack.c.h.b16 %v2651
        %v2816 = vunpack.c.l.b16 %v2652
        %v2817 = vunpack.c.h.b16 %v2652
        %v2818 = vunpack.c.l.b16 %v2653
        %v2819 = vunpack.c.h.b16 %v2653
        %v2820 = vunpack.c.l.b16 %v2654
        %v2821 = vunpack.c.h.b16 %v2654
        %v2822 = vunpack.c.l.b16 %v2655
        %v2823 = vunpack.c.h.b16 %v2655
        %v2824 = vunpack.c.l.b16 %v2656
        %v2825 = vunpack.c.h.b16 %v2656
        %v2826 = vunpack.c.l.b16 %v2657
        %v2827 = vunpack.c.h.b16 %v2657
        %v2828 = vunpack.c.l.b16 %v2658
        %v2829 = vunpack.c.h.b16 %v2658
        %v2830 = vunpack.c.l.b16 %v2659
        %v2831 = vunpack.c.h.b16 %v2659
        %v2832 = vunpack.c.l.b16 %v2660
        %v2833 = vunpack.c.h.b16 %v2660
        %v2834 = vunpack.c.l.b16 %v2661
        %v2835 = vunpack.c.h.b16 %v2661
        %v2836 = vunpack.c.l.b16 %v2662
        %v2837 = vunpack.c.h.b16 %v2662
        %v2838 = vunpack.c.l.b16 %v2663
        %v2839 = vunpack.c.h.b16 %v2663
        %v2840 = vunpack.c.l.b16 %v2664
        %v2841 = vunpack.c.h.b16 %v2664
        %v2842 = vunpack.c.l.b16 %v2665
        %v2843 = vunpack.c.h.b16 %v2665
        %v2844 = vunpack.c.l.b16 %v2666
        %v2845 = vunpack.c.h.b16 %v2666
        %v2846 = vunpack.c.l.b16 %v2667
        %v2847 = vunpack.c.h.b16 %v2667
        %v2848 = vunpack.c.l.b16 %v2668
        %v2849 = vunpack.c.h.b16 %v2668
        %v2850 = vunpack.c.l.b16 %v2669
        %v2851 = vunpack.c.h.b16 %v2669
        %v2852 = vunpack.c.l.b16 %v2670
        %v2853 = vunpack.c.h.b16 %v2670
        %v2854 = vunpack.c.l.b16 %v2671
        %v2855 = vunpack.c.h.b16 %v2671
        %v2856 = vunpack.c.l.b16 %v2672
        %v2857 = vunpack.c.h.b16 %v2672
        %v2858 = vunpack.c.l.b16 %v2673
        %v2859 = vunpack.c.h.b16 %v2673
        %v2860 = vunpack.c.l.b16 %v2674
        %v2861 = vunpack.c.h.b16 %v2674
        %v2862 = vunpack.c.l.b16 %v2675
        %v2863 = vunpack.c.h.b16 %v2675
        %v2864 = vunpack.c.l.b16 %v2676
        %v2865 = vunpack.c.h.b16 %v2676
        %v2866 = vunpack.c.l.b16 %v2677
        %v2867 = vunpack.c.h.b16 %v2677
        %v2868 = vunpack.c.l.b16 %v2678
        %v2869 = vunpack.c.h.b16 %v2678
        %v2870 = vunpack.c.l.b16 %v2679
        %v2871 = vunpack.c.h.b16 %v2679
        %v2872 = vunpack.c.l.b16 %v2680
        %v2873 = vunpack.c.h.b16 %v2680
        %v2874 = vunpack.c.l.b16 %v2681
        %v2875 = vunpack.c.h.b16 %v2681
        %v2876 = vunpack.c.l.b16 %v2682
        %v2877 = vunpack.c.h.b16 %v2682
        %v2878 = vunpack.c.l.b16 %v2683
        %v2879 = vunpack.c.h.b16 %v2683
        %v2880 = vunpack.c.l.b16 %v2684
        %v2881 = vunpack.c.h.b16 %v2684
        %v2882 = vunpack.c.l.b16 %v2685
        %v2883 = vunpack.c.h.b16 %v2685
        %v2884 = vunpack.c.l.b16 %v2686
        %v2885 = vunpack.c.h.b16 %v2686
        %v2886 = vunpack.c.l.b16 %v2687
        %v2887 = vunpack.c.h.b16 %v2687
        %v2888 = vunpack.c.l.b16 %v2688
        %v2889 = vunpack.c.h.b16 %v2688
        %v2890 = vunpack.c.l.b16 %v2689
        %v2891 = vunpack.c.h.b16 %v2689
        %v2892 = vunpack.c.l.b16 %v2690
        %v2893 = vunpack.c.h.b16 %v2690
        %v2894 = vunpack.c.l.b16 %v2691
        %v2895 = vunpack.c.h.b16 %v2691
        %v2896 = vunpack.c.l.b16 %v2692
        %v2897 = vunpack.c.h.b16 %v2692
        %v2898 = vunpack.c.l.b16 %v2693
        %v2899 = vunpack.c.h.b16 %v2693
        %v2900 = vunpack.c.l.b16 %v2694
        %v2901 = vunpack.c.h.b16 %v2694
        %v2902 = vunpack.c.l.b16 %v2695
        %v2903 = vunpack.c.h.b16 %v2695
        %v2904 = vunpack.c.l.b16 %v2696
        %v2905 = vunpack.c.h.b16 %v2696
        %v2906 = vunpack.c.l.b16 %v2697
        %v2907 = vunpack.c.h.b16 %v2697
        %v2908 = vunpack.c.l.b16 %v2698
        %v2909 = vunpack.c.h.b16 %v2698
        %v2910 = vunpack.c.l.b16 %v2699
        %v2911 = vunpack.c.h.b16 %v2699
        %v2912 = vunpack.c.l.b16 %v2700
        %v2913 = vunpack.c.h.b16 %v2700
        %v2914 = vunpack.c.l.b16 %v2701
        %v2915 = vunpack.c.h.b16 %v2701
        %v2916 = vpack.c.b16 %v2792, %v2788
        %v2917 = vpack.c.b16 %v2793, %v2789
        %v2918 = vpack.c.b16 %v2794, %v2790
        %v2919 = vpack.c.b16 %v2795, %v2791
        %v2920 = vpack.c.b16 %v2800, %v2796
        %v2921 = vpack.c.b16 %v2801, %v2797
        %v2922 = vpack.c.b16 %v2802, %v2798
        %v2923 = vpack.c.b16 %v2803, %v2799
        %v2924 = vpack.c.b16 %v2808, %v2804
        %v2925 = vpack.c.b16 %v2809, %v2805
        %v2926 = vpack.c.b16 %v2810, %v2806
        %v2927 = vpack.c.b16 %v2811, %v2807
        %v2928 = vpack.c.b16 %v2816, %v2812
        %v2929 = vpack.c.b16 %v2817, %v2813
        %v2930 = vpack.c.b16 %v2818, %v2814
        %v2931 = vpack.c.b16 %v2819, %v2815
        %v2932 = vpack.c.b16 %v2824, %v2820
        %v2933 = vpack.c.b16 %v2825, %v2821
        %v2934 = vpack.c.b16 %v2826, %v2822
        %v2935 = vpack.c.b16 %v2827, %v2823
        %v2936 = vpack.c.b16 %v2832, %v2828
        %v2937 = vpack.c.b16 %v2833, %v2829
        %v2938 = vpack.c.b16 %v2834, %v2830
        %v2939 = vpack.c.b16 %v2835, %v2831
        %v2940 = vpack.c.b16 %v2840, %v2836
        %v2941 = vpack.c.b16 %v2841, %v2837
        %v2942 = vpack.c.b16 %v2842, %v2838
        %v2943 = vpack.c.b16 %v2843, %v2839
        %v2944 = vpack.c.b16 %v2848, %v2844
        %v2945 = vpack.c.b16 %v2849, %v2845
        %v2946 = vpack.c.b16 %v2850, %v2846
        %v2947 = vpack.c.b16 %v2851, %v2847
        %v2948 = vpack.c.b16 %v2856, %v2852
        %v2949 = vpack.c.b16 %v2857, %v2853
        %v2950 = vpack.c.b16 %v2858, %v2854
        %v2951 = vpack.c.b16 %v2859, %v2855
        %v2952 = vpack.c.b16 %v2864, %v2860
        %v2953 = vpack.c.b16 %v2865, %v2861
        %v2954 = vpack.c.b16 %v2866, %v2862
        %v2955 = vpack.c.b16 %v2867, %v2863
        %v2956 = vpack.c.b16 %v2872, %v2868
        %v2957 = vpack.c.b16 %v2873, %v2869
        %v2958 = vpack.c.b16 %v2874, %v2870
        %v2959 = vpack.c.b16 %v2875, %v2871
        %v2960 = vpack.c.b16 %v2880, %v2876
        %v2961 = vpack.c.b16 %v2881, %v2877
        %v2962 = vpack.c.b16 %v2882, %v2878
        %v2963 = vpack.c.b16 %v2883, %v2879
        %v2964 = vpack.c.b16 %v2888, %v2884
        %v2965 = vpack.c.b16 %v2889, %v2885
        %v2966 = vpack.c.b16 %v2890, %v2886
        %v2967 = vpack.c.b16 %v2891, %v2887
        %v2968 = vpack.c.b16 %v2896, %v2892
        %v2969 = vpack.c.b16 %v2897, %v2893
        %v2970 = vpack.c.b16 %v2898, %v2894
        %v2971 = vpack.c.b16 %v2899, %v2895
        %v2972 = vpack.c.b16 %v2904, %v2900
        %v2973 = vpack.c.b16 %v2905, %v2901
        %v2974 = vpack.c.b16 %v2906, %v2902
        %v2975 = vpack.c.b16 %v2907, %v2903
        %v2976 = vpack.c.b16 %v2912, %v2908
        %v2977 = vpack.c.b16 %v2913, %v2909
        %v2978 = vpack.c.b16 %v2914, %v2910
        %v2979 = vpack.c.b16 %v2915, %v2911
        %3044 = vmatprep.subr.bf16.mxu0 %v2945
        %3045 = vmatpush1.bf16.msra.mxu0 %v2944
        %3046 = vmatprep.subr.bf16.mxu0 %v2941
        %3047 = vmatpush1.bf16.msra.mxu0 %v2940
        %3048 = vmatprep.subr.bf16.mxu0 %v2937
        %3049 = vmatpush1.bf16.msra.mxu0 %v2936
        %3050 = vmatprep.subr.bf16.mxu0 %v2933
        %3051 = vmatpush1.bf16.msra.mxu0 %v2932
        %3052 = vmatprep.subr.bf16.mxu0 %v2929
        %3053 = vmatpush1.bf16.msra.mxu0 %v2928
        %3054 = vmatprep.subr.bf16.mxu0 %v2925
        %3055 = vmatpush1.bf16.msra.mxu0 %v2924
        %3056 = vmatprep.subr.bf16.mxu0 %v2921
        %3057 = vmatpush1.bf16.msra.mxu0 %v2920
        %3058 = vmatprep.subr.bf16.mxu0 %v2917
        %3059 = vmatpush1.bf16.msra.mxu0 %v2916
        %3060 = vmatprep.subr.bf16.mxu0 %v2977
        %3061 = vmatpush2.bf16.msra.mxu0 %v2976
        %3062 = vmatprep.subr.bf16.mxu0 %v2973
        %3063 = vmatpush2.bf16.msra.mxu0 %v2972
        %3064 = vmatprep.subr.bf16.mxu0 %v2969
        %3065 = vmatpush2.bf16.msra.mxu0 %v2968
        %3066 = vmatprep.subr.bf16.mxu0 %v2965
        %3067 = vmatpush2.bf16.msra.mxu0 %v2964
        %3068 = vmatprep.subr.bf16.mxu0 %v2961
        %3069 = vmatpush2.bf16.msra.mxu0 %v2960
        %3070 = vmatprep.subr.bf16.mxu0 %v2957
        %3071 = vmatpush2.bf16.msra.mxu0 %v2956
        %3072 = vmatprep.subr.bf16.mxu0 %v2953
        %3073 = vmatpush2.bf16.msra.mxu0 %v2952
        %3074 = vmatprep.subr.bf16.mxu0 %v2949
        %3075 = vmatpush2.bf16.msra.mxu0 %v2948
        %3076 = vmatprep.mubr.bf16.mxu0 %v2637
        %3077 = vmatmul.mubr.bf16.gmra.mxu0 %v2636
        %v3078 = vpop.f32.mrf.mxu0
        %v3079 = vadd.f32 %v2707, %v3078
        %v3080 = vpop.f32.mrf.mxu0
        %v3081 = vadd.f32 %v2711, %v3080
        %v3082 = vpop.f32.mrf.mxu0
        %v3083 = vadd.f32 %v2707, %v3082
        %v3084 = vpop.f32.mrf.mxu0
        %v3085 = vadd.f32 %v2711, %v3084
        %3086 = vdwg.mxu0
        %3087 = vmatprep.subr.bf16.mxu0 %v2947
        %3088 = vmatpush1.bf16.msra.mxu0 %v2946
        %3089 = vmatprep.subr.bf16.mxu0 %v2943
        %3090 = vmatpush1.bf16.msra.mxu0 %v2942
        %3091 = vmatprep.subr.bf16.mxu0 %v2939
        %3092 = vmatpush1.bf16.msra.mxu0 %v2938
        %3093 = vmatprep.subr.bf16.mxu0 %v2935
        %3094 = vmatpush1.bf16.msra.mxu0 %v2934
        %3095 = vmatprep.subr.bf16.mxu0 %v2931
        %3096 = vmatpush1.bf16.msra.mxu0 %v2930
        %3097 = vmatprep.subr.bf16.mxu0 %v2927
        %3098 = vmatpush1.bf16.msra.mxu0 %v2926
        %3099 = vmatprep.subr.bf16.mxu0 %v2923
        %3100 = vmatpush1.bf16.msra.mxu0 %v2922
        %3101 = vmatprep.subr.bf16.mxu0 %v2919
        %3102 = vmatpush1.bf16.msra.mxu0 %v2918
        %3103 = vmatprep.subr.bf16.mxu0 %v2979
        %3104 = vmatpush2.bf16.msra.mxu0 %v2978
        %3105 = vmatprep.subr.bf16.mxu0 %v2975
        %3106 = vmatpush2.bf16.msra.mxu0 %v2974
        %3107 = vmatprep.subr.bf16.mxu0 %v2971
        %3108 = vmatpush2.bf16.msra.mxu0 %v2970
        %3109 = vmatprep.subr.bf16.mxu0 %v2967
        %3110 = vmatpush2.bf16.msra.mxu0 %v2966
        %3111 = vmatprep.subr.bf16.mxu0 %v2963
        %3112 = vmatpush2.bf16.msra.mxu0 %v2962
        %3113 = vmatprep.subr.bf16.mxu0 %v2959
        %3114 = vmatpush2.bf16.msra.mxu0 %v2958
        %3115 = vmatprep.subr.bf16.mxu0 %v2955
        %3116 = vmatpush2.bf16.msra.mxu0 %v2954
        %3117 = vmatprep.subr.bf16.mxu0 %v2951
        %3118 = vmatpush2.bf16.msra.mxu0 %v2950
        %3119 = vmatprep.mubr.bf16.mxu0 %v2637
        %3120 = vmatmul.mubr.bf16.gmra.mxu0 %v2636
        %v3121 = vpop.f32.mrf.mxu0
        %v3122 = vadd.f32 %v2715, %v3121
        %v3123 = vpop.f32.mrf.mxu0
        %v3124 = vadd.f32 %v2719, %v3123
        %v3125 = vpop.f32.mrf.mxu0
        %v3126 = vadd.f32 %v2715, %v3125
        %v3127 = vpop.f32.mrf.mxu0
        %v3128 = vadd.f32 %v2719, %v3127
        %3129 = vdwg.mxu0
        %v3130 = vmax.f32 %v3079, 0.0
        %v3131 = vmax.f32 %v3081, 0.0
        %v3132 = vmax.f32 %v3122, 0.0
        %v3133 = vmax.f32 %v3124, 0.0
        %v3134 = vmax.f32 %v3083, 0.0
        %v3135 = vmax.f32 %v3085, 0.0
        %v3136 = vmax.f32 %v3126, 0.0
        %v3137 = vmax.f32 %v3128, 0.0
        %v3138 = vpack.c.bf16 %v3134, %v3130
        %v3139 = vpack.c.bf16 %v3135, %v3131
        %v3140 = vpack.c.bf16 %v3136, %v3132
        %v3141 = vpack.c.bf16 %v3137, %v3133
        %v3142 = vld [vmem:[#allocation7] sm:$0xff]
        %v3143 = vld [vmem:[#allocation7 + $0x8] sm:$0xff]
        %v3144 = vld [vmem:[#allocation7 + $0x10] sm:$0xff]
        %v3145 = vld [vmem:[#allocation7 + $0x18] sm:$0xff]
        %v3146 = vld [vmem:[#allocation7 + $0x20] sm:$0xff]
        %v3147 = vld [vmem:[#allocation7 + $0x28] sm:$0xff]
        %v3148 = vld [vmem:[#allocation7 + $0x30] sm:$0xff]
        %v3149 = vld [vmem:[#allocation7 + $0x38] sm:$0xff]
        %v3150 = vld [vmem:[#allocation7 + $0x40] sm:$0xff]
        %v3151 = vld [vmem:[#allocation7 + $0x48] sm:$0xff]
        %v3152 = vld [vmem:[#allocation7 + $0x50] sm:$0xff]
        %v3153 = vld [vmem:[#allocation7 + $0x58] sm:$0xff]
        %v3154 = vld [vmem:[#allocation7 + $0x60] sm:$0xff]
        %v3155 = vld [vmem:[#allocation7 + $0x68] sm:$0xff]
        %v3156 = vld [vmem:[#allocation7 + $0x70] sm:$0xff]
        %v3157 = vld [vmem:[#allocation7 + $0x78] sm:$0xff]
        %v3158 = vld [vmem:[#allocation7 + $0x80] sm:$0xff]
        %v3159 = vld [vmem:[#allocation7 + $0x88] sm:$0xff]
        %v3160 = vld [vmem:[#allocation7 + $0x90] sm:$0xff]
        %v3161 = vld [vmem:[#allocation7 + $0x98] sm:$0xff]
        %v3162 = vld [vmem:[#allocation7 + $0xa0] sm:$0xff]
        %v3163 = vld [vmem:[#allocation7 + $0xa8] sm:$0xff]
        %v3164 = vld [vmem:[#allocation7 + $0xb0] sm:$0xff]
        %v3165 = vld [vmem:[#allocation7 + $0xb8] sm:$0xff]
        %v3166 = vld [vmem:[#allocation7 + $0xc0] sm:$0xff]
        %v3167 = vld [vmem:[#allocation7 + $0xc8] sm:$0xff]
        %v3168 = vld [vmem:[#allocation7 + $0xd0] sm:$0xff]
        %v3169 = vld [vmem:[#allocation7 + $0xd8] sm:$0xff]
        %v3170 = vld [vmem:[#allocation7 + $0xe0] sm:$0xff]
        %v3171 = vld [vmem:[#allocation7 + $0xe8] sm:$0xff]
        %v3172 = vld [vmem:[#allocation7 + $0xf0] sm:$0xff]
        %v3173 = vld [vmem:[#allocation7 + $0xf8] sm:$0xff]
        %v3174 = vld [vmem:[#allocation7 + $0x100] sm:$0xff]
        %v3175 = vld [vmem:[#allocation7 + $0x108] sm:$0xff]
        %v3176 = vld [vmem:[#allocation7 + $0x110] sm:$0xff]
        %v3177 = vld [vmem:[#allocation7 + $0x118] sm:$0xff]
        %v3178 = vld [vmem:[#allocation7 + $0x120] sm:$0xff]
        %v3179 = vld [vmem:[#allocation7 + $0x128] sm:$0xff]
        %v3180 = vld [vmem:[#allocation7 + $0x130] sm:$0xff]
        %v3181 = vld [vmem:[#allocation7 + $0x138] sm:$0xff]
        %v3182 = vld [vmem:[#allocation7 + $0x140] sm:$0xff]
        %v3183 = vld [vmem:[#allocation7 + $0x148] sm:$0xff]
        %v3184 = vld [vmem:[#allocation7 + $0x150] sm:$0xff]
        %v3185 = vld [vmem:[#allocation7 + $0x158] sm:$0xff]
        %v3186 = vld [vmem:[#allocation7 + $0x160] sm:$0xff]
        %v3187 = vld [vmem:[#allocation7 + $0x168] sm:$0xff]
        %v3188 = vld [vmem:[#allocation7 + $0x170] sm:$0xff]
        %v3189 = vld [vmem:[#allocation7 + $0x178] sm:$0xff]
        %v3190 = vld [vmem:[#allocation7 + $0x180] sm:$0xff]
        %v3191 = vld [vmem:[#allocation7 + $0x188] sm:$0xff]
        %v3192 = vld [vmem:[#allocation7 + $0x190] sm:$0xff]
        %v3193 = vld [vmem:[#allocation7 + $0x198] sm:$0xff]
        %v3194 = vld [vmem:[#allocation7 + $0x1a0] sm:$0xff]
        %v3195 = vld [vmem:[#allocation7 + $0x1a8] sm:$0xff]
        %v3196 = vld [vmem:[#allocation7 + $0x1b0] sm:$0xff]
        %v3197 = vld [vmem:[#allocation7 + $0x1b8] sm:$0xff]
        %v3198 = vld [vmem:[#allocation7 + $0x1c0] sm:$0xff]
        %v3199 = vld [vmem:[#allocation7 + $0x1c8] sm:$0xff]
        %v3200 = vld [vmem:[#allocation7 + $0x1d0] sm:$0xff]
        %v3201 = vld [vmem:[#allocation7 + $0x1d8] sm:$0xff]
        %v3202 = vld [vmem:[#allocation7 + $0x1e0] sm:$0xff]
        %v3203 = vld [vmem:[#allocation7 + $0x1e8] sm:$0xff]
        %v3204 = vld [vmem:[#allocation7 + $0x1f0] sm:$0xff]
        %v3205 = vld [vmem:[#allocation7 + $0x1f8] sm:$0xff]
        %v3206 = vld [vmem:[%s11] sm:$0x3]
        %v3208 = vlaneseq
        %v3209 = vshrl.u32 %v3208, 7
        %v3210 = vsub.s32 0, %v3209
        %v3211 = vrot.slane %v3206, %v3210
        %v3212 = vlaneseq
        %v3213 = vshrl.u32 %v3212, 7
        %v3214 = vsub.s32 1, %v3213
        %v3215 = vrot.slane %v3206, %v3214
        %v3282 = vunpack.c.l.b16 %v3142
        %v3283 = vunpack.c.h.b16 %v3142
        %v3284 = vunpack.c.l.b16 %v3143
        %v3285 = vunpack.c.h.b16 %v3143
        %v3286 = vunpack.c.l.b16 %v3144
        %v3287 = vunpack.c.h.b16 %v3144
        %v3288 = vunpack.c.l.b16 %v3145
        %v3289 = vunpack.c.h.b16 %v3145
        %v3290 = vunpack.c.l.b16 %v3146
        %v3291 = vunpack.c.h.b16 %v3146
        %v3292 = vunpack.c.l.b16 %v3147
        %v3293 = vunpack.c.h.b16 %v3147
        %v3294 = vunpack.c.l.b16 %v3148
        %v3295 = vunpack.c.h.b16 %v3148
        %v3296 = vunpack.c.l.b16 %v3149
        %v3297 = vunpack.c.h.b16 %v3149
        %v3298 = vunpack.c.l.b16 %v3150
        %v3299 = vunpack.c.h.b16 %v3150
        %v3300 = vunpack.c.l.b16 %v3151
        %v3301 = vunpack.c.h.b16 %v3151
        %v3302 = vunpack.c.l.b16 %v3152
        %v3303 = vunpack.c.h.b16 %v3152
        %v3304 = vunpack.c.l.b16 %v3153
        %v3305 = vunpack.c.h.b16 %v3153
        %v3306 = vunpack.c.l.b16 %v3154
        %v3307 = vunpack.c.h.b16 %v3154
        %v3308 = vunpack.c.l.b16 %v3155
        %v3309 = vunpack.c.h.b16 %v3155
        %v3310 = vunpack.c.l.b16 %v3156
        %v3311 = vunpack.c.h.b16 %v3156
        %v3312 = vunpack.c.l.b16 %v3157
        %v3313 = vunpack.c.h.b16 %v3157
        %v3314 = vunpack.c.l.b16 %v3158
        %v3315 = vunpack.c.h.b16 %v3158
        %v3316 = vunpack.c.l.b16 %v3159
        %v3317 = vunpack.c.h.b16 %v3159
        %v3318 = vunpack.c.l.b16 %v3160
        %v3319 = vunpack.c.h.b16 %v3160
        %v3320 = vunpack.c.l.b16 %v3161
        %v3321 = vunpack.c.h.b16 %v3161
        %v3322 = vunpack.c.l.b16 %v3162
        %v3323 = vunpack.c.h.b16 %v3162
        %v3324 = vunpack.c.l.b16 %v3163
        %v3325 = vunpack.c.h.b16 %v3163
        %v3326 = vunpack.c.l.b16 %v3164
        %v3327 = vunpack.c.h.b16 %v3164
        %v3328 = vunpack.c.l.b16 %v3165
        %v3329 = vunpack.c.h.b16 %v3165
        %v3330 = vunpack.c.l.b16 %v3166
        %v3331 = vunpack.c.h.b16 %v3166
        %v3332 = vunpack.c.l.b16 %v3167
        %v3333 = vunpack.c.h.b16 %v3167
        %v3334 = vunpack.c.l.b16 %v3168
        %v3335 = vunpack.c.h.b16 %v3168
        %v3336 = vunpack.c.l.b16 %v3169
        %v3337 = vunpack.c.h.b16 %v3169
        %v3338 = vunpack.c.l.b16 %v3170
        %v3339 = vunpack.c.h.b16 %v3170
        %v3340 = vunpack.c.l.b16 %v3171
        %v3341 = vunpack.c.h.b16 %v3171
        %v3342 = vunpack.c.l.b16 %v3172
        %v3343 = vunpack.c.h.b16 %v3172
        %v3344 = vunpack.c.l.b16 %v3173
        %v3345 = vunpack.c.h.b16 %v3173
        %v3346 = vunpack.c.l.b16 %v3174
        %v3347 = vunpack.c.h.b16 %v3174
        %v3348 = vunpack.c.l.b16 %v3175
        %v3349 = vunpack.c.h.b16 %v3175
        %v3350 = vunpack.c.l.b16 %v3176
        %v3351 = vunpack.c.h.b16 %v3176
        %v3352 = vunpack.c.l.b16 %v3177
        %v3353 = vunpack.c.h.b16 %v3177
        %v3354 = vunpack.c.l.b16 %v3178
        %v3355 = vunpack.c.h.b16 %v3178
        %v3356 = vunpack.c.l.b16 %v3179
        %v3357 = vunpack.c.h.b16 %v3179
        %v3358 = vunpack.c.l.b16 %v3180
        %v3359 = vunpack.c.h.b16 %v3180
        %v3360 = vunpack.c.l.b16 %v3181
        %v3361 = vunpack.c.h.b16 %v3181
        %v3362 = vunpack.c.l.b16 %v3182
        %v3363 = vunpack.c.h.b16 %v3182
        %v3364 = vunpack.c.l.b16 %v3183
        %v3365 = vunpack.c.h.b16 %v3183
        %v3366 = vunpack.c.l.b16 %v3184
        %v3367 = vunpack.c.h.b16 %v3184
        %v3368 = vunpack.c.l.b16 %v3185
        %v3369 = vunpack.c.h.b16 %v3185
        %v3370 = vunpack.c.l.b16 %v3186
        %v3371 = vunpack.c.h.b16 %v3186
        %v3372 = vunpack.c.l.b16 %v3187
        %v3373 = vunpack.c.h.b16 %v3187
        %v3374 = vunpack.c.l.b16 %v3188
        %v3375 = vunpack.c.h.b16 %v3188
        %v3376 = vunpack.c.l.b16 %v3189
        %v3377 = vunpack.c.h.b16 %v3189
        %v3378 = vunpack.c.l.b16 %v3190
        %v3379 = vunpack.c.h.b16 %v3190
        %v3380 = vunpack.c.l.b16 %v3191
        %v3381 = vunpack.c.h.b16 %v3191
        %v3382 = vunpack.c.l.b16 %v3192
        %v3383 = vunpack.c.h.b16 %v3192
        %v3384 = vunpack.c.l.b16 %v3193
        %v3385 = vunpack.c.h.b16 %v3193
        %v3386 = vunpack.c.l.b16 %v3194
        %v3387 = vunpack.c.h.b16 %v3194
        %v3388 = vunpack.c.l.b16 %v3195
        %v3389 = vunpack.c.h.b16 %v3195
        %v3390 = vunpack.c.l.b16 %v3196
        %v3391 = vunpack.c.h.b16 %v3196
        %v3392 = vunpack.c.l.b16 %v3197
        %v3393 = vunpack.c.h.b16 %v3197
        %v3394 = vunpack.c.l.b16 %v3198
        %v3395 = vunpack.c.h.b16 %v3198
        %v3396 = vunpack.c.l.b16 %v3199
        %v3397 = vunpack.c.h.b16 %v3199
        %v3398 = vunpack.c.l.b16 %v3200
        %v3399 = vunpack.c.h.b16 %v3200
        %v3400 = vunpack.c.l.b16 %v3201
        %v3401 = vunpack.c.h.b16 %v3201
        %v3402 = vunpack.c.l.b16 %v3202
        %v3403 = vunpack.c.h.b16 %v3202
        %v3404 = vunpack.c.l.b16 %v3203
        %v3405 = vunpack.c.h.b16 %v3203
        %v3406 = vunpack.c.l.b16 %v3204
        %v3407 = vunpack.c.h.b16 %v3204
        %v3408 = vunpack.c.l.b16 %v3205
        %v3409 = vunpack.c.h.b16 %v3205
        %v3410 = vpack.c.b16 %v3284, %v3282
        %v3411 = vpack.c.b16 %v3285, %v3283
        %v3412 = vpack.c.b16 %v3288, %v3286
        %v3413 = vpack.c.b16 %v3289, %v3287
        %v3414 = vpack.c.b16 %v3292, %v3290
        %v3415 = vpack.c.b16 %v3293, %v3291
        %v3416 = vpack.c.b16 %v3296, %v3294
        %v3417 = vpack.c.b16 %v3297, %v3295
        %v3418 = vpack.c.b16 %v3300, %v3298
        %v3419 = vpack.c.b16 %v3301, %v3299
        %v3420 = vpack.c.b16 %v3304, %v3302
        %v3421 = vpack.c.b16 %v3305, %v3303
        %v3422 = vpack.c.b16 %v3308, %v3306
        %v3423 = vpack.c.b16 %v3309, %v3307
        %v3424 = vpack.c.b16 %v3312, %v3310
        %v3425 = vpack.c.b16 %v3313, %v3311
        %v3426 = vpack.c.b16 %v3316, %v3314
        %v3427 = vpack.c.b16 %v3317, %v3315
        %v3428 = vpack.c.b16 %v3320, %v3318
        %v3429 = vpack.c.b16 %v3321, %v3319
        %v3430 = vpack.c.b16 %v3324, %v3322
        %v3431 = vpack.c.b16 %v3325, %v3323
        %v3432 = vpack.c.b16 %v3328, %v3326
        %v3433 = vpack.c.b16 %v3329, %v3327
        %v3434 = vpack.c.b16 %v3332, %v3330
        %v3435 = vpack.c.b16 %v3333, %v3331
        %v3436 = vpack.c.b16 %v3336, %v3334
        %v3437 = vpack.c.b16 %v3337, %v3335
        %v3438 = vpack.c.b16 %v3340, %v3338
        %v3439 = vpack.c.b16 %v3341, %v3339
        %v3440 = vpack.c.b16 %v3344, %v3342
        %v3441 = vpack.c.b16 %v3345, %v3343
        %v3442 = vpack.c.b16 %v3348, %v3346
        %v3443 = vpack.c.b16 %v3349, %v3347
        %v3444 = vpack.c.b16 %v3352, %v3350
        %v3445 = vpack.c.b16 %v3353, %v3351
        %v3446 = vpack.c.b16 %v3356, %v3354
        %v3447 = vpack.c.b16 %v3357, %v3355
        %v3448 = vpack.c.b16 %v3360, %v3358
        %v3449 = vpack.c.b16 %v3361, %v3359
        %v3450 = vpack.c.b16 %v3364, %v3362
        %v3451 = vpack.c.b16 %v3365, %v3363
        %v3452 = vpack.c.b16 %v3368, %v3366
        %v3453 = vpack.c.b16 %v3369, %v3367
        %v3454 = vpack.c.b16 %v3372, %v3370
        %v3455 = vpack.c.b16 %v3373, %v3371
        %v3456 = vpack.c.b16 %v3376, %v3374
        %v3457 = vpack.c.b16 %v3377, %v3375
        %v3458 = vpack.c.b16 %v3380, %v3378
        %v3459 = vpack.c.b16 %v3381, %v3379
        %v3460 = vpack.c.b16 %v3384, %v3382
        %v3461 = vpack.c.b16 %v3385, %v3383
        %v3462 = vpack.c.b16 %v3388, %v3386
        %v3463 = vpack.c.b16 %v3389, %v3387
        %v3464 = vpack.c.b16 %v3392, %v3390
        %v3465 = vpack.c.b16 %v3393, %v3391
        %v3466 = vpack.c.b16 %v3396, %v3394
        %v3467 = vpack.c.b16 %v3397, %v3395
        %v3468 = vpack.c.b16 %v3400, %v3398
        %v3469 = vpack.c.b16 %v3401, %v3399
        %v3470 = vpack.c.b16 %v3404, %v3402
        %v3471 = vpack.c.b16 %v3405, %v3403
        %v3472 = vpack.c.b16 %v3408, %v3406
        %v3473 = vpack.c.b16 %v3409, %v3407
        %3538 = vmatprep.subr.bf16.mxu0 %v3425
        %3539 = vmatpush1.bf16.msra.mxu0 %v3424
        %3540 = vmatprep.subr.bf16.mxu0 %v3423
        %3541 = vmatpush1.bf16.msra.mxu0 %v3422
        %3542 = vmatprep.subr.bf16.mxu0 %v3421
        %3543 = vmatpush1.bf16.msra.mxu0 %v3420
        %3544 = vmatprep.subr.bf16.mxu0 %v3419
        %3545 = vmatpush1.bf16.msra.mxu0 %v3418
        %3546 = vmatprep.subr.bf16.mxu0 %v3417
        %3547 = vmatpush1.bf16.msra.mxu0 %v3416
        %3548 = vmatprep.subr.bf16.mxu0 %v3415
        %3549 = vmatpush1.bf16.msra.mxu0 %v3414
        %3550 = vmatprep.subr.bf16.mxu0 %v3413
        %3551 = vmatpush1.bf16.msra.mxu0 %v3412
        %3552 = vmatprep.subr.bf16.mxu0 %v3411
        %3553 = vmatpush1.bf16.msra.mxu0 %v3410
        %3554 = vmatprep.subr.bf16.mxu0 %v3441
        %3555 = vmatpush2.bf16.msra.mxu0 %v3440
        %3556 = vmatprep.subr.bf16.mxu0 %v3439
        %3557 = vmatpush2.bf16.msra.mxu0 %v3438
        %3558 = vmatprep.subr.bf16.mxu0 %v3437
        %3559 = vmatpush2.bf16.msra.mxu0 %v3436
        %3560 = vmatprep.subr.bf16.mxu0 %v3435
        %3561 = vmatpush2.bf16.msra.mxu0 %v3434
        %3562 = vmatprep.subr.bf16.mxu0 %v3433
        %3563 = vmatpush2.bf16.msra.mxu0 %v3432
        %3564 = vmatprep.subr.bf16.mxu0 %v3431
        %3565 = vmatpush2.bf16.msra.mxu0 %v3430
        %3566 = vmatprep.subr.bf16.mxu0 %v3429
        %3567 = vmatpush2.bf16.msra.mxu0 %v3428
        %3568 = vmatprep.subr.bf16.mxu0 %v3427
        %3569 = vmatpush2.bf16.msra.mxu0 %v3426
        %3570 = vmatprep.mubr.bf16.mxu0 %v3139
        %3571 = vmatmul.mubr.bf16.gmra.mxu0 %v3138
        %v3572 = vpop.f32.mrf.mxu0
        %v3573 = vadd.f32 %v3211, %v3572
        %v3574 = vpop.f32.mrf.mxu0
        %v3575 = vadd.f32 %v3215, %v3574
        %v3576 = vpop.f32.mrf.mxu0
        %v3577 = vadd.f32 %v3211, %v3576
        %v3578 = vpop.f32.mrf.mxu0
        %v3579 = vadd.f32 %v3215, %v3578
        %3580 = vdwg.mxu0
        %3581 = vmatprep.subr.bf16.mxu0 %v3457
        %3582 = vmatpush1.bf16.msra.mxu0 %v3456
        %3583 = vmatprep.subr.bf16.mxu0 %v3455
        %3584 = vmatpush1.bf16.msra.mxu0 %v3454
        %3585 = vmatprep.subr.bf16.mxu0 %v3453
        %3586 = vmatpush1.bf16.msra.mxu0 %v3452
        %3587 = vmatprep.subr.bf16.mxu0 %v3451
        %3588 = vmatpush1.bf16.msra.mxu0 %v3450
        %3589 = vmatprep.subr.bf16.mxu0 %v3449
        %3590 = vmatpush1.bf16.msra.mxu0 %v3448
        %3591 = vmatprep.subr.bf16.mxu0 %v3447
        %3592 = vmatpush1.bf16.msra.mxu0 %v3446
        %3593 = vmatprep.subr.bf16.mxu0 %v3445
        %3594 = vmatpush1.bf16.msra.mxu0 %v3444
        %3595 = vmatprep.subr.bf16.mxu0 %v3443
        %3596 = vmatpush1.bf16.msra.mxu0 %v3442
        %3597 = vmatprep.subr.bf16.mxu0 %v3473
        %3598 = vmatpush2.bf16.msra.mxu0 %v3472
        %3599 = vmatprep.subr.bf16.mxu0 %v3471
        %3600 = vmatpush2.bf16.msra.mxu0 %v3470
        %3601 = vmatprep.subr.bf16.mxu0 %v3469
        %3602 = vmatpush2.bf16.msra.mxu0 %v3468
        %3603 = vmatprep.subr.bf16.mxu0 %v3467
        %3604 = vmatpush2.bf16.msra.mxu0 %v3466
        %3605 = vmatprep.subr.bf16.mxu0 %v3465
        %3606 = vmatpush2.bf16.msra.mxu0 %v3464
        %3607 = vmatprep.subr.bf16.mxu0 %v3463
        %3608 = vmatpush2.bf16.msra.mxu0 %v3462
        %3609 = vmatprep.subr.bf16.mxu0 %v3461
        %3610 = vmatpush2.bf16.msra.mxu0 %v3460
        %3611 = vmatprep.subr.bf16.mxu0 %v3459
        %3612 = vmatpush2.bf16.msra.mxu0 %v3458
        %3613 = vmatprep.mubr.bf16.mxu0 %v3141
        %3614 = vmatmul.mubr.bf16.gmra.mxu0 %v3140
        %v3615 = vpop.f32.mrf.mxu0
        %v3616 = vadd.f32 %v3573, %v3615
        %v3617 = vpop.f32.mrf.mxu0
        %v3618 = vadd.f32 %v3575, %v3617
        %v3619 = vpop.f32.mrf.mxu0
        %v3620 = vadd.f32 %v3577, %v3619
        %v3621 = vpop.f32.mrf.mxu0
        %v3622 = vadd.f32 %v3579, %v3621
        %3623 = vdwg.mxu0
        %v3624 = vadd.f32 %v3616, %v2632
        %v3625 = vadd.f32 %v3618, %v2633
        %v3626 = vadd.f32 %v3620, %v2634
        %v3627 = vadd.f32 %v3622, %v2635
        %v3628 = vld [vmem:[%s12] sm:$0x3]
        %v3629 = vld [vmem:[%s13] sm:$0x3]
        %v3630 = vadd.f32 %v3624, %v3625
        %3631 = vadd.xlane.f32.xlu0 %v3630
        %v3632 = vpop.xlane.xlu0 %3631
        %v3633 = vadd.f32 %v3626, %v3627
        %3634 = vadd.xlane.f32.xlu0 %v3633
        %v3635 = vpop.xlane.xlu0 %3634
        %v3636 = vmul.f32 %v3632, %v2579
        %v3637 = vmul.f32 %v3635, %v2579
        %v3638 = vsub.f32 %v3624, %v3636
        %v3639 = vsub.f32 %v3625, %v3636
        %v3640 = vsub.f32 %v3626, %v3637
        %v3641 = vsub.f32 %v3627, %v3637
        %v3642 = vmul.f32 %v3638, %v3638
        %v3643 = vmul.f32 %v3639, %v3639
        %v3644 = vmul.f32 %v3640, %v3640
        %v3645 = vmul.f32 %v3641, %v3641
        %v3646 = vadd.f32 %v3642, %v3643
        %3647 = vadd.xlane.f32.xlu0 %v3646
        %v3648 = vpop.xlane.xlu0 %3647
        %v3649 = vadd.f32 %v3644, %v3645
        %3650 = vadd.xlane.f32.xlu0 %v3649
        %v3651 = vpop.xlane.xlu0 %3650
        %v3652 = vmul.f32 %v3648, %v2579
        %v3653 = vmul.f32 %v3651, %v2579
        %v3654 = vadd.f32 %v3652, 1e-05
        %v3655 = vadd.f32 %v3653, 1e-05
        %v3656 = vrsqrt.pop %v3654
        %v3657 = vrsqrt.pop %v3655
        %v3658 = vmul.f32 %v3638, %v3656
        %v3659 = vmul.f32 %v3639, %v3656
        %v3660 = vmul.f32 %v3640, %v3657
        %v3661 = vmul.f32 %v3641, %v3657
        %v3663 = vlaneseq
        %v3664 = vshrl.u32 %v3663, 7
        %v3665 = vsub.s32 0, %v3664
        %v3666 = vrot.slane %v3628, %v3665
        %v3667 = vlaneseq
        %v3668 = vshrl.u32 %v3667, 7
        %v3669 = vsub.s32 1, %v3668
        %v3670 = vrot.slane %v3628, %v3669
        %v3673 = vmul.f32 %v3658, %v3666
        %v3674 = vmul.f32 %v3659, %v3670
        %v3675 = vmul.f32 %v3660, %v3666
        %v3676 = vmul.f32 %v3661, %v3670
        %v3678 = vlaneseq
        %v3679 = vshrl.u32 %v3678, 7
        %v3680 = vsub.s32 0, %v3679
        %v3681 = vrot.slane %v3629, %v3680
        %v3682 = vlaneseq
        %v3683 = vshrl.u32 %v3682, 7
        %v3684 = vsub.s32 1, %v3683
        %v3685 = vrot.slane %v3629, %v3684
        %v3688 = vadd.f32 %v3673, %v3681
        %v3689 = vadd.f32 %v3674, %v3685
        %v3690 = vadd.f32 %v3675, %v3681
        %v3691 = vadd.f32 %v3676, %v3685
        %v3692 = vpack.c.bf16 %v3690, %v3688
        %v3693 = vpack.c.bf16 %v3691, %v3689
        %s3694 = scalar_lea.vmem [#allocation3], 768
        %v3695 = vld [vmem:[%s3694] sm:$0xff]
        %v3696 = vld [vmem:[%s3694 + $0x8] sm:$0xff]
        %v3697 = vld [vmem:[%s3694 + $0x10] sm:$0xff]
        %v3698 = vld [vmem:[%s3694 + $0x18] sm:$0xff]
        %v3699 = vld [vmem:[%s3694 + $0x20] sm:$0xff]
        %v3700 = vld [vmem:[%s3694 + $0x28] sm:$0xff]
        %v3701 = vld [vmem:[%s3694 + $0x30] sm:$0xff]
        %v3702 = vld [vmem:[%s3694 + $0x38] sm:$0xff]
        %v3703 = vld [vmem:[%s3694 + $0x40] sm:$0xff]
        %v3704 = vld [vmem:[%s3694 + $0x48] sm:$0xff]
        %v3705 = vld [vmem:[%s3694 + $0x50] sm:$0xff]
        %v3706 = vld [vmem:[%s3694 + $0x58] sm:$0xff]
        %v3707 = vld [vmem:[%s3694 + $0x60] sm:$0xff]
        %v3708 = vld [vmem:[%s3694 + $0x68] sm:$0xff]
        %v3709 = vld [vmem:[%s3694 + $0x70] sm:$0xff]
        %v3710 = vld [vmem:[%s3694 + $0x78] sm:$0xff]
        %v3711 = vld [vmem:[%s3694 + $0x80] sm:$0xff]
        %v3712 = vld [vmem:[%s3694 + $0x88] sm:$0xff]
        %v3713 = vld [vmem:[%s3694 + $0x90] sm:$0xff]
        %v3714 = vld [vmem:[%s3694 + $0x98] sm:$0xff]
        %v3715 = vld [vmem:[%s3694 + $0xa0] sm:$0xff]
        %v3716 = vld [vmem:[%s3694 + $0xa8] sm:$0xff]
        %v3717 = vld [vmem:[%s3694 + $0xb0] sm:$0xff]
        %v3718 = vld [vmem:[%s3694 + $0xb8] sm:$0xff]
        %v3719 = vld [vmem:[%s3694 + $0xc0] sm:$0xff]
        %v3720 = vld [vmem:[%s3694 + $0xc8] sm:$0xff]
        %v3721 = vld [vmem:[%s3694 + $0xd0] sm:$0xff]
        %v3722 = vld [vmem:[%s3694 + $0xd8] sm:$0xff]
        %v3723 = vld [vmem:[%s3694 + $0xe0] sm:$0xff]
        %v3724 = vld [vmem:[%s3694 + $0xe8] sm:$0xff]
        %v3725 = vld [vmem:[%s3694 + $0xf0] sm:$0xff]
        %v3726 = vld [vmem:[%s3694 + $0xf8] sm:$0xff]
        %v3727 = vld [vmem:[%s3694 + $0x100] sm:$0xff]
        %v3728 = vld [vmem:[%s3694 + $0x108] sm:$0xff]
        %v3729 = vld [vmem:[%s3694 + $0x110] sm:$0xff]
        %v3730 = vld [vmem:[%s3694 + $0x118] sm:$0xff]
        %v3731 = vld [vmem:[%s3694 + $0x120] sm:$0xff]
        %v3732 = vld [vmem:[%s3694 + $0x128] sm:$0xff]
        %v3733 = vld [vmem:[%s3694 + $0x130] sm:$0xff]
        %v3734 = vld [vmem:[%s3694 + $0x138] sm:$0xff]
        %v3735 = vld [vmem:[%s3694 + $0x140] sm:$0xff]
        %v3736 = vld [vmem:[%s3694 + $0x148] sm:$0xff]
        %v3737 = vld [vmem:[%s3694 + $0x150] sm:$0xff]
        %v3738 = vld [vmem:[%s3694 + $0x158] sm:$0xff]
        %v3739 = vld [vmem:[%s3694 + $0x160] sm:$0xff]
        %v3740 = vld [vmem:[%s3694 + $0x168] sm:$0xff]
        %v3741 = vld [vmem:[%s3694 + $0x170] sm:$0xff]
        %v3742 = vld [vmem:[%s3694 + $0x178] sm:$0xff]
        %v3743 = vld [vmem:[%s3694 + $0x180] sm:$0xff]
        %v3744 = vld [vmem:[%s3694 + $0x188] sm:$0xff]
        %v3745 = vld [vmem:[%s3694 + $0x190] sm:$0xff]
        %v3746 = vld [vmem:[%s3694 + $0x198] sm:$0xff]
        %v3747 = vld [vmem:[%s3694 + $0x1a0] sm:$0xff]
        %v3748 = vld [vmem:[%s3694 + $0x1a8] sm:$0xff]
        %v3749 = vld [vmem:[%s3694 + $0x1b0] sm:$0xff]
        %v3750 = vld [vmem:[%s3694 + $0x1b8] sm:$0xff]
        %v3751 = vld [vmem:[%s3694 + $0x1c0] sm:$0xff]
        %v3752 = vld [vmem:[%s3694 + $0x1c8] sm:$0xff]
        %v3753 = vld [vmem:[%s3694 + $0x1d0] sm:$0xff]
        %v3754 = vld [vmem:[%s3694 + $0x1d8] sm:$0xff]
        %v3755 = vld [vmem:[%s3694 + $0x1e0] sm:$0xff]
        %v3756 = vld [vmem:[%s3694 + $0x1e8] sm:$0xff]
        %v3757 = vld [vmem:[%s3694 + $0x1f0] sm:$0xff]
        %v3758 = vld [vmem:[%s3694 + $0x1f8] sm:$0xff]
        %v3759 = vld [vmem:[%s3694 + $0x200] sm:$0xff]
        %v3760 = vld [vmem:[%s3694 + $0x208] sm:$0xff]
        %v3761 = vld [vmem:[%s3694 + $0x210] sm:$0xff]
        %v3762 = vld [vmem:[%s3694 + $0x218] sm:$0xff]
        %v3763 = vld [vmem:[%s3694 + $0x220] sm:$0xff]
        %v3764 = vld [vmem:[%s3694 + $0x228] sm:$0xff]
        %v3765 = vld [vmem:[%s3694 + $0x230] sm:$0xff]
        %v3766 = vld [vmem:[%s3694 + $0x238] sm:$0xff]
        %v3767 = vld [vmem:[%s3694 + $0x240] sm:$0xff]
        %v3768 = vld [vmem:[%s3694 + $0x248] sm:$0xff]
        %v3769 = vld [vmem:[%s3694 + $0x250] sm:$0xff]
        %v3770 = vld [vmem:[%s3694 + $0x258] sm:$0xff]
        %v3771 = vld [vmem:[%s3694 + $0x260] sm:$0xff]
        %v3772 = vld [vmem:[%s3694 + $0x268] sm:$0xff]
        %v3773 = vld [vmem:[%s3694 + $0x270] sm:$0xff]
        %v3774 = vld [vmem:[%s3694 + $0x278] sm:$0xff]
        %v3775 = vld [vmem:[%s3694 + $0x280] sm:$0xff]
        %v3776 = vld [vmem:[%s3694 + $0x288] sm:$0xff]
        %v3777 = vld [vmem:[%s3694 + $0x290] sm:$0xff]
        %v3778 = vld [vmem:[%s3694 + $0x298] sm:$0xff]
        %v3779 = vld [vmem:[%s3694 + $0x2a0] sm:$0xff]
        %v3780 = vld [vmem:[%s3694 + $0x2a8] sm:$0xff]
        %v3781 = vld [vmem:[%s3694 + $0x2b0] sm:$0xff]
        %v3782 = vld [vmem:[%s3694 + $0x2b8] sm:$0xff]
        %v3783 = vld [vmem:[%s3694 + $0x2c0] sm:$0xff]
        %v3784 = vld [vmem:[%s3694 + $0x2c8] sm:$0xff]
        %v3785 = vld [vmem:[%s3694 + $0x2d0] sm:$0xff]
        %v3786 = vld [vmem:[%s3694 + $0x2d8] sm:$0xff]
        %v3787 = vld [vmem:[%s3694 + $0x2e0] sm:$0xff]
        %v3788 = vld [vmem:[%s3694 + $0x2e8] sm:$0xff]
        %v3789 = vld [vmem:[%s3694 + $0x2f0] sm:$0xff]
        %v3790 = vld [vmem:[%s3694 + $0x2f8] sm:$0xff]
        %s3791 = scalar_lea.vmem %s3, 6
        %v3792 = vld [vmem:[%s3791] sm:$0x3f]
        %v3794 = vlaneseq
        %v3795 = vshrl.u32 %v3794, 7
        %v3796 = vsub.s32 0, %v3795
        %v3797 = vrot.slane %v3792, %v3796
        %v3798 = vlaneseq
        %v3799 = vshrl.u32 %v3798, 7
        %v3800 = vsub.s32 1, %v3799
        %v3801 = vrot.slane %v3792, %v3800
        %v3802 = vlaneseq
        %v3803 = vshrl.u32 %v3802, 7
        %v3804 = vsub.s32 2, %v3803
        %v3805 = vrot.slane %v3792, %v3804
        %v3806 = vlaneseq
        %v3807 = vshrl.u32 %v3806, 7
        %v3808 = vsub.s32 3, %v3807
        %v3809 = vrot.slane %v3792, %v3808
        %v3810 = vlaneseq
        %v3811 = vshrl.u32 %v3810, 7
        %v3812 = vsub.s32 4, %v3811
        %v3813 = vrot.slane %v3792, %v3812
        %v3814 = vlaneseq
        %v3815 = vshrl.u32 %v3814, 7
        %v3816 = vsub.s32 5, %v3815
        %v3817 = vrot.slane %v3792, %v3816
        %v3920 = vunpack.c.l.b16 %v3695
        %v3921 = vunpack.c.h.b16 %v3695
        %v3922 = vunpack.c.l.b16 %v3696
        %v3923 = vunpack.c.h.b16 %v3696
        %v3924 = vunpack.c.l.b16 %v3697
        %v3925 = vunpack.c.h.b16 %v3697
        %v3926 = vunpack.c.l.b16 %v3698
        %v3927 = vunpack.c.h.b16 %v3698
        %v3928 = vunpack.c.l.b16 %v3699
        %v3929 = vunpack.c.h.b16 %v3699
        %v3930 = vunpack.c.l.b16 %v3700
        %v3931 = vunpack.c.h.b16 %v3700
        %v3932 = vunpack.c.l.b16 %v3701
        %v3933 = vunpack.c.h.b16 %v3701
        %v3934 = vunpack.c.l.b16 %v3702
        %v3935 = vunpack.c.h.b16 %v3702
        %v3936 = vunpack.c.l.b16 %v3703
        %v3937 = vunpack.c.h.b16 %v3703
        %v3938 = vunpack.c.l.b16 %v3704
        %v3939 = vunpack.c.h.b16 %v3704
        %v3940 = vunpack.c.l.b16 %v3705
        %v3941 = vunpack.c.h.b16 %v3705
        %v3942 = vunpack.c.l.b16 %v3706
        %v3943 = vunpack.c.h.b16 %v3706
        %v3944 = vunpack.c.l.b16 %v3707
        %v3945 = vunpack.c.h.b16 %v3707
        %v3946 = vunpack.c.l.b16 %v3708
        %v3947 = vunpack.c.h.b16 %v3708
        %v3948 = vunpack.c.l.b16 %v3709
        %v3949 = vunpack.c.h.b16 %v3709
        %v3950 = vunpack.c.l.b16 %v3710
        %v3951 = vunpack.c.h.b16 %v3710
        %v3952 = vunpack.c.l.b16 %v3711
        %v3953 = vunpack.c.h.b16 %v3711
        %v3954 = vunpack.c.l.b16 %v3712
        %v3955 = vunpack.c.h.b16 %v3712
        %v3956 = vunpack.c.l.b16 %v3713
        %v3957 = vunpack.c.h.b16 %v3713
        %v3958 = vunpack.c.l.b16 %v3714
        %v3959 = vunpack.c.h.b16 %v3714
        %v3960 = vunpack.c.l.b16 %v3715
        %v3961 = vunpack.c.h.b16 %v3715
        %v3962 = vunpack.c.l.b16 %v3716
        %v3963 = vunpack.c.h.b16 %v3716
        %v3964 = vunpack.c.l.b16 %v3717
        %v3965 = vunpack.c.h.b16 %v3717
        %v3966 = vunpack.c.l.b16 %v3718
        %v3967 = vunpack.c.h.b16 %v3718
        %v3968 = vunpack.c.l.b16 %v3719
        %v3969 = vunpack.c.h.b16 %v3719
        %v3970 = vunpack.c.l.b16 %v3720
        %v3971 = vunpack.c.h.b16 %v3720
        %v3972 = vunpack.c.l.b16 %v3721
        %v3973 = vunpack.c.h.b16 %v3721
        %v3974 = vunpack.c.l.b16 %v3722
        %v3975 = vunpack.c.h.b16 %v3722
        %v3976 = vunpack.c.l.b16 %v3723
        %v3977 = vunpack.c.h.b16 %v3723
        %v3978 = vunpack.c.l.b16 %v3724
        %v3979 = vunpack.c.h.b16 %v3724
        %v3980 = vunpack.c.l.b16 %v3725
        %v3981 = vunpack.c.h.b16 %v3725
        %v3982 = vunpack.c.l.b16 %v3726
        %v3983 = vunpack.c.h.b16 %v3726
        %v3984 = vunpack.c.l.b16 %v3727
        %v3985 = vunpack.c.h.b16 %v3727
        %v3986 = vunpack.c.l.b16 %v3728
        %v3987 = vunpack.c.h.b16 %v3728
        %v3988 = vunpack.c.l.b16 %v3729
        %v3989 = vunpack.c.h.b16 %v3729
        %v3990 = vunpack.c.l.b16 %v3730
        %v3991 = vunpack.c.h.b16 %v3730
        %v3992 = vunpack.c.l.b16 %v3731
        %v3993 = vunpack.c.h.b16 %v3731
        %v3994 = vunpack.c.l.b16 %v3732
        %v3995 = vunpack.c.h.b16 %v3732
        %v3996 = vunpack.c.l.b16 %v3733
        %v3997 = vunpack.c.h.b16 %v3733
        %v3998 = vunpack.c.l.b16 %v3734
        %v3999 = vunpack.c.h.b16 %v3734
        %v4000 = vunpack.c.l.b16 %v3735
        %v4001 = vunpack.c.h.b16 %v3735
        %v4002 = vunpack.c.l.b16 %v3736
        %v4003 = vunpack.c.h.b16 %v3736
        %v4004 = vunpack.c.l.b16 %v3737
        %v4005 = vunpack.c.h.b16 %v3737
        %v4006 = vunpack.c.l.b16 %v3738
        %v4007 = vunpack.c.h.b16 %v3738
        %v4008 = vunpack.c.l.b16 %v3739
        %v4009 = vunpack.c.h.b16 %v3739
        %v4010 = vunpack.c.l.b16 %v3740
        %v4011 = vunpack.c.h.b16 %v3740
        %v4012 = vunpack.c.l.b16 %v3741
        %v4013 = vunpack.c.h.b16 %v3741
        %v4014 = vunpack.c.l.b16 %v3742
        %v4015 = vunpack.c.h.b16 %v3742
        %v4016 = vunpack.c.l.b16 %v3743
        %v4017 = vunpack.c.h.b16 %v3743
        %v4018 = vunpack.c.l.b16 %v3744
        %v4019 = vunpack.c.h.b16 %v3744
        %v4020 = vunpack.c.l.b16 %v3745
        %v4021 = vunpack.c.h.b16 %v3745
        %v4022 = vunpack.c.l.b16 %v3746
        %v4023 = vunpack.c.h.b16 %v3746
        %v4024 = vunpack.c.l.b16 %v3747
        %v4025 = vunpack.c.h.b16 %v3747
        %v4026 = vunpack.c.l.b16 %v3748
        %v4027 = vunpack.c.h.b16 %v3748
        %v4028 = vunpack.c.l.b16 %v3749
        %v4029 = vunpack.c.h.b16 %v3749
        %v4030 = vunpack.c.l.b16 %v3750
        %v4031 = vunpack.c.h.b16 %v3750
        %v4032 = vunpack.c.l.b16 %v3751
        %v4033 = vunpack.c.h.b16 %v3751
        %v4034 = vunpack.c.l.b16 %v3752
        %v4035 = vunpack.c.h.b16 %v3752
        %v4036 = vunpack.c.l.b16 %v3753
        %v4037 = vunpack.c.h.b16 %v3753
        %v4038 = vunpack.c.l.b16 %v3754
        %v4039 = vunpack.c.h.b16 %v3754
        %v4040 = vunpack.c.l.b16 %v3755
        %v4041 = vunpack.c.h.b16 %v3755
        %v4042 = vunpack.c.l.b16 %v3756
        %v4043 = vunpack.c.h.b16 %v3756
        %v4044 = vunpack.c.l.b16 %v3757
        %v4045 = vunpack.c.h.b16 %v3757
        %v4046 = vunpack.c.l.b16 %v3758
        %v4047 = vunpack.c.h.b16 %v3758
        %v4048 = vunpack.c.l.b16 %v3759
        %v4049 = vunpack.c.h.b16 %v3759
        %v4050 = vunpack.c.l.b16 %v3760
        %v4051 = vunpack.c.h.b16 %v3760
        %v4052 = vunpack.c.l.b16 %v3761
        %v4053 = vunpack.c.h.b16 %v3761
        %v4054 = vunpack.c.l.b16 %v3762
        %v4055 = vunpack.c.h.b16 %v3762
        %v4056 = vunpack.c.l.b16 %v3763
        %v4057 = vunpack.c.h.b16 %v3763
        %v4058 = vunpack.c.l.b16 %v3764
        %v4059 = vunpack.c.h.b16 %v3764
        %v4060 = vunpack.c.l.b16 %v3765
        %v4061 = vunpack.c.h.b16 %v3765
        %v4062 = vunpack.c.l.b16 %v3766
        %v4063 = vunpack.c.h.b16 %v3766
        %v4064 = vunpack.c.l.b16 %v3767
        %v4065 = vunpack.c.h.b16 %v3767
        %v4066 = vunpack.c.l.b16 %v3768
        %v4067 = vunpack.c.h.b16 %v3768
        %v4068 = vunpack.c.l.b16 %v3769
        %v4069 = vunpack.c.h.b16 %v3769
        %v4070 = vunpack.c.l.b16 %v3770
        %v4071 = vunpack.c.h.b16 %v3770
        %v4072 = vunpack.c.l.b16 %v3771
        %v4073 = vunpack.c.h.b16 %v3771
        %v4074 = vunpack.c.l.b16 %v3772
        %v4075 = vunpack.c.h.b16 %v3772
        %v4076 = vunpack.c.l.b16 %v3773
        %v4077 = vunpack.c.h.b16 %v3773
        %v4078 = vunpack.c.l.b16 %v3774
        %v4079 = vunpack.c.h.b16 %v3774
        %v4080 = vunpack.c.l.b16 %v3775
        %v4081 = vunpack.c.h.b16 %v3775
        %v4082 = vunpack.c.l.b16 %v3776
        %v4083 = vunpack.c.h.b16 %v3776
        %v4084 = vunpack.c.l.b16 %v3777
        %v4085 = vunpack.c.h.b16 %v3777
        %v4086 = vunpack.c.l.b16 %v3778
        %v4087 = vunpack.c.h.b16 %v3778
        %v4088 = vunpack.c.l.b16 %v3779
        %v4089 = vunpack.c.h.b16 %v3779
        %v4090 = vunpack.c.l.b16 %v3780
        %v4091 = vunpack.c.h.b16 %v3780
        %v4092 = vunpack.c.l.b16 %v3781
        %v4093 = vunpack.c.h.b16 %v3781
        %v4094 = vunpack.c.l.b16 %v3782
        %v4095 = vunpack.c.h.b16 %v3782
        %v4096 = vunpack.c.l.b16 %v3783
        %v4097 = vunpack.c.h.b16 %v3783
        %v4098 = vunpack.c.l.b16 %v3784
        %v4099 = vunpack.c.h.b16 %v3784
        %v4100 = vunpack.c.l.b16 %v3785
        %v4101 = vunpack.c.h.b16 %v3785
        %v4102 = vunpack.c.l.b16 %v3786
        %v4103 = vunpack.c.h.b16 %v3786
        %v4104 = vunpack.c.l.b16 %v3787
        %v4105 = vunpack.c.h.b16 %v3787
        %v4106 = vunpack.c.l.b16 %v3788
        %v4107 = vunpack.c.h.b16 %v3788
        %v4108 = vunpack.c.l.b16 %v3789
        %v4109 = vunpack.c.h.b16 %v3789
        %v4110 = vunpack.c.l.b16 %v3790
        %v4111 = vunpack.c.h.b16 %v3790
        %v4112 = vpack.c.b16 %v3926, %v3920
        %v4113 = vpack.c.b16 %v3927, %v3921
        %v4114 = vpack.c.b16 %v3928, %v3922
        %v4115 = vpack.c.b16 %v3929, %v3923
        %v4116 = vpack.c.b16 %v3930, %v3924
        %v4117 = vpack.c.b16 %v3931, %v3925
        %v4118 = vpack.c.b16 %v3938, %v3932
        %v4119 = vpack.c.b16 %v3939, %v3933
        %v4120 = vpack.c.b16 %v3940, %v3934
        %v4121 = vpack.c.b16 %v3941, %v3935
        %v4122 = vpack.c.b16 %v3942, %v3936
        %v4123 = vpack.c.b16 %v3943, %v3937
        %v4124 = vpack.c.b16 %v3950, %v3944
        %v4125 = vpack.c.b16 %v3951, %v3945
        %v4126 = vpack.c.b16 %v3952, %v3946
        %v4127 = vpack.c.b16 %v3953, %v3947
        %v4128 = vpack.c.b16 %v3954, %v3948
        %v4129 = vpack.c.b16 %v3955, %v3949
        %v4130 = vpack.c.b16 %v3962, %v3956
        %v4131 = vpack.c.b16 %v3963, %v3957
        %v4132 = vpack.c.b16 %v3964, %v3958
        %v4133 = vpack.c.b16 %v3965, %v3959
        %v4134 = vpack.c.b16 %v3966, %v3960
        %v4135 = vpack.c.b16 %v3967, %v3961
        %v4136 = vpack.c.b16 %v3974, %v3968
        %v4137 = vpack.c.b16 %v3975, %v3969
        %v4138 = vpack.c.b16 %v3976, %v3970
        %v4139 = vpack.c.b16 %v3977, %v3971
        %v4140 = vpack.c.b16 %v3978, %v3972
        %v4141 = vpack.c.b16 %v3979, %v3973
        %v4142 = vpack.c.b16 %v3986, %v3980
        %v4143 = vpack.c.b16 %v3987, %v3981
        %v4144 = vpack.c.b16 %v3988, %v3982
        %v4145 = vpack.c.b16 %v3989, %v3983
        %v4146 = vpack.c.b16 %v3990, %v3984
        %v4147 = vpack.c.b16 %v3991, %v3985
        %v4148 = vpack.c.b16 %v3998, %v3992
        %v4149 = vpack.c.b16 %v3999, %v3993
        %v4150 = vpack.c.b16 %v4000, %v3994
        %v4151 = vpack.c.b16 %v4001, %v3995
        %v4152 = vpack.c.b16 %v4002, %v3996
        %v4153 = vpack.c.b16 %v4003, %v3997
        %v4154 = vpack.c.b16 %v4010, %v4004
        %v4155 = vpack.c.b16 %v4011, %v4005
        %v4156 = vpack.c.b16 %v4012, %v4006
        %v4157 = vpack.c.b16 %v4013, %v4007
        %v4158 = vpack.c.b16 %v4014, %v4008
        %v4159 = vpack.c.b16 %v4015, %v4009
        %v4160 = vpack.c.b16 %v4022, %v4016
        %v4161 = vpack.c.b16 %v4023, %v4017
        %v4162 = vpack.c.b16 %v4024, %v4018
        %v4163 = vpack.c.b16 %v4025, %v4019
        %v4164 = vpack.c.b16 %v4026, %v4020
        %v4165 = vpack.c.b16 %v4027, %v4021
        %v4166 = vpack.c.b16 %v4034, %v4028
        %v4167 = vpack.c.b16 %v4035, %v4029
        %v4168 = vpack.c.b16 %v4036, %v4030
        %v4169 = vpack.c.b16 %v4037, %v4031
        %v4170 = vpack.c.b16 %v4038, %v4032
        %v4171 = vpack.c.b16 %v4039, %v4033
        %v4172 = vpack.c.b16 %v4046, %v4040
        %v4173 = vpack.c.b16 %v4047, %v4041
        %v4174 = vpack.c.b16 %v4048, %v4042
        %v4175 = vpack.c.b16 %v4049, %v4043
        %v4176 = vpack.c.b16 %v4050, %v4044
        %v4177 = vpack.c.b16 %v4051, %v4045
        %v4178 = vpack.c.b16 %v4058, %v4052
        %v4179 = vpack.c.b16 %v4059, %v4053
        %v4180 = vpack.c.b16 %v4060, %v4054
        %v4181 = vpack.c.b16 %v4061, %v4055
        %v4182 = vpack.c.b16 %v4062, %v4056
        %v4183 = vpack.c.b16 %v4063, %v4057
        %v4184 = vpack.c.b16 %v4070, %v4064
        %v4185 = vpack.c.b16 %v4071, %v4065
        %v4186 = vpack.c.b16 %v4072, %v4066
        %v4187 = vpack.c.b16 %v4073, %v4067
        %v4188 = vpack.c.b16 %v4074, %v4068
        %v4189 = vpack.c.b16 %v4075, %v4069
        %v4190 = vpack.c.b16 %v4082, %v4076
        %v4191 = vpack.c.b16 %v4083, %v4077
        %v4192 = vpack.c.b16 %v4084, %v4078
        %v4193 = vpack.c.b16 %v4085, %v4079
        %v4194 = vpack.c.b16 %v4086, %v4080
        %v4195 = vpack.c.b16 %v4087, %v4081
        %v4196 = vpack.c.b16 %v4094, %v4088
        %v4197 = vpack.c.b16 %v4095, %v4089
        %v4198 = vpack.c.b16 %v4096, %v4090
        %v4199 = vpack.c.b16 %v4097, %v4091
        %v4200 = vpack.c.b16 %v4098, %v4092
        %v4201 = vpack.c.b16 %v4099, %v4093
        %v4202 = vpack.c.b16 %v4106, %v4100
        %v4203 = vpack.c.b16 %v4107, %v4101
        %v4204 = vpack.c.b16 %v4108, %v4102
        %v4205 = vpack.c.b16 %v4109, %v4103
        %v4206 = vpack.c.b16 %v4110, %v4104
        %v4207 = vpack.c.b16 %v4111, %v4105
        %4304 = vmatprep.subr.bf16.mxu0 %v4155
        %4305 = vmatpush1.bf16.msra.mxu0 %v4154
        %4306 = vmatprep.subr.bf16.mxu0 %v4149
        %4307 = vmatpush1.bf16.msra.mxu0 %v4148
        %4308 = vmatprep.subr.bf16.mxu0 %v4143
        %4309 = vmatpush1.bf16.msra.mxu0 %v4142
        %4310 = vmatprep.subr.bf16.mxu0 %v4137
        %4311 = vmatpush1.bf16.msra.mxu0 %v4136
        %4312 = vmatprep.subr.bf16.mxu0 %v4131
        %4313 = vmatpush1.bf16.msra.mxu0 %v4130
        %4314 = vmatprep.subr.bf16.mxu0 %v4125
        %4315 = vmatpush1.bf16.msra.mxu0 %v4124
        %4316 = vmatprep.subr.bf16.mxu0 %v4119
        %4317 = vmatpush1.bf16.msra.mxu0 %v4118
        %4318 = vmatprep.subr.bf16.mxu0 %v4113
        %4319 = vmatpush1.bf16.msra.mxu0 %v4112
        %4320 = vmatprep.subr.bf16.mxu0 %v4203
        %4321 = vmatpush2.bf16.msra.mxu0 %v4202
        %4322 = vmatprep.subr.bf16.mxu0 %v4197
        %4323 = vmatpush2.bf16.msra.mxu0 %v4196
        %4324 = vmatprep.subr.bf16.mxu0 %v4191
        %4325 = vmatpush2.bf16.msra.mxu0 %v4190
        %4326 = vmatprep.subr.bf16.mxu0 %v4185
        %4327 = vmatpush2.bf16.msra.mxu0 %v4184
        %4328 = vmatprep.subr.bf16.mxu0 %v4179
        %4329 = vmatpush2.bf16.msra.mxu0 %v4178
        %4330 = vmatprep.subr.bf16.mxu0 %v4173
        %4331 = vmatpush2.bf16.msra.mxu0 %v4172
        %4332 = vmatprep.subr.bf16.mxu0 %v4167
        %4333 = vmatpush2.bf16.msra.mxu0 %v4166
        %4334 = vmatprep.subr.bf16.mxu0 %v4161
        %4335 = vmatpush2.bf16.msra.mxu0 %v4160
        %4336 = vmatprep.mubr.bf16.mxu0 %v3693
        %4337 = vmatmul.mubr.bf16.gmra.mxu0 %v3692
        %v4338 = vpop.f32.mrf.mxu0
        %v4339 = vadd.f32 %v3797, %v4338
        %v4340 = vpop.f32.mrf.mxu0
        %v4341 = vadd.f32 %v3801, %v4340
        %v4342 = vpop.f32.mrf.mxu0
        %v4343 = vadd.f32 %v3797, %v4342
        %v4344 = vpop.f32.mrf.mxu0
        %v4345 = vadd.f32 %v3801, %v4344
        %4346 = vdwg.mxu0
        %4347 = vmatprep.subr.bf16.mxu0 %v4157
        %4348 = vmatpush1.bf16.msra.mxu0 %v4156
        %4349 = vmatprep.subr.bf16.mxu0 %v4151
        %4350 = vmatpush1.bf16.msra.mxu0 %v4150
        %4351 = vmatprep.subr.bf16.mxu0 %v4145
        %4352 = vmatpush1.bf16.msra.mxu0 %v4144
        %4353 = vmatprep.subr.bf16.mxu0 %v4139
        %4354 = vmatpush1.bf16.msra.mxu0 %v4138
        %4355 = vmatprep.subr.bf16.mxu0 %v4133
        %4356 = vmatpush1.bf16.msra.mxu0 %v4132
        %4357 = vmatprep.subr.bf16.mxu0 %v4127
        %4358 = vmatpush1.bf16.msra.mxu0 %v4126
        %4359 = vmatprep.subr.bf16.mxu0 %v4121
        %4360 = vmatpush1.bf16.msra.mxu0 %v4120
        %4361 = vmatprep.subr.bf16.mxu0 %v4115
        %4362 = vmatpush1.bf16.msra.mxu0 %v4114
        %4363 = vmatprep.subr.bf16.mxu0 %v4205
        %4364 = vmatpush2.bf16.msra.mxu0 %v4204
        %4365 = vmatprep.subr.bf16.mxu0 %v4199
        %4366 = vmatpush2.bf16.msra.mxu0 %v4198
        %4367 = vmatprep.subr.bf16.mxu0 %v4193
        %4368 = vmatpush2.bf16.msra.mxu0 %v4192
        %4369 = vmatprep.subr.bf16.mxu0 %v4187
        %4370 = vmatpush2.bf16.msra.mxu0 %v4186
        %4371 = vmatprep.subr.bf16.mxu0 %v4181
        %4372 = vmatpush2.bf16.msra.mxu0 %v4180
        %4373 = vmatprep.subr.bf16.mxu0 %v4175
        %4374 = vmatpush2.bf16.msra.mxu0 %v4174
        %4375 = vmatprep.subr.bf16.mxu0 %v4169
        %4376 = vmatpush2.bf16.msra.mxu0 %v4168
        %4377 = vmatprep.subr.bf16.mxu0 %v4163
        %4378 = vmatpush2.bf16.msra.mxu0 %v4162
        %4379 = vmatprep.mubr.bf16.mxu0 %v3693
        %4380 = vmatmul.mubr.bf16.gmra.mxu0 %v3692
        %v4381 = vpop.f32.mrf.mxu0
        %v4382 = vadd.f32 %v3805, %v4381
        %v4383 = vpop.f32.mrf.mxu0
        %v4384 = vadd.f32 %v3809, %v4383
        %v4385 = vpop.f32.mrf.mxu0
        %v4386 = vadd.f32 %v3805, %v4385
        %v4387 = vpop.f32.mrf.mxu0
        %v4388 = vadd.f32 %v3809, %v4387
        %4389 = vdwg.mxu0
        %4390 = vmatprep.subr.bf16.mxu0 %v4159
        %4391 = vmatpush1.bf16.msra.mxu0 %v4158
        %4392 = vmatprep.subr.bf16.mxu0 %v4153
        %4393 = vmatpush1.bf16.msra.mxu0 %v4152
        %4394 = vmatprep.subr.bf16.mxu0 %v4147
        %4395 = vmatpush1.bf16.msra.mxu0 %v4146
        %4396 = vmatprep.subr.bf16.mxu0 %v4141
        %4397 = vmatpush1.bf16.msra.mxu0 %v4140
        %4398 = vmatprep.subr.bf16.mxu0 %v4135
        %4399 = vmatpush1.bf16.msra.mxu0 %v4134
        %4400 = vmatprep.subr.bf16.mxu0 %v4129
        %4401 = vmatpush1.bf16.msra.mxu0 %v4128
        %4402 = vmatprep.subr.bf16.mxu0 %v4123
        %4403 = vmatpush1.bf16.msra.mxu0 %v4122
        %4404 = vmatprep.subr.bf16.mxu0 %v4117
        %4405 = vmatpush1.bf16.msra.mxu0 %v4116
        %4406 = vmatprep.subr.bf16.mxu0 %v4207
        %4407 = vmatpush2.bf16.msra.mxu0 %v4206
        %4408 = vmatprep.subr.bf16.mxu0 %v4201
        %4409 = vmatpush2.bf16.msra.mxu0 %v4200
        %4410 = vmatprep.subr.bf16.mxu0 %v4195
        %4411 = vmatpush2.bf16.msra.mxu0 %v4194
        %4412 = vmatprep.subr.bf16.mxu0 %v4189
        %4413 = vmatpush2.bf16.msra.mxu0 %v4188
        %4414 = vmatprep.subr.bf16.mxu0 %v4183
        %4415 = vmatpush2.bf16.msra.mxu0 %v4182
        %4416 = vmatprep.subr.bf16.mxu0 %v4177
        %4417 = vmatpush2.bf16.msra.mxu0 %v4176
        %4418 = vmatprep.subr.bf16.mxu0 %v4171
        %4419 = vmatpush2.bf16.msra.mxu0 %v4170
        %4420 = vmatprep.subr.bf16.mxu0 %v4165
        %4421 = vmatpush2.bf16.msra.mxu0 %v4164
        %4422 = vmatprep.mubr.bf16.mxu0 %v3693
        %4423 = vmatmul.mubr.bf16.gmra.mxu0 %v3692
        %v4424 = vpop.f32.mrf.mxu0
        %v4425 = vadd.f32 %v3813, %v4424
        %v4426 = vpop.f32.mrf.mxu0
        %v4427 = vadd.f32 %v3817, %v4426
        %v4428 = vpop.f32.mrf.mxu0
        %v4429 = vadd.f32 %v3813, %v4428
        %v4430 = vpop.f32.mrf.mxu0
        %v4431 = vadd.f32 %v3817, %v4430
        %4432 = vdwg.mxu0
        %v4433 = vmul.f32 %v4339, 0.17677669
        %v4434 = vmul.f32 %v4343, 0.17677669
        %v4435 = vpack.c.bf16 %v4434, %v4433
        %v4436 = vpack.c.bf16 %v4386, %v4382
        %v4437 = vpack.c.bf16 %v4429, %v4425
        %v4439 = vsel %vm1280, %v4435, 0
        %v4442 = vsel %vm1280, %v4436, 0
        %4444 = vmatprep.subr.bf16.mxu0 0
        %4445 = vmatpush1.bf16.xpose.msra.mxu0 0
        %4446 = vmatprep.subr.bf16.mxu0 0
        %4447 = vmatpush1.bf16.xpose.msra.mxu0 0
        %4448 = vmatprep.subr.bf16.mxu0 0
        %4449 = vmatpush1.bf16.xpose.msra.mxu0 0
        %4450 = vmatprep.subr.bf16.mxu0 0
        %4451 = vmatpush1.bf16.xpose.msra.mxu0 0
        %4452 = vmatprep.subr.bf16.mxu0 0
        %4453 = vmatpush1.bf16.xpose.msra.mxu0 0
        %4454 = vmatprep.subr.bf16.mxu0 0
        %4455 = vmatpush1.bf16.xpose.msra.mxu0 0
        %4456 = vmatprep.subr.bf16.mxu0 0
        %4457 = vmatpush1.bf16.xpose.msra.mxu0 0
        %4458 = vmatprep.subr.bf16.mxu0 0
        %4459 = vmatpush1.bf16.xpose.msra.mxu0 %v4442
        %4460 = vmatprep.subr.bf16.mxu0 0
        %4461 = vmatpush2.bf16.xpose.msra.mxu0 0
        %4462 = vmatprep.subr.bf16.mxu0 0
        %4463 = vmatpush2.bf16.xpose.msra.mxu0 0
        %4464 = vmatprep.subr.bf16.mxu0 0
        %4465 = vmatpush2.bf16.xpose.msra.mxu0 0
        %4466 = vmatprep.subr.bf16.mxu0 0
        %4467 = vmatpush2.bf16.xpose.msra.mxu0 0
        %4468 = vmatprep.subr.bf16.mxu0 0
        %4469 = vmatpush2.bf16.xpose.msra.mxu0 0
        %4470 = vmatprep.subr.bf16.mxu0 0
        %4471 = vmatpush2.bf16.xpose.msra.mxu0 0
        %4472 = vmatprep.subr.bf16.mxu0 0
        %4473 = vmatpush2.bf16.xpose.msra.mxu0 0
        %4474 = vmatprep.subr.bf16.mxu0 0
        %4475 = vmatpush2.bf16.xpose.msra.mxu0 0
        %4476 = vmatprep.mubr.bf16.mxu0 0
        %4477 = vmatmul.mubr.bf16.gmra.mxu0 %v4439
        %v4478 = vpop.f32.mrf.mxu0
        %v4479 = vadd.f32 %v1278, %v4478
        %v4480 = vpop.f32.mrf.mxu0
        %v4481 = vpop.f32.mrf.mxu0
        %v4482 = vadd.f32 %v1278, %v4481
        %v4483 = vpop.f32.mrf.mxu0
        %4484 = vdwg.mxu0
        %v4485 = vsel %vm1328, %v4479, -inf
        %4486 = vmax.xlane.f32.xlu0 %v4485
        %v4487 = vpop.xlane.xlu0 %4486
        %v4488 = vsel %vm1328, %v4482, -inf
        %4489 = vmax.xlane.f32.xlu0 %v4488
        %v4490 = vpop.xlane.xlu0 %4489
        %v4491 = vsub.f32 %v4479, %v4487
        %v4492 = vsub.f32 %v4482, %v4490
        %v4493 = vmul.f32 %v4491, 1.442695
        %v4494 = vpow.pop %v4493
        %v4495 = vmul.f32 %v4492, 1.442695
        %v4496 = vpow.pop %v4495
        %v4497 = vsel %vm1328, %v4494, 0.0
        %4498 = vadd.xlane.f32.xlu0 %v4497
        %v4499 = vpop.xlane.xlu0 %4498
        %v4500 = vsel %vm1328, %v4496, 0.0
        %4501 = vadd.xlane.f32.xlu0 %v4500
        %v4502 = vpop.xlane.xlu0 %4501
        %v4503 = vrcp.pop %v4499
        %v4504 = vrcp.pop %v4502
        %v4505 = vmul.f32 %v4494, %v4503
        %v4506 = vmul.f32 %v4496, %v4504
        %v4507 = vpack.c.bf16 %v4506, %v4505
        %v4509 = vsel %vm1328, %v4507, 0
        %4511 = vmatprep.subr.bf16.mxu0 0
        %4512 = vmatpush1.bf16.msra.mxu0 0
        %4513 = vmatprep.subr.bf16.mxu0 0
        %4514 = vmatpush1.bf16.msra.mxu0 0
        %4515 = vmatprep.subr.bf16.mxu0 0
        %4516 = vmatpush1.bf16.msra.mxu0 0
        %4517 = vmatprep.subr.bf16.mxu0 0
        %4518 = vmatpush1.bf16.msra.mxu0 0
        %4519 = vmatprep.subr.bf16.mxu0 0
        %4520 = vmatpush1.bf16.msra.mxu0 0
        %4521 = vmatprep.subr.bf16.mxu0 0
        %4522 = vmatpush1.bf16.msra.mxu0 0
        %4523 = vmatprep.subr.bf16.mxu0 0
        %4524 = vmatpush1.bf16.msra.mxu0 0
        %4525 = vmatprep.subr.bf16.mxu0 0
        %4526 = vmatpush1.bf16.msra.mxu0 %v4437
        %4527 = vmatprep.subr.bf16.mxu0 0
        %4528 = vmatpush2.bf16.msra.mxu0 0
        %4529 = vmatprep.subr.bf16.mxu0 0
        %4530 = vmatpush2.bf16.msra.mxu0 0
        %4531 = vmatprep.subr.bf16.mxu0 0
        %4532 = vmatpush2.bf16.msra.mxu0 0
        %4533 = vmatprep.subr.bf16.mxu0 0
        %4534 = vmatpush2.bf16.msra.mxu0 0
        %4535 = vmatprep.subr.bf16.mxu0 0
        %4536 = vmatpush2.bf16.msra.mxu0 0
        %4537 = vmatprep.subr.bf16.mxu0 0
        %4538 = vmatpush2.bf16.msra.mxu0 0
        %4539 = vmatprep.subr.bf16.mxu0 0
        %4540 = vmatpush2.bf16.msra.mxu0 0
        %4541 = vmatprep.subr.bf16.mxu0 0
        %4542 = vmatpush2.bf16.msra.mxu0 0
        %4543 = vmatprep.mubr.bf16.mxu0 0
        %4544 = vmatmul.mubr.bf16.gmra.mxu0 %v4509
        %v4545 = vpop.f32.mrf.mxu0
        %v4546 = vadd.f32 0.0, %v4545
        %v4547 = vpop.f32.mrf.mxu0
        %v4548 = vpop.f32.mrf.mxu0
        %v4549 = vadd.f32 0.0, %v4548
        %v4550 = vpop.f32.mrf.mxu0
        %4551 = vdwg.mxu0
        %4552 = vst.msk [vmem:[#allocation2] sm:$0xff] %vm1280, %v4546
        %4553 = vst.msk [vmem:[#allocation2 + $0x10] sm:$0xff] %vm1280, %v4549
        %4555 = vrot.lane.b32.xlu0 %v4435, 96
        %v4556 = vpop.permute.xlu0 %4555
        %4558 = vrot.lane.b32.xlu0 %v4436, 96
        %v4559 = vpop.permute.xlu0 %4558
        %v4561 = vsel %vm1280, %v4556, 0
        %v4564 = vsel %vm1280, %v4559, 0
        %4566 = vmatprep.subr.bf16.mxu0 0
        %4567 = vmatpush1.bf16.xpose.msra.mxu0 0
        %4568 = vmatprep.subr.bf16.mxu0 0
        %4569 = vmatpush1.bf16.xpose.msra.mxu0 0
        %4570 = vmatprep.subr.bf16.mxu0 0
        %4571 = vmatpush1.bf16.xpose.msra.mxu0 0
        %4572 = vmatprep.subr.bf16.mxu0 0
        %4573 = vmatpush1.bf16.xpose.msra.mxu0 0
        %4574 = vmatprep.subr.bf16.mxu0 0
        %4575 = vmatpush1.bf16.xpose.msra.mxu0 0
        %4576 = vmatprep.subr.bf16.mxu0 0
        %4577 = vmatpush1.bf16.xpose.msra.mxu0 0
        %4578 = vmatprep.subr.bf16.mxu0 0
        %4579 = vmatpush1.bf16.xpose.msra.mxu0 0
        %4580 = vmatprep.subr.bf16.mxu0 0
        %4581 = vmatpush1.bf16.xpose.msra.mxu0 %v4564
        %4582 = vmatprep.subr.bf16.mxu0 0
        %4583 = vmatpush2.bf16.xpose.msra.mxu0 0
        %4584 = vmatprep.subr.bf16.mxu0 0
        %4585 = vmatpush2.bf16.xpose.msra.mxu0 0
        %4586 = vmatprep.subr.bf16.mxu0 0
        %4587 = vmatpush2.bf16.xpose.msra.mxu0 0
        %4588 = vmatprep.subr.bf16.mxu0 0
        %4589 = vmatpush2.bf16.xpose.msra.mxu0 0
        %4590 = vmatprep.subr.bf16.mxu0 0
        %4591 = vmatpush2.bf16.xpose.msra.mxu0 0
        %4592 = vmatprep.subr.bf16.mxu0 0
        %4593 = vmatpush2.bf16.xpose.msra.mxu0 0
        %4594 = vmatprep.subr.bf16.mxu0 0
        %4595 = vmatpush2.bf16.xpose.msra.mxu0 0
        %4596 = vmatprep.subr.bf16.mxu0 0
        %4597 = vmatpush2.bf16.xpose.msra.mxu0 0
        %4598 = vmatprep.mubr.bf16.mxu0 0
        %4599 = vmatmul.mubr.bf16.gmra.mxu0 %v4561
        %v4600 = vpop.f32.mrf.mxu0
        %v4601 = vadd.f32 %v1278, %v4600
        %v4602 = vpop.f32.mrf.mxu0
        %v4603 = vpop.f32.mrf.mxu0
        %v4604 = vadd.f32 %v1278, %v4603
        %v4605 = vpop.f32.mrf.mxu0
        %4606 = vdwg.mxu0
        %v4607 = vsel %vm1328, %v4601, -inf
        %4608 = vmax.xlane.f32.xlu0 %v4607
        %v4609 = vpop.xlane.xlu0 %4608
        %v4610 = vsel %vm1328, %v4604, -inf
        %4611 = vmax.xlane.f32.xlu0 %v4610
        %v4612 = vpop.xlane.xlu0 %4611
        %v4613 = vsub.f32 %v4601, %v4609
        %v4614 = vsub.f32 %v4604, %v4612
        %v4615 = vmul.f32 %v4613, 1.442695
        %v4616 = vpow.pop %v4615
        %v4617 = vmul.f32 %v4614, 1.442695
        %v4618 = vpow.pop %v4617
        %v4619 = vsel %vm1328, %v4616, 0.0
        %4620 = vadd.xlane.f32.xlu0 %v4619
        %v4621 = vpop.xlane.xlu0 %4620
        %v4622 = vsel %vm1328, %v4618, 0.0
        %4623 = vadd.xlane.f32.xlu0 %v4622
        %v4624 = vpop.xlane.xlu0 %4623
        %v4625 = vrcp.pop %v4621
        %v4626 = vrcp.pop %v4624
        %v4627 = vmul.f32 %v4616, %v4625
        %v4628 = vmul.f32 %v4618, %v4626
        %v4629 = vpack.c.bf16 %v4628, %v4627
        %4631 = vrot.lane.b32.xlu0 %v4437, 96
        %v4632 = vpop.permute.xlu0 %4631
        %v4635 = vsel %vm1328, %v4629, 0
        %4637 = vmatprep.subr.bf16.mxu0 0
        %4638 = vmatpush1.bf16.msra.mxu0 0
        %4639 = vmatprep.subr.bf16.mxu0 0
        %4640 = vmatpush1.bf16.msra.mxu0 0
        %4641 = vmatprep.subr.bf16.mxu0 0
        %4642 = vmatpush1.bf16.msra.mxu0 0
        %4643 = vmatprep.subr.bf16.mxu0 0
        %4644 = vmatpush1.bf16.msra.mxu0 0
        %4645 = vmatprep.subr.bf16.mxu0 0
        %4646 = vmatpush1.bf16.msra.mxu0 0
        %4647 = vmatprep.subr.bf16.mxu0 0
        %4648 = vmatpush1.bf16.msra.mxu0 0
        %4649 = vmatprep.subr.bf16.mxu0 0
        %4650 = vmatpush1.bf16.msra.mxu0 0
        %4651 = vmatprep.subr.bf16.mxu0 0
        %4652 = vmatpush1.bf16.msra.mxu0 %v4632
        %4653 = vmatprep.subr.bf16.mxu0 0
        %4654 = vmatpush2.bf16.msra.mxu0 0
        %4655 = vmatprep.subr.bf16.mxu0 0
        %4656 = vmatpush2.bf16.msra.mxu0 0
        %4657 = vmatprep.subr.bf16.mxu0 0
        %4658 = vmatpush2.bf16.msra.mxu0 0
        %4659 = vmatprep.subr.bf16.mxu0 0
        %4660 = vmatpush2.bf16.msra.mxu0 0
        %4661 = vmatprep.subr.bf16.mxu0 0
        %4662 = vmatpush2.bf16.msra.mxu0 0
        %4663 = vmatprep.subr.bf16.mxu0 0
        %4664 = vmatpush2.bf16.msra.mxu0 0
        %4665 = vmatprep.subr.bf16.mxu0 0
        %4666 = vmatpush2.bf16.msra.mxu0 0
        %4667 = vmatprep.subr.bf16.mxu0 0
        %4668 = vmatpush2.bf16.msra.mxu0 0
        %4669 = vmatprep.mubr.bf16.mxu0 0
        %4670 = vmatmul.mubr.bf16.gmra.mxu0 %v4635
        %v4671 = vpop.f32.mrf.mxu0
        %v4672 = vadd.f32 0.0, %v4671
        %v4673 = vpop.f32.mrf.mxu0
        %v4674 = vpop.f32.mrf.mxu0
        %v4675 = vadd.f32 0.0, %v4674
        %v4676 = vpop.f32.mrf.mxu0
        %4677 = vdwg.mxu0
        %4680 = vrot.lane.b32.xlu0 %v4672, 32
        %v4681 = vpop.permute.xlu0 %4680
        %4682 = vrot.lane.b32.xlu0 %v4675, 32
        %v4683 = vpop.permute.xlu0 %4682
        %4686 = vst.msk [vmem:[#allocation2] sm:$0xff] %vm1530, %v4681
        %4687 = vst.msk [vmem:[#allocation2 + $0x10] sm:$0xff] %vm1530, %v4683
        %4688 = vrot.lane.b32.xlu0 %v4435, 64
        %v4689 = vpop.permute.xlu0 %4688
        %4690 = vrot.lane.b32.xlu0 %v4436, 64
        %v4691 = vpop.permute.xlu0 %4690
        %v4693 = vsel %vm1280, %v4689, 0
        %v4696 = vsel %vm1280, %v4691, 0
        %4698 = vmatprep.subr.bf16.mxu0 0
        %4699 = vmatpush1.bf16.xpose.msra.mxu0 0
        %4700 = vmatprep.subr.bf16.mxu0 0
        %4701 = vmatpush1.bf16.xpose.msra.mxu0 0
        %4702 = vmatprep.subr.bf16.mxu0 0
        %4703 = vmatpush1.bf16.xpose.msra.mxu0 0
        %4704 = vmatprep.subr.bf16.mxu0 0
        %4705 = vmatpush1.bf16.xpose.msra.mxu0 0
        %4706 = vmatprep.subr.bf16.mxu0 0
        %4707 = vmatpush1.bf16.xpose.msra.mxu0 0
        %4708 = vmatprep.subr.bf16.mxu0 0
        %4709 = vmatpush1.bf16.xpose.msra.mxu0 0
        %4710 = vmatprep.subr.bf16.mxu0 0
        %4711 = vmatpush1.bf16.xpose.msra.mxu0 0
        %4712 = vmatprep.subr.bf16.mxu0 0
        %4713 = vmatpush1.bf16.xpose.msra.mxu0 %v4696
        %4714 = vmatprep.subr.bf16.mxu0 0
        %4715 = vmatpush2.bf16.xpose.msra.mxu0 0
        %4716 = vmatprep.subr.bf16.mxu0 0
        %4717 = vmatpush2.bf16.xpose.msra.mxu0 0
        %4718 = vmatprep.subr.bf16.mxu0 0
        %4719 = vmatpush2.bf16.xpose.msra.mxu0 0
        %4720 = vmatprep.subr.bf16.mxu0 0
        %4721 = vmatpush2.bf16.xpose.msra.mxu0 0
        %4722 = vmatprep.subr.bf16.mxu0 0
        %4723 = vmatpush2.bf16.xpose.msra.mxu0 0
        %4724 = vmatprep.subr.bf16.mxu0 0
        %4725 = vmatpush2.bf16.xpose.msra.mxu0 0
        %4726 = vmatprep.subr.bf16.mxu0 0
        %4727 = vmatpush2.bf16.xpose.msra.mxu0 0
        %4728 = vmatprep.subr.bf16.mxu0 0
        %4729 = vmatpush2.bf16.xpose.msra.mxu0 0
        %4730 = vmatprep.mubr.bf16.mxu0 0
        %4731 = vmatmul.mubr.bf16.gmra.mxu0 %v4693
        %v4732 = vpop.f32.mrf.mxu0
        %v4733 = vadd.f32 %v1278, %v4732
        %v4734 = vpop.f32.mrf.mxu0
        %v4735 = vpop.f32.mrf.mxu0
        %v4736 = vadd.f32 %v1278, %v4735
        %v4737 = vpop.f32.mrf.mxu0
        %4738 = vdwg.mxu0
        %v4739 = vsel %vm1328, %v4733, -inf
        %4740 = vmax.xlane.f32.xlu0 %v4739
        %v4741 = vpop.xlane.xlu0 %4740
        %v4742 = vsel %vm1328, %v4736, -inf
        %4743 = vmax.xlane.f32.xlu0 %v4742
        %v4744 = vpop.xlane.xlu0 %4743
        %v4745 = vsub.f32 %v4733, %v4741
        %v4746 = vsub.f32 %v4736, %v4744
        %v4747 = vmul.f32 %v4745, 1.442695
        %v4748 = vpow.pop %v4747
        %v4749 = vmul.f32 %v4746, 1.442695
        %v4750 = vpow.pop %v4749
        %v4751 = vsel %vm1328, %v4748, 0.0
        %4752 = vadd.xlane.f32.xlu0 %v4751
        %v4753 = vpop.xlane.xlu0 %4752
        %v4754 = vsel %vm1328, %v4750, 0.0
        %4755 = vadd.xlane.f32.xlu0 %v4754
        %v4756 = vpop.xlane.xlu0 %4755
        %v4757 = vrcp.pop %v4753
        %v4758 = vrcp.pop %v4756
        %v4759 = vmul.f32 %v4748, %v4757
        %v4760 = vmul.f32 %v4750, %v4758
        %v4761 = vpack.c.bf16 %v4760, %v4759
        %4762 = vrot.lane.b32.xlu0 %v4437, 64
        %v4763 = vpop.permute.xlu0 %4762
        %v4766 = vsel %vm1328, %v4761, 0
        %4768 = vmatprep.subr.bf16.mxu0 0
        %4769 = vmatpush1.bf16.msra.mxu0 0
        %4770 = vmatprep.subr.bf16.mxu0 0
        %4771 = vmatpush1.bf16.msra.mxu0 0
        %4772 = vmatprep.subr.bf16.mxu0 0
        %4773 = vmatpush1.bf16.msra.mxu0 0
        %4774 = vmatprep.subr.bf16.mxu0 0
        %4775 = vmatpush1.bf16.msra.mxu0 0
        %4776 = vmatprep.subr.bf16.mxu0 0
        %4777 = vmatpush1.bf16.msra.mxu0 0
        %4778 = vmatprep.subr.bf16.mxu0 0
        %4779 = vmatpush1.bf16.msra.mxu0 0
        %4780 = vmatprep.subr.bf16.mxu0 0
        %4781 = vmatpush1.bf16.msra.mxu0 0
        %4782 = vmatprep.subr.bf16.mxu0 0
        %4783 = vmatpush1.bf16.msra.mxu0 %v4763
        %4784 = vmatprep.subr.bf16.mxu0 0
        %4785 = vmatpush2.bf16.msra.mxu0 0
        %4786 = vmatprep.subr.bf16.mxu0 0
        %4787 = vmatpush2.bf16.msra.mxu0 0
        %4788 = vmatprep.subr.bf16.mxu0 0
        %4789 = vmatpush2.bf16.msra.mxu0 0
        %4790 = vmatprep.subr.bf16.mxu0 0
        %4791 = vmatpush2.bf16.msra.mxu0 0
        %4792 = vmatprep.subr.bf16.mxu0 0
        %4793 = vmatpush2.bf16.msra.mxu0 0
        %4794 = vmatprep.subr.bf16.mxu0 0
        %4795 = vmatpush2.bf16.msra.mxu0 0
        %4796 = vmatprep.subr.bf16.mxu0 0
        %4797 = vmatpush2.bf16.msra.mxu0 0
        %4798 = vmatprep.subr.bf16.mxu0 0
        %4799 = vmatpush2.bf16.msra.mxu0 0
        %4800 = vmatprep.mubr.bf16.mxu0 0
        %4801 = vmatmul.mubr.bf16.gmra.mxu0 %v4766
        %v4802 = vpop.f32.mrf.mxu0
        %v4803 = vadd.f32 0.0, %v4802
        %v4804 = vpop.f32.mrf.mxu0
        %v4805 = vpop.f32.mrf.mxu0
        %v4806 = vadd.f32 0.0, %v4805
        %v4807 = vpop.f32.mrf.mxu0
        %4808 = vdwg.mxu0
        %4811 = vrot.lane.b32.xlu0 %v4803, 64
        %v4812 = vpop.permute.xlu0 %4811
        %4813 = vrot.lane.b32.xlu0 %v4806, 64
        %v4814 = vpop.permute.xlu0 %4813
        %4817 = vst.msk [vmem:[#allocation2] sm:$0xff] %vm1662, %v4812
        %4818 = vst.msk [vmem:[#allocation2 + $0x10] sm:$0xff] %vm1662, %v4814
        %4819 = vrot.lane.b32.xlu0 %v4435, 32
        %v4820 = vpop.permute.xlu0 %4819
        %4821 = vrot.lane.b32.xlu0 %v4436, 32
        %v4822 = vpop.permute.xlu0 %4821
        %v4824 = vsel %vm1280, %v4820, 0
        %v4827 = vsel %vm1280, %v4822, 0
        %4829 = vmatprep.subr.bf16.mxu0 0
        %4830 = vmatpush1.bf16.xpose.msra.mxu0 0
        %4831 = vmatprep.subr.bf16.mxu0 0
        %4832 = vmatpush1.bf16.xpose.msra.mxu0 0
        %4833 = vmatprep.subr.bf16.mxu0 0
        %4834 = vmatpush1.bf16.xpose.msra.mxu0 0
        %4835 = vmatprep.subr.bf16.mxu0 0
        %4836 = vmatpush1.bf16.xpose.msra.mxu0 0
        %4837 = vmatprep.subr.bf16.mxu0 0
        %4838 = vmatpush1.bf16.xpose.msra.mxu0 0
        %4839 = vmatprep.subr.bf16.mxu0 0
        %4840 = vmatpush1.bf16.xpose.msra.mxu0 0
        %4841 = vmatprep.subr.bf16.mxu0 0
        %4842 = vmatpush1.bf16.xpose.msra.mxu0 0
        %4843 = vmatprep.subr.bf16.mxu0 0
        %4844 = vmatpush1.bf16.xpose.msra.mxu0 %v4827
        %4845 = vmatprep.subr.bf16.mxu0 0
        %4846 = vmatpush2.bf16.xpose.msra.mxu0 0
        %4847 = vmatprep.subr.bf16.mxu0 0
        %4848 = vmatpush2.bf16.xpose.msra.mxu0 0
        %4849 = vmatprep.subr.bf16.mxu0 0
        %4850 = vmatpush2.bf16.xpose.msra.mxu0 0
        %4851 = vmatprep.subr.bf16.mxu0 0
        %4852 = vmatpush2.bf16.xpose.msra.mxu0 0
        %4853 = vmatprep.subr.bf16.mxu0 0
        %4854 = vmatpush2.bf16.xpose.msra.mxu0 0
        %4855 = vmatprep.subr.bf16.mxu0 0
        %4856 = vmatpush2.bf16.xpose.msra.mxu0 0
        %4857 = vmatprep.subr.bf16.mxu0 0
        %4858 = vmatpush2.bf16.xpose.msra.mxu0 0
        %4859 = vmatprep.subr.bf16.mxu0 0
        %4860 = vmatpush2.bf16.xpose.msra.mxu0 0
        %4861 = vmatprep.mubr.bf16.mxu0 0
        %4862 = vmatmul.mubr.bf16.gmra.mxu0 %v4824
        %v4863 = vpop.f32.mrf.mxu0
        %v4864 = vadd.f32 %v1278, %v4863
        %v4865 = vpop.f32.mrf.mxu0
        %v4866 = vpop.f32.mrf.mxu0
        %v4867 = vadd.f32 %v1278, %v4866
        %v4868 = vpop.f32.mrf.mxu0
        %4869 = vdwg.mxu0
        %v4870 = vsel %vm1328, %v4864, -inf
        %4871 = vmax.xlane.f32.xlu0 %v4870
        %v4872 = vpop.xlane.xlu0 %4871
        %v4873 = vsel %vm1328, %v4867, -inf
        %4874 = vmax.xlane.f32.xlu0 %v4873
        %v4875 = vpop.xlane.xlu0 %4874
        %v4876 = vsub.f32 %v4864, %v4872
        %v4877 = vsub.f32 %v4867, %v4875
        %v4878 = vmul.f32 %v4876, 1.442695
        %v4879 = vpow.pop %v4878
        %v4880 = vmul.f32 %v4877, 1.442695
        %v4881 = vpow.pop %v4880
        %v4882 = vsel %vm1328, %v4879, 0.0
        %4883 = vadd.xlane.f32.xlu0 %v4882
        %v4884 = vpop.xlane.xlu0 %4883
        %v4885 = vsel %vm1328, %v4881, 0.0
        %4886 = vadd.xlane.f32.xlu0 %v4885
        %v4887 = vpop.xlane.xlu0 %4886
        %v4888 = vrcp.pop %v4884
        %v4889 = vrcp.pop %v4887
        %v4890 = vmul.f32 %v4879, %v4888
        %v4891 = vmul.f32 %v4881, %v4889
        %v4892 = vpack.c.bf16 %v4891, %v4890
        %4893 = vrot.lane.b32.xlu0 %v4437, 32
        %v4894 = vpop.permute.xlu0 %4893
        %v4897 = vsel %vm1328, %v4892, 0
        %4899 = vmatprep.subr.bf16.mxu0 0
        %4900 = vmatpush1.bf16.msra.mxu0 0
        %4901 = vmatprep.subr.bf16.mxu0 0
        %4902 = vmatpush1.bf16.msra.mxu0 0
        %4903 = vmatprep.subr.bf16.mxu0 0
        %4904 = vmatpush1.bf16.msra.mxu0 0
        %4905 = vmatprep.subr.bf16.mxu0 0
        %4906 = vmatpush1.bf16.msra.mxu0 0
        %4907 = vmatprep.subr.bf16.mxu0 0
        %4908 = vmatpush1.bf16.msra.mxu0 0
        %4909 = vmatprep.subr.bf16.mxu0 0
        %4910 = vmatpush1.bf16.msra.mxu0 0
        %4911 = vmatprep.subr.bf16.mxu0 0
        %4912 = vmatpush1.bf16.msra.mxu0 0
        %4913 = vmatprep.subr.bf16.mxu0 0
        %4914 = vmatpush1.bf16.msra.mxu0 %v4894
        %4915 = vmatprep.subr.bf16.mxu0 0
        %4916 = vmatpush2.bf16.msra.mxu0 0
        %4917 = vmatprep.subr.bf16.mxu0 0
        %4918 = vmatpush2.bf16.msra.mxu0 0
        %4919 = vmatprep.subr.bf16.mxu0 0
        %4920 = vmatpush2.bf16.msra.mxu0 0
        %4921 = vmatprep.subr.bf16.mxu0 0
        %4922 = vmatpush2.bf16.msra.mxu0 0
        %4923 = vmatprep.subr.bf16.mxu0 0
        %4924 = vmatpush2.bf16.msra.mxu0 0
        %4925 = vmatprep.subr.bf16.mxu0 0
        %4926 = vmatpush2.bf16.msra.mxu0 0
        %4927 = vmatprep.subr.bf16.mxu0 0
        %4928 = vmatpush2.bf16.msra.mxu0 0
        %4929 = vmatprep.subr.bf16.mxu0 0
        %4930 = vmatpush2.bf16.msra.mxu0 0
        %4931 = vmatprep.mubr.bf16.mxu0 0
        %4932 = vmatmul.mubr.bf16.gmra.mxu0 %v4897
        %v4933 = vpop.f32.mrf.mxu0
        %v4934 = vadd.f32 0.0, %v4933
        %v4935 = vpop.f32.mrf.mxu0
        %v4936 = vpop.f32.mrf.mxu0
        %v4937 = vadd.f32 0.0, %v4936
        %v4938 = vpop.f32.mrf.mxu0
        %4939 = vdwg.mxu0
        %4942 = vrot.lane.b32.xlu0 %v4934, 96
        %v4943 = vpop.permute.xlu0 %4942
        %4944 = vrot.lane.b32.xlu0 %v4937, 96
        %v4945 = vpop.permute.xlu0 %4944
        %4948 = vst.msk [vmem:[#allocation2] sm:$0xff] %vm1794, %v4943
        %4949 = vst.msk [vmem:[#allocation2 + $0x10] sm:$0xff] %vm1794, %v4945
        %v4950 = vmul.f32 %v4341, 0.17677669
        %v4951 = vmul.f32 %v4345, 0.17677669
        %v4952 = vpack.c.bf16 %v4951, %v4950
        %v4953 = vpack.c.bf16 %v4388, %v4384
        %v4954 = vpack.c.bf16 %v4431, %v4427
        %v4956 = vsel %vm1280, %v4952, 0
        %v4959 = vsel %vm1280, %v4953, 0
        %4961 = vmatprep.subr.bf16.mxu0 0
        %4962 = vmatpush1.bf16.xpose.msra.mxu0 0
        %4963 = vmatprep.subr.bf16.mxu0 0
        %4964 = vmatpush1.bf16.xpose.msra.mxu0 0
        %4965 = vmatprep.subr.bf16.mxu0 0
        %4966 = vmatpush1.bf16.xpose.msra.mxu0 0
        %4967 = vmatprep.subr.bf16.mxu0 0
        %4968 = vmatpush1.bf16.xpose.msra.mxu0 0
        %4969 = vmatprep.subr.bf16.mxu0 0
        %4970 = vmatpush1.bf16.xpose.msra.mxu0 0
        %4971 = vmatprep.subr.bf16.mxu0 0
        %4972 = vmatpush1.bf16.xpose.msra.mxu0 0
        %4973 = vmatprep.subr.bf16.mxu0 0
        %4974 = vmatpush1.bf16.xpose.msra.mxu0 0
        %4975 = vmatprep.subr.bf16.mxu0 0
        %4976 = vmatpush1.bf16.xpose.msra.mxu0 %v4959
        %4977 = vmatprep.subr.bf16.mxu0 0
        %4978 = vmatpush2.bf16.xpose.msra.mxu0 0
        %4979 = vmatprep.subr.bf16.mxu0 0
        %4980 = vmatpush2.bf16.xpose.msra.mxu0 0
        %4981 = vmatprep.subr.bf16.mxu0 0
        %4982 = vmatpush2.bf16.xpose.msra.mxu0 0
        %4983 = vmatprep.subr.bf16.mxu0 0
        %4984 = vmatpush2.bf16.xpose.msra.mxu0 0
        %4985 = vmatprep.subr.bf16.mxu0 0
        %4986 = vmatpush2.bf16.xpose.msra.mxu0 0
        %4987 = vmatprep.subr.bf16.mxu0 0
        %4988 = vmatpush2.bf16.xpose.msra.mxu0 0
        %4989 = vmatprep.subr.bf16.mxu0 0
        %4990 = vmatpush2.bf16.xpose.msra.mxu0 0
        %4991 = vmatprep.subr.bf16.mxu0 0
        %4992 = vmatpush2.bf16.xpose.msra.mxu0 0
        %4993 = vmatprep.mubr.bf16.mxu0 0
        %4994 = vmatmul.mubr.bf16.gmra.mxu0 %v4956
        %v4995 = vpop.f32.mrf.mxu0
        %v4996 = vadd.f32 %v1278, %v4995
        %v4997 = vpop.f32.mrf.mxu0
        %v4998 = vpop.f32.mrf.mxu0
        %v4999 = vadd.f32 %v1278, %v4998
        %v5000 = vpop.f32.mrf.mxu0
        %5001 = vdwg.mxu0
        %v5002 = vsel %vm1328, %v4996, -inf
        %5003 = vmax.xlane.f32.xlu0 %v5002
        %v5004 = vpop.xlane.xlu0 %5003
        %v5005 = vsel %vm1328, %v4999, -inf
        %5006 = vmax.xlane.f32.xlu0 %v5005
        %v5007 = vpop.xlane.xlu0 %5006
        %v5008 = vsub.f32 %v4996, %v5004
        %v5009 = vsub.f32 %v4999, %v5007
        %v5010 = vmul.f32 %v5008, 1.442695
        %v5011 = vpow.pop %v5010
        %v5012 = vmul.f32 %v5009, 1.442695
        %v5013 = vpow.pop %v5012
        %v5014 = vsel %vm1328, %v5011, 0.0
        %5015 = vadd.xlane.f32.xlu0 %v5014
        %v5016 = vpop.xlane.xlu0 %5015
        %v5017 = vsel %vm1328, %v5013, 0.0
        %5018 = vadd.xlane.f32.xlu0 %v5017
        %v5019 = vpop.xlane.xlu0 %5018
        %v5020 = vrcp.pop %v5016
        %v5021 = vrcp.pop %v5019
        %v5022 = vmul.f32 %v5011, %v5020
        %v5023 = vmul.f32 %v5013, %v5021
        %v5024 = vpack.c.bf16 %v5023, %v5022
        %v5026 = vsel %vm1328, %v5024, 0
        %5028 = vmatprep.subr.bf16.mxu0 0
        %5029 = vmatpush1.bf16.msra.mxu0 0
        %5030 = vmatprep.subr.bf16.mxu0 0
        %5031 = vmatpush1.bf16.msra.mxu0 0
        %5032 = vmatprep.subr.bf16.mxu0 0
        %5033 = vmatpush1.bf16.msra.mxu0 0
        %5034 = vmatprep.subr.bf16.mxu0 0
        %5035 = vmatpush1.bf16.msra.mxu0 0
        %5036 = vmatprep.subr.bf16.mxu0 0
        %5037 = vmatpush1.bf16.msra.mxu0 0
        %5038 = vmatprep.subr.bf16.mxu0 0
        %5039 = vmatpush1.bf16.msra.mxu0 0
        %5040 = vmatprep.subr.bf16.mxu0 0
        %5041 = vmatpush1.bf16.msra.mxu0 0
        %5042 = vmatprep.subr.bf16.mxu0 0
        %5043 = vmatpush1.bf16.msra.mxu0 %v4954
        %5044 = vmatprep.subr.bf16.mxu0 0
        %5045 = vmatpush2.bf16.msra.mxu0 0
        %5046 = vmatprep.subr.bf16.mxu0 0
        %5047 = vmatpush2.bf16.msra.mxu0 0
        %5048 = vmatprep.subr.bf16.mxu0 0
        %5049 = vmatpush2.bf16.msra.mxu0 0
        %5050 = vmatprep.subr.bf16.mxu0 0
        %5051 = vmatpush2.bf16.msra.mxu0 0
        %5052 = vmatprep.subr.bf16.mxu0 0
        %5053 = vmatpush2.bf16.msra.mxu0 0
        %5054 = vmatprep.subr.bf16.mxu0 0
        %5055 = vmatpush2.bf16.msra.mxu0 0
        %5056 = vmatprep.subr.bf16.mxu0 0
        %5057 = vmatpush2.bf16.msra.mxu0 0
        %5058 = vmatprep.subr.bf16.mxu0 0
        %5059 = vmatpush2.bf16.msra.mxu0 0
        %5060 = vmatprep.mubr.bf16.mxu0 0
        %5061 = vmatmul.mubr.bf16.gmra.mxu0 %v5026
        %v5062 = vpop.f32.mrf.mxu0
        %v5063 = vadd.f32 0.0, %v5062
        %v5064 = vpop.f32.mrf.mxu0
        %v5065 = vpop.f32.mrf.mxu0
        %v5066 = vadd.f32 0.0, %v5065
        %v5067 = vpop.f32.mrf.mxu0
        %5068 = vdwg.mxu0
        %5069 = vst.msk [vmem:[#allocation2 + $0x8] sm:$0xff] %vm1280, %v5063
        %5070 = vst.msk [vmem:[#allocation2 + $0x18] sm:$0xff] %vm1280, %v5066
        %5072 = vrot.lane.b32.xlu0 %v4952, 96
        %v5073 = vpop.permute.xlu0 %5072
        %5075 = vrot.lane.b32.xlu0 %v4953, 96
        %v5076 = vpop.permute.xlu0 %5075
        %v5078 = vsel %vm1280, %v5073, 0
        %v5081 = vsel %vm1280, %v5076, 0
        %5083 = vmatprep.subr.bf16.mxu0 0
        %5084 = vmatpush1.bf16.xpose.msra.mxu0 0
        %5085 = vmatprep.subr.bf16.mxu0 0
        %5086 = vmatpush1.bf16.xpose.msra.mxu0 0
        %5087 = vmatprep.subr.bf16.mxu0 0
        %5088 = vmatpush1.bf16.xpose.msra.mxu0 0
        %5089 = vmatprep.subr.bf16.mxu0 0
        %5090 = vmatpush1.bf16.xpose.msra.mxu0 0
        %5091 = vmatprep.subr.bf16.mxu0 0
        %5092 = vmatpush1.bf16.xpose.msra.mxu0 0
        %5093 = vmatprep.subr.bf16.mxu0 0
        %5094 = vmatpush1.bf16.xpose.msra.mxu0 0
        %5095 = vmatprep.subr.bf16.mxu0 0
        %5096 = vmatpush1.bf16.xpose.msra.mxu0 0
        %5097 = vmatprep.subr.bf16.mxu0 0
        %5098 = vmatpush1.bf16.xpose.msra.mxu0 %v5081
        %5099 = vmatprep.subr.bf16.mxu0 0
        %5100 = vmatpush2.bf16.xpose.msra.mxu0 0
        %5101 = vmatprep.subr.bf16.mxu0 0
        %5102 = vmatpush2.bf16.xpose.msra.mxu0 0
        %5103 = vmatprep.subr.bf16.mxu0 0
        %5104 = vmatpush2.bf16.xpose.msra.mxu0 0
        %5105 = vmatprep.subr.bf16.mxu0 0
        %5106 = vmatpush2.bf16.xpose.msra.mxu0 0
        %5107 = vmatprep.subr.bf16.mxu0 0
        %5108 = vmatpush2.bf16.xpose.msra.mxu0 0
        %5109 = vmatprep.subr.bf16.mxu0 0
        %5110 = vmatpush2.bf16.xpose.msra.mxu0 0
        %5111 = vmatprep.subr.bf16.mxu0 0
        %5112 = vmatpush2.bf16.xpose.msra.mxu0 0
        %5113 = vmatprep.subr.bf16.mxu0 0
        %5114 = vmatpush2.bf16.xpose.msra.mxu0 0
        %5115 = vmatprep.mubr.bf16.mxu0 0
        %5116 = vmatmul.mubr.bf16.gmra.mxu0 %v5078
        %v5117 = vpop.f32.mrf.mxu0
        %v5118 = vadd.f32 %v1278, %v5117
        %v5119 = vpop.f32.mrf.mxu0
        %v5120 = vpop.f32.mrf.mxu0
        %v5121 = vadd.f32 %v1278, %v5120
        %v5122 = vpop.f32.mrf.mxu0
        %5123 = vdwg.mxu0
        %v5124 = vsel %vm1328, %v5118, -inf
        %5125 = vmax.xlane.f32.xlu0 %v5124
        %v5126 = vpop.xlane.xlu0 %5125
        %v5127 = vsel %vm1328, %v5121, -inf
        %5128 = vmax.xlane.f32.xlu0 %v5127
        %v5129 = vpop.xlane.xlu0 %5128
        %v5130 = vsub.f32 %v5118, %v5126
        %v5131 = vsub.f32 %v5121, %v5129
        %v5132 = vmul.f32 %v5130, 1.442695
        %v5133 = vpow.pop %v5132
        %v5134 = vmul.f32 %v5131, 1.442695
        %v5135 = vpow.pop %v5134
        %v5136 = vsel %vm1328, %v5133, 0.0
        %5137 = vadd.xlane.f32.xlu0 %v5136
        %v5138 = vpop.xlane.xlu0 %5137
        %v5139 = vsel %vm1328, %v5135, 0.0
        %5140 = vadd.xlane.f32.xlu0 %v5139
        %v5141 = vpop.xlane.xlu0 %5140
        %v5142 = vrcp.pop %v5138
        %v5143 = vrcp.pop %v5141
        %v5144 = vmul.f32 %v5133, %v5142
        %v5145 = vmul.f32 %v5135, %v5143
        %v5146 = vpack.c.bf16 %v5145, %v5144
        %5148 = vrot.lane.b32.xlu0 %v4954, 96
        %v5149 = vpop.permute.xlu0 %5148
        %v5152 = vsel %vm1328, %v5146, 0
        %5154 = vmatprep.subr.bf16.mxu0 0
        %5155 = vmatpush1.bf16.msra.mxu0 0
        %5156 = vmatprep.subr.bf16.mxu0 0
        %5157 = vmatpush1.bf16.msra.mxu0 0
        %5158 = vmatprep.subr.bf16.mxu0 0
        %5159 = vmatpush1.bf16.msra.mxu0 0
        %5160 = vmatprep.subr.bf16.mxu0 0
        %5161 = vmatpush1.bf16.msra.mxu0 0
        %5162 = vmatprep.subr.bf16.mxu0 0
        %5163 = vmatpush1.bf16.msra.mxu0 0
        %5164 = vmatprep.subr.bf16.mxu0 0
        %5165 = vmatpush1.bf16.msra.mxu0 0
        %5166 = vmatprep.subr.bf16.mxu0 0
        %5167 = vmatpush1.bf16.msra.mxu0 0
        %5168 = vmatprep.subr.bf16.mxu0 0
        %5169 = vmatpush1.bf16.msra.mxu0 %v5149
        %5170 = vmatprep.subr.bf16.mxu0 0
        %5171 = vmatpush2.bf16.msra.mxu0 0
        %5172 = vmatprep.subr.bf16.mxu0 0
        %5173 = vmatpush2.bf16.msra.mxu0 0
        %5174 = vmatprep.subr.bf16.mxu0 0
        %5175 = vmatpush2.bf16.msra.mxu0 0
        %5176 = vmatprep.subr.bf16.mxu0 0
        %5177 = vmatpush2.bf16.msra.mxu0 0
        %5178 = vmatprep.subr.bf16.mxu0 0
        %5179 = vmatpush2.bf16.msra.mxu0 0
        %5180 = vmatprep.subr.bf16.mxu0 0
        %5181 = vmatpush2.bf16.msra.mxu0 0
        %5182 = vmatprep.subr.bf16.mxu0 0
        %5183 = vmatpush2.bf16.msra.mxu0 0
        %5184 = vmatprep.subr.bf16.mxu0 0
        %5185 = vmatpush2.bf16.msra.mxu0 0
        %5186 = vmatprep.mubr.bf16.mxu0 0
        %5187 = vmatmul.mubr.bf16.gmra.mxu0 %v5152
        %v5188 = vpop.f32.mrf.mxu0
        %v5189 = vadd.f32 0.0, %v5188
        %v5190 = vpop.f32.mrf.mxu0
        %v5191 = vpop.f32.mrf.mxu0
        %v5192 = vadd.f32 0.0, %v5191
        %v5193 = vpop.f32.mrf.mxu0
        %5194 = vdwg.mxu0
        %5197 = vrot.lane.b32.xlu0 %v5189, 32
        %v5198 = vpop.permute.xlu0 %5197
        %5199 = vrot.lane.b32.xlu0 %v5192, 32
        %v5200 = vpop.permute.xlu0 %5199
        %5203 = vst.msk [vmem:[#allocation2 + $0x8] sm:$0xff] %vm1530, %v5198
        %5204 = vst.msk [vmem:[#allocation2 + $0x18] sm:$0xff] %vm1530, %v5200
        %5205 = vrot.lane.b32.xlu0 %v4952, 64
        %v5206 = vpop.permute.xlu0 %5205
        %5207 = vrot.lane.b32.xlu0 %v4953, 64
        %v5208 = vpop.permute.xlu0 %5207
        %v5210 = vsel %vm1280, %v5206, 0
        %v5213 = vsel %vm1280, %v5208, 0
        %5215 = vmatprep.subr.bf16.mxu0 0
        %5216 = vmatpush1.bf16.xpose.msra.mxu0 0
        %5217 = vmatprep.subr.bf16.mxu0 0
        %5218 = vmatpush1.bf16.xpose.msra.mxu0 0
        %5219 = vmatprep.subr.bf16.mxu0 0
        %5220 = vmatpush1.bf16.xpose.msra.mxu0 0
        %5221 = vmatprep.subr.bf16.mxu0 0
        %5222 = vmatpush1.bf16.xpose.msra.mxu0 0
        %5223 = vmatprep.subr.bf16.mxu0 0
        %5224 = vmatpush1.bf16.xpose.msra.mxu0 0
        %5225 = vmatprep.subr.bf16.mxu0 0
        %5226 = vmatpush1.bf16.xpose.msra.mxu0 0
        %5227 = vmatprep.subr.bf16.mxu0 0
        %5228 = vmatpush1.bf16.xpose.msra.mxu0 0
        %5229 = vmatprep.subr.bf16.mxu0 0
        %5230 = vmatpush1.bf16.xpose.msra.mxu0 %v5213
        %5231 = vmatprep.subr.bf16.mxu0 0
        %5232 = vmatpush2.bf16.xpose.msra.mxu0 0
        %5233 = vmatprep.subr.bf16.mxu0 0
        %5234 = vmatpush2.bf16.xpose.msra.mxu0 0
        %5235 = vmatprep.subr.bf16.mxu0 0
        %5236 = vmatpush2.bf16.xpose.msra.mxu0 0
        %5237 = vmatprep.subr.bf16.mxu0 0
        %5238 = vmatpush2.bf16.xpose.msra.mxu0 0
        %5239 = vmatprep.subr.bf16.mxu0 0
        %5240 = vmatpush2.bf16.xpose.msra.mxu0 0
        %5241 = vmatprep.subr.bf16.mxu0 0
        %5242 = vmatpush2.bf16.xpose.msra.mxu0 0
        %5243 = vmatprep.subr.bf16.mxu0 0
        %5244 = vmatpush2.bf16.xpose.msra.mxu0 0
        %5245 = vmatprep.subr.bf16.mxu0 0
        %5246 = vmatpush2.bf16.xpose.msra.mxu0 0
        %5247 = vmatprep.mubr.bf16.mxu0 0
        %5248 = vmatmul.mubr.bf16.gmra.mxu0 %v5210
        %v5249 = vpop.f32.mrf.mxu0
        %v5250 = vadd.f32 %v1278, %v5249
        %v5251 = vpop.f32.mrf.mxu0
        %v5252 = vpop.f32.mrf.mxu0
        %v5253 = vadd.f32 %v1278, %v5252
        %v5254 = vpop.f32.mrf.mxu0
        %5255 = vdwg.mxu0
        %v5256 = vsel %vm1328, %v5250, -inf
        %5257 = vmax.xlane.f32.xlu0 %v5256
        %v5258 = vpop.xlane.xlu0 %5257
        %v5259 = vsel %vm1328, %v5253, -inf
        %5260 = vmax.xlane.f32.xlu0 %v5259
        %v5261 = vpop.xlane.xlu0 %5260
        %v5262 = vsub.f32 %v5250, %v5258
        %v5263 = vsub.f32 %v5253, %v5261
        %v5264 = vmul.f32 %v5262, 1.442695
        %v5265 = vpow.pop %v5264
        %v5266 = vmul.f32 %v5263, 1.442695
        %v5267 = vpow.pop %v5266
        %v5268 = vsel %vm1328, %v5265, 0.0
        %5269 = vadd.xlane.f32.xlu0 %v5268
        %v5270 = vpop.xlane.xlu0 %5269
        %v5271 = vsel %vm1328, %v5267, 0.0
        %5272 = vadd.xlane.f32.xlu0 %v5271
        %v5273 = vpop.xlane.xlu0 %5272
        %v5274 = vrcp.pop %v5270
        %v5275 = vrcp.pop %v5273
        %v5276 = vmul.f32 %v5265, %v5274
        %v5277 = vmul.f32 %v5267, %v5275
        %v5278 = vpack.c.bf16 %v5277, %v5276
        %5279 = vrot.lane.b32.xlu0 %v4954, 64
        %v5280 = vpop.permute.xlu0 %5279
        %v5283 = vsel %vm1328, %v5278, 0
        %5285 = vmatprep.subr.bf16.mxu0 0
        %5286 = vmatpush1.bf16.msra.mxu0 0
        %5287 = vmatprep.subr.bf16.mxu0 0
        %5288 = vmatpush1.bf16.msra.mxu0 0
        %5289 = vmatprep.subr.bf16.mxu0 0
        %5290 = vmatpush1.bf16.msra.mxu0 0
        %5291 = vmatprep.subr.bf16.mxu0 0
        %5292 = vmatpush1.bf16.msra.mxu0 0
        %5293 = vmatprep.subr.bf16.mxu0 0
        %5294 = vmatpush1.bf16.msra.mxu0 0
        %5295 = vmatprep.subr.bf16.mxu0 0
        %5296 = vmatpush1.bf16.msra.mxu0 0
        %5297 = vmatprep.subr.bf16.mxu0 0
        %5298 = vmatpush1.bf16.msra.mxu0 0
        %5299 = vmatprep.subr.bf16.mxu0 0
        %5300 = vmatpush1.bf16.msra.mxu0 %v5280
        %5301 = vmatprep.subr.bf16.mxu0 0
        %5302 = vmatpush2.bf16.msra.mxu0 0
        %5303 = vmatprep.subr.bf16.mxu0 0
        %5304 = vmatpush2.bf16.msra.mxu0 0
        %5305 = vmatprep.subr.bf16.mxu0 0
        %5306 = vmatpush2.bf16.msra.mxu0 0
        %5307 = vmatprep.subr.bf16.mxu0 0
        %5308 = vmatpush2.bf16.msra.mxu0 0
        %5309 = vmatprep.subr.bf16.mxu0 0
        %5310 = vmatpush2.bf16.msra.mxu0 0
        %5311 = vmatprep.subr.bf16.mxu0 0
        %5312 = vmatpush2.bf16.msra.mxu0 0
        %5313 = vmatprep.subr.bf16.mxu0 0
        %5314 = vmatpush2.bf16.msra.mxu0 0
        %5315 = vmatprep.subr.bf16.mxu0 0
        %5316 = vmatpush2.bf16.msra.mxu0 0
        %5317 = vmatprep.mubr.bf16.mxu0 0
        %5318 = vmatmul.mubr.bf16.gmra.mxu0 %v5283
        %v5319 = vpop.f32.mrf.mxu0
        %v5320 = vadd.f32 0.0, %v5319
        %v5321 = vpop.f32.mrf.mxu0
        %v5322 = vpop.f32.mrf.mxu0
        %v5323 = vadd.f32 0.0, %v5322
        %v5324 = vpop.f32.mrf.mxu0
        %5325 = vdwg.mxu0
        %5328 = vrot.lane.b32.xlu0 %v5320, 64
        %v5329 = vpop.permute.xlu0 %5328
        %5330 = vrot.lane.b32.xlu0 %v5323, 64
        %v5331 = vpop.permute.xlu0 %5330
        %5334 = vst.msk [vmem:[#allocation2 + $0x8] sm:$0xff] %vm1662, %v5329
        %5335 = vst.msk [vmem:[#allocation2 + $0x18] sm:$0xff] %vm1662, %v5331
        %5336 = vrot.lane.b32.xlu0 %v4952, 32
        %v5337 = vpop.permute.xlu0 %5336
        %5338 = vrot.lane.b32.xlu0 %v4953, 32
        %v5339 = vpop.permute.xlu0 %5338
        %v5341 = vsel %vm1280, %v5337, 0
        %v5344 = vsel %vm1280, %v5339, 0
        %5346 = vmatprep.subr.bf16.mxu0 0
        %5347 = vmatpush1.bf16.xpose.msra.mxu0 0
        %5348 = vmatprep.subr.bf16.mxu0 0
        %5349 = vmatpush1.bf16.xpose.msra.mxu0 0
        %5350 = vmatprep.subr.bf16.mxu0 0
        %5351 = vmatpush1.bf16.xpose.msra.mxu0 0
        %5352 = vmatprep.subr.bf16.mxu0 0
        %5353 = vmatpush1.bf16.xpose.msra.mxu0 0
        %5354 = vmatprep.subr.bf16.mxu0 0
        %5355 = vmatpush1.bf16.xpose.msra.mxu0 0
        %5356 = vmatprep.subr.bf16.mxu0 0
        %5357 = vmatpush1.bf16.xpose.msra.mxu0 0
        %5358 = vmatprep.subr.bf16.mxu0 0
        %5359 = vmatpush1.bf16.xpose.msra.mxu0 0
        %5360 = vmatprep.subr.bf16.mxu0 0
        %5361 = vmatpush1.bf16.xpose.msra.mxu0 %v5344
        %5362 = vmatprep.subr.bf16.mxu0 0
        %5363 = vmatpush2.bf16.xpose.msra.mxu0 0
        %5364 = vmatprep.subr.bf16.mxu0 0
        %5365 = vmatpush2.bf16.xpose.msra.mxu0 0
        %5366 = vmatprep.subr.bf16.mxu0 0
        %5367 = vmatpush2.bf16.xpose.msra.mxu0 0
        %5368 = vmatprep.subr.bf16.mxu0 0
        %5369 = vmatpush2.bf16.xpose.msra.mxu0 0
        %5370 = vmatprep.subr.bf16.mxu0 0
        %5371 = vmatpush2.bf16.xpose.msra.mxu0 0
        %5372 = vmatprep.subr.bf16.mxu0 0
        %5373 = vmatpush2.bf16.xpose.msra.mxu0 0
        %5374 = vmatprep.subr.bf16.mxu0 0
        %5375 = vmatpush2.bf16.xpose.msra.mxu0 0
        %5376 = vmatprep.subr.bf16.mxu0 0
        %5377 = vmatpush2.bf16.xpose.msra.mxu0 0
        %5378 = vmatprep.mubr.bf16.mxu0 0
        %5379 = vmatmul.mubr.bf16.gmra.mxu0 %v5341
        %v5380 = vpop.f32.mrf.mxu0
        %v5381 = vadd.f32 %v1278, %v5380
        %v5382 = vpop.f32.mrf.mxu0
        %v5383 = vpop.f32.mrf.mxu0
        %v5384 = vadd.f32 %v1278, %v5383
        %v5385 = vpop.f32.mrf.mxu0
        %5386 = vdwg.mxu0
        %v5387 = vsel %vm1328, %v5381, -inf
        %5388 = vmax.xlane.f32.xlu0 %v5387
        %v5389 = vpop.xlane.xlu0 %5388
        %v5390 = vsel %vm1328, %v5384, -inf
        %5391 = vmax.xlane.f32.xlu0 %v5390
        %v5392 = vpop.xlane.xlu0 %5391
        %v5393 = vsub.f32 %v5381, %v5389
        %v5394 = vsub.f32 %v5384, %v5392
        %v5395 = vmul.f32 %v5393, 1.442695
        %v5396 = vpow.pop %v5395
        %v5397 = vmul.f32 %v5394, 1.442695
        %v5398 = vpow.pop %v5397
        %v5399 = vsel %vm1328, %v5396, 0.0
        %5400 = vadd.xlane.f32.xlu0 %v5399
        %v5401 = vpop.xlane.xlu0 %5400
        %v5402 = vsel %vm1328, %v5398, 0.0
        %5403 = vadd.xlane.f32.xlu0 %v5402
        %v5404 = vpop.xlane.xlu0 %5403
        %v5405 = vrcp.pop %v5401
        %v5406 = vrcp.pop %v5404
        %v5407 = vmul.f32 %v5396, %v5405
        %v5408 = vmul.f32 %v5398, %v5406
        %v5409 = vpack.c.bf16 %v5408, %v5407
        %5410 = vrot.lane.b32.xlu0 %v4954, 32
        %v5411 = vpop.permute.xlu0 %5410
        %v5414 = vsel %vm1328, %v5409, 0
        %5416 = vmatprep.subr.bf16.mxu0 0
        %5417 = vmatpush1.bf16.msra.mxu0 0
        %5418 = vmatprep.subr.bf16.mxu0 0
        %5419 = vmatpush1.bf16.msra.mxu0 0
        %5420 = vmatprep.subr.bf16.mxu0 0
        %5421 = vmatpush1.bf16.msra.mxu0 0
        %5422 = vmatprep.subr.bf16.mxu0 0
        %5423 = vmatpush1.bf16.msra.mxu0 0
        %5424 = vmatprep.subr.bf16.mxu0 0
        %5425 = vmatpush1.bf16.msra.mxu0 0
        %5426 = vmatprep.subr.bf16.mxu0 0
        %5427 = vmatpush1.bf16.msra.mxu0 0
        %5428 = vmatprep.subr.bf16.mxu0 0
        %5429 = vmatpush1.bf16.msra.mxu0 0
        %5430 = vmatprep.subr.bf16.mxu0 0
        %5431 = vmatpush1.bf16.msra.mxu0 %v5411
        %5432 = vmatprep.subr.bf16.mxu0 0
        %5433 = vmatpush2.bf16.msra.mxu0 0
        %5434 = vmatprep.subr.bf16.mxu0 0
        %5435 = vmatpush2.bf16.msra.mxu0 0
        %5436 = vmatprep.subr.bf16.mxu0 0
        %5437 = vmatpush2.bf16.msra.mxu0 0
        %5438 = vmatprep.subr.bf16.mxu0 0
        %5439 = vmatpush2.bf16.msra.mxu0 0
        %5440 = vmatprep.subr.bf16.mxu0 0
        %5441 = vmatpush2.bf16.msra.mxu0 0
        %5442 = vmatprep.subr.bf16.mxu0 0
        %5443 = vmatpush2.bf16.msra.mxu0 0
        %5444 = vmatprep.subr.bf16.mxu0 0
        %5445 = vmatpush2.bf16.msra.mxu0 0
        %5446 = vmatprep.subr.bf16.mxu0 0
        %5447 = vmatpush2.bf16.msra.mxu0 0
        %5448 = vmatprep.mubr.bf16.mxu0 0
        %5449 = vmatmul.mubr.bf16.gmra.mxu0 %v5414
        %v5450 = vpop.f32.mrf.mxu0
        %v5451 = vadd.f32 0.0, %v5450
        %v5452 = vpop.f32.mrf.mxu0
        %v5453 = vpop.f32.mrf.mxu0
        %v5454 = vadd.f32 0.0, %v5453
        %v5455 = vpop.f32.mrf.mxu0
        %5456 = vdwg.mxu0
        %5459 = vrot.lane.b32.xlu0 %v5451, 96
        %v5460 = vpop.permute.xlu0 %5459
        %5461 = vrot.lane.b32.xlu0 %v5454, 96
        %v5462 = vpop.permute.xlu0 %5461
        %5465 = vst.msk [vmem:[#allocation2 + $0x8] sm:$0xff] %vm1794, %v5460
        %5466 = vst.msk [vmem:[#allocation2 + $0x18] sm:$0xff] %vm1794, %v5462
        %v5467 = vld [vmem:[#allocation2] sm:$0xff]
        %v5468 = vld [vmem:[#allocation2 + $0x8] sm:$0xff]
        %v5469 = vld [vmem:[#allocation2 + $0x10] sm:$0xff]
        %v5470 = vld [vmem:[#allocation2 + $0x18] sm:$0xff]
        %v5471 = vpack.c.bf16 %v5469, %v5467
        %v5472 = vpack.c.bf16 %v5470, %v5468
        %s5473 = scalar_lea.vmem %s4, 256
        %v5474 = vld [vmem:[%s5473] sm:$0xff]
        %v5475 = vld [vmem:[%s5473 + $0x8] sm:$0xff]
        %v5476 = vld [vmem:[%s5473 + $0x10] sm:$0xff]
        %v5477 = vld [vmem:[%s5473 + $0x18] sm:$0xff]
        %v5478 = vld [vmem:[%s5473 + $0x20] sm:$0xff]
        %v5479 = vld [vmem:[%s5473 + $0x28] sm:$0xff]
        %v5480 = vld [vmem:[%s5473 + $0x30] sm:$0xff]
        %v5481 = vld [vmem:[%s5473 + $0x38] sm:$0xff]
        %v5482 = vld [vmem:[%s5473 + $0x40] sm:$0xff]
        %v5483 = vld [vmem:[%s5473 + $0x48] sm:$0xff]
        %v5484 = vld [vmem:[%s5473 + $0x50] sm:$0xff]
        %v5485 = vld [vmem:[%s5473 + $0x58] sm:$0xff]
        %v5486 = vld [vmem:[%s5473 + $0x60] sm:$0xff]
        %v5487 = vld [vmem:[%s5473 + $0x68] sm:$0xff]
        %v5488 = vld [vmem:[%s5473 + $0x70] sm:$0xff]
        %v5489 = vld [vmem:[%s5473 + $0x78] sm:$0xff]
        %v5490 = vld [vmem:[%s5473 + $0x80] sm:$0xff]
        %v5491 = vld [vmem:[%s5473 + $0x88] sm:$0xff]
        %v5492 = vld [vmem:[%s5473 + $0x90] sm:$0xff]
        %v5493 = vld [vmem:[%s5473 + $0x98] sm:$0xff]
        %v5494 = vld [vmem:[%s5473 + $0xa0] sm:$0xff]
        %v5495 = vld [vmem:[%s5473 + $0xa8] sm:$0xff]
        %v5496 = vld [vmem:[%s5473 + $0xb0] sm:$0xff]
        %v5497 = vld [vmem:[%s5473 + $0xb8] sm:$0xff]
        %v5498 = vld [vmem:[%s5473 + $0xc0] sm:$0xff]
        %v5499 = vld [vmem:[%s5473 + $0xc8] sm:$0xff]
        %v5500 = vld [vmem:[%s5473 + $0xd0] sm:$0xff]
        %v5501 = vld [vmem:[%s5473 + $0xd8] sm:$0xff]
        %v5502 = vld [vmem:[%s5473 + $0xe0] sm:$0xff]
        %v5503 = vld [vmem:[%s5473 + $0xe8] sm:$0xff]
        %v5504 = vld [vmem:[%s5473 + $0xf0] sm:$0xff]
        %v5505 = vld [vmem:[%s5473 + $0xf8] sm:$0xff]
        %s5506 = scalar_lea.vmem %s5, 2
        %v5507 = vld [vmem:[%s5506] sm:$0x3]
        %v5509 = vlaneseq
        %v5510 = vshrl.u32 %v5509, 7
        %v5511 = vsub.s32 0, %v5510
        %v5512 = vrot.slane %v5507, %v5511
        %v5513 = vlaneseq
        %v5514 = vshrl.u32 %v5513, 7
        %v5515 = vsub.s32 1, %v5514
        %v5516 = vrot.slane %v5507, %v5515
        %v5551 = vunpack.c.l.b16 %v5474
        %v5552 = vunpack.c.h.b16 %v5474
        %v5553 = vunpack.c.l.b16 %v5475
        %v5554 = vunpack.c.h.b16 %v5475
        %v5555 = vunpack.c.l.b16 %v5476
        %v5556 = vunpack.c.h.b16 %v5476
        %v5557 = vunpack.c.l.b16 %v5477
        %v5558 = vunpack.c.h.b16 %v5477
        %v5559 = vunpack.c.l.b16 %v5478
        %v5560 = vunpack.c.h.b16 %v5478
        %v5561 = vunpack.c.l.b16 %v5479
        %v5562 = vunpack.c.h.b16 %v5479
        %v5563 = vunpack.c.l.b16 %v5480
        %v5564 = vunpack.c.h.b16 %v5480
        %v5565 = vunpack.c.l.b16 %v5481
        %v5566 = vunpack.c.h.b16 %v5481
        %v5567 = vunpack.c.l.b16 %v5482
        %v5568 = vunpack.c.h.b16 %v5482
        %v5569 = vunpack.c.l.b16 %v5483
        %v5570 = vunpack.c.h.b16 %v5483
        %v5571 = vunpack.c.l.b16 %v5484
        %v5572 = vunpack.c.h.b16 %v5484
        %v5573 = vunpack.c.l.b16 %v5485
        %v5574 = vunpack.c.h.b16 %v5485
        %v5575 = vunpack.c.l.b16 %v5486
        %v5576 = vunpack.c.h.b16 %v5486
        %v5577 = vunpack.c.l.b16 %v5487
        %v5578 = vunpack.c.h.b16 %v5487
        %v5579 = vunpack.c.l.b16 %v5488
        %v5580 = vunpack.c.h.b16 %v5488
        %v5581 = vunpack.c.l.b16 %v5489
        %v5582 = vunpack.c.h.b16 %v5489
        %v5583 = vunpack.c.l.b16 %v5490
        %v5584 = vunpack.c.h.b16 %v5490
        %v5585 = vunpack.c.l.b16 %v5491
        %v5586 = vunpack.c.h.b16 %v5491
        %v5587 = vunpack.c.l.b16 %v5492
        %v5588 = vunpack.c.h.b16 %v5492
        %v5589 = vunpack.c.l.b16 %v5493
        %v5590 = vunpack.c.h.b16 %v5493
        %v5591 = vunpack.c.l.b16 %v5494
        %v5592 = vunpack.c.h.b16 %v5494
        %v5593 = vunpack.c.l.b16 %v5495
        %v5594 = vunpack.c.h.b16 %v5495
        %v5595 = vunpack.c.l.b16 %v5496
        %v5596 = vunpack.c.h.b16 %v5496
        %v5597 = vunpack.c.l.b16 %v5497
        %v5598 = vunpack.c.h.b16 %v5497
        %v5599 = vunpack.c.l.b16 %v5498
        %v5600 = vunpack.c.h.b16 %v5498
        %v5601 = vunpack.c.l.b16 %v5499
        %v5602 = vunpack.c.h.b16 %v5499
        %v5603 = vunpack.c.l.b16 %v5500
        %v5604 = vunpack.c.h.b16 %v5500
        %v5605 = vunpack.c.l.b16 %v5501
        %v5606 = vunpack.c.h.b16 %v5501
        %v5607 = vunpack.c.l.b16 %v5502
        %v5608 = vunpack.c.h.b16 %v5502
        %v5609 = vunpack.c.l.b16 %v5503
        %v5610 = vunpack.c.h.b16 %v5503
        %v5611 = vunpack.c.l.b16 %v5504
        %v5612 = vunpack.c.h.b16 %v5504
        %v5613 = vunpack.c.l.b16 %v5505
        %v5614 = vunpack.c.h.b16 %v5505
        %v5615 = vpack.c.b16 %v5553, %v5551
        %v5616 = vpack.c.b16 %v5554, %v5552
        %v5617 = vpack.c.b16 %v5557, %v5555
        %v5618 = vpack.c.b16 %v5558, %v5556
        %v5619 = vpack.c.b16 %v5561, %v5559
        %v5620 = vpack.c.b16 %v5562, %v5560
        %v5621 = vpack.c.b16 %v5565, %v5563
        %v5622 = vpack.c.b16 %v5566, %v5564
        %v5623 = vpack.c.b16 %v5569, %v5567
        %v5624 = vpack.c.b16 %v5570, %v5568
        %v5625 = vpack.c.b16 %v5573, %v5571
        %v5626 = vpack.c.b16 %v5574, %v5572
        %v5627 = vpack.c.b16 %v5577, %v5575
        %v5628 = vpack.c.b16 %v5578, %v5576
        %v5629 = vpack.c.b16 %v5581, %v5579
        %v5630 = vpack.c.b16 %v5582, %v5580
        %v5631 = vpack.c.b16 %v5585, %v5583
        %v5632 = vpack.c.b16 %v5586, %v5584
        %v5633 = vpack.c.b16 %v5589, %v5587
        %v5634 = vpack.c.b16 %v5590, %v5588
        %v5635 = vpack.c.b16 %v5593, %v5591
        %v5636 = vpack.c.b16 %v5594, %v5592
        %v5637 = vpack.c.b16 %v5597, %v5595
        %v5638 = vpack.c.b16 %v5598, %v5596
        %v5639 = vpack.c.b16 %v5601, %v5599
        %v5640 = vpack.c.b16 %v5602, %v5600
        %v5641 = vpack.c.b16 %v5605, %v5603
        %v5642 = vpack.c.b16 %v5606, %v5604
        %v5643 = vpack.c.b16 %v5609, %v5607
        %v5644 = vpack.c.b16 %v5610, %v5608
        %v5645 = vpack.c.b16 %v5613, %v5611
        %v5646 = vpack.c.b16 %v5614, %v5612
        %5679 = vmatprep.subr.bf16.mxu0 %v5630
        %5680 = vmatpush1.bf16.msra.mxu0 %v5629
        %5681 = vmatprep.subr.bf16.mxu0 %v5628
        %5682 = vmatpush1.bf16.msra.mxu0 %v5627
        %5683 = vmatprep.subr.bf16.mxu0 %v5626
        %5684 = vmatpush1.bf16.msra.mxu0 %v5625
        %5685 = vmatprep.subr.bf16.mxu0 %v5624
        %5686 = vmatpush1.bf16.msra.mxu0 %v5623
        %5687 = vmatprep.subr.bf16.mxu0 %v5622
        %5688 = vmatpush1.bf16.msra.mxu0 %v5621
        %5689 = vmatprep.subr.bf16.mxu0 %v5620
        %5690 = vmatpush1.bf16.msra.mxu0 %v5619
        %5691 = vmatprep.subr.bf16.mxu0 %v5618
        %5692 = vmatpush1.bf16.msra.mxu0 %v5617
        %5693 = vmatprep.subr.bf16.mxu0 %v5616
        %5694 = vmatpush1.bf16.msra.mxu0 %v5615
        %5695 = vmatprep.subr.bf16.mxu0 %v5646
        %5696 = vmatpush2.bf16.msra.mxu0 %v5645
        %5697 = vmatprep.subr.bf16.mxu0 %v5644
        %5698 = vmatpush2.bf16.msra.mxu0 %v5643
        %5699 = vmatprep.subr.bf16.mxu0 %v5642
        %5700 = vmatpush2.bf16.msra.mxu0 %v5641
        %5701 = vmatprep.subr.bf16.mxu0 %v5640
        %5702 = vmatpush2.bf16.msra.mxu0 %v5639
        %5703 = vmatprep.subr.bf16.mxu0 %v5638
        %5704 = vmatpush2.bf16.msra.mxu0 %v5637
        %5705 = vmatprep.subr.bf16.mxu0 %v5636
        %5706 = vmatpush2.bf16.msra.mxu0 %v5635
        %5707 = vmatprep.subr.bf16.mxu0 %v5634
        %5708 = vmatpush2.bf16.msra.mxu0 %v5633
        %5709 = vmatprep.subr.bf16.mxu0 %v5632
        %5710 = vmatpush2.bf16.msra.mxu0 %v5631
        %5711 = vmatprep.mubr.bf16.mxu0 %v5472
        %5712 = vmatmul.mubr.bf16.gmra.mxu0 %v5471
        %v5713 = vpop.f32.mrf.mxu0
        %v5714 = vadd.f32 %v5512, %v5713
        %v5715 = vpop.f32.mrf.mxu0
        %v5716 = vadd.f32 %v5516, %v5715
        %v5717 = vpop.f32.mrf.mxu0
        %v5718 = vadd.f32 %v5512, %v5717
        %v5719 = vpop.f32.mrf.mxu0
        %v5720 = vadd.f32 %v5516, %v5719
        %5721 = vdwg.mxu0
        %v5722 = vadd.f32 %v5714, %v3688
        %v5723 = vadd.f32 %v5716, %v3689
        %v5724 = vadd.f32 %v5718, %v3690
        %v5725 = vadd.f32 %v5720, %v3691
        %s5726 = scalar_lea.vmem %s6, 2
        %v5727 = vld [vmem:[%s5726] sm:$0x3]
        %s5728 = scalar_lea.vmem %s7, 2
        %v5729 = vld [vmem:[%s5728] sm:$0x3]
        %v5730 = vadd.f32 %v5722, %v5723
        %5731 = vadd.xlane.f32.xlu0 %v5730
        %v5732 = vpop.xlane.xlu0 %5731
        %v5733 = vadd.f32 %v5724, %v5725
        %5734 = vadd.xlane.f32.xlu0 %v5733
        %v5735 = vpop.xlane.xlu0 %5734
        %v5736 = vmul.f32 %v5732, %v2579
        %v5737 = vmul.f32 %v5735, %v2579
        %v5738 = vsub.f32 %v5722, %v5736
        %v5739 = vsub.f32 %v5723, %v5736
        %v5740 = vsub.f32 %v5724, %v5737
        %v5741 = vsub.f32 %v5725, %v5737
        %v5742 = vmul.f32 %v5738, %v5738
        %v5743 = vmul.f32 %v5739, %v5739
        %v5744 = vmul.f32 %v5740, %v5740
        %v5745 = vmul.f32 %v5741, %v5741
        %v5746 = vadd.f32 %v5742, %v5743
        %5747 = vadd.xlane.f32.xlu0 %v5746
        %v5748 = vpop.xlane.xlu0 %5747
        %v5749 = vadd.f32 %v5744, %v5745
        %5750 = vadd.xlane.f32.xlu0 %v5749
        %v5751 = vpop.xlane.xlu0 %5750
        %v5752 = vmul.f32 %v5748, %v2579
        %v5753 = vmul.f32 %v5751, %v2579
        %v5754 = vadd.f32 %v5752, 1e-05
        %v5755 = vadd.f32 %v5753, 1e-05
        %v5756 = vrsqrt.pop %v5754
        %v5757 = vrsqrt.pop %v5755
        %v5758 = vmul.f32 %v5738, %v5756
        %v5759 = vmul.f32 %v5739, %v5756
        %v5760 = vmul.f32 %v5740, %v5757
        %v5761 = vmul.f32 %v5741, %v5757
        %v5763 = vlaneseq
        %v5764 = vshrl.u32 %v5763, 7
        %v5765 = vsub.s32 0, %v5764
        %v5766 = vrot.slane %v5727, %v5765
        %v5767 = vlaneseq
        %v5768 = vshrl.u32 %v5767, 7
        %v5769 = vsub.s32 1, %v5768
        %v5770 = vrot.slane %v5727, %v5769
        %v5773 = vmul.f32 %v5758, %v5766
        %v5774 = vmul.f32 %v5759, %v5770
        %v5775 = vmul.f32 %v5760, %v5766
        %v5776 = vmul.f32 %v5761, %v5770
        %v5778 = vlaneseq
        %v5779 = vshrl.u32 %v5778, 7
        %v5780 = vsub.s32 0, %v5779
        %v5781 = vrot.slane %v5729, %v5780
        %v5782 = vlaneseq
        %v5783 = vshrl.u32 %v5782, 7
        %v5784 = vsub.s32 1, %v5783
        %v5785 = vrot.slane %v5729, %v5784
        %v5788 = vadd.f32 %v5773, %v5781
        %v5789 = vadd.f32 %v5774, %v5785
        %v5790 = vadd.f32 %v5775, %v5781
        %v5791 = vadd.f32 %v5776, %v5785
        %v5792 = vpack.c.bf16 %v5790, %v5788
        %v5793 = vpack.c.bf16 %v5791, %v5789
        %s5794 = scalar_lea.vmem [#allocation5], 512
        %v5795 = vld [vmem:[%s5794] sm:$0xff]
        %v5796 = vld [vmem:[%s5794 + $0x8] sm:$0xff]
        %v5797 = vld [vmem:[%s5794 + $0x10] sm:$0xff]
        %v5798 = vld [vmem:[%s5794 + $0x18] sm:$0xff]
        %v5799 = vld [vmem:[%s5794 + $0x20] sm:$0xff]
        %v5800 = vld [vmem:[%s5794 + $0x28] sm:$0xff]
        %v5801 = vld [vmem:[%s5794 + $0x30] sm:$0xff]
        %v5802 = vld [vmem:[%s5794 + $0x38] sm:$0xff]
        %v5803 = vld [vmem:[%s5794 + $0x40] sm:$0xff]
        %v5804 = vld [vmem:[%s5794 + $0x48] sm:$0xff]
        %v5805 = vld [vmem:[%s5794 + $0x50] sm:$0xff]
        %v5806 = vld [vmem:[%s5794 + $0x58] sm:$0xff]
        %v5807 = vld [vmem:[%s5794 + $0x60] sm:$0xff]
        %v5808 = vld [vmem:[%s5794 + $0x68] sm:$0xff]
        %v5809 = vld [vmem:[%s5794 + $0x70] sm:$0xff]
        %v5810 = vld [vmem:[%s5794 + $0x78] sm:$0xff]
        %v5811 = vld [vmem:[%s5794 + $0x80] sm:$0xff]
        %v5812 = vld [vmem:[%s5794 + $0x88] sm:$0xff]
        %v5813 = vld [vmem:[%s5794 + $0x90] sm:$0xff]
        %v5814 = vld [vmem:[%s5794 + $0x98] sm:$0xff]
        %v5815 = vld [vmem:[%s5794 + $0xa0] sm:$0xff]
        %v5816 = vld [vmem:[%s5794 + $0xa8] sm:$0xff]
        %v5817 = vld [vmem:[%s5794 + $0xb0] sm:$0xff]
        %v5818 = vld [vmem:[%s5794 + $0xb8] sm:$0xff]
        %v5819 = vld [vmem:[%s5794 + $0xc0] sm:$0xff]
        %v5820 = vld [vmem:[%s5794 + $0xc8] sm:$0xff]
        %v5821 = vld [vmem:[%s5794 + $0xd0] sm:$0xff]
        %v5822 = vld [vmem:[%s5794 + $0xd8] sm:$0xff]
        %v5823 = vld [vmem:[%s5794 + $0xe0] sm:$0xff]
        %v5824 = vld [vmem:[%s5794 + $0xe8] sm:$0xff]
        %v5825 = vld [vmem:[%s5794 + $0xf0] sm:$0xff]
        %v5826 = vld [vmem:[%s5794 + $0xf8] sm:$0xff]
        %v5827 = vld [vmem:[%s5794 + $0x100] sm:$0xff]
        %v5828 = vld [vmem:[%s5794 + $0x108] sm:$0xff]
        %v5829 = vld [vmem:[%s5794 + $0x110] sm:$0xff]
        %v5830 = vld [vmem:[%s5794 + $0x118] sm:$0xff]
        %v5831 = vld [vmem:[%s5794 + $0x120] sm:$0xff]
        %v5832 = vld [vmem:[%s5794 + $0x128] sm:$0xff]
        %v5833 = vld [vmem:[%s5794 + $0x130] sm:$0xff]
        %v5834 = vld [vmem:[%s5794 + $0x138] sm:$0xff]
        %v5835 = vld [vmem:[%s5794 + $0x140] sm:$0xff]
        %v5836 = vld [vmem:[%s5794 + $0x148] sm:$0xff]
        %v5837 = vld [vmem:[%s5794 + $0x150] sm:$0xff]
        %v5838 = vld [vmem:[%s5794 + $0x158] sm:$0xff]
        %v5839 = vld [vmem:[%s5794 + $0x160] sm:$0xff]
        %v5840 = vld [vmem:[%s5794 + $0x168] sm:$0xff]
        %v5841 = vld [vmem:[%s5794 + $0x170] sm:$0xff]
        %v5842 = vld [vmem:[%s5794 + $0x178] sm:$0xff]
        %v5843 = vld [vmem:[%s5794 + $0x180] sm:$0xff]
        %v5844 = vld [vmem:[%s5794 + $0x188] sm:$0xff]
        %v5845 = vld [vmem:[%s5794 + $0x190] sm:$0xff]
        %v5846 = vld [vmem:[%s5794 + $0x198] sm:$0xff]
        %v5847 = vld [vmem:[%s5794 + $0x1a0] sm:$0xff]
        %v5848 = vld [vmem:[%s5794 + $0x1a8] sm:$0xff]
        %v5849 = vld [vmem:[%s5794 + $0x1b0] sm:$0xff]
        %v5850 = vld [vmem:[%s5794 + $0x1b8] sm:$0xff]
        %v5851 = vld [vmem:[%s5794 + $0x1c0] sm:$0xff]
        %v5852 = vld [vmem:[%s5794 + $0x1c8] sm:$0xff]
        %v5853 = vld [vmem:[%s5794 + $0x1d0] sm:$0xff]
        %v5854 = vld [vmem:[%s5794 + $0x1d8] sm:$0xff]
        %v5855 = vld [vmem:[%s5794 + $0x1e0] sm:$0xff]
        %v5856 = vld [vmem:[%s5794 + $0x1e8] sm:$0xff]
        %v5857 = vld [vmem:[%s5794 + $0x1f0] sm:$0xff]
        %v5858 = vld [vmem:[%s5794 + $0x1f8] sm:$0xff]
        %s5859 = scalar_lea.vmem %s9, 4
        %v5860 = vld [vmem:[%s5859] sm:$0xf]
        %v5862 = vlaneseq
        %v5863 = vshrl.u32 %v5862, 7
        %v5864 = vsub.s32 0, %v5863
        %v5865 = vrot.slane %v5860, %v5864
        %v5866 = vlaneseq
        %v5867 = vshrl.u32 %v5866, 7
        %v5868 = vsub.s32 1, %v5867
        %v5869 = vrot.slane %v5860, %v5868
        %v5870 = vlaneseq
        %v5871 = vshrl.u32 %v5870, 7
        %v5872 = vsub.s32 2, %v5871
        %v5873 = vrot.slane %v5860, %v5872
        %v5874 = vlaneseq
        %v5875 = vshrl.u32 %v5874, 7
        %v5876 = vsub.s32 3, %v5875
        %v5877 = vrot.slane %v5860, %v5876
        %v5946 = vunpack.c.l.b16 %v5795
        %v5947 = vunpack.c.h.b16 %v5795
        %v5948 = vunpack.c.l.b16 %v5796
        %v5949 = vunpack.c.h.b16 %v5796
        %v5950 = vunpack.c.l.b16 %v5797
        %v5951 = vunpack.c.h.b16 %v5797
        %v5952 = vunpack.c.l.b16 %v5798
        %v5953 = vunpack.c.h.b16 %v5798
        %v5954 = vunpack.c.l.b16 %v5799
        %v5955 = vunpack.c.h.b16 %v5799
        %v5956 = vunpack.c.l.b16 %v5800
        %v5957 = vunpack.c.h.b16 %v5800
        %v5958 = vunpack.c.l.b16 %v5801
        %v5959 = vunpack.c.h.b16 %v5801
        %v5960 = vunpack.c.l.b16 %v5802
        %v5961 = vunpack.c.h.b16 %v5802
        %v5962 = vunpack.c.l.b16 %v5803
        %v5963 = vunpack.c.h.b16 %v5803
        %v5964 = vunpack.c.l.b16 %v5804
        %v5965 = vunpack.c.h.b16 %v5804
        %v5966 = vunpack.c.l.b16 %v5805
        %v5967 = vunpack.c.h.b16 %v5805
        %v5968 = vunpack.c.l.b16 %v5806
        %v5969 = vunpack.c.h.b16 %v5806
        %v5970 = vunpack.c.l.b16 %v5807
        %v5971 = vunpack.c.h.b16 %v5807
        %v5972 = vunpack.c.l.b16 %v5808
        %v5973 = vunpack.c.h.b16 %v5808
        %v5974 = vunpack.c.l.b16 %v5809
        %v5975 = vunpack.c.h.b16 %v5809
        %v5976 = vunpack.c.l.b16 %v5810
        %v5977 = vunpack.c.h.b16 %v5810
        %v5978 = vunpack.c.l.b16 %v5811
        %v5979 = vunpack.c.h.b16 %v5811
        %v5980 = vunpack.c.l.b16 %v5812
        %v5981 = vunpack.c.h.b16 %v5812
        %v5982 = vunpack.c.l.b16 %v5813
        %v5983 = vunpack.c.h.b16 %v5813
        %v5984 = vunpack.c.l.b16 %v5814
        %v5985 = vunpack.c.h.b16 %v5814
        %v5986 = vunpack.c.l.b16 %v5815
        %v5987 = vunpack.c.h.b16 %v5815
        %v5988 = vunpack.c.l.b16 %v5816
        %v5989 = vunpack.c.h.b16 %v5816
        %v5990 = vunpack.c.l.b16 %v5817
        %v5991 = vunpack.c.h.b16 %v5817
        %v5992 = vunpack.c.l.b16 %v5818
        %v5993 = vunpack.c.h.b16 %v5818
        %v5994 = vunpack.c.l.b16 %v5819
        %v5995 = vunpack.c.h.b16 %v5819
        %v5996 = vunpack.c.l.b16 %v5820
        %v5997 = vunpack.c.h.b16 %v5820
        %v5998 = vunpack.c.l.b16 %v5821
        %v5999 = vunpack.c.h.b16 %v5821
        %v6000 = vunpack.c.l.b16 %v5822
        %v6001 = vunpack.c.h.b16 %v5822
        %v6002 = vunpack.c.l.b16 %v5823
        %v6003 = vunpack.c.h.b16 %v5823
        %v6004 = vunpack.c.l.b16 %v5824
        %v6005 = vunpack.c.h.b16 %v5824
        %v6006 = vunpack.c.l.b16 %v5825
        %v6007 = vunpack.c.h.b16 %v5825
        %v6008 = vunpack.c.l.b16 %v5826
        %v6009 = vunpack.c.h.b16 %v5826
        %v6010 = vunpack.c.l.b16 %v5827
        %v6011 = vunpack.c.h.b16 %v5827
        %v6012 = vunpack.c.l.b16 %v5828
        %v6013 = vunpack.c.h.b16 %v5828
        %v6014 = vunpack.c.l.b16 %v5829
        %v6015 = vunpack.c.h.b16 %v5829
        %v6016 = vunpack.c.l.b16 %v5830
        %v6017 = vunpack.c.h.b16 %v5830
        %v6018 = vunpack.c.l.b16 %v5831
        %v6019 = vunpack.c.h.b16 %v5831
        %v6020 = vunpack.c.l.b16 %v5832
        %v6021 = vunpack.c.h.b16 %v5832
        %v6022 = vunpack.c.l.b16 %v5833
        %v6023 = vunpack.c.h.b16 %v5833
        %v6024 = vunpack.c.l.b16 %v5834
        %v6025 = vunpack.c.h.b16 %v5834
        %v6026 = vunpack.c.l.b16 %v5835
        %v6027 = vunpack.c.h.b16 %v5835
        %v6028 = vunpack.c.l.b16 %v5836
        %v6029 = vunpack.c.h.b16 %v5836
        %v6030 = vunpack.c.l.b16 %v5837
        %v6031 = vunpack.c.h.b16 %v5837
        %v6032 = vunpack.c.l.b16 %v5838
        %v6033 = vunpack.c.h.b16 %v5838
        %v6034 = vunpack.c.l.b16 %v5839
        %v6035 = vunpack.c.h.b16 %v5839
        %v6036 = vunpack.c.l.b16 %v5840
        %v6037 = vunpack.c.h.b16 %v5840
        %v6038 = vunpack.c.l.b16 %v5841
        %v6039 = vunpack.c.h.b16 %v5841
        %v6040 = vunpack.c.l.b16 %v5842
        %v6041 = vunpack.c.h.b16 %v5842
        %v6042 = vunpack.c.l.b16 %v5843
        %v6043 = vunpack.c.h.b16 %v5843
        %v6044 = vunpack.c.l.b16 %v5844
        %v6045 = vunpack.c.h.b16 %v5844
        %v6046 = vunpack.c.l.b16 %v5845
        %v6047 = vunpack.c.h.b16 %v5845
        %v6048 = vunpack.c.l.b16 %v5846
        %v6049 = vunpack.c.h.b16 %v5846
        %v6050 = vunpack.c.l.b16 %v5847
        %v6051 = vunpack.c.h.b16 %v5847
        %v6052 = vunpack.c.l.b16 %v5848
        %v6053 = vunpack.c.h.b16 %v5848
        %v6054 = vunpack.c.l.b16 %v5849
        %v6055 = vunpack.c.h.b16 %v5849
        %v6056 = vunpack.c.l.b16 %v5850
        %v6057 = vunpack.c.h.b16 %v5850
        %v6058 = vunpack.c.l.b16 %v5851
        %v6059 = vunpack.c.h.b16 %v5851
        %v6060 = vunpack.c.l.b16 %v5852
        %v6061 = vunpack.c.h.b16 %v5852
        %v6062 = vunpack.c.l.b16 %v5853
        %v6063 = vunpack.c.h.b16 %v5853
        %v6064 = vunpack.c.l.b16 %v5854
        %v6065 = vunpack.c.h.b16 %v5854
        %v6066 = vunpack.c.l.b16 %v5855
        %v6067 = vunpack.c.h.b16 %v5855
        %v6068 = vunpack.c.l.b16 %v5856
        %v6069 = vunpack.c.h.b16 %v5856
        %v6070 = vunpack.c.l.b16 %v5857
        %v6071 = vunpack.c.h.b16 %v5857
        %v6072 = vunpack.c.l.b16 %v5858
        %v6073 = vunpack.c.h.b16 %v5858
        %v6074 = vpack.c.b16 %v5950, %v5946
        %v6075 = vpack.c.b16 %v5951, %v5947
        %v6076 = vpack.c.b16 %v5952, %v5948
        %v6077 = vpack.c.b16 %v5953, %v5949
        %v6078 = vpack.c.b16 %v5958, %v5954
        %v6079 = vpack.c.b16 %v5959, %v5955
        %v6080 = vpack.c.b16 %v5960, %v5956
        %v6081 = vpack.c.b16 %v5961, %v5957
        %v6082 = vpack.c.b16 %v5966, %v5962
        %v6083 = vpack.c.b16 %v5967, %v5963
        %v6084 = vpack.c.b16 %v5968, %v5964
        %v6085 = vpack.c.b16 %v5969, %v5965
        %v6086 = vpack.c.b16 %v5974, %v5970
        %v6087 = vpack.c.b16 %v5975, %v5971
        %v6088 = vpack.c.b16 %v5976, %v5972
        %v6089 = vpack.c.b16 %v5977, %v5973
        %v6090 = vpack.c.b16 %v5982, %v5978
        %v6091 = vpack.c.b16 %v5983, %v5979
        %v6092 = vpack.c.b16 %v5984, %v5980
        %v6093 = vpack.c.b16 %v5985, %v5981
        %v6094 = vpack.c.b16 %v5990, %v5986
        %v6095 = vpack.c.b16 %v5991, %v5987
        %v6096 = vpack.c.b16 %v5992, %v5988
        %v6097 = vpack.c.b16 %v5993, %v5989
        %v6098 = vpack.c.b16 %v5998, %v5994
        %v6099 = vpack.c.b16 %v5999, %v5995
        %v6100 = vpack.c.b16 %v6000, %v5996
        %v6101 = vpack.c.b16 %v6001, %v5997
        %v6102 = vpack.c.b16 %v6006, %v6002
        %v6103 = vpack.c.b16 %v6007, %v6003
        %v6104 = vpack.c.b16 %v6008, %v6004
        %v6105 = vpack.c.b16 %v6009, %v6005
        %v6106 = vpack.c.b16 %v6014, %v6010
        %v6107 = vpack.c.b16 %v6015, %v6011
        %v6108 = vpack.c.b16 %v6016, %v6012
        %v6109 = vpack.c.b16 %v6017, %v6013
        %v6110 = vpack.c.b16 %v6022, %v6018
        %v6111 = vpack.c.b16 %v6023, %v6019
        %v6112 = vpack.c.b16 %v6024, %v6020
        %v6113 = vpack.c.b16 %v6025, %v6021
        %v6114 = vpack.c.b16 %v6030, %v6026
        %v6115 = vpack.c.b16 %v6031, %v6027
        %v6116 = vpack.c.b16 %v6032, %v6028
        %v6117 = vpack.c.b16 %v6033, %v6029
        %v6118 = vpack.c.b16 %v6038, %v6034
        %v6119 = vpack.c.b16 %v6039, %v6035
        %v6120 = vpack.c.b16 %v6040, %v6036
        %v6121 = vpack.c.b16 %v6041, %v6037
        %v6122 = vpack.c.b16 %v6046, %v6042
        %v6123 = vpack.c.b16 %v6047, %v6043
        %v6124 = vpack.c.b16 %v6048, %v6044
        %v6125 = vpack.c.b16 %v6049, %v6045
        %v6126 = vpack.c.b16 %v6054, %v6050
        %v6127 = vpack.c.b16 %v6055, %v6051
        %v6128 = vpack.c.b16 %v6056, %v6052
        %v6129 = vpack.c.b16 %v6057, %v6053
        %v6130 = vpack.c.b16 %v6062, %v6058
        %v6131 = vpack.c.b16 %v6063, %v6059
        %v6132 = vpack.c.b16 %v6064, %v6060
        %v6133 = vpack.c.b16 %v6065, %v6061
        %v6134 = vpack.c.b16 %v6070, %v6066
        %v6135 = vpack.c.b16 %v6071, %v6067
        %v6136 = vpack.c.b16 %v6072, %v6068
        %v6137 = vpack.c.b16 %v6073, %v6069
        %6202 = vmatprep.subr.bf16.mxu0 %v6103
        %6203 = vmatpush1.bf16.msra.mxu0 %v6102
        %6204 = vmatprep.subr.bf16.mxu0 %v6099
        %6205 = vmatpush1.bf16.msra.mxu0 %v6098
        %6206 = vmatprep.subr.bf16.mxu0 %v6095
        %6207 = vmatpush1.bf16.msra.mxu0 %v6094
        %6208 = vmatprep.subr.bf16.mxu0 %v6091
        %6209 = vmatpush1.bf16.msra.mxu0 %v6090
        %6210 = vmatprep.subr.bf16.mxu0 %v6087
        %6211 = vmatpush1.bf16.msra.mxu0 %v6086
        %6212 = vmatprep.subr.bf16.mxu0 %v6083
        %6213 = vmatpush1.bf16.msra.mxu0 %v6082
        %6214 = vmatprep.subr.bf16.mxu0 %v6079
        %6215 = vmatpush1.bf16.msra.mxu0 %v6078
        %6216 = vmatprep.subr.bf16.mxu0 %v6075
        %6217 = vmatpush1.bf16.msra.mxu0 %v6074
        %6218 = vmatprep.subr.bf16.mxu0 %v6135
        %6219 = vmatpush2.bf16.msra.mxu0 %v6134
        %6220 = vmatprep.subr.bf16.mxu0 %v6131
        %6221 = vmatpush2.bf16.msra.mxu0 %v6130
        %6222 = vmatprep.subr.bf16.mxu0 %v6127
        %6223 = vmatpush2.bf16.msra.mxu0 %v6126
        %6224 = vmatprep.subr.bf16.mxu0 %v6123
        %6225 = vmatpush2.bf16.msra.mxu0 %v6122
        %6226 = vmatprep.subr.bf16.mxu0 %v6119
        %6227 = vmatpush2.bf16.msra.mxu0 %v6118
        %6228 = vmatprep.subr.bf16.mxu0 %v6115
        %6229 = vmatpush2.bf16.msra.mxu0 %v6114
        %6230 = vmatprep.subr.bf16.mxu0 %v6111
        %6231 = vmatpush2.bf16.msra.mxu0 %v6110
        %6232 = vmatprep.subr.bf16.mxu0 %v6107
        %6233 = vmatpush2.bf16.msra.mxu0 %v6106
        %6234 = vmatprep.mubr.bf16.mxu0 %v5793
        %6235 = vmatmul.mubr.bf16.gmra.mxu0 %v5792
        %v6236 = vpop.f32.mrf.mxu0
        %v6237 = vadd.f32 %v5865, %v6236
        %v6238 = vpop.f32.mrf.mxu0
        %v6239 = vadd.f32 %v5869, %v6238
        %v6240 = vpop.f32.mrf.mxu0
        %v6241 = vadd.f32 %v5865, %v6240
        %v6242 = vpop.f32.mrf.mxu0
        %v6243 = vadd.f32 %v5869, %v6242
        %6244 = vdwg.mxu0
        %6245 = vmatprep.subr.bf16.mxu0 %v6105
        %6246 = vmatpush1.bf16.msra.mxu0 %v6104
        %6247 = vmatprep.subr.bf16.mxu0 %v6101
        %6248 = vmatpush1.bf16.msra.mxu0 %v6100
        %6249 = vmatprep.subr.bf16.mxu0 %v6097
        %6250 = vmatpush1.bf16.msra.mxu0 %v6096
        %6251 = vmatprep.subr.bf16.mxu0 %v6093
        %6252 = vmatpush1.bf16.msra.mxu0 %v6092
        %6253 = vmatprep.subr.bf16.mxu0 %v6089
        %6254 = vmatpush1.bf16.msra.mxu0 %v6088
        %6255 = vmatprep.subr.bf16.mxu0 %v6085
        %6256 = vmatpush1.bf16.msra.mxu0 %v6084
        %6257 = vmatprep.subr.bf16.mxu0 %v6081
        %6258 = vmatpush1.bf16.msra.mxu0 %v6080
        %6259 = vmatprep.subr.bf16.mxu0 %v6077
        %6260 = vmatpush1.bf16.msra.mxu0 %v6076
        %6261 = vmatprep.subr.bf16.mxu0 %v6137
        %6262 = vmatpush2.bf16.msra.mxu0 %v6136
        %6263 = vmatprep.subr.bf16.mxu0 %v6133
        %6264 = vmatpush2.bf16.msra.mxu0 %v6132
        %6265 = vmatprep.subr.bf16.mxu0 %v6129
        %6266 = vmatpush2.bf16.msra.mxu0 %v6128
        %6267 = vmatprep.subr.bf16.mxu0 %v6125
        %6268 = vmatpush2.bf16.msra.mxu0 %v6124
        %6269 = vmatprep.subr.bf16.mxu0 %v6121
        %6270 = vmatpush2.bf16.msra.mxu0 %v6120
        %6271 = vmatprep.subr.bf16.mxu0 %v6117
        %6272 = vmatpush2.bf16.msra.mxu0 %v6116
        %6273 = vmatprep.subr.bf16.mxu0 %v6113
        %6274 = vmatpush2.bf16.msra.mxu0 %v6112
        %6275 = vmatprep.subr.bf16.mxu0 %v6109
        %6276 = vmatpush2.bf16.msra.mxu0 %v6108
        %6277 = vmatprep.mubr.bf16.mxu0 %v5793
        %6278 = vmatmul.mubr.bf16.gmra.mxu0 %v5792
        %v6279 = vpop.f32.mrf.mxu0
        %v6280 = vadd.f32 %v5873, %v6279
        %v6281 = vpop.f32.mrf.mxu0
        %v6282 = vadd.f32 %v5877, %v6281
        %v6283 = vpop.f32.mrf.mxu0
        %v6284 = vadd.f32 %v5873, %v6283
        %v6285 = vpop.f32.mrf.mxu0
        %v6286 = vadd.f32 %v5877, %v6285
        %6287 = vdwg.mxu0
        %v6288 = vmax.f32 %v6237, 0.0
        %v6289 = vmax.f32 %v6239, 0.0
        %v6290 = vmax.f32 %v6280, 0.0
        %v6291 = vmax.f32 %v6282, 0.0
        %v6292 = vmax.f32 %v6241, 0.0
        %v6293 = vmax.f32 %v6243, 0.0
        %v6294 = vmax.f32 %v6284, 0.0
        %v6295 = vmax.f32 %v6286, 0.0
        %v6296 = vpack.c.bf16 %v6292, %v6288
        %v6297 = vpack.c.bf16 %v6293, %v6289
        %v6298 = vpack.c.bf16 %v6294, %v6290
        %v6299 = vpack.c.bf16 %v6295, %v6291
        %s6300 = scalar_lea.vmem [#allocation7], 512
        %v6301 = vld [vmem:[%s6300] sm:$0xff]
        %v6302 = vld [vmem:[%s6300 + $0x8] sm:$0xff]
        %v6303 = vld [vmem:[%s6300 + $0x10] sm:$0xff]
        %v6304 = vld [vmem:[%s6300 + $0x18] sm:$0xff]
        %v6305 = vld [vmem:[%s6300 + $0x20] sm:$0xff]
        %v6306 = vld [vmem:[%s6300 + $0x28] sm:$0xff]
        %v6307 = vld [vmem:[%s6300 + $0x30] sm:$0xff]
        %v6308 = vld [vmem:[%s6300 + $0x38] sm:$0xff]
        %v6309 = vld [vmem:[%s6300 + $0x40] sm:$0xff]
        %v6310 = vld [vmem:[%s6300 + $0x48] sm:$0xff]
        %v6311 = vld [vmem:[%s6300 + $0x50] sm:$0xff]
        %v6312 = vld [vmem:[%s6300 + $0x58] sm:$0xff]
        %v6313 = vld [vmem:[%s6300 + $0x60] sm:$0xff]
        %v6314 = vld [vmem:[%s6300 + $0x68] sm:$0xff]
        %v6315 = vld [vmem:[%s6300 + $0x70] sm:$0xff]
        %v6316 = vld [vmem:[%s6300 + $0x78] sm:$0xff]
        %v6317 = vld [vmem:[%s6300 + $0x80] sm:$0xff]
        %v6318 = vld [vmem:[%s6300 + $0x88] sm:$0xff]
        %v6319 = vld [vmem:[%s6300 + $0x90] sm:$0xff]
        %v6320 = vld [vmem:[%s6300 + $0x98] sm:$0xff]
        %v6321 = vld [vmem:[%s6300 + $0xa0] sm:$0xff]
        %v6322 = vld [vmem:[%s6300 + $0xa8] sm:$0xff]
        %v6323 = vld [vmem:[%s6300 + $0xb0] sm:$0xff]
        %v6324 = vld [vmem:[%s6300 + $0xb8] sm:$0xff]
        %v6325 = vld [vmem:[%s6300 + $0xc0] sm:$0xff]
        %v6326 = vld [vmem:[%s6300 + $0xc8] sm:$0xff]
        %v6327 = vld [vmem:[%s6300 + $0xd0] sm:$0xff]
        %v6328 = vld [vmem:[%s6300 + $0xd8] sm:$0xff]
        %v6329 = vld [vmem:[%s6300 + $0xe0] sm:$0xff]
        %v6330 = vld [vmem:[%s6300 + $0xe8] sm:$0xff]
        %v6331 = vld [vmem:[%s6300 + $0xf0] sm:$0xff]
        %v6332 = vld [vmem:[%s6300 + $0xf8] sm:$0xff]
        %v6333 = vld [vmem:[%s6300 + $0x100] sm:$0xff]
        %v6334 = vld [vmem:[%s6300 + $0x108] sm:$0xff]
        %v6335 = vld [vmem:[%s6300 + $0x110] sm:$0xff]
        %v6336 = vld [vmem:[%s6300 + $0x118] sm:$0xff]
        %v6337 = vld [vmem:[%s6300 + $0x120] sm:$0xff]
        %v6338 = vld [vmem:[%s6300 + $0x128] sm:$0xff]
        %v6339 = vld [vmem:[%s6300 + $0x130] sm:$0xff]
        %v6340 = vld [vmem:[%s6300 + $0x138] sm:$0xff]
        %v6341 = vld [vmem:[%s6300 + $0x140] sm:$0xff]
        %v6342 = vld [vmem:[%s6300 + $0x148] sm:$0xff]
        %v6343 = vld [vmem:[%s6300 + $0x150] sm:$0xff]
        %v6344 = vld [vmem:[%s6300 + $0x158] sm:$0xff]
        %v6345 = vld [vmem:[%s6300 + $0x160] sm:$0xff]
        %v6346 = vld [vmem:[%s6300 + $0x168] sm:$0xff]
        %v6347 = vld [vmem:[%s6300 + $0x170] sm:$0xff]
        %v6348 = vld [vmem:[%s6300 + $0x178] sm:$0xff]
        %v6349 = vld [vmem:[%s6300 + $0x180] sm:$0xff]
        %v6350 = vld [vmem:[%s6300 + $0x188] sm:$0xff]
        %v6351 = vld [vmem:[%s6300 + $0x190] sm:$0xff]
        %v6352 = vld [vmem:[%s6300 + $0x198] sm:$0xff]
        %v6353 = vld [vmem:[%s6300 + $0x1a0] sm:$0xff]
        %v6354 = vld [vmem:[%s6300 + $0x1a8] sm:$0xff]
        %v6355 = vld [vmem:[%s6300 + $0x1b0] sm:$0xff]
        %v6356 = vld [vmem:[%s6300 + $0x1b8] sm:$0xff]
        %v6357 = vld [vmem:[%s6300 + $0x1c0] sm:$0xff]
        %v6358 = vld [vmem:[%s6300 + $0x1c8] sm:$0xff]
        %v6359 = vld [vmem:[%s6300 + $0x1d0] sm:$0xff]
        %v6360 = vld [vmem:[%s6300 + $0x1d8] sm:$0xff]
        %v6361 = vld [vmem:[%s6300 + $0x1e0] sm:$0xff]
        %v6362 = vld [vmem:[%s6300 + $0x1e8] sm:$0xff]
        %v6363 = vld [vmem:[%s6300 + $0x1f0] sm:$0xff]
        %v6364 = vld [vmem:[%s6300 + $0x1f8] sm:$0xff]
        %s6365 = scalar_lea.vmem %s11, 2
        %v6366 = vld [vmem:[%s6365] sm:$0x3]
        %v6368 = vlaneseq
        %v6369 = vshrl.u32 %v6368, 7
        %v6370 = vsub.s32 0, %v6369
        %v6371 = vrot.slane %v6366, %v6370
        %v6372 = vlaneseq
        %v6373 = vshrl.u32 %v6372, 7
        %v6374 = vsub.s32 1, %v6373
        %v6375 = vrot.slane %v6366, %v6374
        %v6442 = vunpack.c.l.b16 %v6301
        %v6443 = vunpack.c.h.b16 %v6301
        %v6444 = vunpack.c.l.b16 %v6302
        %v6445 = vunpack.c.h.b16 %v6302
        %v6446 = vunpack.c.l.b16 %v6303
        %v6447 = vunpack.c.h.b16 %v6303
        %v6448 = vunpack.c.l.b16 %v6304
        %v6449 = vunpack.c.h.b16 %v6304
        %v6450 = vunpack.c.l.b16 %v6305
        %v6451 = vunpack.c.h.b16 %v6305
        %v6452 = vunpack.c.l.b16 %v6306
        %v6453 = vunpack.c.h.b16 %v6306
        %v6454 = vunpack.c.l.b16 %v6307
        %v6455 = vunpack.c.h.b16 %v6307
        %v6456 = vunpack.c.l.b16 %v6308
        %v6457 = vunpack.c.h.b16 %v6308
        %v6458 = vunpack.c.l.b16 %v6309
        %v6459 = vunpack.c.h.b16 %v6309
        %v6460 = vunpack.c.l.b16 %v6310
        %v6461 = vunpack.c.h.b16 %v6310
        %v6462 = vunpack.c.l.b16 %v6311
        %v6463 = vunpack.c.h.b16 %v6311
        %v6464 = vunpack.c.l.b16 %v6312
        %v6465 = vunpack.c.h.b16 %v6312
        %v6466 = vunpack.c.l.b16 %v6313
        %v6467 = vunpack.c.h.b16 %v6313
        %v6468 = vunpack.c.l.b16 %v6314
        %v6469 = vunpack.c.h.b16 %v6314
        %v6470 = vunpack.c.l.b16 %v6315
        %v6471 = vunpack.c.h.b16 %v6315
        %v6472 = vunpack.c.l.b16 %v6316
        %v6473 = vunpack.c.h.b16 %v6316
        %v6474 = vunpack.c.l.b16 %v6317
        %v6475 = vunpack.c.h.b16 %v6317
        %v6476 = vunpack.c.l.b16 %v6318
        %v6477 = vunpack.c.h.b16 %v6318
        %v6478 = vunpack.c.l.b16 %v6319
        %v6479 = vunpack.c.h.b16 %v6319
        %v6480 = vunpack.c.l.b16 %v6320
        %v6481 = vunpack.c.h.b16 %v6320
        %v6482 = vunpack.c.l.b16 %v6321
        %v6483 = vunpack.c.h.b16 %v6321
        %v6484 = vunpack.c.l.b16 %v6322
        %v6485 = vunpack.c.h.b16 %v6322
        %v6486 = vunpack.c.l.b16 %v6323
        %v6487 = vunpack.c.h.b16 %v6323
        %v6488 = vunpack.c.l.b16 %v6324
        %v6489 = vunpack.c.h.b16 %v6324
        %v6490 = vunpack.c.l.b16 %v6325
        %v6491 = vunpack.c.h.b16 %v6325
        %v6492 = vunpack.c.l.b16 %v6326
        %v6493 = vunpack.c.h.b16 %v6326
        %v6494 = vunpack.c.l.b16 %v6327
        %v6495 = vunpack.c.h.b16 %v6327
        %v6496 = vunpack.c.l.b16 %v6328
        %v6497 = vunpack.c.h.b16 %v6328
        %v6498 = vunpack.c.l.b16 %v6329
        %v6499 = vunpack.c.h.b16 %v6329
        %v6500 = vunpack.c.l.b16 %v6330
        %v6501 = vunpack.c.h.b16 %v6330
        %v6502 = vunpack.c.l.b16 %v6331
        %v6503 = vunpack.c.h.b16 %v6331
        %v6504 = vunpack.c.l.b16 %v6332
        %v6505 = vunpack.c.h.b16 %v6332
        %v6506 = vunpack.c.l.b16 %v6333
        %v6507 = vunpack.c.h.b16 %v6333
        %v6508 = vunpack.c.l.b16 %v6334
        %v6509 = vunpack.c.h.b16 %v6334
        %v6510 = vunpack.c.l.b16 %v6335
        %v6511 = vunpack.c.h.b16 %v6335
        %v6512 = vunpack.c.l.b16 %v6336
        %v6513 = vunpack.c.h.b16 %v6336
        %v6514 = vunpack.c.l.b16 %v6337
        %v6515 = vunpack.c.h.b16 %v6337
        %v6516 = vunpack.c.l.b16 %v6338
        %v6517 = vunpack.c.h.b16 %v6338
        %v6518 = vunpack.c.l.b16 %v6339
        %v6519 = vunpack.c.h.b16 %v6339
        %v6520 = vunpack.c.l.b16 %v6340
        %v6521 = vunpack.c.h.b16 %v6340
        %v6522 = vunpack.c.l.b16 %v6341
        %v6523 = vunpack.c.h.b16 %v6341
        %v6524 = vunpack.c.l.b16 %v6342
        %v6525 = vunpack.c.h.b16 %v6342
        %v6526 = vunpack.c.l.b16 %v6343
        %v6527 = vunpack.c.h.b16 %v6343
        %v6528 = vunpack.c.l.b16 %v6344
        %v6529 = vunpack.c.h.b16 %v6344
        %v6530 = vunpack.c.l.b16 %v6345
        %v6531 = vunpack.c.h.b16 %v6345
        %v6532 = vunpack.c.l.b16 %v6346
        %v6533 = vunpack.c.h.b16 %v6346
        %v6534 = vunpack.c.l.b16 %v6347
        %v6535 = vunpack.c.h.b16 %v6347
        %v6536 = vunpack.c.l.b16 %v6348
        %v6537 = vunpack.c.h.b16 %v6348
        %v6538 = vunpack.c.l.b16 %v6349
        %v6539 = vunpack.c.h.b16 %v6349
        %v6540 = vunpack.c.l.b16 %v6350
        %v6541 = vunpack.c.h.b16 %v6350
        %v6542 = vunpack.c.l.b16 %v6351
        %v6543 = vunpack.c.h.b16 %v6351
        %v6544 = vunpack.c.l.b16 %v6352
        %v6545 = vunpack.c.h.b16 %v6352
        %v6546 = vunpack.c.l.b16 %v6353
        %v6547 = vunpack.c.h.b16 %v6353
        %v6548 = vunpack.c.l.b16 %v6354
        %v6549 = vunpack.c.h.b16 %v6354
        %v6550 = vunpack.c.l.b16 %v6355
        %v6551 = vunpack.c.h.b16 %v6355
        %v6552 = vunpack.c.l.b16 %v6356
        %v6553 = vunpack.c.h.b16 %v6356
        %v6554 = vunpack.c.l.b16 %v6357
        %v6555 = vunpack.c.h.b16 %v6357
        %v6556 = vunpack.c.l.b16 %v6358
        %v6557 = vunpack.c.h.b16 %v6358
        %v6558 = vunpack.c.l.b16 %v6359
        %v6559 = vunpack.c.h.b16 %v6359
        %v6560 = vunpack.c.l.b16 %v6360
        %v6561 = vunpack.c.h.b16 %v6360
        %v6562 = vunpack.c.l.b16 %v6361
        %v6563 = vunpack.c.h.b16 %v6361
        %v6564 = vunpack.c.l.b16 %v6362
        %v6565 = vunpack.c.h.b16 %v6362
        %v6566 = vunpack.c.l.b16 %v6363
        %v6567 = vunpack.c.h.b16 %v6363
        %v6568 = vunpack.c.l.b16 %v6364
        %v6569 = vunpack.c.h.b16 %v6364
        %v6570 = vpack.c.b16 %v6444, %v6442
        %v6571 = vpack.c.b16 %v6445, %v6443
        %v6572 = vpack.c.b16 %v6448, %v6446
        %v6573 = vpack.c.b16 %v6449, %v6447
        %v6574 = vpack.c.b16 %v6452, %v6450
        %v6575 = vpack.c.b16 %v6453, %v6451
        %v6576 = vpack.c.b16 %v6456, %v6454
        %v6577 = vpack.c.b16 %v6457, %v6455
        %v6578 = vpack.c.b16 %v6460, %v6458
        %v6579 = vpack.c.b16 %v6461, %v6459
        %v6580 = vpack.c.b16 %v6464, %v6462
        %v6581 = vpack.c.b16 %v6465, %v6463
        %v6582 = vpack.c.b16 %v6468, %v6466
        %v6583 = vpack.c.b16 %v6469, %v6467
        %v6584 = vpack.c.b16 %v6472, %v6470
        %v6585 = vpack.c.b16 %v6473, %v6471
        %v6586 = vpack.c.b16 %v6476, %v6474
        %v6587 = vpack.c.b16 %v6477, %v6475
        %v6588 = vpack.c.b16 %v6480, %v6478
        %v6589 = vpack.c.b16 %v6481, %v6479
        %v6590 = vpack.c.b16 %v6484, %v6482
        %v6591 = vpack.c.b16 %v6485, %v6483
        %v6592 = vpack.c.b16 %v6488, %v6486
        %v6593 = vpack.c.b16 %v6489, %v6487
        %v6594 = vpack.c.b16 %v6492, %v6490
        %v6595 = vpack.c.b16 %v6493, %v6491
        %v6596 = vpack.c.b16 %v6496, %v6494
        %v6597 = vpack.c.b16 %v6497, %v6495
        %v6598 = vpack.c.b16 %v6500, %v6498
        %v6599 = vpack.c.b16 %v6501, %v6499
        %v6600 = vpack.c.b16 %v6504, %v6502
        %v6601 = vpack.c.b16 %v6505, %v6503
        %v6602 = vpack.c.b16 %v6508, %v6506
        %v6603 = vpack.c.b16 %v6509, %v6507
        %v6604 = vpack.c.b16 %v6512, %v6510
        %v6605 = vpack.c.b16 %v6513, %v6511
        %v6606 = vpack.c.b16 %v6516, %v6514
        %v6607 = vpack.c.b16 %v6517, %v6515
        %v6608 = vpack.c.b16 %v6520, %v6518
        %v6609 = vpack.c.b16 %v6521, %v6519
        %v6610 = vpack.c.b16 %v6524, %v6522
        %v6611 = vpack.c.b16 %v6525, %v6523
        %v6612 = vpack.c.b16 %v6528, %v6526
        %v6613 = vpack.c.b16 %v6529, %v6527
        %v6614 = vpack.c.b16 %v6532, %v6530
        %v6615 = vpack.c.b16 %v6533, %v6531
        %v6616 = vpack.c.b16 %v6536, %v6534
        %v6617 = vpack.c.b16 %v6537, %v6535
        %v6618 = vpack.c.b16 %v6540, %v6538
        %v6619 = vpack.c.b16 %v6541, %v6539
        %v6620 = vpack.c.b16 %v6544, %v6542
        %v6621 = vpack.c.b16 %v6545, %v6543
        %v6622 = vpack.c.b16 %v6548, %v6546
        %v6623 = vpack.c.b16 %v6549, %v6547
        %v6624 = vpack.c.b16 %v6552, %v6550
        %v6625 = vpack.c.b16 %v6553, %v6551
        %v6626 = vpack.c.b16 %v6556, %v6554
        %v6627 = vpack.c.b16 %v6557, %v6555
        %v6628 = vpack.c.b16 %v6560, %v6558
        %v6629 = vpack.c.b16 %v6561, %v6559
        %v6630 = vpack.c.b16 %v6564, %v6562
        %v6631 = vpack.c.b16 %v6565, %v6563
        %v6632 = vpack.c.b16 %v6568, %v6566
        %v6633 = vpack.c.b16 %v6569, %v6567
        %6698 = vmatprep.subr.bf16.mxu0 %v6585
        %6699 = vmatpush1.bf16.msra.mxu0 %v6584
        %6700 = vmatprep.subr.bf16.mxu0 %v6583
        %6701 = vmatpush1.bf16.msra.mxu0 %v6582
        %6702 = vmatprep.subr.bf16.mxu0 %v6581
        %6703 = vmatpush1.bf16.msra.mxu0 %v6580
        %6704 = vmatprep.subr.bf16.mxu0 %v6579
        %6705 = vmatpush1.bf16.msra.mxu0 %v6578
        %6706 = vmatprep.subr.bf16.mxu0 %v6577
        %6707 = vmatpush1.bf16.msra.mxu0 %v6576
        %6708 = vmatprep.subr.bf16.mxu0 %v6575
        %6709 = vmatpush1.bf16.msra.mxu0 %v6574
        %6710 = vmatprep.subr.bf16.mxu0 %v6573
        %6711 = vmatpush1.bf16.msra.mxu0 %v6572
        %6712 = vmatprep.subr.bf16.mxu0 %v6571
        %6713 = vmatpush1.bf16.msra.mxu0 %v6570
        %6714 = vmatprep.subr.bf16.mxu0 %v6601
        %6715 = vmatpush2.bf16.msra.mxu0 %v6600
        %6716 = vmatprep.subr.bf16.mxu0 %v6599
        %6717 = vmatpush2.bf16.msra.mxu0 %v6598
        %6718 = vmatprep.subr.bf16.mxu0 %v6597
        %6719 = vmatpush2.bf16.msra.mxu0 %v6596
        %6720 = vmatprep.subr.bf16.mxu0 %v6595
        %6721 = vmatpush2.bf16.msra.mxu0 %v6594
        %6722 = vmatprep.subr.bf16.mxu0 %v6593
        %6723 = vmatpush2.bf16.msra.mxu0 %v6592
        %6724 = vmatprep.subr.bf16.mxu0 %v6591
        %6725 = vmatpush2.bf16.msra.mxu0 %v6590
        %6726 = vmatprep.subr.bf16.mxu0 %v6589
        %6727 = vmatpush2.bf16.msra.mxu0 %v6588
        %6728 = vmatprep.subr.bf16.mxu0 %v6587
        %6729 = vmatpush2.bf16.msra.mxu0 %v6586
        %6730 = vmatprep.mubr.bf16.mxu0 %v6297
        %6731 = vmatmul.mubr.bf16.gmra.mxu0 %v6296
        %v6732 = vpop.f32.mrf.mxu0
        %v6733 = vadd.f32 %v6371, %v6732
        %v6734 = vpop.f32.mrf.mxu0
        %v6735 = vadd.f32 %v6375, %v6734
        %v6736 = vpop.f32.mrf.mxu0
        %v6737 = vpop.f32.mrf.mxu0
        %6738 = vdwg.mxu0
        %6739 = vmatprep.subr.bf16.mxu0 %v6617
        %6740 = vmatpush1.bf16.msra.mxu0 %v6616
        %6741 = vmatprep.subr.bf16.mxu0 %v6615
        %6742 = vmatpush1.bf16.msra.mxu0 %v6614
        %6743 = vmatprep.subr.bf16.mxu0 %v6613
        %6744 = vmatpush1.bf16.msra.mxu0 %v6612
        %6745 = vmatprep.subr.bf16.mxu0 %v6611
        %6746 = vmatpush1.bf16.msra.mxu0 %v6610
        %6747 = vmatprep.subr.bf16.mxu0 %v6609
        %6748 = vmatpush1.bf16.msra.mxu0 %v6608
        %6749 = vmatprep.subr.bf16.mxu0 %v6607
        %6750 = vmatpush1.bf16.msra.mxu0 %v6606
        %6751 = vmatprep.subr.bf16.mxu0 %v6605
        %6752 = vmatpush1.bf16.msra.mxu0 %v6604
        %6753 = vmatprep.subr.bf16.mxu0 %v6603
        %6754 = vmatpush1.bf16.msra.mxu0 %v6602
        %6755 = vmatprep.subr.bf16.mxu0 %v6633
        %6756 = vmatpush2.bf16.msra.mxu0 %v6632
        %6757 = vmatprep.subr.bf16.mxu0 %v6631
        %6758 = vmatpush2.bf16.msra.mxu0 %v6630
        %6759 = vmatprep.subr.bf16.mxu0 %v6629
        %6760 = vmatpush2.bf16.msra.mxu0 %v6628
        %6761 = vmatprep.subr.bf16.mxu0 %v6627
        %6762 = vmatpush2.bf16.msra.mxu0 %v6626
        %6763 = vmatprep.subr.bf16.mxu0 %v6625
        %6764 = vmatpush2.bf16.msra.mxu0 %v6624
        %6765 = vmatprep.subr.bf16.mxu0 %v6623
        %6766 = vmatpush2.bf16.msra.mxu0 %v6622
        %6767 = vmatprep.subr.bf16.mxu0 %v6621
        %6768 = vmatpush2.bf16.msra.mxu0 %v6620
        %6769 = vmatprep.subr.bf16.mxu0 %v6619
        %6770 = vmatpush2.bf16.msra.mxu0 %v6618
        %6771 = vmatprep.mubr.bf16.mxu0 %v6299
        %6772 = vmatmul.mubr.bf16.gmra.mxu0 %v6298
        %v6773 = vpop.f32.mrf.mxu0
        %v6774 = vadd.f32 %v6733, %v6773
        %v6775 = vpop.f32.mrf.mxu0
        %v6776 = vadd.f32 %v6735, %v6775
        %v6777 = vpop.f32.mrf.mxu0
        %v6778 = vpop.f32.mrf.mxu0
        %6779 = vdwg.mxu0
        %v6780 = vadd.f32 %v6774, %v5788
        %v6781 = vadd.f32 %v6776, %v5789
        %s6782 = scalar_lea.vmem %s12, 2
        %v6783 = vld [vmem:[%s6782] sm:$0x3]
        %s6784 = scalar_lea.vmem %s13, 2
        %v6785 = vld [vmem:[%s6784] sm:$0x3]
        %v6786 = vadd.f32 %v6780, %v6781
        %6787 = vadd.xlane.f32.xlu0 %v6786
        %v6788 = vpop.xlane.xlu0 %6787
        %v6789 = vmul.f32 %v6788, %v2579
        %v6790 = vsub.f32 %v6780, %v6789
        %v6791 = vsub.f32 %v6781, %v6789
        %v6792 = vmul.f32 %v6790, %v6790
        %v6793 = vmul.f32 %v6791, %v6791
        %v6794 = vadd.f32 %v6792, %v6793
        %6795 = vadd.xlane.f32.xlu0 %v6794
        %v6796 = vpop.xlane.xlu0 %6795
        %v6797 = vmul.f32 %v6796, %v2579
        %v6798 = vadd.f32 %v6797, 1e-05
        %v6799 = vrsqrt.pop %v6798
        %v6800 = vmul.f32 %v6790, %v6799
        %v6801 = vmul.f32 %v6791, %v6799
        %v6803 = vlaneseq
        %v6804 = vshrl.u32 %v6803, 7
        %v6805 = vsub.s32 0, %v6804
        %v6806 = vrot.slane %v6783, %v6805
        %v6807 = vlaneseq
        %v6808 = vshrl.u32 %v6807, 7
        %v6809 = vsub.s32 1, %v6808
        %v6810 = vrot.slane %v6783, %v6809
        %v6813 = vmul.f32 %v6800, %v6806
        %v6814 = vmul.f32 %v6801, %v6810
        %v6816 = vlaneseq
        %v6817 = vshrl.u32 %v6816, 7
        %v6818 = vsub.s32 0, %v6817
        %v6819 = vrot.slane %v6785, %v6818
        %v6820 = vlaneseq
        %v6821 = vshrl.u32 %v6820, 7
        %v6822 = vsub.s32 1, %v6821
        %v6823 = vrot.slane %v6785, %v6822
        %v6826 = vadd.f32 %v6813, %v6819
        %v6827 = vadd.f32 %v6814, %v6823
        %v6830 = vcombine.low %v6826, %v6827
        %v6832 = vunpack.c.l.s4 1966171168
        %v6833 = vunpack.c.0.s8 %v6832
        %v6834 = vlaneseq
        %v6835 = vshrl.u32 %v6834, 7
        %v6836 = vsub.s32 %v6833, %v6835
        %v6837 = vrot.slane %v6830, %v6836
        %v6839 = vunpack.c.l.s4 1966171168
        %v6840 = vunpack.c.0.s8 %v6839
        %v6841 = vlaneseq
        %v6842 = vshrl.u32 %v6841, 7
        %v6843 = vsub.s32 %v6840, %v6842
        %v6844 = vrot.slane %v6837, %v6843
        %v6846 = vlaneseq
        %vm6847 = vcmp.ge.s32.totalorder %v6846, 0
        %vm6848 = vcmp.lt.s32.totalorder %v6846, 256
        %vm6849 = vmand %vm6847, %vm6848
        %6850 = vst.msk [vmem:[%s523] sm:$0x3] %vm6849, %v6844
        %p6851 = scmp.lt.s32.totalorder %s27, 1
        %s6852 = scalar_select %p6851, %s27, 1
        %s6853 = smul.addr %s6852, 2
        %s6854 = scalar_lea.vmem %s14, %s6853
        // Predicated region
        $region89: #{text_encoder_forward.1} parent=75 // pred_check
          %p6855 = pneg %p349
        $region90: #{text_encoder_forward.1} parent=75 // pred_check_branch
          %6857 = sbr.rel (%p6855) target = $region92
        $region91: #{text_encoder_forward.1} parent=75 // pred_region
          _
        $region92: #{text_encoder_forward.1} parent=75 // pred_fallthru
          _
      $region76: #{text_encoder_forward.1} parent=5 // pred_fallthru
        _
      %p6858 = scmp.le.s32.totalorder 2, %s22
      // Predicated region
      $region93: #{text_encoder_forward.1} parent=5 // pred_check
        %p6859 = pneg %p6858
      $region94: #{text_encoder_forward.1} parent=5 // pred_check_branch
        %6861 = sbr.rel (%p6859) target = $region96
      $region95: #{text_encoder_forward.1} parent=5 // pred_region
        %s6862 = ssub.s32 %s22, 2
        // Predicated region
        $region97: #{text_encoder_forward.1} parent=95 // pred_check
          %p6863 = pneg %p355
        $region98: #{text_encoder_forward.1} parent=95 // pred_check_branch
          %6865 = sbr.rel (%p6863) target = $region100
        $region99: #{text_encoder_forward.1} parent=95 // pred_region
          %p6866 = scmp.lt.s32.totalorder %s28, 1
          %s6867 = scalar_select %p6866, %s28, 1
          %s6868 = smul.addr %s6867, 2
          %s6869 = scalar_lea.vmem %s14, %s6868
        $region100: #{text_encoder_forward.1} parent=95 // pred_fallthru
          _
      $region96: #{text_encoder_forward.1} parent=5 // pred_fallthru
        _
    $region6: #{text_encoder_forward.1} parent=1 // loop_footer
      %s26 = sadd.s32 1, %s22
    $region7: #{text_encoder_forward.1} parent=1 // loop_footer_branch
      %21 = sbr.rel target = $region3
    $region8: #{text_encoder_forward.1} parent=1 // loop_exit
      _
    %6870 = vsyncpa [#allocation4], 1
    %s6871 = scalar_lea.sflag [#allocation4], 1
    %6872 = vsyncpa %s6871, 1
    %6873 = vsyncpa [#allocation6], 1

</llo_original>
